<compile_context>
chip_gen: v5e
topology: v5e:2x2
jax: 0.10.0
libtpu: 0.0.40
codegen_flags: <defaults>
</compile_context>

<pallas_src>
import numpy as np

import jax
import jax.numpy as jnp
from jax import lax
from jax.experimental import pallas as pl
from jax.experimental.pallas import tpu as pltpu

# ----------------------------------------------------------------------------
# Fixed geometry for the 28x28 MNIST-AE configuration of autoencoder_vgg1.
# Flattened padded widths (Wp) and tap-slice lengths L = (Ho-1)*s*Wp + (Wo-1)*s + 1.
# ----------------------------------------------------------------------------
WP1, L1 = 30, 13 * 2 * 30 + 13 * 2 + 1      # e1: 28x28 pad1 -> 30x30, out 14x14 (L1=807)
WP2, L2 = 16, 6 * 2 * 16 + 6 * 2 + 1        # e2: 14x14 pad1 -> 16x16, out 7x7  (L2=205)
WPD2, LD2 = 16, 13 * 16 + 13 + 1            # d2: 7x7 dil2+pad(1,2) -> 16x16, out 14x14 (222)
WPD3, LD3 = 30, 27 * 30 + 27 + 1            # d3: 14x14 dil2+pad(1,2) -> 30x30, out 28x28 (838)


# ----------------------------------------------------------------------------
# Pallas kernels
# ----------------------------------------------------------------------------
def _encoder_kernel(x_ref, w1_ref, b1_ref, s1_ref, w2_ref, b2_ref,
                    w3_ref, b3_ref, wd1_ref, bd1_ref, enc_ref, h1_ref):
    """Per-sample e1 -> e2 -> e3 (encode) -> d1, all resident in VMEM."""
    f32 = jnp.float32
    x = x_ref[...]                                            # (3, 900) padded 30x30, flat

    # ---- e1: Conv2d(3,16,3,s=2,p=1): 28x28 -> 14x14 --------------------------------
    y1 = jnp.zeros((16, L1), f32)
    for kh in range(3):
        for kw in range(3):
            t = kh * 3 + kw
            w_tap = w1_ref[:, t * 3:(t + 1) * 3]              # (16, 3)
            o = kh * WP1 + kw
            y1 = y1 + jnp.dot(w_tap, x[:, o:o + L1], preferred_element_type=f32)
    a1 = jnp.maximum(y1 + b1_ref[...], 0.0)                   # (16, 807); pixel(r,c)@col r*60+2c

    # relayout valid e1 outputs into the zero-padded 16x16 e2 input (selection matmul)
    x2 = jnp.dot(a1, s1_ref[...], preferred_element_type=f32)  # (16, 256)

    # ---- e2: Conv2d(16,32,3,s=2,p=1): 14x14 -> 7x7 ----------------------------------
    y2 = jnp.zeros((32, L2), f32)
    for kh in range(3):
        for kw in range(3):
            t = kh * 3 + kw
            w_tap = w2_ref[:, t * 16:(t + 1) * 16]            # (32, 16)
            o = kh * WP2 + kw
            y2 = y2 + jnp.dot(w_tap, x2[:, o:o + L2], preferred_element_type=f32)
    a2 = jnp.maximum(y2 + b2_ref[...], 0.0)                   # (32, 205); pixel(r,c)@col r*32+2c

    # ---- e3: Conv2d(32,64,7) on the 7x7 map == dense; no activation -----------------
    acc = jnp.zeros((32, 64), f32)
    for r in range(7):
        for c in range(7):
            col = r * (2 * WP2) + 2 * c
            acc = acc + a2[:, col:col + 1] * w3_ref[r * 7 + c]   # (32,1) * (32,64)
    enc = jnp.sum(acc, axis=0, keepdims=True) + b3_ref[...]      # (1, 64)
    enc_ref[...] = enc

    # ---- d1: ConvTranspose2d(64,32,7) on the 1x1 latent == dense; ReLU --------------
    h1 = jnp.dot(enc, wd1_ref[...], preferred_element_type=f32) + bd1_ref[...]
    h1_ref[...] = jnp.maximum(h1, 0.0)                        # (1, 1568), cols = (co, kh, kw)


def _decoder_kernel(h_ref, sd2_ref, w2_ref, b2_ref, sd3_ref, w3_ref, b3_ref, out_ref):
    """Per-sample d2 -> d3; dilation/padding done by in-VMEM selection matmuls."""
    f32 = jnp.float32
    h = h_ref[...]                                            # (32, 49) d1 output

    # place the 7x7 map into the zero-dilated + padded 16x16 d2 input
    xd2 = jnp.dot(h, sd2_ref[...], preferred_element_type=f32)   # (32, 256)

    # ---- d2: ConvTranspose2d(32,16,3,s=2,p=1,op=1): 7x7 -> 14x14 --------------------
    y2 = jnp.zeros((16, LD2), f32)
    for kh in range(3):
        for kw in range(3):
            t = kh * 3 + kw
            w_tap = w2_ref[:, t * 32:(t + 1) * 32]            # (16, 32)
            o = kh * WPD2 + kw
            y2 = y2 + jnp.dot(w_tap, xd2[:, o:o + LD2], preferred_element_type=f32)
    a2 = jnp.maximum(y2 + b2_ref[...], 0.0)                   # (16, 222); pixel(r,c)@col r*16+c

    # place the 14x14 map into the zero-dilated + padded 30x30 d3 input
    xd3 = jnp.dot(a2, sd3_ref[...], preferred_element_type=f32)  # (16, 900)

    # ---- d3: ConvTranspose2d(16,3,3,s=2,p=1,op=1): 14x14 -> 28x28, Tanh -------------
    y3 = jnp.zeros((3, LD3), f32)
    for kh in range(3):
        for kw in range(3):
            t = kh * 3 + kw
            w_tap = w3_ref[:, t * 16:(t + 1) * 16]            # (3, 16)
            o = kh * WPD3 + kw
            y3 = y3 + jnp.dot(w_tap, xd3[:, o:o + LD3], preferred_element_type=f32)
    a3 = jnp.tanh(y3 + b3_ref[...])                           # (3, 838); pixel(r,c)@col r*30+c

    # write the 28 valid rows (unit-stride lane slices) into the (3, 784) output block
    for r in range(28):
        out_ref[:, r * 28:(r + 1) * 28] = a3[:, r * WPD3:r * WPD3 + 28]


# ----------------------------------------------------------------------------
# Parameters (PyTorch layout) and one-time packing into the kernels' layouts
# ----------------------------------------------------------------------------
def init_params(seed=0):
    shapes = {
        "e1_w": (16, 3, 3, 3),  "e1_b": (16,),   # Conv2d(3, 16, 3, s=2, p=1)
        "e2_w": (32, 16, 3, 3), "e2_b": (32,),   # Conv2d(16, 32, 3, s=2, p=1)
        "e3_w": (64, 32, 7, 7), "e3_b": (64,),   # Conv2d(32, 64, 7)
        "d1_w": (64, 32, 7, 7), "d1_b": (32,),   # ConvTranspose2d(64, 32, 7)   (Cin,Cout,k,k)
        "d2_w": (32, 16, 3, 3), "d2_b": (16,),   # ConvTranspose2d(32, 16, 3, s=2, p=1, op=1)
        "d3_w": (16, 3, 3, 3),  "d3_b": (3,),    # ConvTranspose2d(16, 3, 3, s=2, p=1, op=1)
    }
    key = jax.random.PRNGKey(seed)
    params = {}
    for name in sorted(shapes):
        key, sub = jax.random.split(key)
        shp = shapes[name]
        fan = 1
        for d in shp[1:]:
            fan *= d
        bound = 1.0 / (fan ** 0.5) if fan > 0 else 0.1
        params[name] = jax.random.uniform(sub, shp, jnp.float32, -bound, bound)
    return params


def _sel_matrix(src_len, dst_len, pairs):
    """Constant 0/1 relayout matrix: column `dst` copies row `src`; other columns are 0."""
    s = np.zeros((src_len, dst_len), np.float32)
    for src, dst in pairs:
        s[src, dst] = 1.0
    return jnp.asarray(s)


def prepare_params(params):
    p = {}
    # encoder 3x3 convs: (Cout,Cin,3,3) -> (Cout, 9*Cin), col = (kh*3+kw)*Cin + ci
    for src, dst in (("e1", "1"), ("e2", "2")):
        w = params[src + "_w"]
        p["w" + dst] = jnp.transpose(w, (0, 2, 3, 1)).reshape(w.shape[0], -1)
        p["b" + dst] = params[src + "_b"].reshape(-1, 1)
    # e3 (7x7 valid conv) per spatial tap: (49, 32, 64) with [m, ci, o]
    w = params["e3_w"]                                        # (64, 32, 7, 7)
    p["we3"] = jnp.transpose(w, (2, 3, 1, 0)).reshape(49, 32, 64)
    p["be3"] = params["e3_b"].reshape(1, -1)
    # d1 (7x7 convT on a 1x1 map) as dense: (64, 1568), cols ordered (co, kh, kw)
    w = params["d1_w"]                                        # (64, 32, 7, 7)
    p["wd1"] = w.reshape(64, -1)
    p["bd1"] = jnp.repeat(params["d1_b"], 49).reshape(1, -1)
    # d2/d3 convT -> equivalent forward-conv taps: (Cout, 9*Cin), flipped kernel
    for name in ("d2", "d3"):
        w = params[name + "_w"]                               # (Cin, Cout, 3, 3)
        weq = jnp.transpose(w[:, :, ::-1, ::-1], (1, 2, 3, 0))  # (Cout, kh, kw, Cin)
        p["w" + name] = weq.reshape(w.shape[1], -1)
        p["b" + name] = params[name + "_b"].reshape(-1, 1)
    # constant relayout (selection) matrices
    p["s1"] = _sel_matrix(L1, WP2 * WP2,
                          [((r * 2 * WP1 + 2 * c), ((r + 1) * WP2 + (c + 1)))
                           for r in range(14) for c in range(14)])
    p["sd2"] = _sel_matrix(49, WPD2 * WPD2,
                           [((i * 7 + j), ((1 + 2 * i) * WPD2 + (1 + 2 * j)))
                            for i in range(7) for j in range(7)])
    p["sd3"] = _sel_matrix(LD2, WPD3 * WPD3,
                           [((r * WPD2 + c), ((1 + 2 * r) * WPD3 + (1 + 2 * c)))
                            for r in range(14) for c in range(14)])
    return p


# ----------------------------------------------------------------------------
# Forward pass: 2 pallas_calls + a handful of free reshapes
# ----------------------------------------------------------------------------
def autoencoder_vgg1_forward(x_nchw, pp):
    n = x_nchw.shape[0]
    f32 = jnp.float32
    xpad = jnp.pad(x_nchw, ((0, 0), (0, 0), (1, 1), (1, 1)))  # (N, 3, 30, 30)
    xflat = xpad.reshape(n, 3, WP1 * WP1)

    enc, h1 = pl.pallas_call(
        _encoder_kernel,
        out_shape=(jax.ShapeDtypeStruct((n, 1, 64), f32),
                   jax.ShapeDtypeStruct((n, 1, 1568), f32)),
        grid=(n,),
        in_specs=[
            pl.BlockSpec((None, 3, WP1 * WP1), lambda i: (i, 0, 0)),
            pl.BlockSpec((16, 27), lambda i: (0, 0)),
            pl.BlockSpec((16, 1), lambda i: (0, 0)),
            pl.BlockSpec((L1, WP2 * WP2), lambda i: (0, 0)),
            pl.BlockSpec((32, 144), lambda i: (0, 0)),
            pl.BlockSpec((32, 1), lambda i: (0, 0)),
            pl.BlockSpec((49, 32, 64), lambda i: (0, 0, 0)),
            pl.BlockSpec((1, 64), lambda i: (0, 0)),
            pl.BlockSpec((64, 1568), lambda i: (0, 0)),
            pl.BlockSpec((1, 1568), lambda i: (0, 0)),
        ],
        out_specs=(pl.BlockSpec((None, 1, 64), lambda i: (i, 0, 0)),
                   pl.BlockSpec((None, 1, 1568), lambda i: (i, 0, 0))),
        compiler_params=pltpu.CompilerParams(dimension_semantics=("parallel",)),
        cost_estimate=pl.CostEstimate(flops=20 * n * 1_000_000,
                                      transcendentals=0,
                                      bytes_accessed=2_000_000),
    )(xflat, pp["w1"], pp["b1"], pp["s1"], pp["w2"], pp["b2"],
      pp["we3"], pp["be3"], pp["wd1"], pp["bd1"])

    h1m = h1.reshape(n, 32, 49)                               # d1 output per sample

    dec = pl.pallas_call(
        _decoder_kernel,
        out_shape=jax.ShapeDtypeStruct((n, 3, 784), f32),
        grid=(n,),
        in_specs=[
            pl.BlockSpec((None, 32, 49), lambda i: (i, 0, 0)),
            pl.BlockSpec((49, WPD2 * WPD2), lambda i: (0, 0)),
            pl.BlockSpec((16, 288), lambda i: (0, 0)),
            pl.BlockSpec((16, 1), lambda i: (0, 0)),
            pl.BlockSpec((LD2, WPD3 * WPD3), lambda i: (0, 0)),
            pl.BlockSpec((3, 144), lambda i: (0, 0)),
            pl.BlockSpec((3, 1), lambda i: (0, 0)),
        ],
        out_specs=pl.BlockSpec((None, 3, 784), lambda i: (i, 0, 0)),
        compiler_params=pltpu.CompilerParams(dimension_semantics=("parallel",)),
        cost_estimate=pl.CostEstimate(flops=20 * n * 1_000_000,
                                      transcendentals=n * 3 * 28 * 28,
                                      bytes_accessed=1_000_000),
    )(h1m, pp["sd2"], pp["wd2"], pp["bd2"], pp["sd3"], pp["wd3"], pp["bd3"])

    encode = enc.reshape(n, 64, 1, 1)
    decode = dec.reshape(n, 3, 28, 28)
    return encode, decode


# ----------------------------------------------------------------------------
# Pure-JAX reference (lax convs), used only to validate the Pallas path
# ----------------------------------------------------------------------------
def _ref_forward(x_nchw, params):
    dn = ("NCHW", "OIHW", "NCHW")
    prec = lax.Precision.HIGHEST

    def conv(x, w, b, s, p):
        y = lax.conv_general_dilated(x, w, (s, s), [(p, p), (p, p)],
                                     dimension_numbers=dn, precision=prec)
        return y + b.reshape(1, -1, 1, 1)

    def convT(x, w, b, s, p, op):
        k = w.shape[2]
        w_eq = jnp.transpose(w[:, :, ::-1, ::-1], (1, 0, 2, 3))
        y = lax.conv_general_dilated(
            x, w_eq, (1, 1), [(k - 1 - p, k - 1 - p + op)] * 2,
            lhs_dilation=(s, s), dimension_numbers=dn, precision=prec)
        return y + b.reshape(1, -1, 1, 1)

    e = jax.nn.relu(conv(x_nchw, params["e1_w"], params["e1_b"], 2, 1))
    e = jax.nn.relu(conv(e, params["e2_w"], params["e2_b"], 2, 1))
    e = conv(e, params["e3_w"], params["e3_b"], 1, 0)
    d = jax.nn.relu(convT(e, params["d1_w"], params["d1_b"], 1, 0, 0))
    d = jax.nn.relu(convT(d, params["d2_w"], params["d2_b"], 2, 1, 1))
    d = jnp.tanh(convT(d, params["d3_w"], params["d3_b"], 2, 1, 1))
    return e, d


if __name__ == "__main__":
    # 28x28 input so the 7x7 encoder conv reduces to a 1x1 latent (MNIST-AE geometry).
    x = jax.random.normal(jax.random.PRNGKey(0), (2, 3, 28, 28), jnp.float32)
    params = init_params(seed=0)
    pp = prepare_params(params)     # packed weights + constant relayout matrices, built once

    fwd = jax.jit(autoencoder_vgg1_forward)
    encode, decode = fwd(x, pp)
    jax.block_until_ready((encode, decode))

    assert encode.shape == (2, 64, 1, 1), encode.shape
    assert decode.shape == (2, 3, 28, 28), decode.shape

    e_ref, d_ref = _ref_forward(x, params)
    assert jnp.allclose(encode, e_ref, atol=2e-3, rtol=2e-3), \
        float(jnp.max(jnp.abs(encode - e_ref)))
    assert jnp.allclose(decode, d_ref, atol=2e-3, rtol=2e-3), \
        float(jnp.max(jnp.abs(decode - d_ref)))

    print("KERNEL_OK")
</pallas_src>

<mosaic_0001>
module attributes {stable_mosaic.version = 11 : i64} {
  func.func @_encoder_kernel(%arg0: i32, %arg1: memref<1x3x900xf32, #tpu.memory_space<vmem>>, %arg2: memref<16x27xf32, #tpu.memory_space<vmem>>, %arg3: memref<16x1xf32, #tpu.memory_space<vmem>>, %arg4: memref<807x256xf32, #tpu.memory_space<vmem>>, %arg5: memref<32x144xf32, #tpu.memory_space<vmem>>, %arg6: memref<32x1xf32, #tpu.memory_space<vmem>>, %arg7: memref<49x32x64xf32, #tpu.memory_space<vmem>>, %arg8: memref<1x64xf32, #tpu.memory_space<vmem>>, %arg9: memref<64x1568xf32, #tpu.memory_space<vmem>>, %arg10: memref<1x1568xf32, #tpu.memory_space<vmem>>, %arg11: memref<1x1x64xf32, #tpu.memory_space<vmem>>, %arg12: memref<1x1x1568xf32, #tpu.memory_space<vmem>>) attributes {dimension_semantics = [#tpu.dimension_semantics<parallel>], iteration_bounds = array<i64: 2>, scalar_prefetch = 0 : i64, scratch_operands = 0 : i64, tpu.core_type = #tpu.core_type<tc>, window_params = [{transform_indices = @transform_0, window_bounds = array<i64: 1, 3, 900>}, {pipeline_mode = #tpu.pipeline_mode<synchronous>, transform_indices = @transform_1, window_bounds = array<i64: 16, 27>}, {pipeline_mode = #tpu.pipeline_mode<synchronous>, transform_indices = @transform_2, window_bounds = array<i64: 16, 1>}, {pipeline_mode = #tpu.pipeline_mode<synchronous>, transform_indices = @transform_3, window_bounds = array<i64: 807, 256>}, {pipeline_mode = #tpu.pipeline_mode<synchronous>, transform_indices = @transform_4, window_bounds = array<i64: 32, 144>}, {pipeline_mode = #tpu.pipeline_mode<synchronous>, transform_indices = @transform_5, window_bounds = array<i64: 32, 1>}, {pipeline_mode = #tpu.pipeline_mode<synchronous>, transform_indices = @transform_6, window_bounds = array<i64: 49, 32, 64>}, {pipeline_mode = #tpu.pipeline_mode<synchronous>, transform_indices = @transform_7, window_bounds = array<i64: 1, 64>}, {pipeline_mode = #tpu.pipeline_mode<synchronous>, transform_indices = @transform_8, window_bounds = array<i64: 64, 1568>}, {pipeline_mode = #tpu.pipeline_mode<synchronous>, transform_indices = @transform_9, window_bounds = array<i64: 1, 1568>}, {transform_indices = @transform_10, window_bounds = array<i64: 1, 1, 64>}, {transform_indices = @transform_11, window_bounds = array<i64: 1, 1, 1568>}]} {
    %c0 = arith.constant 0 : index
    %c0_0 = arith.constant 0 : index
    %c0_1 = arith.constant 0 : index
    %0 = vector.load %arg1[%c0, %c0_0, %c0_1] : memref<1x3x900xf32, #tpu.memory_space<vmem>>, vector<1x3x900xf32>
    %1 = vector.shape_cast %0 : vector<1x3x900xf32> to vector<3x900xf32>
    %cst = arith.constant 0.000000e+00 : f32
    %2 = vector.broadcast %cst : f32 to vector<16x807xf32>
    %c0_2 = arith.constant 0 : index
    %c0_3 = arith.constant 0 : index
    %3 = vector.load %arg2[%c0_2, %c0_3] : memref<16x27xf32, #tpu.memory_space<vmem>>, vector<16x3xf32>
    %4 = vector.extract_strided_slice %1 {offsets = [0, 0], sizes = [3, 807], strides = [1, 1]} : vector<3x900xf32> to vector<3x807xf32>
    %cst_4 = arith.constant dense<0.000000e+00> : vector<16x807xf32>
    %5 = tpu.matmul %3, %4, %cst_4 {dimension_numbers = #tpu.dot_dimension_numbers<[1], [0], [0], [1], [0, 0, 1, 1], [], []>} : vector<16x3xf32>, vector<3x807xf32>, vector<16x807xf32> -> vector<16x807xf32>
    %6 = arith.addf %2, %5 : vector<16x807xf32>
    %c0_5 = arith.constant 0 : index
    %c3 = arith.constant 3 : index
    %7 = vector.load %arg2[%c0_5, %c3] : memref<16x27xf32, #tpu.memory_space<vmem>>, vector<16x3xf32>
    %8 = vector.extract_strided_slice %1 {offsets = [0, 1], sizes = [3, 807], strides = [1, 1]} : vector<3x900xf32> to vector<3x807xf32>
    %cst_6 = arith.constant dense<0.000000e+00> : vector<16x807xf32>
    %9 = tpu.matmul %7, %8, %cst_6 {dimension_numbers = #tpu.dot_dimension_numbers<[1], [0], [0], [1], [0, 0, 1, 1], [], []>} : vector<16x3xf32>, vector<3x807xf32>, vector<16x807xf32> -> vector<16x807xf32>
    %10 = arith.addf %6, %9 : vector<16x807xf32>
    %c0_7 = arith.constant 0 : index
    %c6 = arith.constant 6 : index
    %11 = vector.load %arg2[%c0_7, %c6] : memref<16x27xf32, #tpu.memory_space<vmem>>, vector<16x3xf32>
    %12 = vector.extract_strided_slice %1 {offsets = [0, 2], sizes = [3, 807], strides = [1, 1]} : vector<3x900xf32> to vector<3x807xf32>
    %cst_8 = arith.constant dense<0.000000e+00> : vector<16x807xf32>
    %13 = tpu.matmul %11, %12, %cst_8 {dimension_numbers = #tpu.dot_dimension_numbers<[1], [0], [0], [1], [0, 0, 1, 1], [], []>} : vector<16x3xf32>, vector<3x807xf32>, vector<16x807xf32> -> vector<16x807xf32>
    %14 = arith.addf %10, %13 : vector<16x807xf32>
    %c0_9 = arith.constant 0 : index
    %c9 = arith.constant 9 : index
    %15 = vector.load %arg2[%c0_9, %c9] : memref<16x27xf32, #tpu.memory_space<vmem>>, vector<16x3xf32>
    %16 = vector.extract_strided_slice %1 {offsets = [0, 30], sizes = [3, 807], strides = [1, 1]} : vector<3x900xf32> to vector<3x807xf32>
    %cst_10 = arith.constant dense<0.000000e+00> : vector<16x807xf32>
    %17 = tpu.matmul %15, %16, %cst_10 {dimension_numbers = #tpu.dot_dimension_numbers<[1], [0], [0], [1], [0, 0, 1, 1], [], []>} : vector<16x3xf32>, vector<3x807xf32>, vector<16x807xf32> -> vector<16x807xf32>
    %18 = arith.addf %14, %17 : vector<16x807xf32>
    %c0_11 = arith.constant 0 : index
    %c12 = arith.constant 12 : index
    %19 = vector.load %arg2[%c0_11, %c12] : memref<16x27xf32, #tpu.memory_space<vmem>>, vector<16x3xf32>
    %20 = vector.extract_strided_slice %1 {offsets = [0, 31], sizes = [3, 807], strides = [1, 1]} : vector<3x900xf32> to vector<3x807xf32>
    %cst_12 = arith.constant dense<0.000000e+00> : vector<16x807xf32>
    %21 = tpu.matmul %19, %20, %cst_12 {dimension_numbers = #tpu.dot_dimension_numbers<[1], [0], [0], [1], [0, 0, 1, 1], [], []>} : vector<16x3xf32>, vector<3x807xf32>, vector<16x807xf32> -> vector<16x807xf32>
    %22 = arith.addf %18, %21 : vector<16x807xf32>
    %c0_13 = arith.constant 0 : index
    %c15 = arith.constant 15 : index
    %23 = vector.load %arg2[%c0_13, %c15] : memref<16x27xf32, #tpu.memory_space<vmem>>, vector<16x3xf32>
    %24 = vector.extract_strided_slice %1 {offsets = [0, 32], sizes = [3, 807], strides = [1, 1]} : vector<3x900xf32> to vector<3x807xf32>
    %cst_14 = arith.constant dense<0.000000e+00> : vector<16x807xf32>
    %25 = tpu.matmul %23, %24, %cst_14 {dimension_numbers = #tpu.dot_dimension_numbers<[1], [0], [0], [1], [0, 0, 1, 1], [], []>} : vector<16x3xf32>, vector<3x807xf32>, vector<16x807xf32> -> vector<16x807xf32>
    %26 = arith.addf %22, %25 : vector<16x807xf32>
    %c0_15 = arith.constant 0 : index
    %c18 = arith.constant 18 : index
    %27 = vector.load %arg2[%c0_15, %c18] : memref<16x27xf32, #tpu.memory_space<vmem>>, vector<16x3xf32>
    %28 = vector.extract_strided_slice %1 {offsets = [0, 60], sizes = [3, 807], strides = [1, 1]} : vector<3x900xf32> to vector<3x807xf32>
    %cst_16 = arith.constant dense<0.000000e+00> : vector<16x807xf32>
    %29 = tpu.matmul %27, %28, %cst_16 {dimension_numbers = #tpu.dot_dimension_numbers<[1], [0], [0], [1], [0, 0, 1, 1], [], []>} : vector<16x3xf32>, vector<3x807xf32>, vector<16x807xf32> -> vector<16x807xf32>
    %30 = arith.addf %26, %29 : vector<16x807xf32>
    %c0_17 = arith.constant 0 : index
    %c21 = arith.constant 21 : index
    %31 = vector.load %arg2[%c0_17, %c21] : memref<16x27xf32, #tpu.memory_space<vmem>>, vector<16x3xf32>
    %32 = vector.extract_strided_slice %1 {offsets = [0, 61], sizes = [3, 807], strides = [1, 1]} : vector<3x900xf32> to vector<3x807xf32>
    %cst_18 = arith.constant dense<0.000000e+00> : vector<16x807xf32>
    %33 = tpu.matmul %31, %32, %cst_18 {dimension_numbers = #tpu.dot_dimension_numbers<[1], [0], [0], [1], [0, 0, 1, 1], [], []>} : vector<16x3xf32>, vector<3x807xf32>, vector<16x807xf32> -> vector<16x807xf32>
    %34 = arith.addf %30, %33 : vector<16x807xf32>
    %c0_19 = arith.constant 0 : index
    %c24 = arith.constant 24 : index
    %35 = vector.load %arg2[%c0_19, %c24] : memref<16x27xf32, #tpu.memory_space<vmem>>, vector<16x3xf32>
    %36 = vector.extract_strided_slice %1 {offsets = [0, 62], sizes = [3, 807], strides = [1, 1]} : vector<3x900xf32> to vector<3x807xf32>
    %cst_20 = arith.constant dense<0.000000e+00> : vector<16x807xf32>
    %37 = tpu.matmul %35, %36, %cst_20 {dimension_numbers = #tpu.dot_dimension_numbers<[1], [0], [0], [1], [0, 0, 1, 1], [], []>} : vector<16x3xf32>, vector<3x807xf32>, vector<16x807xf32> -> vector<16x807xf32>
    %38 = arith.addf %34, %37 : vector<16x807xf32>
    %c0_21 = arith.constant 0 : index
    %c0_22 = arith.constant 0 : index
    %39 = vector.load %arg3[%c0_21, %c0_22] : memref<16x1xf32, #tpu.memory_space<vmem>>, vector<16x1xf32>
    %40 = vector.broadcast %39 : vector<16x1xf32> to vector<16x807xf32>
    %41 = arith.addf %38, %40 : vector<16x807xf32>
    %cst_23 = arith.constant 0.000000e+00 : f32
    %42 = vector.broadcast %cst_23 : f32 to vector<16x807xf32>
    %43 = arith.maximumf %41, %42 : vector<16x807xf32>
    %c0_24 = arith.constant 0 : index
    %c0_25 = arith.constant 0 : index
    %44 = vector.load %arg4[%c0_24, %c0_25] : memref<807x256xf32, #tpu.memory_space<vmem>>, vector<807x256xf32>
    %cst_26 = arith.constant dense<0.000000e+00> : vector<16x256xf32>
    %45 = tpu.matmul %43, %44, %cst_26 {dimension_numbers = #tpu.dot_dimension_numbers<[1], [0], [0], [1], [0, 0, 1, 1], [], []>} : vector<16x807xf32>, vector<807x256xf32>, vector<16x256xf32> -> vector<16x256xf32>
    %cst_27 = arith.constant 0.000000e+00 : f32
    %46 = vector.broadcast %cst_27 : f32 to vector<32x205xf32>
    %c0_28 = arith.constant 0 : index
    %c0_29 = arith.constant 0 : index
    %47 = vector.load %arg5[%c0_28, %c0_29] : memref<32x144xf32, #tpu.memory_space<vmem>>, vector<32x16xf32>
    %48 = vector.extract_strided_slice %45 {offsets = [0, 0], sizes = [16, 205], strides = [1, 1]} : vector<16x256xf32> to vector<16x205xf32>
    %cst_30 = arith.constant dense<0.000000e+00> : vector<32x205xf32>
    %49 = tpu.matmul %47, %48, %cst_30 {dimension_numbers = #tpu.dot_dimension_numbers<[1], [0], [0], [1], [0, 0, 1, 1], [], []>} : vector<32x16xf32>, vector<16x205xf32>, vector<32x205xf32> -> vector<32x205xf32>
    %50 = arith.addf %46, %49 : vector<32x205xf32>
    %c0_31 = arith.constant 0 : index
    %c16 = arith.constant 16 : index
    %51 = vector.load %arg5[%c0_31, %c16] : memref<32x144xf32, #tpu.memory_space<vmem>>, vector<32x16xf32>
    %52 = vector.extract_strided_slice %45 {offsets = [0, 1], sizes = [16, 205], strides = [1, 1]} : vector<16x256xf32> to vector<16x205xf32>
    %cst_32 = arith.constant dense<0.000000e+00> : vector<32x205xf32>
    %53 = tpu.matmul %51, %52, %cst_32 {dimension_numbers = #tpu.dot_dimension_numbers<[1], [0], [0], [1], [0, 0, 1, 1], [], []>} : vector<32x16xf32>, vector<16x205xf32>, vector<32x205xf32> -> vector<32x205xf32>
    %54 = arith.addf %50, %53 : vector<32x205xf32>
    %c0_33 = arith.constant 0 : index
    %c32 = arith.constant 32 : index
    %55 = vector.load %arg5[%c0_33, %c32] : memref<32x144xf32, #tpu.memory_space<vmem>>, vector<32x16xf32>
    %56 = vector.extract_strided_slice %45 {offsets = [0, 2], sizes = [16, 205], strides = [1, 1]} : vector<16x256xf32> to vector<16x205xf32>
    %cst_34 = arith.constant dense<0.000000e+00> : vector<32x205xf32>
    %57 = tpu.matmul %55, %56, %cst_34 {dimension_numbers = #tpu.dot_dimension_numbers<[1], [0], [0], [1], [0, 0, 1, 1], [], []>} : vector<32x16xf32>, vector<16x205xf32>, vector<32x205xf32> -> vector<32x205xf32>
    %58 = arith.addf %54, %57 : vector<32x205xf32>
    %c0_35 = arith.constant 0 : index
    %c48 = arith.constant 48 : index
    %59 = vector.load %arg5[%c0_35, %c48] : memref<32x144xf32, #tpu.memory_space<vmem>>, vector<32x16xf32>
    %60 = vector.extract_strided_slice %45 {offsets = [0, 16], sizes = [16, 205], strides = [1, 1]} : vector<16x256xf32> to vector<16x205xf32>
    %cst_36 = arith.constant dense<0.000000e+00> : vector<32x205xf32>
    %61 = tpu.matmul %59, %60, %cst_36 {dimension_numbers = #tpu.dot_dimension_numbers<[1], [0], [0], [1], [0, 0, 1, 1], [], []>} : vector<32x16xf32>, vector<16x205xf32>, vector<32x205xf32> -> vector<32x205xf32>
    %62 = arith.addf %58, %61 : vector<32x205xf32>
    %c0_37 = arith.constant 0 : index
    %c64 = arith.constant 64 : index
    %63 = vector.load %arg5[%c0_37, %c64] : memref<32x144xf32, #tpu.memory_space<vmem>>, vector<32x16xf32>
    %64 = vector.extract_strided_slice %45 {offsets = [0, 17], sizes = [16, 205], strides = [1, 1]} : vector<16x256xf32> to vector<16x205xf32>
    %cst_38 = arith.constant dense<0.000000e+00> : vector<32x205xf32>
    %65 = tpu.matmul %63, %64, %cst_38 {dimension_numbers = #tpu.dot_dimension_numbers<[1], [0], [0], [1], [0, 0, 1, 1], [], []>} : vector<32x16xf32>, vector<16x205xf32>, vector<32x205xf32> -> vector<32x205xf32>
    %66 = arith.addf %62, %65 : vector<32x205xf32>
    %c0_39 = arith.constant 0 : index
    %c80 = arith.constant 80 : index
    %67 = vector.load %arg5[%c0_39, %c80] : memref<32x144xf32, #tpu.memory_space<vmem>>, vector<32x16xf32>
    %68 = vector.extract_strided_slice %45 {offsets = [0, 18], sizes = [16, 205], strides = [1, 1]} : vector<16x256xf32> to vector<16x205xf32>
    %cst_40 = arith.constant dense<0.000000e+00> : vector<32x205xf32>
    %69 = tpu.matmul %67, %68, %cst_40 {dimension_numbers = #tpu.dot_dimension_numbers<[1], [0], [0], [1], [0, 0, 1, 1], [], []>} : vector<32x16xf32>, vector<16x205xf32>, vector<32x205xf32> -> vector<32x205xf32>
    %70 = arith.addf %66, %69 : vector<32x205xf32>
    %c0_41 = arith.constant 0 : index
    %c96 = arith.constant 96 : index
    %71 = vector.load %arg5[%c0_41, %c96] : memref<32x144xf32, #tpu.memory_space<vmem>>, vector<32x16xf32>
    %72 = vector.extract_strided_slice %45 {offsets = [0, 32], sizes = [16, 205], strides = [1, 1]} : vector<16x256xf32> to vector<16x205xf32>
    %cst_42 = arith.constant dense<0.000000e+00> : vector<32x205xf32>
    %73 = tpu.matmul %71, %72, %cst_42 {dimension_numbers = #tpu.dot_dimension_numbers<[1], [0], [0], [1], [0, 0, 1, 1], [], []>} : vector<32x16xf32>, vector<16x205xf32>, vector<32x205xf32> -> vector<32x205xf32>
    %74 = arith.addf %70, %73 : vector<32x205xf32>
    %c0_43 = arith.constant 0 : index
    %c112 = arith.constant 112 : index
    %75 = vector.load %arg5[%c0_43, %c112] : memref<32x144xf32, #tpu.memory_space<vmem>>, vector<32x16xf32>
    %76 = vector.extract_strided_slice %45 {offsets = [0, 33], sizes = [16, 205], strides = [1, 1]} : vector<16x256xf32> to vector<16x205xf32>
    %cst_44 = arith.constant dense<0.000000e+00> : vector<32x205xf32>
    %77 = tpu.matmul %75, %76, %cst_44 {dimension_numbers = #tpu.dot_dimension_numbers<[1], [0], [0], [1], [0, 0, 1, 1], [], []>} : vector<32x16xf32>, vector<16x205xf32>, vector<32x205xf32> -> vector<32x205xf32>
    %78 = arith.addf %74, %77 : vector<32x205xf32>
    %c0_45 = arith.constant 0 : index
    %c128 = arith.constant 128 : index
    %79 = vector.load %arg5[%c0_45, %c128] : memref<32x144xf32, #tpu.memory_space<vmem>>, vector<32x16xf32>
    %80 = vector.extract_strided_slice %45 {offsets = [0, 34], sizes = [16, 205], strides = [1, 1]} : vector<16x256xf32> to vector<16x205xf32>
    %cst_46 = arith.constant dense<0.000000e+00> : vector<32x205xf32>
    %81 = tpu.matmul %79, %80, %cst_46 {dimension_numbers = #tpu.dot_dimension_numbers<[1], [0], [0], [1], [0, 0, 1, 1], [], []>} : vector<32x16xf32>, vector<16x205xf32>, vector<32x205xf32> -> vector<32x205xf32>
    %82 = arith.addf %78, %81 : vector<32x205xf32>
    %c0_47 = arith.constant 0 : index
    %c0_48 = arith.constant 0 : index
    %83 = vector.load %arg6[%c0_47, %c0_48] : memref<32x1xf32, #tpu.memory_space<vmem>>, vector<32x1xf32>
    %84 = vector.broadcast %83 : vector<32x1xf32> to vector<32x205xf32>
    %85 = arith.addf %82, %84 : vector<32x205xf32>
    %cst_49 = arith.constant 0.000000e+00 : f32
    %86 = vector.broadcast %cst_49 : f32 to vector<32x205xf32>
    %87 = arith.maximumf %85, %86 : vector<32x205xf32>
    %cst_50 = arith.constant 0.000000e+00 : f32
    %88 = vector.broadcast %cst_50 : f32 to vector<32x64xf32>
    %89 = vector.extract_strided_slice %87 {offsets = [0, 0], sizes = [32, 1], strides = [1, 1]} : vector<32x205xf32> to vector<32x1xf32>
    %c0_51 = arith.constant 0 : index
    %c0_52 = arith.constant 0 : index
    %c0_53 = arith.constant 0 : index
    %90 = vector.load %arg7[%c0_51, %c0_52, %c0_53] : memref<49x32x64xf32, #tpu.memory_space<vmem>>, vector<1x32x64xf32>
    %91 = vector.shape_cast %90 : vector<1x32x64xf32> to vector<32x64xf32>
    %92 = vector.broadcast %89 : vector<32x1xf32> to vector<32x64xf32>
    %93 = arith.mulf %92, %91 : vector<32x64xf32>
    %94 = arith.addf %88, %93 : vector<32x64xf32>
    %95 = vector.extract_strided_slice %87 {offsets = [0, 2], sizes = [32, 1], strides = [1, 1]} : vector<32x205xf32> to vector<32x1xf32>
    %c1 = arith.constant 1 : index
    %c0_54 = arith.constant 0 : index
    %c0_55 = arith.constant 0 : index
    %96 = vector.load %arg7[%c1, %c0_54, %c0_55] : memref<49x32x64xf32, #tpu.memory_space<vmem>>, vector<1x32x64xf32>
    %97 = vector.shape_cast %96 : vector<1x32x64xf32> to vector<32x64xf32>
    %98 = vector.broadcast %95 : vector<32x1xf32> to vector<32x64xf32>
    %99 = arith.mulf %98, %97 : vector<32x64xf32>
    %100 = arith.addf %94, %99 : vector<32x64xf32>
    %101 = vector.extract_strided_slice %87 {offsets = [0, 4], sizes = [32, 1], strides = [1, 1]} : vector<32x205xf32> to vector<32x1xf32>
    %c2 = arith.constant 2 : index
    %c0_56 = arith.constant 0 : index
    %c0_57 = arith.constant 0 : index
    %102 = vector.load %arg7[%c2, %c0_56, %c0_57] : memref<49x32x64xf32, #tpu.memory_space<vmem>>, vector<1x32x64xf32>
    %103 = vector.shape_cast %102 : vector<1x32x64xf32> to vector<32x64xf32>
    %104 = vector.broadcast %101 : vector<32x1xf32> to vector<32x64xf32>
    %105 = arith.mulf %104, %103 : vector<32x64xf32>
    %106 = arith.addf %100, %105 : vector<32x64xf32>
    %107 = vector.extract_strided_slice %87 {offsets = [0, 6], sizes = [32, 1], strides = [1, 1]} : vector<32x205xf32> to vector<32x1xf32>
    %c3_58 = arith.constant 3 : index
    %c0_59 = arith.constant 0 : index
    %c0_60 = arith.constant 0 : index
    %108 = vector.load %arg7[%c3_58, %c0_59, %c0_60] : memref<49x32x64xf32, #tpu.memory_space<vmem>>, vector<1x32x64xf32>
    %109 = vector.shape_cast %108 : vector<1x32x64xf32> to vector<32x64xf32>
    %110 = vector.broadcast %107 : vector<32x1xf32> to vector<32x64xf32>
    %111 = arith.mulf %110, %109 : vector<32x64xf32>
    %112 = arith.addf %106, %111 : vector<32x64xf32>
    %113 = vector.extract_strided_slice %87 {offsets = [0, 8], sizes = [32, 1], strides = [1, 1]} : vector<32x205xf32> to vector<32x1xf32>
    %c4 = arith.constant 4 : index
    %c0_61 = arith.constant 0 : index
    %c0_62 = arith.constant 0 : index
    %114 = vector.load %arg7[%c4, %c0_61, %c0_62] : memref<49x32x64xf32, #tpu.memory_space<vmem>>, vector<1x32x64xf32>
    %115 = vector.shape_cast %114 : vector<1x32x64xf32> to vector<32x64xf32>
    %116 = vector.broadcast %113 : vector<32x1xf32> to vector<32x64xf32>
    %117 = arith.mulf %116, %115 : vector<32x64xf32>
    %118 = arith.addf %112, %117 : vector<32x64xf32>
    %119 = vector.extract_strided_slice %87 {offsets = [0, 10], sizes = [32, 1], strides = [1, 1]} : vector<32x205xf32> to vector<32x1xf32>
    %c5 = arith.constant 5 : index
    %c0_63 = arith.constant 0 : index
    %c0_64 = arith.constant 0 : index
    %120 = vector.load %arg7[%c5, %c0_63, %c0_64] : memref<49x32x64xf32, #tpu.memory_space<vmem>>, vector<1x32x64xf32>
    %121 = vector.shape_cast %120 : vector<1x32x64xf32> to vector<32x64xf32>
    %122 = vector.broadcast %119 : vector<32x1xf32> to vector<32x64xf32>
    %123 = arith.mulf %122, %121 : vector<32x64xf32>
    %124 = arith.addf %118, %123 : vector<32x64xf32>
    %125 = vector.extract_strided_slice %87 {offsets = [0, 12], sizes = [32, 1], strides = [1, 1]} : vector<32x205xf32> to vector<32x1xf32>
    %c6_65 = arith.constant 6 : index
    %c0_66 = arith.constant 0 : index
    %c0_67 = arith.constant 0 : index
    %126 = vector.load %arg7[%c6_65, %c0_66, %c0_67] : memref<49x32x64xf32, #tpu.memory_space<vmem>>, vector<1x32x64xf32>
    %127 = vector.shape_cast %126 : vector<1x32x64xf32> to vector<32x64xf32>
    %128 = vector.broadcast %125 : vector<32x1xf32> to vector<32x64xf32>
    %129 = arith.mulf %128, %127 : vector<32x64xf32>
    %130 = arith.addf %124, %129 : vector<32x64xf32>
    %131 = vector.extract_strided_slice %87 {offsets = [0, 32], sizes = [32, 1], strides = [1, 1]} : vector<32x205xf32> to vector<32x1xf32>
    %c7 = arith.constant 7 : index
    %c0_68 = arith.constant 0 : index
    %c0_69 = arith.constant 0 : index
    %132 = vector.load %arg7[%c7, %c0_68, %c0_69] : memref<49x32x64xf32, #tpu.memory_space<vmem>>, vector<1x32x64xf32>
    %133 = vector.shape_cast %132 : vector<1x32x64xf32> to vector<32x64xf32>
    %134 = vector.broadcast %131 : vector<32x1xf32> to vector<32x64xf32>
    %135 = arith.mulf %134, %133 : vector<32x64xf32>
    %136 = arith.addf %130, %135 : vector<32x64xf32>
    %137 = vector.extract_strided_slice %87 {offsets = [0, 34], sizes = [32, 1], strides = [1, 1]} : vector<32x205xf32> to vector<32x1xf32>
    %c8 = arith.constant 8 : index
    %c0_70 = arith.constant 0 : index
    %c0_71 = arith.constant 0 : index
    %138 = vector.load %arg7[%c8, %c0_70, %c0_71] : memref<49x32x64xf32, #tpu.memory_space<vmem>>, vector<1x32x64xf32>
    %139 = vector.shape_cast %138 : vector<1x32x64xf32> to vector<32x64xf32>
    %140 = vector.broadcast %137 : vector<32x1xf32> to vector<32x64xf32>
    %141 = arith.mulf %140, %139 : vector<32x64xf32>
    %142 = arith.addf %136, %141 : vector<32x64xf32>
    %143 = vector.extract_strided_slice %87 {offsets = [0, 36], sizes = [32, 1], strides = [1, 1]} : vector<32x205xf32> to vector<32x1xf32>
    %c9_72 = arith.constant 9 : index
    %c0_73 = arith.constant 0 : index
    %c0_74 = arith.constant 0 : index
    %144 = vector.load %arg7[%c9_72, %c0_73, %c0_74] : memref<49x32x64xf32, #tpu.memory_space<vmem>>, vector<1x32x64xf32>
    %145 = vector.shape_cast %144 : vector<1x32x64xf32> to vector<32x64xf32>
    %146 = vector.broadcast %143 : vector<32x1xf32> to vector<32x64xf32>
    %147 = arith.mulf %146, %145 : vector<32x64xf32>
    %148 = arith.addf %142, %147 : vector<32x64xf32>
    %149 = vector.extract_strided_slice %87 {offsets = [0, 38], sizes = [32, 1], strides = [1, 1]} : vector<32x205xf32> to vector<32x1xf32>
    %c10 = arith.constant 10 : index
    %c0_75 = arith.constant 0 : index
    %c0_76 = arith.constant 0 : index
    %150 = vector.load %arg7[%c10, %c0_75, %c0_76] : memref<49x32x64xf32, #tpu.memory_space<vmem>>, vector<1x32x64xf32>
    %151 = vector.shape_cast %150 : vector<1x32x64xf32> to vector<32x64xf32>
    %152 = vector.broadcast %149 : vector<32x1xf32> to vector<32x64xf32>
    %153 = arith.mulf %152, %151 : vector<32x64xf32>
    %154 = arith.addf %148, %153 : vector<32x64xf32>
    %155 = vector.extract_strided_slice %87 {offsets = [0, 40], sizes = [32, 1], strides = [1, 1]} : vector<32x205xf32> to vector<32x1xf32>
    %c11 = arith.constant 11 : index
    %c0_77 = arith.constant 0 : index
    %c0_78 = arith.constant 0 : index
    %156 = vector.load %arg7[%c11, %c0_77, %c0_78] : memref<49x32x64xf32, #tpu.memory_space<vmem>>, vector<1x32x64xf32>
    %157 = vector.shape_cast %156 : vector<1x32x64xf32> to vector<32x64xf32>
    %158 = vector.broadcast %155 : vector<32x1xf32> to vector<32x64xf32>
    %159 = arith.mulf %158, %157 : vector<32x64xf32>
    %160 = arith.addf %154, %159 : vector<32x64xf32>
    %161 = vector.extract_strided_slice %87 {offsets = [0, 42], sizes = [32, 1], strides = [1, 1]} : vector<32x205xf32> to vector<32x1xf32>
    %c12_79 = arith.constant 12 : index
    %c0_80 = arith.constant 0 : index
    %c0_81 = arith.constant 0 : index
    %162 = vector.load %arg7[%c12_79, %c0_80, %c0_81] : memref<49x32x64xf32, #tpu.memory_space<vmem>>, vector<1x32x64xf32>
    %163 = vector.shape_cast %162 : vector<1x32x64xf32> to vector<32x64xf32>
    %164 = vector.broadcast %161 : vector<32x1xf32> to vector<32x64xf32>
    %165 = arith.mulf %164, %163 : vector<32x64xf32>
    %166 = arith.addf %160, %165 : vector<32x64xf32>
    %167 = vector.extract_strided_slice %87 {offsets = [0, 44], sizes = [32, 1], strides = [1, 1]} : vector<32x205xf32> to vector<32x1xf32>
    %c13 = arith.constant 13 : index
    %c0_82 = arith.constant 0 : index
    %c0_83 = arith.constant 0 : index
    %168 = vector.load %arg7[%c13, %c0_82, %c0_83] : memref<49x32x64xf32, #tpu.memory_space<vmem>>, vector<1x32x64xf32>
    %169 = vector.shape_cast %168 : vector<1x32x64xf32> to vector<32x64xf32>
    %170 = vector.broadcast %167 : vector<32x1xf32> to vector<32x64xf32>
    %171 = arith.mulf %170, %169 : vector<32x64xf32>
    %172 = arith.addf %166, %171 : vector<32x64xf32>
    %173 = vector.extract_strided_slice %87 {offsets = [0, 64], sizes = [32, 1], strides = [1, 1]} : vector<32x205xf32> to vector<32x1xf32>
    %c14 = arith.constant 14 : index
    %c0_84 = arith.constant 0 : index
    %c0_85 = arith.constant 0 : index
    %174 = vector.load %arg7[%c14, %c0_84, %c0_85] : memref<49x32x64xf32, #tpu.memory_space<vmem>>, vector<1x32x64xf32>
    %175 = vector.shape_cast %174 : vector<1x32x64xf32> to vector<32x64xf32>
    %176 = vector.broadcast %173 : vector<32x1xf32> to vector<32x64xf32>
    %177 = arith.mulf %176, %175 : vector<32x64xf32>
    %178 = arith.addf %172, %177 : vector<32x64xf32>
    %179 = vector.extract_strided_slice %87 {offsets = [0, 66], sizes = [32, 1], strides = [1, 1]} : vector<32x205xf32> to vector<32x1xf32>
    %c15_86 = arith.constant 15 : index
    %c0_87 = arith.constant 0 : index
    %c0_88 = arith.constant 0 : index
    %180 = vector.load %arg7[%c15_86, %c0_87, %c0_88] : memref<49x32x64xf32, #tpu.memory_space<vmem>>, vector<1x32x64xf32>
    %181 = vector.shape_cast %180 : vector<1x32x64xf32> to vector<32x64xf32>
    %182 = vector.broadcast %179 : vector<32x1xf32> to vector<32x64xf32>
    %183 = arith.mulf %182, %181 : vector<32x64xf32>
    %184 = arith.addf %178, %183 : vector<32x64xf32>
    %185 = vector.extract_strided_slice %87 {offsets = [0, 68], sizes = [32, 1], strides = [1, 1]} : vector<32x205xf32> to vector<32x1xf32>
    %c16_89 = arith.constant 16 : index
    %c0_90 = arith.constant 0 : index
    %c0_91 = arith.constant 0 : index
    %186 = vector.load %arg7[%c16_89, %c0_90, %c0_91] : memref<49x32x64xf32, #tpu.memory_space<vmem>>, vector<1x32x64xf32>
    %187 = vector.shape_cast %186 : vector<1x32x64xf32> to vector<32x64xf32>
    %188 = vector.broadcast %185 : vector<32x1xf32> to vector<32x64xf32>
    %189 = arith.mulf %188, %187 : vector<32x64xf32>
    %190 = arith.addf %184, %189 : vector<32x64xf32>
    %191 = vector.extract_strided_slice %87 {offsets = [0, 70], sizes = [32, 1], strides = [1, 1]} : vector<32x205xf32> to vector<32x1xf32>
    %c17 = arith.constant 17 : index
    %c0_92 = arith.constant 0 : index
    %c0_93 = arith.constant 0 : index
    %192 = vector.load %arg7[%c17, %c0_92, %c0_93] : memref<49x32x64xf32, #tpu.memory_space<vmem>>, vector<1x32x64xf32>
    %193 = vector.shape_cast %192 : vector<1x32x64xf32> to vector<32x64xf32>
    %194 = vector.broadcast %191 : vector<32x1xf32> to vector<32x64xf32>
    %195 = arith.mulf %194, %193 : vector<32x64xf32>
    %196 = arith.addf %190, %195 : vector<32x64xf32>
    %197 = vector.extract_strided_slice %87 {offsets = [0, 72], sizes = [32, 1], strides = [1, 1]} : vector<32x205xf32> to vector<32x1xf32>
    %c18_94 = arith.constant 18 : index
    %c0_95 = arith.constant 0 : index
    %c0_96 = arith.constant 0 : index
    %198 = vector.load %arg7[%c18_94, %c0_95, %c0_96] : memref<49x32x64xf32, #tpu.memory_space<vmem>>, vector<1x32x64xf32>
    %199 = vector.shape_cast %198 : vector<1x32x64xf32> to vector<32x64xf32>
    %200 = vector.broadcast %197 : vector<32x1xf32> to vector<32x64xf32>
    %201 = arith.mulf %200, %199 : vector<32x64xf32>
    %202 = arith.addf %196, %201 : vector<32x64xf32>
    %203 = vector.extract_strided_slice %87 {offsets = [0, 74], sizes = [32, 1], strides = [1, 1]} : vector<32x205xf32> to vector<32x1xf32>
    %c19 = arith.constant 19 : index
    %c0_97 = arith.constant 0 : index
    %c0_98 = arith.constant 0 : index
    %204 = vector.load %arg7[%c19, %c0_97, %c0_98] : memref<49x32x64xf32, #tpu.memory_space<vmem>>, vector<1x32x64xf32>
    %205 = vector.shape_cast %204 : vector<1x32x64xf32> to vector<32x64xf32>
    %206 = vector.broadcast %203 : vector<32x1xf32> to vector<32x64xf32>
    %207 = arith.mulf %206, %205 : vector<32x64xf32>
    %208 = arith.addf %202, %207 : vector<32x64xf32>
    %209 = vector.extract_strided_slice %87 {offsets = [0, 76], sizes = [32, 1], strides = [1, 1]} : vector<32x205xf32> to vector<32x1xf32>
    %c20 = arith.constant 20 : index
    %c0_99 = arith.constant 0 : index
    %c0_100 = arith.constant 0 : index
    %210 = vector.load %arg7[%c20, %c0_99, %c0_100] : memref<49x32x64xf32, #tpu.memory_space<vmem>>, vector<1x32x64xf32>
    %211 = vector.shape_cast %210 : vector<1x32x64xf32> to vector<32x64xf32>
    %212 = vector.broadcast %209 : vector<32x1xf32> to vector<32x64xf32>
    %213 = arith.mulf %212, %211 : vector<32x64xf32>
    %214 = arith.addf %208, %213 : vector<32x64xf32>
    %215 = vector.extract_strided_slice %87 {offsets = [0, 96], sizes = [32, 1], strides = [1, 1]} : vector<32x205xf32> to vector<32x1xf32>
    %c21_101 = arith.constant 21 : index
    %c0_102 = arith.constant 0 : index
    %c0_103 = arith.constant 0 : index
    %216 = vector.load %arg7[%c21_101, %c0_102, %c0_103] : memref<49x32x64xf32, #tpu.memory_space<vmem>>, vector<1x32x64xf32>
    %217 = vector.shape_cast %216 : vector<1x32x64xf32> to vector<32x64xf32>
    %218 = vector.broadcast %215 : vector<32x1xf32> to vector<32x64xf32>
    %219 = arith.mulf %218, %217 : vector<32x64xf32>
    %220 = arith.addf %214, %219 : vector<32x64xf32>
    %221 = vector.extract_strided_slice %87 {offsets = [0, 98], sizes = [32, 1], strides = [1, 1]} : vector<32x205xf32> to vector<32x1xf32>
    %c22 = arith.constant 22 : index
    %c0_104 = arith.constant 0 : index
    %c0_105 = arith.constant 0 : index
    %222 = vector.load %arg7[%c22, %c0_104, %c0_105] : memref<49x32x64xf32, #tpu.memory_space<vmem>>, vector<1x32x64xf32>
    %223 = vector.shape_cast %222 : vector<1x32x64xf32> to vector<32x64xf32>
    %224 = vector.broadcast %221 : vector<32x1xf32> to vector<32x64xf32>
    %225 = arith.mulf %224, %223 : vector<32x64xf32>
    %226 = arith.addf %220, %225 : vector<32x64xf32>
    %227 = vector.extract_strided_slice %87 {offsets = [0, 100], sizes = [32, 1], strides = [1, 1]} : vector<32x205xf32> to vector<32x1xf32>
    %c23 = arith.constant 23 : index
    %c0_106 = arith.constant 0 : index
    %c0_107 = arith.constant 0 : index
    %228 = vector.load %arg7[%c23, %c0_106, %c0_107] : memref<49x32x64xf32, #tpu.memory_space<vmem>>, vector<1x32x64xf32>
    %229 = vector.shape_cast %228 : vector<1x32x64xf32> to vector<32x64xf32>
    %230 = vector.broadcast %227 : vector<32x1xf32> to vector<32x64xf32>
    %231 = arith.mulf %230, %229 : vector<32x64xf32>
    %232 = arith.addf %226, %231 : vector<32x64xf32>
    %233 = vector.extract_strided_slice %87 {offsets = [0, 102], sizes = [32, 1], strides = [1, 1]} : vector<32x205xf32> to vector<32x1xf32>
    %c24_108 = arith.constant 24 : index
    %c0_109 = arith.constant 0 : index
    %c0_110 = arith.constant 0 : index
    %234 = vector.load %arg7[%c24_108, %c0_109, %c0_110] : memref<49x32x64xf32, #tpu.memory_space<vmem>>, vector<1x32x64xf32>
    %235 = vector.shape_cast %234 : vector<1x32x64xf32> to vector<32x64xf32>
    %236 = vector.broadcast %233 : vector<32x1xf32> to vector<32x64xf32>
    %237 = arith.mulf %236, %235 : vector<32x64xf32>
    %238 = arith.addf %232, %237 : vector<32x64xf32>
    %239 = vector.extract_strided_slice %87 {offsets = [0, 104], sizes = [32, 1], strides = [1, 1]} : vector<32x205xf32> to vector<32x1xf32>
    %c25 = arith.constant 25 : index
    %c0_111 = arith.constant 0 : index
    %c0_112 = arith.constant 0 : index
    %240 = vector.load %arg7[%c25, %c0_111, %c0_112] : memref<49x32x64xf32, #tpu.memory_space<vmem>>, vector<1x32x64xf32>
    %241 = vector.shape_cast %240 : vector<1x32x64xf32> to vector<32x64xf32>
    %242 = vector.broadcast %239 : vector<32x1xf32> to vector<32x64xf32>
    %243 = arith.mulf %242, %241 : vector<32x64xf32>
    %244 = arith.addf %238, %243 : vector<32x64xf32>
    %245 = vector.extract_strided_slice %87 {offsets = [0, 106], sizes = [32, 1], strides = [1, 1]} : vector<32x205xf32> to vector<32x1xf32>
    %c26 = arith.constant 26 : index
    %c0_113 = arith.constant 0 : index
    %c0_114 = arith.constant 0 : index
    %246 = vector.load %arg7[%c26, %c0_113, %c0_114] : memref<49x32x64xf32, #tpu.memory_space<vmem>>, vector<1x32x64xf32>
    %247 = vector.shape_cast %246 : vector<1x32x64xf32> to vector<32x64xf32>
    %248 = vector.broadcast %245 : vector<32x1xf32> to vector<32x64xf32>
    %249 = arith.mulf %248, %247 : vector<32x64xf32>
    %250 = arith.addf %244, %249 : vector<32x64xf32>
    %251 = vector.extract_strided_slice %87 {offsets = [0, 108], sizes = [32, 1], strides = [1, 1]} : vector<32x205xf32> to vector<32x1xf32>
    %c27 = arith.constant 27 : index
    %c0_115 = arith.constant 0 : index
    %c0_116 = arith.constant 0 : index
    %252 = vector.load %arg7[%c27, %c0_115, %c0_116] : memref<49x32x64xf32, #tpu.memory_space<vmem>>, vector<1x32x64xf32>
    %253 = vector.shape_cast %252 : vector<1x32x64xf32> to vector<32x64xf32>
    %254 = vector.broadcast %251 : vector<32x1xf32> to vector<32x64xf32>
    %255 = arith.mulf %254, %253 : vector<32x64xf32>
    %256 = arith.addf %250, %255 : vector<32x64xf32>
    %257 = vector.extract_strided_slice %87 {offsets = [0, 128], sizes = [32, 1], strides = [1, 1]} : vector<32x205xf32> to vector<32x1xf32>
    %c28 = arith.constant 28 : index
    %c0_117 = arith.constant 0 : index
    %c0_118 = arith.constant 0 : index
    %258 = vector.load %arg7[%c28, %c0_117, %c0_118] : memref<49x32x64xf32, #tpu.memory_space<vmem>>, vector<1x32x64xf32>
    %259 = vector.shape_cast %258 : vector<1x32x64xf32> to vector<32x64xf32>
    %260 = vector.broadcast %257 : vector<32x1xf32> to vector<32x64xf32>
    %261 = arith.mulf %260, %259 : vector<32x64xf32>
    %262 = arith.addf %256, %261 : vector<32x64xf32>
    %263 = vector.extract_strided_slice %87 {offsets = [0, 130], sizes = [32, 1], strides = [1, 1]} : vector<32x205xf32> to vector<32x1xf32>
    %c29 = arith.constant 29 : index
    %c0_119 = arith.constant 0 : index
    %c0_120 = arith.constant 0 : index
    %264 = vector.load %arg7[%c29, %c0_119, %c0_120] : memref<49x32x64xf32, #tpu.memory_space<vmem>>, vector<1x32x64xf32>
    %265 = vector.shape_cast %264 : vector<1x32x64xf32> to vector<32x64xf32>
    %266 = vector.broadcast %263 : vector<32x1xf32> to vector<32x64xf32>
    %267 = arith.mulf %266, %265 : vector<32x64xf32>
    %268 = arith.addf %262, %267 : vector<32x64xf32>
    %269 = vector.extract_strided_slice %87 {offsets = [0, 132], sizes = [32, 1], strides = [1, 1]} : vector<32x205xf32> to vector<32x1xf32>
    %c30 = arith.constant 30 : index
    %c0_121 = arith.constant 0 : index
    %c0_122 = arith.constant 0 : index
    %270 = vector.load %arg7[%c30, %c0_121, %c0_122] : memref<49x32x64xf32, #tpu.memory_space<vmem>>, vector<1x32x64xf32>
    %271 = vector.shape_cast %270 : vector<1x32x64xf32> to vector<32x64xf32>
    %272 = vector.broadcast %269 : vector<32x1xf32> to vector<32x64xf32>
    %273 = arith.mulf %272, %271 : vector<32x64xf32>
    %274 = arith.addf %268, %273 : vector<32x64xf32>
    %275 = vector.extract_strided_slice %87 {offsets = [0, 134], sizes = [32, 1], strides = [1, 1]} : vector<32x205xf32> to vector<32x1xf32>
    %c31 = arith.constant 31 : index
    %c0_123 = arith.constant 0 : index
    %c0_124 = arith.constant 0 : index
    %276 = vector.load %arg7[%c31, %c0_123, %c0_124] : memref<49x32x64xf32, #tpu.memory_space<vmem>>, vector<1x32x64xf32>
    %277 = vector.shape_cast %276 : vector<1x32x64xf32> to vector<32x64xf32>
    %278 = vector.broadcast %275 : vector<32x1xf32> to vector<32x64xf32>
    %279 = arith.mulf %278, %277 : vector<32x64xf32>
    %280 = arith.addf %274, %279 : vector<32x64xf32>
    %281 = vector.extract_strided_slice %87 {offsets = [0, 136], sizes = [32, 1], strides = [1, 1]} : vector<32x205xf32> to vector<32x1xf32>
    %c32_125 = arith.constant 32 : index
    %c0_126 = arith.constant 0 : index
    %c0_127 = arith.constant 0 : index
    %282 = vector.load %arg7[%c32_125, %c0_126, %c0_127] : memref<49x32x64xf32, #tpu.memory_space<vmem>>, vector<1x32x64xf32>
    %283 = vector.shape_cast %282 : vector<1x32x64xf32> to vector<32x64xf32>
    %284 = vector.broadcast %281 : vector<32x1xf32> to vector<32x64xf32>
    %285 = arith.mulf %284, %283 : vector<32x64xf32>
    %286 = arith.addf %280, %285 : vector<32x64xf32>
    %287 = vector.extract_strided_slice %87 {offsets = [0, 138], sizes = [32, 1], strides = [1, 1]} : vector<32x205xf32> to vector<32x1xf32>
    %c33 = arith.constant 33 : index
    %c0_128 = arith.constant 0 : index
    %c0_129 = arith.constant 0 : index
    %288 = vector.load %arg7[%c33, %c0_128, %c0_129] : memref<49x32x64xf32, #tpu.memory_space<vmem>>, vector<1x32x64xf32>
    %289 = vector.shape_cast %288 : vector<1x32x64xf32> to vector<32x64xf32>
    %290 = vector.broadcast %287 : vector<32x1xf32> to vector<32x64xf32>
    %291 = arith.mulf %290, %289 : vector<32x64xf32>
    %292 = arith.addf %286, %291 : vector<32x64xf32>
    %293 = vector.extract_strided_slice %87 {offsets = [0, 140], sizes = [32, 1], strides = [1, 1]} : vector<32x205xf32> to vector<32x1xf32>
    %c34 = arith.constant 34 : index
    %c0_130 = arith.constant 0 : index
    %c0_131 = arith.constant 0 : index
    %294 = vector.load %arg7[%c34, %c0_130, %c0_131] : memref<49x32x64xf32, #tpu.memory_space<vmem>>, vector<1x32x64xf32>
    %295 = vector.shape_cast %294 : vector<1x32x64xf32> to vector<32x64xf32>
    %296 = vector.broadcast %293 : vector<32x1xf32> to vector<32x64xf32>
    %297 = arith.mulf %296, %295 : vector<32x64xf32>
    %298 = arith.addf %292, %297 : vector<32x64xf32>
    %299 = vector.extract_strided_slice %87 {offsets = [0, 160], sizes = [32, 1], strides = [1, 1]} : vector<32x205xf32> to vector<32x1xf32>
    %c35 = arith.constant 35 : index
    %c0_132 = arith.constant 0 : index
    %c0_133 = arith.constant 0 : index
    %300 = vector.load %arg7[%c35, %c0_132, %c0_133] : memref<49x32x64xf32, #tpu.memory_space<vmem>>, vector<1x32x64xf32>
    %301 = vector.shape_cast %300 : vector<1x32x64xf32> to vector<32x64xf32>
    %302 = vector.broadcast %299 : vector<32x1xf32> to vector<32x64xf32>
    %303 = arith.mulf %302, %301 : vector<32x64xf32>
    %304 = arith.addf %298, %303 : vector<32x64xf32>
    %305 = vector.extract_strided_slice %87 {offsets = [0, 162], sizes = [32, 1], strides = [1, 1]} : vector<32x205xf32> to vector<32x1xf32>
    %c36 = arith.constant 36 : index
    %c0_134 = arith.constant 0 : index
    %c0_135 = arith.constant 0 : index
    %306 = vector.load %arg7[%c36, %c0_134, %c0_135] : memref<49x32x64xf32, #tpu.memory_space<vmem>>, vector<1x32x64xf32>
    %307 = vector.shape_cast %306 : vector<1x32x64xf32> to vector<32x64xf32>
    %308 = vector.broadcast %305 : vector<32x1xf32> to vector<32x64xf32>
    %309 = arith.mulf %308, %307 : vector<32x64xf32>
    %310 = arith.addf %304, %309 : vector<32x64xf32>
    %311 = vector.extract_strided_slice %87 {offsets = [0, 164], sizes = [32, 1], strides = [1, 1]} : vector<32x205xf32> to vector<32x1xf32>
    %c37 = arith.constant 37 : index
    %c0_136 = arith.constant 0 : index
    %c0_137 = arith.constant 0 : index
    %312 = vector.load %arg7[%c37, %c0_136, %c0_137] : memref<49x32x64xf32, #tpu.memory_space<vmem>>, vector<1x32x64xf32>
    %313 = vector.shape_cast %312 : vector<1x32x64xf32> to vector<32x64xf32>
    %314 = vector.broadcast %311 : vector<32x1xf32> to vector<32x64xf32>
    %315 = arith.mulf %314, %313 : vector<32x64xf32>
    %316 = arith.addf %310, %315 : vector<32x64xf32>
    %317 = vector.extract_strided_slice %87 {offsets = [0, 166], sizes = [32, 1], strides = [1, 1]} : vector<32x205xf32> to vector<32x1xf32>
    %c38 = arith.constant 38 : index
    %c0_138 = arith.constant 0 : index
    %c0_139 = arith.constant 0 : index
    %318 = vector.load %arg7[%c38, %c0_138, %c0_139] : memref<49x32x64xf32, #tpu.memory_space<vmem>>, vector<1x32x64xf32>
    %319 = vector.shape_cast %318 : vector<1x32x64xf32> to vector<32x64xf32>
    %320 = vector.broadcast %317 : vector<32x1xf32> to vector<32x64xf32>
    %321 = arith.mulf %320, %319 : vector<32x64xf32>
    %322 = arith.addf %316, %321 : vector<32x64xf32>
    %323 = vector.extract_strided_slice %87 {offsets = [0, 168], sizes = [32, 1], strides = [1, 1]} : vector<32x205xf32> to vector<32x1xf32>
    %c39 = arith.constant 39 : index
    %c0_140 = arith.constant 0 : index
    %c0_141 = arith.constant 0 : index
    %324 = vector.load %arg7[%c39, %c0_140, %c0_141] : memref<49x32x64xf32, #tpu.memory_space<vmem>>, vector<1x32x64xf32>
    %325 = vector.shape_cast %324 : vector<1x32x64xf32> to vector<32x64xf32>
    %326 = vector.broadcast %323 : vector<32x1xf32> to vector<32x64xf32>
    %327 = arith.mulf %326, %325 : vector<32x64xf32>
    %328 = arith.addf %322, %327 : vector<32x64xf32>
    %329 = vector.extract_strided_slice %87 {offsets = [0, 170], sizes = [32, 1], strides = [1, 1]} : vector<32x205xf32> to vector<32x1xf32>
    %c40 = arith.constant 40 : index
    %c0_142 = arith.constant 0 : index
    %c0_143 = arith.constant 0 : index
    %330 = vector.load %arg7[%c40, %c0_142, %c0_143] : memref<49x32x64xf32, #tpu.memory_space<vmem>>, vector<1x32x64xf32>
    %331 = vector.shape_cast %330 : vector<1x32x64xf32> to vector<32x64xf32>
    %332 = vector.broadcast %329 : vector<32x1xf32> to vector<32x64xf32>
    %333 = arith.mulf %332, %331 : vector<32x64xf32>
    %334 = arith.addf %328, %333 : vector<32x64xf32>
    %335 = vector.extract_strided_slice %87 {offsets = [0, 172], sizes = [32, 1], strides = [1, 1]} : vector<32x205xf32> to vector<32x1xf32>
    %c41 = arith.constant 41 : index
    %c0_144 = arith.constant 0 : index
    %c0_145 = arith.constant 0 : index
    %336 = vector.load %arg7[%c41, %c0_144, %c0_145] : memref<49x32x64xf32, #tpu.memory_space<vmem>>, vector<1x32x64xf32>
    %337 = vector.shape_cast %336 : vector<1x32x64xf32> to vector<32x64xf32>
    %338 = vector.broadcast %335 : vector<32x1xf32> to vector<32x64xf32>
    %339 = arith.mulf %338, %337 : vector<32x64xf32>
    %340 = arith.addf %334, %339 : vector<32x64xf32>
    %341 = vector.extract_strided_slice %87 {offsets = [0, 192], sizes = [32, 1], strides = [1, 1]} : vector<32x205xf32> to vector<32x1xf32>
    %c42 = arith.constant 42 : index
    %c0_146 = arith.constant 0 : index
    %c0_147 = arith.constant 0 : index
    %342 = vector.load %arg7[%c42, %c0_146, %c0_147] : memref<49x32x64xf32, #tpu.memory_space<vmem>>, vector<1x32x64xf32>
    %343 = vector.shape_cast %342 : vector<1x32x64xf32> to vector<32x64xf32>
    %344 = vector.broadcast %341 : vector<32x1xf32> to vector<32x64xf32>
    %345 = arith.mulf %344, %343 : vector<32x64xf32>
    %346 = arith.addf %340, %345 : vector<32x64xf32>
    %347 = vector.extract_strided_slice %87 {offsets = [0, 194], sizes = [32, 1], strides = [1, 1]} : vector<32x205xf32> to vector<32x1xf32>
    %c43 = arith.constant 43 : index
    %c0_148 = arith.constant 0 : index
    %c0_149 = arith.constant 0 : index
    %348 = vector.load %arg7[%c43, %c0_148, %c0_149] : memref<49x32x64xf32, #tpu.memory_space<vmem>>, vector<1x32x64xf32>
    %349 = vector.shape_cast %348 : vector<1x32x64xf32> to vector<32x64xf32>
    %350 = vector.broadcast %347 : vector<32x1xf32> to vector<32x64xf32>
    %351 = arith.mulf %350, %349 : vector<32x64xf32>
    %352 = arith.addf %346, %351 : vector<32x64xf32>
    %353 = vector.extract_strided_slice %87 {offsets = [0, 196], sizes = [32, 1], strides = [1, 1]} : vector<32x205xf32> to vector<32x1xf32>
    %c44 = arith.constant 44 : index
    %c0_150 = arith.constant 0 : index
    %c0_151 = arith.constant 0 : index
    %354 = vector.load %arg7[%c44, %c0_150, %c0_151] : memref<49x32x64xf32, #tpu.memory_space<vmem>>, vector<1x32x64xf32>
    %355 = vector.shape_cast %354 : vector<1x32x64xf32> to vector<32x64xf32>
    %356 = vector.broadcast %353 : vector<32x1xf32> to vector<32x64xf32>
    %357 = arith.mulf %356, %355 : vector<32x64xf32>
    %358 = arith.addf %352, %357 : vector<32x64xf32>
    %359 = vector.extract_strided_slice %87 {offsets = [0, 198], sizes = [32, 1], strides = [1, 1]} : vector<32x205xf32> to vector<32x1xf32>
    %c45 = arith.constant 45 : index
    %c0_152 = arith.constant 0 : index
    %c0_153 = arith.constant 0 : index
    %360 = vector.load %arg7[%c45, %c0_152, %c0_153] : memref<49x32x64xf32, #tpu.memory_space<vmem>>, vector<1x32x64xf32>
    %361 = vector.shape_cast %360 : vector<1x32x64xf32> to vector<32x64xf32>
    %362 = vector.broadcast %359 : vector<32x1xf32> to vector<32x64xf32>
    %363 = arith.mulf %362, %361 : vector<32x64xf32>
    %364 = arith.addf %358, %363 : vector<32x64xf32>
    %365 = vector.extract_strided_slice %87 {offsets = [0, 200], sizes = [32, 1], strides = [1, 1]} : vector<32x205xf32> to vector<32x1xf32>
    %c46 = arith.constant 46 : index
    %c0_154 = arith.constant 0 : index
    %c0_155 = arith.constant 0 : index
    %366 = vector.load %arg7[%c46, %c0_154, %c0_155] : memref<49x32x64xf32, #tpu.memory_space<vmem>>, vector<1x32x64xf32>
    %367 = vector.shape_cast %366 : vector<1x32x64xf32> to vector<32x64xf32>
    %368 = vector.broadcast %365 : vector<32x1xf32> to vector<32x64xf32>
    %369 = arith.mulf %368, %367 : vector<32x64xf32>
    %370 = arith.addf %364, %369 : vector<32x64xf32>
    %371 = vector.extract_strided_slice %87 {offsets = [0, 202], sizes = [32, 1], strides = [1, 1]} : vector<32x205xf32> to vector<32x1xf32>
    %c47 = arith.constant 47 : index
    %c0_156 = arith.constant 0 : index
    %c0_157 = arith.constant 0 : index
    %372 = vector.load %arg7[%c47, %c0_156, %c0_157] : memref<49x32x64xf32, #tpu.memory_space<vmem>>, vector<1x32x64xf32>
    %373 = vector.shape_cast %372 : vector<1x32x64xf32> to vector<32x64xf32>
    %374 = vector.broadcast %371 : vector<32x1xf32> to vector<32x64xf32>
    %375 = arith.mulf %374, %373 : vector<32x64xf32>
    %376 = arith.addf %370, %375 : vector<32x64xf32>
    %377 = vector.extract_strided_slice %87 {offsets = [0, 204], sizes = [32, 1], strides = [1, 1]} : vector<32x205xf32> to vector<32x1xf32>
    %c48_158 = arith.constant 48 : index
    %c0_159 = arith.constant 0 : index
    %c0_160 = arith.constant 0 : index
    %378 = vector.load %arg7[%c48_158, %c0_159, %c0_160] : memref<49x32x64xf32, #tpu.memory_space<vmem>>, vector<1x32x64xf32>
    %379 = vector.shape_cast %378 : vector<1x32x64xf32> to vector<32x64xf32>
    %380 = vector.broadcast %377 : vector<32x1xf32> to vector<32x64xf32>
    %381 = arith.mulf %380, %379 : vector<32x64xf32>
    %382 = arith.addf %376, %381 : vector<32x64xf32>
    %cst_161 = arith.constant dense<0.000000e+00> : vector<64xf32>
    %383 = vector.multi_reduction <add>, %382, %cst_161 [0] : vector<32x64xf32> to vector<64xf32>
    %384 = vector.shape_cast %383 : vector<64xf32> to vector<1x64xf32>
    %c0_162 = arith.constant 0 : index
    %c0_163 = arith.constant 0 : index
    %385 = vector.load %arg8[%c0_162, %c0_163] : memref<1x64xf32, #tpu.memory_space<vmem>>, vector<1x64xf32>
    %386 = arith.addf %384, %385 : vector<1x64xf32>
    %c0_164 = arith.constant 0 : index
    %c0_165 = arith.constant 0 : index
    %c0_166 = arith.constant 0 : index
    %387 = vector.load %arg11[%c0_164, %c0_165, %c0_166] : memref<1x1x64xf32, #tpu.memory_space<vmem>>, vector<1x1x64xf32>
    %388 = vector.shape_cast %387 : vector<1x1x64xf32> to vector<1x64xf32>
    %389 = vector.shape_cast %386 : vector<1x64xf32> to vector<1x1x64xf32>
    tpu.vector_store %arg11[%c0_164, %c0_165, %c0_166], %389 {strides = array<i32>} : memref<1x1x64xf32, #tpu.memory_space<vmem>>, vector<1x1x64xf32>,
    %c0_167 = arith.constant 0 : index
    %c0_168 = arith.constant 0 : index
    %390 = vector.load %arg9[%c0_167, %c0_168] : memref<64x1568xf32, #tpu.memory_space<vmem>>, vector<64x1568xf32>
    %cst_169 = arith.constant dense<0.000000e+00> : vector<1x1568xf32>
    %391 = tpu.matmul %386, %390, %cst_169 {dimension_numbers = #tpu.dot_dimension_numbers<[1], [0], [0], [1], [0, 0, 1, 1], [], []>} : vector<1x64xf32>, vector<64x1568xf32>, vector<1x1568xf32> -> vector<1x1568xf32>
    %c0_170 = arith.constant 0 : index
    %c0_171 = arith.constant 0 : index
    %392 = vector.load %arg10[%c0_170, %c0_171] : memref<1x1568xf32, #tpu.memory_space<vmem>>, vector<1x1568xf32>
    %393 = arith.addf %391, %392 : vector<1x1568xf32>
    %cst_172 = arith.constant 0.000000e+00 : f32
    %394 = vector.broadcast %cst_172 : f32 to vector<1x1568xf32>
    %395 = arith.maximumf %393, %394 : vector<1x1568xf32>
    %c0_173 = arith.constant 0 : index
    %c0_174 = arith.constant 0 : index
    %c0_175 = arith.constant 0 : index
    %396 = vector.load %arg12[%c0_173, %c0_174, %c0_175] : memref<1x1x1568xf32, #tpu.memory_space<vmem>>, vector<1x1x1568xf32>
    %397 = vector.shape_cast %396 : vector<1x1x1568xf32> to vector<1x1568xf32>
    %398 = vector.shape_cast %395 : vector<1x1568xf32> to vector<1x1x1568xf32>
    tpu.vector_store %arg12[%c0_173, %c0_174, %c0_175], %398 {strides = array<i32>} : memref<1x1x1568xf32, #tpu.memory_space<vmem>>, vector<1x1x1568xf32>,
    return
  }
  func.func @transform_0(%arg0: i32) -> (i32, i32, i32) {
    %c0_i32 = arith.constant 0 : i32
    %c0_i32_0 = arith.constant 0 : i32
    %c0_i32_1 = arith.constant 0 : i32
    return %arg0, %c0_i32, %c0_i32_0 : i32, i32, i32
  }
  func.func @transform_1(%arg0: i32) -> (i32, i32) {
    %c0_i32 = arith.constant 0 : i32
    %c0_i32_0 = arith.constant 0 : i32
    %c0_i32_1 = arith.constant 0 : i32
    return %c0_i32, %c0_i32_0 : i32, i32
  }
  func.func @transform_2(%arg0: i32) -> (i32, i32) {
    %c0_i32 = arith.constant 0 : i32
    %c0_i32_0 = arith.constant 0 : i32
    %c0_i32_1 = arith.constant 0 : i32
    return %c0_i32, %c0_i32_0 : i32, i32
  }
  func.func @transform_3(%arg0: i32) -> (i32, i32) {
    %c0_i32 = arith.constant 0 : i32
    %c0_i32_0 = arith.constant 0 : i32
    %c0_i32_1 = arith.constant 0 : i32
    return %c0_i32, %c0_i32_0 : i32, i32
  }
  func.func @transform_4(%arg0: i32) -> (i32, i32) {
    %c0_i32 = arith.constant 0 : i32
    %c0_i32_0 = arith.constant 0 : i32
    %c0_i32_1 = arith.constant 0 : i32
    return %c0_i32, %c0_i32_0 : i32, i32
  }
  func.func @transform_5(%arg0: i32) -> (i32, i32) {
    %c0_i32 = arith.constant 0 : i32
    %c0_i32_0 = arith.constant 0 : i32
    %c0_i32_1 = arith.constant 0 : i32
    return %c0_i32, %c0_i32_0 : i32, i32
  }
  func.func @transform_6(%arg0: i32) -> (i32, i32, i32) {
    %c0_i32 = arith.constant 0 : i32
    %c0_i32_0 = arith.constant 0 : i32
    %c0_i32_1 = arith.constant 0 : i32
    %c0_i32_2 = arith.constant 0 : i32
    return %c0_i32, %c0_i32_0, %c0_i32_1 : i32, i32, i32
  }
  func.func @transform_7(%arg0: i32) -> (i32, i32) {
    %c0_i32 = arith.constant 0 : i32
    %c0_i32_0 = arith.constant 0 : i32
    %c0_i32_1 = arith.constant 0 : i32
    return %c0_i32, %c0_i32_0 : i32, i32
  }
  func.func @transform_8(%arg0: i32) -> (i32, i32) {
    %c0_i32 = arith.constant 0 : i32
    %c0_i32_0 = arith.constant 0 : i32
    %c0_i32_1 = arith.constant 0 : i32
    return %c0_i32, %c0_i32_0 : i32, i32
  }
  func.func @transform_9(%arg0: i32) -> (i32, i32) {
    %c0_i32 = arith.constant 0 : i32
    %c0_i32_0 = arith.constant 0 : i32
    %c0_i32_1 = arith.constant 0 : i32
    return %c0_i32, %c0_i32_0 : i32, i32
  }
  func.func @transform_10(%arg0: i32) -> (i32, i32, i32) {
    %c0_i32 = arith.constant 0 : i32
    %c0_i32_0 = arith.constant 0 : i32
    %c0_i32_1 = arith.constant 0 : i32
    return %arg0, %c0_i32, %c0_i32_0 : i32, i32, i32
  }
  func.func @transform_11(%arg0: i32) -> (i32, i32, i32) {
    %c0_i32 = arith.constant 0 : i32
    %c0_i32_0 = arith.constant 0 : i32
    %c0_i32_1 = arith.constant 0 : i32
    return %arg0, %c0_i32, %c0_i32_0 : i32, i32, i32
  }
}

module attributes {stable_mosaic.version = 11 : i64} {
  func.func @_decoder_kernel(%arg0: i32, %arg1: memref<1x32x49xf32, #tpu.memory_space<vmem>>, %arg2: memref<49x256xf32, #tpu.memory_space<vmem>>, %arg3: memref<16x288xf32, #tpu.memory_space<vmem>>, %arg4: memref<16x1xf32, #tpu.memory_space<vmem>>, %arg5: memref<222x900xf32, #tpu.memory_space<vmem>>, %arg6: memref<3x144xf32, #tpu.memory_space<vmem>>, %arg7: memref<3x1xf32, #tpu.memory_space<vmem>>, %arg8: memref<1x3x784xf32, #tpu.memory_space<vmem>>) attributes {dimension_semantics = [#tpu.dimension_semantics<parallel>], iteration_bounds = array<i64: 2>, scalar_prefetch = 0 : i64, scratch_operands = 0 : i64, tpu.core_type = #tpu.core_type<tc>, window_params = [{transform_indices = @transform_0, window_bounds = array<i64: 1, 32, 49>}, {pipeline_mode = #tpu.pipeline_mode<synchronous>, transform_indices = @transform_1, window_bounds = array<i64: 49, 256>}, {pipeline_mode = #tpu.pipeline_mode<synchronous>, transform_indices = @transform_2, window_bounds = array<i64: 16, 288>}, {pipeline_mode = #tpu.pipeline_mode<synchronous>, transform_indices = @transform_3, window_bounds = array<i64: 16, 1>}, {pipeline_mode = #tpu.pipeline_mode<synchronous>, transform_indices = @transform_4, window_bounds = array<i64: 222, 900>}, {pipeline_mode = #tpu.pipeline_mode<synchronous>, transform_indices = @transform_5, window_bounds = array<i64: 3, 144>}, {pipeline_mode = #tpu.pipeline_mode<synchronous>, transform_indices = @transform_6, window_bounds = array<i64: 3, 1>}, {transform_indices = @transform_7, window_bounds = array<i64: 1, 3, 784>}]} {
    %c0 = arith.constant 0 : index
    %c0_0 = arith.constant 0 : index
    %c0_1 = arith.constant 0 : index
    %0 = vector.load %arg1[%c0, %c0_0, %c0_1] : memref<1x32x49xf32, #tpu.memory_space<vmem>>, vector<1x32x49xf32>
    %1 = vector.shape_cast %0 : vector<1x32x49xf32> to vector<32x49xf32>
    %c0_2 = arith.constant 0 : index
    %c0_3 = arith.constant 0 : index
    %2 = vector.load %arg2[%c0_2, %c0_3] : memref<49x256xf32, #tpu.memory_space<vmem>>, vector<49x256xf32>
    %cst = arith.constant dense<0.000000e+00> : vector<32x256xf32>
    %3 = tpu.matmul %1, %2, %cst {dimension_numbers = #tpu.dot_dimension_numbers<[1], [0], [0], [1], [0, 0, 1, 1], [], []>} : vector<32x49xf32>, vector<49x256xf32>, vector<32x256xf32> -> vector<32x256xf32>
    %cst_4 = arith.constant 0.000000e+00 : f32
    %4 = vector.broadcast %cst_4 : f32 to vector<16x222xf32>
    %c0_5 = arith.constant 0 : index
    %c0_6 = arith.constant 0 : index
    %5 = vector.load %arg3[%c0_5, %c0_6] : memref<16x288xf32, #tpu.memory_space<vmem>>, vector<16x32xf32>
    %6 = vector.extract_strided_slice %3 {offsets = [0, 0], sizes = [32, 222], strides = [1, 1]} : vector<32x256xf32> to vector<32x222xf32>
    %cst_7 = arith.constant dense<0.000000e+00> : vector<16x222xf32>
    %7 = tpu.matmul %5, %6, %cst_7 {dimension_numbers = #tpu.dot_dimension_numbers<[1], [0], [0], [1], [0, 0, 1, 1], [], []>} : vector<16x32xf32>, vector<32x222xf32>, vector<16x222xf32> -> vector<16x222xf32>
    %8 = arith.addf %4, %7 : vector<16x222xf32>
    %c0_8 = arith.constant 0 : index
    %c32 = arith.constant 32 : index
    %9 = vector.load %arg3[%c0_8, %c32] : memref<16x288xf32, #tpu.memory_space<vmem>>, vector<16x32xf32>
    %10 = vector.extract_strided_slice %3 {offsets = [0, 1], sizes = [32, 222], strides = [1, 1]} : vector<32x256xf32> to vector<32x222xf32>
    %cst_9 = arith.constant dense<0.000000e+00> : vector<16x222xf32>
    %11 = tpu.matmul %9, %10, %cst_9 {dimension_numbers = #tpu.dot_dimension_numbers<[1], [0], [0], [1], [0, 0, 1, 1], [], []>} : vector<16x32xf32>, vector<32x222xf32>, vector<16x222xf32> -> vector<16x222xf32>
    %12 = arith.addf %8, %11 : vector<16x222xf32>
    %c0_10 = arith.constant 0 : index
    %c64 = arith.constant 64 : index
    %13 = vector.load %arg3[%c0_10, %c64] : memref<16x288xf32, #tpu.memory_space<vmem>>, vector<16x32xf32>
    %14 = vector.extract_strided_slice %3 {offsets = [0, 2], sizes = [32, 222], strides = [1, 1]} : vector<32x256xf32> to vector<32x222xf32>
    %cst_11 = arith.constant dense<0.000000e+00> : vector<16x222xf32>
    %15 = tpu.matmul %13, %14, %cst_11 {dimension_numbers = #tpu.dot_dimension_numbers<[1], [0], [0], [1], [0, 0, 1, 1], [], []>} : vector<16x32xf32>, vector<32x222xf32>, vector<16x222xf32> -> vector<16x222xf32>
    %16 = arith.addf %12, %15 : vector<16x222xf32>
    %c0_12 = arith.constant 0 : index
    %c96 = arith.constant 96 : index
    %17 = vector.load %arg3[%c0_12, %c96] : memref<16x288xf32, #tpu.memory_space<vmem>>, vector<16x32xf32>
    %18 = vector.extract_strided_slice %3 {offsets = [0, 16], sizes = [32, 222], strides = [1, 1]} : vector<32x256xf32> to vector<32x222xf32>
    %cst_13 = arith.constant dense<0.000000e+00> : vector<16x222xf32>
    %19 = tpu.matmul %17, %18, %cst_13 {dimension_numbers = #tpu.dot_dimension_numbers<[1], [0], [0], [1], [0, 0, 1, 1], [], []>} : vector<16x32xf32>, vector<32x222xf32>, vector<16x222xf32> -> vector<16x222xf32>
    %20 = arith.addf %16, %19 : vector<16x222xf32>
    %c0_14 = arith.constant 0 : index
    %c128 = arith.constant 128 : index
    %21 = vector.load %arg3[%c0_14, %c128] : memref<16x288xf32, #tpu.memory_space<vmem>>, vector<16x32xf32>
    %22 = vector.extract_strided_slice %3 {offsets = [0, 17], sizes = [32, 222], strides = [1, 1]} : vector<32x256xf32> to vector<32x222xf32>
    %cst_15 = arith.constant dense<0.000000e+00> : vector<16x222xf32>
    %23 = tpu.matmul %21, %22, %cst_15 {dimension_numbers = #tpu.dot_dimension_numbers<[1], [0], [0], [1], [0, 0, 1, 1], [], []>} : vector<16x32xf32>, vector<32x222xf32>, vector<16x222xf32> -> vector<16x222xf32>
    %24 = arith.addf %20, %23 : vector<16x222xf32>
    %c0_16 = arith.constant 0 : index
    %c160 = arith.constant 160 : index
    %25 = vector.load %arg3[%c0_16, %c160] : memref<16x288xf32, #tpu.memory_space<vmem>>, vector<16x32xf32>
    %26 = vector.extract_strided_slice %3 {offsets = [0, 18], sizes = [32, 222], strides = [1, 1]} : vector<32x256xf32> to vector<32x222xf32>
    %cst_17 = arith.constant dense<0.000000e+00> : vector<16x222xf32>
    %27 = tpu.matmul %25, %26, %cst_17 {dimension_numbers = #tpu.dot_dimension_numbers<[1], [0], [0], [1], [0, 0, 1, 1], [], []>} : vector<16x32xf32>, vector<32x222xf32>, vector<16x222xf32> -> vector<16x222xf32>
    %28 = arith.addf %24, %27 : vector<16x222xf32>
    %c0_18 = arith.constant 0 : index
    %c192 = arith.constant 192 : index
    %29 = vector.load %arg3[%c0_18, %c192] : memref<16x288xf32, #tpu.memory_space<vmem>>, vector<16x32xf32>
    %30 = vector.extract_strided_slice %3 {offsets = [0, 32], sizes = [32, 222], strides = [1, 1]} : vector<32x256xf32> to vector<32x222xf32>
    %cst_19 = arith.constant dense<0.000000e+00> : vector<16x222xf32>
    %31 = tpu.matmul %29, %30, %cst_19 {dimension_numbers = #tpu.dot_dimension_numbers<[1], [0], [0], [1], [0, 0, 1, 1], [], []>} : vector<16x32xf32>, vector<32x222xf32>, vector<16x222xf32> -> vector<16x222xf32>
    %32 = arith.addf %28, %31 : vector<16x222xf32>
    %c0_20 = arith.constant 0 : index
    %c224 = arith.constant 224 : index
    %33 = vector.load %arg3[%c0_20, %c224] : memref<16x288xf32, #tpu.memory_space<vmem>>, vector<16x32xf32>
    %34 = vector.extract_strided_slice %3 {offsets = [0, 33], sizes = [32, 222], strides = [1, 1]} : vector<32x256xf32> to vector<32x222xf32>
    %cst_21 = arith.constant dense<0.000000e+00> : vector<16x222xf32>
    %35 = tpu.matmul %33, %34, %cst_21 {dimension_numbers = #tpu.dot_dimension_numbers<[1], [0], [0], [1], [0, 0, 1, 1], [], []>} : vector<16x32xf32>, vector<32x222xf32>, vector<16x222xf32> -> vector<16x222xf32>
    %36 = arith.addf %32, %35 : vector<16x222xf32>
    %c0_22 = arith.constant 0 : index
    %c256 = arith.constant 256 : index
    %37 = vector.load %arg3[%c0_22, %c256] : memref<16x288xf32, #tpu.memory_space<vmem>>, vector<16x32xf32>
    %38 = vector.extract_strided_slice %3 {offsets = [0, 34], sizes = [32, 222], strides = [1, 1]} : vector<32x256xf32> to vector<32x222xf32>
    %cst_23 = arith.constant dense<0.000000e+00> : vector<16x222xf32>
    %39 = tpu.matmul %37, %38, %cst_23 {dimension_numbers = #tpu.dot_dimension_numbers<[1], [0], [0], [1], [0, 0, 1, 1], [], []>} : vector<16x32xf32>, vector<32x222xf32>, vector<16x222xf32> -> vector<16x222xf32>
    %40 = arith.addf %36, %39 : vector<16x222xf32>
    %c0_24 = arith.constant 0 : index
    %c0_25 = arith.constant 0 : index
    %41 = vector.load %arg4[%c0_24, %c0_25] : memref<16x1xf32, #tpu.memory_space<vmem>>, vector<16x1xf32>
    %42 = vector.broadcast %41 : vector<16x1xf32> to vector<16x222xf32>
    %43 = arith.addf %40, %42 : vector<16x222xf32>
    %cst_26 = arith.constant 0.000000e+00 : f32
    %44 = vector.broadcast %cst_26 : f32 to vector<16x222xf32>
    %45 = arith.maximumf %43, %44 : vector<16x222xf32>
    %c0_27 = arith.constant 0 : index
    %c0_28 = arith.constant 0 : index
    %46 = vector.load %arg5[%c0_27, %c0_28] : memref<222x900xf32, #tpu.memory_space<vmem>>, vector<222x900xf32>
    %cst_29 = arith.constant dense<0.000000e+00> : vector<16x900xf32>
    %47 = tpu.matmul %45, %46, %cst_29 {dimension_numbers = #tpu.dot_dimension_numbers<[1], [0], [0], [1], [0, 0, 1, 1], [], []>} : vector<16x222xf32>, vector<222x900xf32>, vector<16x900xf32> -> vector<16x900xf32>
    %cst_30 = arith.constant 0.000000e+00 : f32
    %48 = vector.broadcast %cst_30 : f32 to vector<3x838xf32>
    %c0_31 = arith.constant 0 : index
    %c0_32 = arith.constant 0 : index
    %49 = vector.load %arg6[%c0_31, %c0_32] : memref<3x144xf32, #tpu.memory_space<vmem>>, vector<3x16xf32>
    %50 = vector.extract_strided_slice %47 {offsets = [0, 0], sizes = [16, 838], strides = [1, 1]} : vector<16x900xf32> to vector<16x838xf32>
    %cst_33 = arith.constant dense<0.000000e+00> : vector<3x838xf32>
    %51 = tpu.matmul %49, %50, %cst_33 {dimension_numbers = #tpu.dot_dimension_numbers<[1], [0], [0], [1], [0, 0, 1, 1], [], []>} : vector<3x16xf32>, vector<16x838xf32>, vector<3x838xf32> -> vector<3x838xf32>
    %52 = arith.addf %48, %51 : vector<3x838xf32>
    %c0_34 = arith.constant 0 : index
    %c16 = arith.constant 16 : index
    %53 = vector.load %arg6[%c0_34, %c16] : memref<3x144xf32, #tpu.memory_space<vmem>>, vector<3x16xf32>
    %54 = vector.extract_strided_slice %47 {offsets = [0, 1], sizes = [16, 838], strides = [1, 1]} : vector<16x900xf32> to vector<16x838xf32>
    %cst_35 = arith.constant dense<0.000000e+00> : vector<3x838xf32>
    %55 = tpu.matmul %53, %54, %cst_35 {dimension_numbers = #tpu.dot_dimension_numbers<[1], [0], [0], [1], [0, 0, 1, 1], [], []>} : vector<3x16xf32>, vector<16x838xf32>, vector<3x838xf32> -> vector<3x838xf32>
    %56 = arith.addf %52, %55 : vector<3x838xf32>
    %c0_36 = arith.constant 0 : index
    %c32_37 = arith.constant 32 : index
    %57 = vector.load %arg6[%c0_36, %c32_37] : memref<3x144xf32, #tpu.memory_space<vmem>>, vector<3x16xf32>
    %58 = vector.extract_strided_slice %47 {offsets = [0, 2], sizes = [16, 838], strides = [1, 1]} : vector<16x900xf32> to vector<16x838xf32>
    %cst_38 = arith.constant dense<0.000000e+00> : vector<3x838xf32>
    %59 = tpu.matmul %57, %58, %cst_38 {dimension_numbers = #tpu.dot_dimension_numbers<[1], [0], [0], [1], [0, 0, 1, 1], [], []>} : vector<3x16xf32>, vector<16x838xf32>, vector<3x838xf32> -> vector<3x838xf32>
    %60 = arith.addf %56, %59 : vector<3x838xf32>
    %c0_39 = arith.constant 0 : index
    %c48 = arith.constant 48 : index
    %61 = vector.load %arg6[%c0_39, %c48] : memref<3x144xf32, #tpu.memory_space<vmem>>, vector<3x16xf32>
    %62 = vector.extract_strided_slice %47 {offsets = [0, 30], sizes = [16, 838], strides = [1, 1]} : vector<16x900xf32> to vector<16x838xf32>
    %cst_40 = arith.constant dense<0.000000e+00> : vector<3x838xf32>
    %63 = tpu.matmul %61, %62, %cst_40 {dimension_numbers = #tpu.dot_dimension_numbers<[1], [0], [0], [1], [0, 0, 1, 1], [], []>} : vector<3x16xf32>, vector<16x838xf32>, vector<3x838xf32> -> vector<3x838xf32>
    %64 = arith.addf %60, %63 : vector<3x838xf32>
    %c0_41 = arith.constant 0 : index
    %c64_42 = arith.constant 64 : index
    %65 = vector.load %arg6[%c0_41, %c64_42] : memref<3x144xf32, #tpu.memory_space<vmem>>, vector<3x16xf32>
    %66 = vector.extract_strided_slice %47 {offsets = [0, 31], sizes = [16, 838], strides = [1, 1]} : vector<16x900xf32> to vector<16x838xf32>
    %cst_43 = arith.constant dense<0.000000e+00> : vector<3x838xf32>
    %67 = tpu.matmul %65, %66, %cst_43 {dimension_numbers = #tpu.dot_dimension_numbers<[1], [0], [0], [1], [0, 0, 1, 1], [], []>} : vector<3x16xf32>, vector<16x838xf32>, vector<3x838xf32> -> vector<3x838xf32>
    %68 = arith.addf %64, %67 : vector<3x838xf32>
    %c0_44 = arith.constant 0 : index
    %c80 = arith.constant 80 : index
    %69 = vector.load %arg6[%c0_44, %c80] : memref<3x144xf32, #tpu.memory_space<vmem>>, vector<3x16xf32>
    %70 = vector.extract_strided_slice %47 {offsets = [0, 32], sizes = [16, 838], strides = [1, 1]} : vector<16x900xf32> to vector<16x838xf32>
    %cst_45 = arith.constant dense<0.000000e+00> : vector<3x838xf32>
    %71 = tpu.matmul %69, %70, %cst_45 {dimension_numbers = #tpu.dot_dimension_numbers<[1], [0], [0], [1], [0, 0, 1, 1], [], []>} : vector<3x16xf32>, vector<16x838xf32>, vector<3x838xf32> -> vector<3x838xf32>
    %72 = arith.addf %68, %71 : vector<3x838xf32>
    %c0_46 = arith.constant 0 : index
    %c96_47 = arith.constant 96 : index
    %73 = vector.load %arg6[%c0_46, %c96_47] : memref<3x144xf32, #tpu.memory_space<vmem>>, vector<3x16xf32>
    %74 = vector.extract_strided_slice %47 {offsets = [0, 60], sizes = [16, 838], strides = [1, 1]} : vector<16x900xf32> to vector<16x838xf32>
    %cst_48 = arith.constant dense<0.000000e+00> : vector<3x838xf32>
    %75 = tpu.matmul %73, %74, %cst_48 {dimension_numbers = #tpu.dot_dimension_numbers<[1], [0], [0], [1], [0, 0, 1, 1], [], []>} : vector<3x16xf32>, vector<16x838xf32>, vector<3x838xf32> -> vector<3x838xf32>
    %76 = arith.addf %72, %75 : vector<3x838xf32>
    %c0_49 = arith.constant 0 : index
    %c112 = arith.constant 112 : index
    %77 = vector.load %arg6[%c0_49, %c112] : memref<3x144xf32, #tpu.memory_space<vmem>>, vector<3x16xf32>
    %78 = vector.extract_strided_slice %47 {offsets = [0, 61], sizes = [16, 838], strides = [1, 1]} : vector<16x900xf32> to vector<16x838xf32>
    %cst_50 = arith.constant dense<0.000000e+00> : vector<3x838xf32>
    %79 = tpu.matmul %77, %78, %cst_50 {dimension_numbers = #tpu.dot_dimension_numbers<[1], [0], [0], [1], [0, 0, 1, 1], [], []>} : vector<3x16xf32>, vector<16x838xf32>, vector<3x838xf32> -> vector<3x838xf32>
    %80 = arith.addf %76, %79 : vector<3x838xf32>
    %c0_51 = arith.constant 0 : index
    %c128_52 = arith.constant 128 : index
    %81 = vector.load %arg6[%c0_51, %c128_52] : memref<3x144xf32, #tpu.memory_space<vmem>>, vector<3x16xf32>
    %82 = vector.extract_strided_slice %47 {offsets = [0, 62], sizes = [16, 838], strides = [1, 1]} : vector<16x900xf32> to vector<16x838xf32>
    %cst_53 = arith.constant dense<0.000000e+00> : vector<3x838xf32>
    %83 = tpu.matmul %81, %82, %cst_53 {dimension_numbers = #tpu.dot_dimension_numbers<[1], [0], [0], [1], [0, 0, 1, 1], [], []>} : vector<3x16xf32>, vector<16x838xf32>, vector<3x838xf32> -> vector<3x838xf32>
    %84 = arith.addf %80, %83 : vector<3x838xf32>
    %c0_54 = arith.constant 0 : index
    %c0_55 = arith.constant 0 : index
    %85 = vector.load %arg7[%c0_54, %c0_55] : memref<3x1xf32, #tpu.memory_space<vmem>>, vector<3x1xf32>
    %86 = vector.broadcast %85 : vector<3x1xf32> to vector<3x838xf32>
    %87 = arith.addf %84, %86 : vector<3x838xf32>
    %88 = math.tanh %87 : vector<3x838xf32>
    %89 = vector.extract_strided_slice %88 {offsets = [0, 0], sizes = [3, 28], strides = [1, 1]} : vector<3x838xf32> to vector<3x28xf32>
    %c0_56 = arith.constant 0 : index
    %c0_57 = arith.constant 0 : index
    %c0_58 = arith.constant 0 : index
    %90 = vector.load %arg8[%c0_56, %c0_57, %c0_58] : memref<1x3x784xf32, #tpu.memory_space<vmem>>, vector<1x3x28xf32>
    %91 = vector.shape_cast %90 : vector<1x3x28xf32> to vector<3x28xf32>
    %92 = vector.shape_cast %89 : vector<3x28xf32> to vector<1x3x28xf32>
    tpu.vector_store %arg8[%c0_56, %c0_57, %c0_58], %92 {strides = array<i32>} : memref<1x3x784xf32, #tpu.memory_space<vmem>>, vector<1x3x28xf32>,
    %93 = vector.extract_strided_slice %88 {offsets = [0, 30], sizes = [3, 28], strides = [1, 1]} : vector<3x838xf32> to vector<3x28xf32>
    %c0_59 = arith.constant 0 : index
    %c0_60 = arith.constant 0 : index
    %c28 = arith.constant 28 : index
    %94 = vector.load %arg8[%c0_59, %c0_60, %c28] : memref<1x3x784xf32, #tpu.memory_space<vmem>>, vector<1x3x28xf32>
    %95 = vector.shape_cast %94 : vector<1x3x28xf32> to vector<3x28xf32>
    %96 = vector.shape_cast %93 : vector<3x28xf32> to vector<1x3x28xf32>
    tpu.vector_store %arg8[%c0_59, %c0_60, %c28], %96 {strides = array<i32>} : memref<1x3x784xf32, #tpu.memory_space<vmem>>, vector<1x3x28xf32>,
    %97 = vector.extract_strided_slice %88 {offsets = [0, 60], sizes = [3, 28], strides = [1, 1]} : vector<3x838xf32> to vector<3x28xf32>
    %c0_61 = arith.constant 0 : index
    %c0_62 = arith.constant 0 : index
    %c56 = arith.constant 56 : index
    %98 = vector.load %arg8[%c0_61, %c0_62, %c56] : memref<1x3x784xf32, #tpu.memory_space<vmem>>, vector<1x3x28xf32>
    %99 = vector.shape_cast %98 : vector<1x3x28xf32> to vector<3x28xf32>
    %100 = vector.shape_cast %97 : vector<3x28xf32> to vector<1x3x28xf32>
    tpu.vector_store %arg8[%c0_61, %c0_62, %c56], %100 {strides = array<i32>} : memref<1x3x784xf32, #tpu.memory_space<vmem>>, vector<1x3x28xf32>,
    %101 = vector.extract_strided_slice %88 {offsets = [0, 90], sizes = [3, 28], strides = [1, 1]} : vector<3x838xf32> to vector<3x28xf32>
    %c0_63 = arith.constant 0 : index
    %c0_64 = arith.constant 0 : index
    %c84 = arith.constant 84 : index
    %102 = vector.load %arg8[%c0_63, %c0_64, %c84] : memref<1x3x784xf32, #tpu.memory_space<vmem>>, vector<1x3x28xf32>
    %103 = vector.shape_cast %102 : vector<1x3x28xf32> to vector<3x28xf32>
    %104 = vector.shape_cast %101 : vector<3x28xf32> to vector<1x3x28xf32>
    tpu.vector_store %arg8[%c0_63, %c0_64, %c84], %104 {strides = array<i32>} : memref<1x3x784xf32, #tpu.memory_space<vmem>>, vector<1x3x28xf32>,
    %105 = vector.extract_strided_slice %88 {offsets = [0, 120], sizes = [3, 28], strides = [1, 1]} : vector<3x838xf32> to vector<3x28xf32>
    %c0_65 = arith.constant 0 : index
    %c0_66 = arith.constant 0 : index
    %c112_67 = arith.constant 112 : index
    %106 = vector.load %arg8[%c0_65, %c0_66, %c112_67] : memref<1x3x784xf32, #tpu.memory_space<vmem>>, vector<1x3x28xf32>
    %107 = vector.shape_cast %106 : vector<1x3x28xf32> to vector<3x28xf32>
    %108 = vector.shape_cast %105 : vector<3x28xf32> to vector<1x3x28xf32>
    tpu.vector_store %arg8[%c0_65, %c0_66, %c112_67], %108 {strides = array<i32>} : memref<1x3x784xf32, #tpu.memory_space<vmem>>, vector<1x3x28xf32>,
    %109 = vector.extract_strided_slice %88 {offsets = [0, 150], sizes = [3, 28], strides = [1, 1]} : vector<3x838xf32> to vector<3x28xf32>
    %c0_68 = arith.constant 0 : index
    %c0_69 = arith.constant 0 : index
    %c140 = arith.constant 140 : index
    %110 = vector.load %arg8[%c0_68, %c0_69, %c140] : memref<1x3x784xf32, #tpu.memory_space<vmem>>, vector<1x3x28xf32>
    %111 = vector.shape_cast %110 : vector<1x3x28xf32> to vector<3x28xf32>
    %112 = vector.shape_cast %109 : vector<3x28xf32> to vector<1x3x28xf32>
    tpu.vector_store %arg8[%c0_68, %c0_69, %c140], %112 {strides = array<i32>} : memref<1x3x784xf32, #tpu.memory_space<vmem>>, vector<1x3x28xf32>,
    %113 = vector.extract_strided_slice %88 {offsets = [0, 180], sizes = [3, 28], strides = [1, 1]} : vector<3x838xf32> to vector<3x28xf32>
    %c0_70 = arith.constant 0 : index
    %c0_71 = arith.constant 0 : index
    %c168 = arith.constant 168 : index
    %114 = vector.load %arg8[%c0_70, %c0_71, %c168] : memref<1x3x784xf32, #tpu.memory_space<vmem>>, vector<1x3x28xf32>
    %115 = vector.shape_cast %114 : vector<1x3x28xf32> to vector<3x28xf32>
    %116 = vector.shape_cast %113 : vector<3x28xf32> to vector<1x3x28xf32>
    tpu.vector_store %arg8[%c0_70, %c0_71, %c168], %116 {strides = array<i32>} : memref<1x3x784xf32, #tpu.memory_space<vmem>>, vector<1x3x28xf32>,
    %117 = vector.extract_strided_slice %88 {offsets = [0, 210], sizes = [3, 28], strides = [1, 1]} : vector<3x838xf32> to vector<3x28xf32>
    %c0_72 = arith.constant 0 : index
    %c0_73 = arith.constant 0 : index
    %c196 = arith.constant 196 : index
    %118 = vector.load %arg8[%c0_72, %c0_73, %c196] : memref<1x3x784xf32, #tpu.memory_space<vmem>>, vector<1x3x28xf32>
    %119 = vector.shape_cast %118 : vector<1x3x28xf32> to vector<3x28xf32>
    %120 = vector.shape_cast %117 : vector<3x28xf32> to vector<1x3x28xf32>
    tpu.vector_store %arg8[%c0_72, %c0_73, %c196], %120 {strides = array<i32>} : memref<1x3x784xf32, #tpu.memory_space<vmem>>, vector<1x3x28xf32>,
    %121 = vector.extract_strided_slice %88 {offsets = [0, 240], sizes = [3, 28], strides = [1, 1]} : vector<3x838xf32> to vector<3x28xf32>
    %c0_74 = arith.constant 0 : index
    %c0_75 = arith.constant 0 : index
    %c224_76 = arith.constant 224 : index
    %122 = vector.load %arg8[%c0_74, %c0_75, %c224_76] : memref<1x3x784xf32, #tpu.memory_space<vmem>>, vector<1x3x28xf32>
    %123 = vector.shape_cast %122 : vector<1x3x28xf32> to vector<3x28xf32>
    %124 = vector.shape_cast %121 : vector<3x28xf32> to vector<1x3x28xf32>
    tpu.vector_store %arg8[%c0_74, %c0_75, %c224_76], %124 {strides = array<i32>} : memref<1x3x784xf32, #tpu.memory_space<vmem>>, vector<1x3x28xf32>,
    %125 = vector.extract_strided_slice %88 {offsets = [0, 270], sizes = [3, 28], strides = [1, 1]} : vector<3x838xf32> to vector<3x28xf32>
    %c0_77 = arith.constant 0 : index
    %c0_78 = arith.constant 0 : index
    %c252 = arith.constant 252 : index
    %126 = vector.load %arg8[%c0_77, %c0_78, %c252] : memref<1x3x784xf32, #tpu.memory_space<vmem>>, vector<1x3x28xf32>
    %127 = vector.shape_cast %126 : vector<1x3x28xf32> to vector<3x28xf32>
    %128 = vector.shape_cast %125 : vector<3x28xf32> to vector<1x3x28xf32>
    tpu.vector_store %arg8[%c0_77, %c0_78, %c252], %128 {strides = array<i32>} : memref<1x3x784xf32, #tpu.memory_space<vmem>>, vector<1x3x28xf32>,
    %129 = vector.extract_strided_slice %88 {offsets = [0, 300], sizes = [3, 28], strides = [1, 1]} : vector<3x838xf32> to vector<3x28xf32>
    %c0_79 = arith.constant 0 : index
    %c0_80 = arith.constant 0 : index
    %c280 = arith.constant 280 : index
    %130 = vector.load %arg8[%c0_79, %c0_80, %c280] : memref<1x3x784xf32, #tpu.memory_space<vmem>>, vector<1x3x28xf32>
    %131 = vector.shape_cast %130 : vector<1x3x28xf32> to vector<3x28xf32>
    %132 = vector.shape_cast %129 : vector<3x28xf32> to vector<1x3x28xf32>
    tpu.vector_store %arg8[%c0_79, %c0_80, %c280], %132 {strides = array<i32>} : memref<1x3x784xf32, #tpu.memory_space<vmem>>, vector<1x3x28xf32>,
    %133 = vector.extract_strided_slice %88 {offsets = [0, 330], sizes = [3, 28], strides = [1, 1]} : vector<3x838xf32> to vector<3x28xf32>
    %c0_81 = arith.constant 0 : index
    %c0_82 = arith.constant 0 : index
    %c308 = arith.constant 308 : index
    %134 = vector.load %arg8[%c0_81, %c0_82, %c308] : memref<1x3x784xf32, #tpu.memory_space<vmem>>, vector<1x3x28xf32>
    %135 = vector.shape_cast %134 : vector<1x3x28xf32> to vector<3x28xf32>
    %136 = vector.shape_cast %133 : vector<3x28xf32> to vector<1x3x28xf32>
    tpu.vector_store %arg8[%c0_81, %c0_82, %c308], %136 {strides = array<i32>} : memref<1x3x784xf32, #tpu.memory_space<vmem>>, vector<1x3x28xf32>,
    %137 = vector.extract_strided_slice %88 {offsets = [0, 360], sizes = [3, 28], strides = [1, 1]} : vector<3x838xf32> to vector<3x28xf32>
    %c0_83 = arith.constant 0 : index
    %c0_84 = arith.constant 0 : index
    %c336 = arith.constant 336 : index
    %138 = vector.load %arg8[%c0_83, %c0_84, %c336] : memref<1x3x784xf32, #tpu.memory_space<vmem>>, vector<1x3x28xf32>
    %139 = vector.shape_cast %138 : vector<1x3x28xf32> to vector<3x28xf32>
    %140 = vector.shape_cast %137 : vector<3x28xf32> to vector<1x3x28xf32>
    tpu.vector_store %arg8[%c0_83, %c0_84, %c336], %140 {strides = array<i32>} : memref<1x3x784xf32, #tpu.memory_space<vmem>>, vector<1x3x28xf32>,
    %141 = vector.extract_strided_slice %88 {offsets = [0, 390], sizes = [3, 28], strides = [1, 1]} : vector<3x838xf32> to vector<3x28xf32>
    %c0_85 = arith.constant 0 : index
    %c0_86 = arith.constant 0 : index
    %c364 = arith.constant 364 : index
    %142 = vector.load %arg8[%c0_85, %c0_86, %c364] : memref<1x3x784xf32, #tpu.memory_space<vmem>>, vector<1x3x28xf32>
    %143 = vector.shape_cast %142 : vector<1x3x28xf32> to vector<3x28xf32>
    %144 = vector.shape_cast %141 : vector<3x28xf32> to vector<1x3x28xf32>
    tpu.vector_store %arg8[%c0_85, %c0_86, %c364], %144 {strides = array<i32>} : memref<1x3x784xf32, #tpu.memory_space<vmem>>, vector<1x3x28xf32>,
    %145 = vector.extract_strided_slice %88 {offsets = [0, 420], sizes = [3, 28], strides = [1, 1]} : vector<3x838xf32> to vector<3x28xf32>
    %c0_87 = arith.constant 0 : index
    %c0_88 = arith.constant 0 : index
    %c392 = arith.constant 392 : index
    %146 = vector.load %arg8[%c0_87, %c0_88, %c392] : memref<1x3x784xf32, #tpu.memory_space<vmem>>, vector<1x3x28xf32>
    %147 = vector.shape_cast %146 : vector<1x3x28xf32> to vector<3x28xf32>
    %148 = vector.shape_cast %145 : vector<3x28xf32> to vector<1x3x28xf32>
    tpu.vector_store %arg8[%c0_87, %c0_88, %c392], %148 {strides = array<i32>} : memref<1x3x784xf32, #tpu.memory_space<vmem>>, vector<1x3x28xf32>,
    %149 = vector.extract_strided_slice %88 {offsets = [0, 450], sizes = [3, 28], strides = [1, 1]} : vector<3x838xf32> to vector<3x28xf32>
    %c0_89 = arith.constant 0 : index
    %c0_90 = arith.constant 0 : index
    %c420 = arith.constant 420 : index
    %150 = vector.load %arg8[%c0_89, %c0_90, %c420] : memref<1x3x784xf32, #tpu.memory_space<vmem>>, vector<1x3x28xf32>
    %151 = vector.shape_cast %150 : vector<1x3x28xf32> to vector<3x28xf32>
    %152 = vector.shape_cast %149 : vector<3x28xf32> to vector<1x3x28xf32>
    tpu.vector_store %arg8[%c0_89, %c0_90, %c420], %152 {strides = array<i32>} : memref<1x3x784xf32, #tpu.memory_space<vmem>>, vector<1x3x28xf32>,
    %153 = vector.extract_strided_slice %88 {offsets = [0, 480], sizes = [3, 28], strides = [1, 1]} : vector<3x838xf32> to vector<3x28xf32>
    %c0_91 = arith.constant 0 : index
    %c0_92 = arith.constant 0 : index
    %c448 = arith.constant 448 : index
    %154 = vector.load %arg8[%c0_91, %c0_92, %c448] : memref<1x3x784xf32, #tpu.memory_space<vmem>>, vector<1x3x28xf32>
    %155 = vector.shape_cast %154 : vector<1x3x28xf32> to vector<3x28xf32>
    %156 = vector.shape_cast %153 : vector<3x28xf32> to vector<1x3x28xf32>
    tpu.vector_store %arg8[%c0_91, %c0_92, %c448], %156 {strides = array<i32>} : memref<1x3x784xf32, #tpu.memory_space<vmem>>, vector<1x3x28xf32>,
    %157 = vector.extract_strided_slice %88 {offsets = [0, 510], sizes = [3, 28], strides = [1, 1]} : vector<3x838xf32> to vector<3x28xf32>
    %c0_93 = arith.constant 0 : index
    %c0_94 = arith.constant 0 : index
    %c476 = arith.constant 476 : index
    %158 = vector.load %arg8[%c0_93, %c0_94, %c476] : memref<1x3x784xf32, #tpu.memory_space<vmem>>, vector<1x3x28xf32>
    %159 = vector.shape_cast %158 : vector<1x3x28xf32> to vector<3x28xf32>
    %160 = vector.shape_cast %157 : vector<3x28xf32> to vector<1x3x28xf32>
    tpu.vector_store %arg8[%c0_93, %c0_94, %c476], %160 {strides = array<i32>} : memref<1x3x784xf32, #tpu.memory_space<vmem>>, vector<1x3x28xf32>,
    %161 = vector.extract_strided_slice %88 {offsets = [0, 540], sizes = [3, 28], strides = [1, 1]} : vector<3x838xf32> to vector<3x28xf32>
    %c0_95 = arith.constant 0 : index
    %c0_96 = arith.constant 0 : index
    %c504 = arith.constant 504 : index
    %162 = vector.load %arg8[%c0_95, %c0_96, %c504] : memref<1x3x784xf32, #tpu.memory_space<vmem>>, vector<1x3x28xf32>
    %163 = vector.shape_cast %162 : vector<1x3x28xf32> to vector<3x28xf32>
    %164 = vector.shape_cast %161 : vector<3x28xf32> to vector<1x3x28xf32>
    tpu.vector_store %arg8[%c0_95, %c0_96, %c504], %164 {strides = array<i32>} : memref<1x3x784xf32, #tpu.memory_space<vmem>>, vector<1x3x28xf32>,
    %165 = vector.extract_strided_slice %88 {offsets = [0, 570], sizes = [3, 28], strides = [1, 1]} : vector<3x838xf32> to vector<3x28xf32>
    %c0_97 = arith.constant 0 : index
    %c0_98 = arith.constant 0 : index
    %c532 = arith.constant 532 : index
    %166 = vector.load %arg8[%c0_97, %c0_98, %c532] : memref<1x3x784xf32, #tpu.memory_space<vmem>>, vector<1x3x28xf32>
    %167 = vector.shape_cast %166 : vector<1x3x28xf32> to vector<3x28xf32>
    %168 = vector.shape_cast %165 : vector<3x28xf32> to vector<1x3x28xf32>
    tpu.vector_store %arg8[%c0_97, %c0_98, %c532], %168 {strides = array<i32>} : memref<1x3x784xf32, #tpu.memory_space<vmem>>, vector<1x3x28xf32>,
    %169 = vector.extract_strided_slice %88 {offsets = [0, 600], sizes = [3, 28], strides = [1, 1]} : vector<3x838xf32> to vector<3x28xf32>
    %c0_99 = arith.constant 0 : index
    %c0_100 = arith.constant 0 : index
    %c560 = arith.constant 560 : index
    %170 = vector.load %arg8[%c0_99, %c0_100, %c560] : memref<1x3x784xf32, #tpu.memory_space<vmem>>, vector<1x3x28xf32>
    %171 = vector.shape_cast %170 : vector<1x3x28xf32> to vector<3x28xf32>
    %172 = vector.shape_cast %169 : vector<3x28xf32> to vector<1x3x28xf32>
    tpu.vector_store %arg8[%c0_99, %c0_100, %c560], %172 {strides = array<i32>} : memref<1x3x784xf32, #tpu.memory_space<vmem>>, vector<1x3x28xf32>,
    %173 = vector.extract_strided_slice %88 {offsets = [0, 630], sizes = [3, 28], strides = [1, 1]} : vector<3x838xf32> to vector<3x28xf32>
    %c0_101 = arith.constant 0 : index
    %c0_102 = arith.constant 0 : index
    %c588 = arith.constant 588 : index
    %174 = vector.load %arg8[%c0_101, %c0_102, %c588] : memref<1x3x784xf32, #tpu.memory_space<vmem>>, vector<1x3x28xf32>
    %175 = vector.shape_cast %174 : vector<1x3x28xf32> to vector<3x28xf32>
    %176 = vector.shape_cast %173 : vector<3x28xf32> to vector<1x3x28xf32>
    tpu.vector_store %arg8[%c0_101, %c0_102, %c588], %176 {strides = array<i32>} : memref<1x3x784xf32, #tpu.memory_space<vmem>>, vector<1x3x28xf32>,
    %177 = vector.extract_strided_slice %88 {offsets = [0, 660], sizes = [3, 28], strides = [1, 1]} : vector<3x838xf32> to vector<3x28xf32>
    %c0_103 = arith.constant 0 : index
    %c0_104 = arith.constant 0 : index
    %c616 = arith.constant 616 : index
    %178 = vector.load %arg8[%c0_103, %c0_104, %c616] : memref<1x3x784xf32, #tpu.memory_space<vmem>>, vector<1x3x28xf32>
    %179 = vector.shape_cast %178 : vector<1x3x28xf32> to vector<3x28xf32>
    %180 = vector.shape_cast %177 : vector<3x28xf32> to vector<1x3x28xf32>
    tpu.vector_store %arg8[%c0_103, %c0_104, %c616], %180 {strides = array<i32>} : memref<1x3x784xf32, #tpu.memory_space<vmem>>, vector<1x3x28xf32>,
    %181 = vector.extract_strided_slice %88 {offsets = [0, 690], sizes = [3, 28], strides = [1, 1]} : vector<3x838xf32> to vector<3x28xf32>
    %c0_105 = arith.constant 0 : index
    %c0_106 = arith.constant 0 : index
    %c644 = arith.constant 644 : index
    %182 = vector.load %arg8[%c0_105, %c0_106, %c644] : memref<1x3x784xf32, #tpu.memory_space<vmem>>, vector<1x3x28xf32>
    %183 = vector.shape_cast %182 : vector<1x3x28xf32> to vector<3x28xf32>
    %184 = vector.shape_cast %181 : vector<3x28xf32> to vector<1x3x28xf32>
    tpu.vector_store %arg8[%c0_105, %c0_106, %c644], %184 {strides = array<i32>} : memref<1x3x784xf32, #tpu.memory_space<vmem>>, vector<1x3x28xf32>,
    %185 = vector.extract_strided_slice %88 {offsets = [0, 720], sizes = [3, 28], strides = [1, 1]} : vector<3x838xf32> to vector<3x28xf32>
    %c0_107 = arith.constant 0 : index
    %c0_108 = arith.constant 0 : index
    %c672 = arith.constant 672 : index
    %186 = vector.load %arg8[%c0_107, %c0_108, %c672] : memref<1x3x784xf32, #tpu.memory_space<vmem>>, vector<1x3x28xf32>
    %187 = vector.shape_cast %186 : vector<1x3x28xf32> to vector<3x28xf32>
    %188 = vector.shape_cast %185 : vector<3x28xf32> to vector<1x3x28xf32>
    tpu.vector_store %arg8[%c0_107, %c0_108, %c672], %188 {strides = array<i32>} : memref<1x3x784xf32, #tpu.memory_space<vmem>>, vector<1x3x28xf32>,
    %189 = vector.extract_strided_slice %88 {offsets = [0, 750], sizes = [3, 28], strides = [1, 1]} : vector<3x838xf32> to vector<3x28xf32>
    %c0_109 = arith.constant 0 : index
    %c0_110 = arith.constant 0 : index
    %c700 = arith.constant 700 : index
    %190 = vector.load %arg8[%c0_109, %c0_110, %c700] : memref<1x3x784xf32, #tpu.memory_space<vmem>>, vector<1x3x28xf32>
    %191 = vector.shape_cast %190 : vector<1x3x28xf32> to vector<3x28xf32>
    %192 = vector.shape_cast %189 : vector<3x28xf32> to vector<1x3x28xf32>
    tpu.vector_store %arg8[%c0_109, %c0_110, %c700], %192 {strides = array<i32>} : memref<1x3x784xf32, #tpu.memory_space<vmem>>, vector<1x3x28xf32>,
    %193 = vector.extract_strided_slice %88 {offsets = [0, 780], sizes = [3, 28], strides = [1, 1]} : vector<3x838xf32> to vector<3x28xf32>
    %c0_111 = arith.constant 0 : index
    %c0_112 = arith.constant 0 : index
    %c728 = arith.constant 728 : index
    %194 = vector.load %arg8[%c0_111, %c0_112, %c728] : memref<1x3x784xf32, #tpu.memory_space<vmem>>, vector<1x3x28xf32>
    %195 = vector.shape_cast %194 : vector<1x3x28xf32> to vector<3x28xf32>
    %196 = vector.shape_cast %193 : vector<3x28xf32> to vector<1x3x28xf32>
    tpu.vector_store %arg8[%c0_111, %c0_112, %c728], %196 {strides = array<i32>} : memref<1x3x784xf32, #tpu.memory_space<vmem>>, vector<1x3x28xf32>,
    %197 = vector.extract_strided_slice %88 {offsets = [0, 810], sizes = [3, 28], strides = [1, 1]} : vector<3x838xf32> to vector<3x28xf32>
    %c0_113 = arith.constant 0 : index
    %c0_114 = arith.constant 0 : index
    %c756 = arith.constant 756 : index
    %198 = vector.load %arg8[%c0_113, %c0_114, %c756] : memref<1x3x784xf32, #tpu.memory_space<vmem>>, vector<1x3x28xf32>
    %199 = vector.shape_cast %198 : vector<1x3x28xf32> to vector<3x28xf32>
    %200 = vector.shape_cast %197 : vector<3x28xf32> to vector<1x3x28xf32>
    tpu.vector_store %arg8[%c0_113, %c0_114, %c756], %200 {strides = array<i32>} : memref<1x3x784xf32, #tpu.memory_space<vmem>>, vector<1x3x28xf32>,
    return
  }
  func.func @transform_0(%arg0: i32) -> (i32, i32, i32) {
    %c0_i32 = arith.constant 0 : i32
    %c0_i32_0 = arith.constant 0 : i32
    %c0_i32_1 = arith.constant 0 : i32
    return %arg0, %c0_i32, %c0_i32_0 : i32, i32, i32
  }
  func.func @transform_1(%arg0: i32) -> (i32, i32) {
    %c0_i32 = arith.constant 0 : i32
    %c0_i32_0 = arith.constant 0 : i32
    %c0_i32_1 = arith.constant 0 : i32
    return %c0_i32, %c0_i32_0 : i32, i32
  }
  func.func @transform_2(%arg0: i32) -> (i32, i32) {
    %c0_i32 = arith.constant 0 : i32
    %c0_i32_0 = arith.constant 0 : i32
    %c0_i32_1 = arith.constant 0 : i32
    return %c0_i32, %c0_i32_0 : i32, i32
  }
  func.func @transform_3(%arg0: i32) -> (i32, i32) {
    %c0_i32 = arith.constant 0 : i32
    %c0_i32_0 = arith.constant 0 : i32
    %c0_i32_1 = arith.constant 0 : i32
    return %c0_i32, %c0_i32_0 : i32, i32
  }
  func.func @transform_4(%arg0: i32) -> (i32, i32) {
    %c0_i32 = arith.constant 0 : i32
    %c0_i32_0 = arith.constant 0 : i32
    %c0_i32_1 = arith.constant 0 : i32
    return %c0_i32, %c0_i32_0 : i32, i32
  }
  func.func @transform_5(%arg0: i32) -> (i32, i32) {
    %c0_i32 = arith.constant 0 : i32
    %c0_i32_0 = arith.constant 0 : i32
    %c0_i32_1 = arith.constant 0 : i32
    return %c0_i32, %c0_i32_0 : i32, i32
  }
  func.func @transform_6(%arg0: i32) -> (i32, i32) {
    %c0_i32 = arith.constant 0 : i32
    %c0_i32_0 = arith.constant 0 : i32
    %c0_i32_1 = arith.constant 0 : i32
    return %c0_i32, %c0_i32_0 : i32, i32
  }
  func.func @transform_7(%arg0: i32) -> (i32, i32, i32) {
    %c0_i32 = arith.constant 0 : i32
    %c0_i32_0 = arith.constant 0 : i32
    %c0_i32_1 = arith.constant 0 : i32
    return %arg0, %c0_i32, %c0_i32_0 : i32, i32, i32
  }
}

</mosaic_0001>

<llo_original>
// kernel: autoencoder_vgg1_forward.3
$region0: #{autoencoder_vgg1_forward.3}
  #allocation0 [shape = 'u32[]', space=smem, size = 0x4, offset = 0x4, fixed_abs, tag = 'smem constant byte address 0x4 - core index']
  #allocation1 [shape = 'u32[72,128]{1,0:T(1,128)}', space=vmem, size = 0x9000, scoped, tag = 'internal scratch']
  %s0 = inlined_call_operand.vmem [shape: f32[2,32,49], index: 0, kind: input, shape index: {}]
  %s1 = inlined_call_operand.vmem [shape: f32[49,256], index: 1, kind: input, shape index: {}]
  %s2 = inlined_call_operand.vmem [shape: f32[16,288], index: 2, kind: input, shape index: {}]
  %s3 = inlined_call_operand.vmem [shape: f32[16,1], index: 3, kind: input, shape index: {}]
  %s4 = inlined_call_operand.vmem [shape: f32[222,900], index: 4, kind: input, shape index: {}]
  %s5 = inlined_call_operand.vmem [shape: f32[3,144], index: 5, kind: input, shape index: {}]
  %s6 = inlined_call_operand.vmem [shape: f32[3,1], index: 6, kind: input, shape index: {}]
  %s7 = inlined_call_operand.vmem [shape: f32[2,3,784], index: 7, kind: output, shape index: {}]
  %s8 = sld [smem:[#allocation0]]
  $region61: #{autoencoder_vgg1_forward.3} parent=0
    _
  %s10 = ssub.s32 1, %s8
  %s11 = scalar_select 0, %s10, %s8
  loop: start=0, step=1, limit=4
  $region2: #{autoencoder_vgg1_forward.3} parent=0 // loop_pre_header
    _
  $region3: #{autoencoder_vgg1_forward.3} parent=0 // loop_header
    %s13 = sphi 0, %s17
    %p14 = scmp.ge.s32.totalorder %s13, 4
    %s23 = sphi 0, %s25
    %s26 = sphi 0, %s23
    %s27 = sphi 0, %s26
    %s43 = sphi 0, %s27
    %s47 = sphi 0, %s47
    %s49 = sphi 0, %s47
    %s50 = sphi 0, %s49
    %s64 = sphi 0, %s50
    %s68 = sphi 0, %s68
    %s70 = sphi 0, %s68
    %s71 = sphi 0, %s70
    %s85 = sphi 0, %s71
    %s89 = sphi 0, %s89
    %s91 = sphi 0, %s89
    %s92 = sphi 0, %s91
    %s106 = sphi 0, %s92
    %s110 = sphi 0, %s110
    %s112 = sphi 0, %s110
    %s113 = sphi 0, %s112
    %s127 = sphi 0, %s113
    %s131 = sphi 0, %s131
    %s133 = sphi 0, %s131
    %s134 = sphi 0, %s133
    %s148 = sphi 0, %s134
    %s152 = sphi 0, %s152
    %s154 = sphi 0, %s152
    %s155 = sphi 0, %s154
    %s169 = sphi 0, %s155
    %s175 = sphi 0, %s177
    %s178 = sphi 0, %s175
    %s179 = sphi 0, %s178
    %s195 = sphi 0, %s179
  $region4: #{autoencoder_vgg1_forward.3} parent=0 // loop_header_branch
    %16 = sbr.rel (%p14) target = $region8
  $region5: #{autoencoder_vgg1_forward.3} parent=0 // loop_body
    %s18 = ssub.s32 %s13, 1
    %s19 = ssub.s32 %s13, 2
    %s20 = sadd.s32 %s13, 1
    %s21 = ssub.s32 %s13, %s20
    %p22 = scmp.eq.s32.totalorder %s21, 0
    %s24 = sadd.s32 %s23, 1
    %s25 = scalar_select %p22, %s23, %s24
    %p28 = pneg %p22
    %p29 = scmp.eq.s32.totalorder %s13, 1
    %p30 = por %p28, %p29
    %p31 = scmp.ne.s32.totalorder %s23, %s26
    %p32 = scmp.eq.s32.totalorder %s13, 0
    %p33 = por %p31, %p32
    %p34 = scmp.ne.s32.totalorder %s23, %s26
    %p35 = scmp.eq.s32.totalorder %s18, 1
    %p36 = por %p34, %p35
    %p37 = scmp.ne.s32.totalorder %s26, %s27
    %p38 = scmp.eq.s32.totalorder %s18, 0
    %p39 = por %p37, %p38
    %p40 = scmp.ne.s32.totalorder %s26, %s27
    %p41 = scmp.eq.s32.totalorder %s19, 1
    %p42 = por %p40, %p41
    %p44 = scmp.ne.s32.totalorder %s27, %s43
    %p45 = scmp.eq.s32.totalorder %s19, 0
    %p46 = por %p44, %p45
    %s48 = sadd.s32 %s47, 1
    %p51 = scmp.eq.s32.totalorder %s13, 1
    %p52 = scmp.ne.s32.totalorder %s47, %s49
    %p53 = scmp.eq.s32.totalorder %s13, 0
    %p54 = por %p52, %p53
    %p55 = scmp.ne.s32.totalorder %s47, %s49
    %p56 = scmp.eq.s32.totalorder %s18, 1
    %p57 = por %p55, %p56
    %p58 = scmp.ne.s32.totalorder %s49, %s50
    %p59 = scmp.eq.s32.totalorder %s18, 0
    %p60 = por %p58, %p59
    %p61 = scmp.ne.s32.totalorder %s49, %s50
    %p62 = scmp.eq.s32.totalorder %s19, 1
    %p63 = por %p61, %p62
    %p65 = scmp.ne.s32.totalorder %s50, %s64
    %p66 = scmp.eq.s32.totalorder %s19, 0
    %p67 = por %p65, %p66
    %s69 = sadd.s32 %s68, 1
    %p72 = scmp.eq.s32.totalorder %s13, 1
    %p73 = scmp.ne.s32.totalorder %s68, %s70
    %p74 = scmp.eq.s32.totalorder %s13, 0
    %p75 = por %p73, %p74
    %p76 = scmp.ne.s32.totalorder %s68, %s70
    %p77 = scmp.eq.s32.totalorder %s18, 1
    %p78 = por %p76, %p77
    %p79 = scmp.ne.s32.totalorder %s70, %s71
    %p80 = scmp.eq.s32.totalorder %s18, 0
    %p81 = por %p79, %p80
    %p82 = scmp.ne.s32.totalorder %s70, %s71
    %p83 = scmp.eq.s32.totalorder %s19, 1
    %p84 = por %p82, %p83
    %p86 = scmp.ne.s32.totalorder %s71, %s85
    %p87 = scmp.eq.s32.totalorder %s19, 0
    %p88 = por %p86, %p87
    %s90 = sadd.s32 %s89, 1
    %p93 = scmp.eq.s32.totalorder %s13, 1
    %p94 = scmp.ne.s32.totalorder %s89, %s91
    %p95 = scmp.eq.s32.totalorder %s13, 0
    %p96 = por %p94, %p95
    %p97 = scmp.ne.s32.totalorder %s89, %s91
    %p98 = scmp.eq.s32.totalorder %s18, 1
    %p99 = por %p97, %p98
    %p100 = scmp.ne.s32.totalorder %s91, %s92
    %p101 = scmp.eq.s32.totalorder %s18, 0
    %p102 = por %p100, %p101
    %p103 = scmp.ne.s32.totalorder %s91, %s92
    %p104 = scmp.eq.s32.totalorder %s19, 1
    %p105 = por %p103, %p104
    %p107 = scmp.ne.s32.totalorder %s92, %s106
    %p108 = scmp.eq.s32.totalorder %s19, 0
    %p109 = por %p107, %p108
    %s111 = sadd.s32 %s110, 1
    %p114 = scmp.eq.s32.totalorder %s13, 1
    %p115 = scmp.ne.s32.totalorder %s110, %s112
    %p116 = scmp.eq.s32.totalorder %s13, 0
    %p117 = por %p115, %p116
    %p118 = scmp.ne.s32.totalorder %s110, %s112
    %p119 = scmp.eq.s32.totalorder %s18, 1
    %p120 = por %p118, %p119
    %p121 = scmp.ne.s32.totalorder %s112, %s113
    %p122 = scmp.eq.s32.totalorder %s18, 0
    %p123 = por %p121, %p122
    %p124 = scmp.ne.s32.totalorder %s112, %s113
    %p125 = scmp.eq.s32.totalorder %s19, 1
    %p126 = por %p124, %p125
    %p128 = scmp.ne.s32.totalorder %s113, %s127
    %p129 = scmp.eq.s32.totalorder %s19, 0
    %p130 = por %p128, %p129
    %s132 = sadd.s32 %s131, 1
    %p135 = scmp.eq.s32.totalorder %s13, 1
    %p136 = scmp.ne.s32.totalorder %s131, %s133
    %p137 = scmp.eq.s32.totalorder %s13, 0
    %p138 = por %p136, %p137
    %p139 = scmp.ne.s32.totalorder %s131, %s133
    %p140 = scmp.eq.s32.totalorder %s18, 1
    %p141 = por %p139, %p140
    %p142 = scmp.ne.s32.totalorder %s133, %s134
    %p143 = scmp.eq.s32.totalorder %s18, 0
    %p144 = por %p142, %p143
    %p145 = scmp.ne.s32.totalorder %s133, %s134
    %p146 = scmp.eq.s32.totalorder %s19, 1
    %p147 = por %p145, %p146
    %p149 = scmp.ne.s32.totalorder %s134, %s148
    %p150 = scmp.eq.s32.totalorder %s19, 0
    %p151 = por %p149, %p150
    %s153 = sadd.s32 %s152, 1
    %p156 = scmp.eq.s32.totalorder %s13, 1
    %p157 = scmp.ne.s32.totalorder %s152, %s154
    %p158 = scmp.eq.s32.totalorder %s13, 0
    %p159 = por %p157, %p158
    %p160 = scmp.ne.s32.totalorder %s152, %s154
    %p161 = scmp.eq.s32.totalorder %s18, 1
    %p162 = por %p160, %p161
    %p163 = scmp.ne.s32.totalorder %s154, %s155
    %p164 = scmp.eq.s32.totalorder %s18, 0
    %p165 = por %p163, %p164
    %p166 = scmp.ne.s32.totalorder %s154, %s155
    %p167 = scmp.eq.s32.totalorder %s19, 1
    %p168 = por %p166, %p167
    %p170 = scmp.ne.s32.totalorder %s155, %s169
    %p171 = scmp.eq.s32.totalorder %s19, 0
    %p172 = por %p170, %p171
    %s173 = ssub.s32 %s13, %s20
    %p174 = scmp.eq.s32.totalorder %s173, 0
    %s176 = sadd.s32 %s175, 1
    %s177 = scalar_select %p174, %s175, %s176
    %p180 = pneg %p174
    %p181 = scmp.eq.s32.totalorder %s13, 1
    %p182 = por %p180, %p181
    %p183 = scmp.ne.s32.totalorder %s175, %s178
    %p184 = scmp.eq.s32.totalorder %s13, 0
    %p185 = por %p183, %p184
    %p186 = scmp.ne.s32.totalorder %s175, %s178
    %p187 = scmp.eq.s32.totalorder %s18, 1
    %p188 = por %p186, %p187
    %p189 = scmp.ne.s32.totalorder %s178, %s179
    %p190 = scmp.eq.s32.totalorder %s18, 0
    %p191 = por %p189, %p190
    %p192 = scmp.ne.s32.totalorder %s178, %s179
    %p193 = scmp.eq.s32.totalorder %s19, 1
    %p194 = por %p192, %p193
    %p196 = scmp.ne.s32.totalorder %s179, %s195
    %p197 = scmp.eq.s32.totalorder %s19, 0
    %p198 = por %p196, %p197
    %p199 = scmp.le.s32.totalorder 1, %s13
    %p200 = scmp.lt.s32.totalorder %s13, 3
    %p201 = pnand %p199, %p200
    %p202 = pneg %p201
    // Predicated region
    $region9: #{autoencoder_vgg1_forward.3} parent=5 // pred_check
      _
    $region10: #{autoencoder_vgg1_forward.3} parent=5 // pred_check_branch
      %204 = sbr.rel (%p201) target = $region12
    $region11: #{autoencoder_vgg1_forward.3} parent=5 // pred_region
      %s205 = ssub.s32 %s13, 1
      // Predicated region
      $region13: #{autoencoder_vgg1_forward.3} parent=11 // pred_check
        %p206 = pneg %p60
      $region14: #{autoencoder_vgg1_forward.3} parent=11 // pred_check_branch
        %208 = sbr.rel (%p206) target = $region16
      $region15: #{autoencoder_vgg1_forward.3} parent=11 // pred_region
        _
      $region16: #{autoencoder_vgg1_forward.3} parent=11 // pred_fallthru
        _
      // Predicated region
      $region17: #{autoencoder_vgg1_forward.3} parent=11 // pred_check
        %p209 = pneg %p81
      $region18: #{autoencoder_vgg1_forward.3} parent=11 // pred_check_branch
        %211 = sbr.rel (%p209) target = $region20
      $region19: #{autoencoder_vgg1_forward.3} parent=11 // pred_region
        _
      $region20: #{autoencoder_vgg1_forward.3} parent=11 // pred_fallthru
        _
      // Predicated region
      $region21: #{autoencoder_vgg1_forward.3} parent=11 // pred_check
        %p212 = pneg %p102
      $region22: #{autoencoder_vgg1_forward.3} parent=11 // pred_check_branch
        %214 = sbr.rel (%p212) target = $region24
      $region23: #{autoencoder_vgg1_forward.3} parent=11 // pred_region
        _
      $region24: #{autoencoder_vgg1_forward.3} parent=11 // pred_fallthru
        _
      // Predicated region
      $region25: #{autoencoder_vgg1_forward.3} parent=11 // pred_check
        %p215 = pneg %p123
      $region26: #{autoencoder_vgg1_forward.3} parent=11 // pred_check_branch
        %217 = sbr.rel (%p215) target = $region28
      $region27: #{autoencoder_vgg1_forward.3} parent=11 // pred_region
        _
      $region28: #{autoencoder_vgg1_forward.3} parent=11 // pred_fallthru
        _
      // Predicated region
      $region29: #{autoencoder_vgg1_forward.3} parent=11 // pred_check
        %p218 = pneg %p144
      $region30: #{autoencoder_vgg1_forward.3} parent=11 // pred_check_branch
        %220 = sbr.rel (%p218) target = $region32
      $region31: #{autoencoder_vgg1_forward.3} parent=11 // pred_region
        _
      $region32: #{autoencoder_vgg1_forward.3} parent=11 // pred_fallthru
        _
      // Predicated region
      $region33: #{autoencoder_vgg1_forward.3} parent=11 // pred_check
        %p221 = pneg %p165
      $region34: #{autoencoder_vgg1_forward.3} parent=11 // pred_check_branch
        %223 = sbr.rel (%p221) target = $region36
      $region35: #{autoencoder_vgg1_forward.3} parent=11 // pred_region
        _
      $region36: #{autoencoder_vgg1_forward.3} parent=11 // pred_fallthru
        _
    $region12: #{autoencoder_vgg1_forward.3} parent=5 // pred_fallthru
      _
    %p224 = scmp.lt.s32.totalorder %s13, 2
    // Predicated region
    $region37: #{autoencoder_vgg1_forward.3} parent=5 // pred_check
      %p225 = pneg %p224
    $region38: #{autoencoder_vgg1_forward.3} parent=5 // pred_check_branch
      %227 = sbr.rel (%p225) target = $region40
    $region39: #{autoencoder_vgg1_forward.3} parent=5 // pred_region
      // Predicated region
      $region41: #{autoencoder_vgg1_forward.3} parent=39 // pred_check
        %p228 = pneg %p33
      $region42: #{autoencoder_vgg1_forward.3} parent=39 // pred_check_branch
        %230 = sbr.rel (%p228) target = $region44
      $region43: #{autoencoder_vgg1_forward.3} parent=39 // pred_region
        %p231 = scmp.lt.s32.totalorder %s13, 1
        %s232 = scalar_select %p231, %s13, 1
        %s233 = smul.addr %s232, 4
        %s234 = smul.addr %s233, 8
        %s235 = scalar_lea.vmem %s0, %s234
      $region44: #{autoencoder_vgg1_forward.3} parent=39 // pred_fallthru
        _
    $region40: #{autoencoder_vgg1_forward.3} parent=5 // pred_fallthru
      _
    %p236 = scmp.le.s32.totalorder 1, %s13
    %p237 = scmp.lt.s32.totalorder %s13, 3
    %p238 = pnand %p236, %p237
    %p239 = pneg %p238
    // Predicated region
    $region45: #{autoencoder_vgg1_forward.3} parent=5 // pred_check
      _
    $region46: #{autoencoder_vgg1_forward.3} parent=5 // pred_check_branch
      %241 = sbr.rel (%p238) target = $region48
    $region47: #{autoencoder_vgg1_forward.3} parent=5 // pred_region
      %s242 = ssub.s32 %s13, 1
      %p243 = scmp.lt.s32.totalorder %s18, 1
      %s244 = scalar_select %p243, %s18, 1
      %s245 = smul.addr %s244, 4
      %s246 = smul.addr %s245, 8
      %s247 = scalar_lea.vmem %s0, %s246
      %p248 = pneg %p39
      %p249 = pneg %p36
      %p250 = pneg %p60
      %p251 = pneg %p57
      %p252 = pneg %p81
      %p253 = pneg %p78
      %p254 = pneg %p102
      %p255 = pneg %p99
      %p256 = pneg %p123
      %p257 = pneg %p120
      %p258 = pneg %p144
      %p259 = pneg %p141
      %p260 = pneg %p165
      %p261 = pneg %p162
      %p262 = pneg %p191
      %p263 = pneg %p188
      %p264 = scmp.lt.s32.totalorder %s18, 1
      %s265 = scalar_select %p264, %s18, 1
      %s266 = smul.addr %s265, 7
      %s267 = smul.addr %s266, 4
      %s268 = scalar_lea.vmem %s7, %s267
      %p269 = scmp.lt.s32.totalorder %s18, 1
      %s270 = scalar_select %p269, %s18, 1
      %s271 = smul.addr %s270, 4
      %s272 = smul.addr %s271, 8
      %s273 = scalar_lea.vmem %s0, %s272
      %p274 = scmp.lt.s32.totalorder %s18, 1
      %s275 = scalar_select %p274, %s18, 1
      %s276 = smul.addr %s275, 7
      %s277 = smul.addr %s276, 4
      %s278 = scalar_lea.vmem %s7, %s277
      %v279 = vld [vmem:[%s273] sm:$0xff]
      %v280 = vld [vmem:[%s273 + $0x8] sm:$0xff]
      %v281 = vld [vmem:[%s273 + $0x10] sm:$0xff]
      %v282 = vld [vmem:[%s273 + $0x18] sm:$0xff]
      %v283 = vld [vmem:[%s1] sm:$0xff]
      %v284 = vld [vmem:[%s1 + $0x8] sm:$0xff]
      %v285 = vld [vmem:[%s1 + $0x10] sm:$0xff]
      %v286 = vld [vmem:[%s1 + $0x18] sm:$0xff]
      %v287 = vld [vmem:[%s1 + $0x20] sm:$0xff]
      %v288 = vld [vmem:[%s1 + $0x28] sm:$0xff]
      %v289 = vld [vmem:[%s1 + $0x30] sm:$0xff]
      %v290 = vld [vmem:[%s1 + $0x38] sm:$0xff]
      %v291 = vld [vmem:[%s1 + $0x40] sm:$0xff]
      %v292 = vld [vmem:[%s1 + $0x48] sm:$0xff]
      %v293 = vld [vmem:[%s1 + $0x50] sm:$0xff]
      %v294 = vld [vmem:[%s1 + $0x58] sm:$0xff]
      %v295 = vld [vmem:[%s1 + $0x60] sm:$0x1]
      %v296 = vld [vmem:[%s1 + $0x68] sm:$0x1]
      %vm297 = vcmask 400384
      %v299 = vsel %vm297, %v279, 0
      %v302 = vsel %vm297, %v280, 0
      %v305 = vsel %vm297, %v281, 0
      %v308 = vsel %vm297, %v282, 0
      %vm310 = vcmask 1040384
      %v312 = vsel %vm310, %v295, 0
      %v315 = vsel %vm310, %v296, 0
      %317 = vmatpush.msra.mxu0 0.0
      %318 = vmatpush.msra.mxu0 0.0
      %319 = vmatpush.msra.mxu0 0.0
      %320 = vmatpush.msra.mxu0 0.0
      %321 = vmatpush.msra.mxu0 0.0
      %322 = vmatpush.msra.mxu0 0.0
      %323 = vmatpush.msra.mxu0 0.0
      %324 = vmatpush.msra.mxu0 0.0
      %325 = vmatpush.msra.mxu0 0.0
      %326 = vmatpush.msra.mxu0 %v312
      %327 = vmatpush.msra.mxu0 %v293
      %328 = vmatpush.msra.mxu0 %v291
      %329 = vmatpush.msra.mxu0 %v289
      %330 = vmatpush.msra.mxu0 %v287
      %331 = vmatpush.msra.mxu0 %v285
      %332 = vmatpush.msra.mxu0 %v283
      %333 = vmatmul.f32.gmra.mxu0 %v299
      %v334 = vpop.f32.mrf.mxu0
      %v335 = vadd.f32 0.0, %v334
      %336 = vmatmul.f32.gmra.mxu0 %v302
      %v337 = vpop.f32.mrf.mxu0
      %v338 = vadd.f32 0.0, %v337
      %339 = vmatmul.f32.gmra.mxu0 %v305
      %v340 = vpop.f32.mrf.mxu0
      %v341 = vadd.f32 0.0, %v340
      %342 = vmatmul.f32.gmra.mxu0 %v308
      %v343 = vpop.f32.mrf.mxu0
      %v344 = vadd.f32 0.0, %v343
      %345 = vdwg.mxu0
      %346 = vmatpush.msra.mxu0 0.0
      %347 = vmatpush.msra.mxu0 0.0
      %348 = vmatpush.msra.mxu0 0.0
      %349 = vmatpush.msra.mxu0 0.0
      %350 = vmatpush.msra.mxu0 0.0
      %351 = vmatpush.msra.mxu0 0.0
      %352 = vmatpush.msra.mxu0 0.0
      %353 = vmatpush.msra.mxu0 0.0
      %354 = vmatpush.msra.mxu0 0.0
      %355 = vmatpush.msra.mxu0 %v315
      %356 = vmatpush.msra.mxu0 %v294
      %357 = vmatpush.msra.mxu0 %v292
      %358 = vmatpush.msra.mxu0 %v290
      %359 = vmatpush.msra.mxu0 %v288
      %360 = vmatpush.msra.mxu0 %v286
      %361 = vmatpush.msra.mxu0 %v284
      %362 = vmatmul.f32.gmra.mxu0 %v299
      %v363 = vpop.f32.mrf.mxu0
      %v364 = vadd.f32 0.0, %v363
      %365 = vmatmul.f32.gmra.mxu0 %v302
      %v366 = vpop.f32.mrf.mxu0
      %v367 = vadd.f32 0.0, %v366
      %368 = vmatmul.f32.gmra.mxu0 %v305
      %v369 = vpop.f32.mrf.mxu0
      %v370 = vadd.f32 0.0, %v369
      %371 = vmatmul.f32.gmra.mxu0 %v308
      %v372 = vpop.f32.mrf.mxu0
      %v373 = vadd.f32 0.0, %v372
      %374 = vdwg.mxu0
      %v375 = vld [vmem:[%s2] sm:$0xff]
      %v376 = vld [vmem:[%s2 + $0x18] sm:$0xff]
      %379 = vrot.lane.b32.xlu0 %v375, 96
      %v380 = vpop.permute.xlu0 %379
      %381 = vrot.lane.b32.xlu0 %v376, 96
      %v382 = vpop.permute.xlu0 %381
      %391 = vrot.lane.b32.xlu0 %v335, 127
      %v392 = vpop.permute.xlu0 %391
      %393 = vrot.lane.b32.xlu0 %v364, 127
      %v394 = vpop.permute.xlu0 %393
      %395 = vrot.lane.b32.xlu0 %v338, 127
      %v396 = vpop.permute.xlu0 %395
      %397 = vrot.lane.b32.xlu0 %v367, 127
      %v398 = vpop.permute.xlu0 %397
      %399 = vrot.lane.b32.xlu0 %v341, 127
      %v400 = vpop.permute.xlu0 %399
      %401 = vrot.lane.b32.xlu0 %v370, 127
      %v402 = vpop.permute.xlu0 %401
      %403 = vrot.lane.b32.xlu0 %v344, 127
      %v404 = vpop.permute.xlu0 %403
      %405 = vrot.lane.b32.xlu0 %v373, 127
      %v406 = vpop.permute.xlu0 %405
      %vm407 = vcmask 1039360
      %v408 = vsel %vm407, %v392, %v394
      %v409 = vsel %vm407, %v396, %v398
      %v410 = vsel %vm407, %v400, %v402
      %v411 = vsel %vm407, %v404, %v406
      %vm420 = vcmask 261120
      %v421 = vsel %vm420, %v380, 0
      %v423 = vsel %vm420, %v382, 0
      %425 = vmatpush.msra.mxu0 0.0
      %426 = vmatpush.msra.mxu0 0.0
      %427 = vmatpush.msra.mxu0 0.0
      %428 = vmatpush.msra.mxu0 0.0
      %429 = vmatpush.msra.mxu0 0.0
      %430 = vmatpush.msra.mxu0 0.0
      %431 = vmatpush.msra.mxu0 0.0
      %432 = vmatpush.msra.mxu0 0.0
      %433 = vmatpush.msra.mxu0 0.0
      %434 = vmatpush.msra.mxu0 0.0
      %435 = vmatpush.msra.mxu0 0.0
      %436 = vmatpush.msra.mxu0 0.0
      %437 = vmatpush.msra.mxu0 %v411
      %438 = vmatpush.msra.mxu0 %v410
      %439 = vmatpush.msra.mxu0 %v409
      %440 = vmatpush.msra.mxu0 %v408
      %441 = vmatmul.f32.gmra.mxu0 %v421
      %v442 = vpop.f32.mrf.mxu0
      %v443 = vadd.f32 0.0, %v442
      %444 = vmatmul.f32.gmra.mxu0 %v423
      %v445 = vpop.f32.mrf.mxu0
      %v446 = vadd.f32 0.0, %v445
      %447 = vdwg.mxu0
      %448 = vmatpush.msra.mxu0 0.0
      %449 = vmatpush.msra.mxu0 0.0
      %450 = vmatpush.msra.mxu0 0.0
      %451 = vmatpush.msra.mxu0 0.0
      %452 = vmatpush.msra.mxu0 0.0
      %453 = vmatpush.msra.mxu0 0.0
      %454 = vmatpush.msra.mxu0 0.0
      %455 = vmatpush.msra.mxu0 0.0
      %456 = vmatpush.msra.mxu0 0.0
      %457 = vmatpush.msra.mxu0 0.0
      %458 = vmatpush.msra.mxu0 0.0
      %459 = vmatpush.msra.mxu0 0.0
      %460 = vmatpush.msra.mxu0 %v406
      %461 = vmatpush.msra.mxu0 %v402
      %462 = vmatpush.msra.mxu0 %v398
      %463 = vmatpush.msra.mxu0 %v394
      %464 = vmatmul.f32.gmra.mxu0 %v421
      %v465 = vpop.f32.mrf.mxu0
      %v466 = vadd.f32 0.0, %v465
      %467 = vmatmul.f32.gmra.mxu0 %v423
      %v468 = vpop.f32.mrf.mxu0
      %v469 = vadd.f32 0.0, %v468
      %470 = vdwg.mxu0
      %v471 = vsel %vm420, %v375, 0
      %v473 = vsel %vm420, %v376, 0
      %475 = vmatpush.msra.mxu0 0.0
      %476 = vmatpush.msra.mxu0 0.0
      %477 = vmatpush.msra.mxu0 0.0
      %478 = vmatpush.msra.mxu0 0.0
      %479 = vmatpush.msra.mxu0 0.0
      %480 = vmatpush.msra.mxu0 0.0
      %481 = vmatpush.msra.mxu0 0.0
      %482 = vmatpush.msra.mxu0 0.0
      %483 = vmatpush.msra.mxu0 0.0
      %484 = vmatpush.msra.mxu0 0.0
      %485 = vmatpush.msra.mxu0 0.0
      %486 = vmatpush.msra.mxu0 0.0
      %487 = vmatpush.msra.mxu0 %v344
      %488 = vmatpush.msra.mxu0 %v341
      %489 = vmatpush.msra.mxu0 %v338
      %490 = vmatpush.msra.mxu0 %v335
      %491 = vmatmul.f32.gmra.mxu0 %v471
      %v492 = vpop.f32.mrf.mxu0
      %v493 = vadd.f32 %v443, %v492
      %494 = vmatmul.f32.gmra.mxu0 %v473
      %v495 = vpop.f32.mrf.mxu0
      %v496 = vadd.f32 %v446, %v495
      %497 = vdwg.mxu0
      %498 = vmatpush.msra.mxu0 0.0
      %499 = vmatpush.msra.mxu0 0.0
      %500 = vmatpush.msra.mxu0 0.0
      %501 = vmatpush.msra.mxu0 0.0
      %502 = vmatpush.msra.mxu0 0.0
      %503 = vmatpush.msra.mxu0 0.0
      %504 = vmatpush.msra.mxu0 0.0
      %505 = vmatpush.msra.mxu0 0.0
      %506 = vmatpush.msra.mxu0 0.0
      %507 = vmatpush.msra.mxu0 0.0
      %508 = vmatpush.msra.mxu0 0.0
      %509 = vmatpush.msra.mxu0 0.0
      %510 = vmatpush.msra.mxu0 %v373
      %511 = vmatpush.msra.mxu0 %v370
      %512 = vmatpush.msra.mxu0 %v367
      %513 = vmatpush.msra.mxu0 %v364
      %514 = vmatmul.f32.gmra.mxu0 %v471
      %v515 = vpop.f32.mrf.mxu0
      %v516 = vadd.f32 %v466, %v515
      %517 = vmatmul.f32.gmra.mxu0 %v473
      %v518 = vpop.f32.mrf.mxu0
      %v519 = vadd.f32 %v469, %v518
      %520 = vdwg.mxu0
      %521 = vrot.lane.b32.xlu0 %v375, 64
      %v522 = vpop.permute.xlu0 %521
      %523 = vrot.lane.b32.xlu0 %v376, 64
      %v524 = vpop.permute.xlu0 %523
      %525 = vrot.lane.b32.xlu0 %v335, 126
      %v526 = vpop.permute.xlu0 %525
      %527 = vrot.lane.b32.xlu0 %v364, 126
      %v528 = vpop.permute.xlu0 %527
      %529 = vrot.lane.b32.xlu0 %v338, 126
      %v530 = vpop.permute.xlu0 %529
      %531 = vrot.lane.b32.xlu0 %v367, 126
      %v532 = vpop.permute.xlu0 %531
      %533 = vrot.lane.b32.xlu0 %v341, 126
      %v534 = vpop.permute.xlu0 %533
      %535 = vrot.lane.b32.xlu0 %v370, 126
      %v536 = vpop.permute.xlu0 %535
      %537 = vrot.lane.b32.xlu0 %v344, 126
      %v538 = vpop.permute.xlu0 %537
      %539 = vrot.lane.b32.xlu0 %v373, 126
      %v540 = vpop.permute.xlu0 %539
      %vm541 = vcmask 1031168
      %v542 = vsel %vm541, %v526, %v528
      %v543 = vsel %vm541, %v530, %v532
      %v544 = vsel %vm541, %v534, %v536
      %v545 = vsel %vm541, %v538, %v540
      %v554 = vsel %vm420, %v522, 0
      %v556 = vsel %vm420, %v524, 0
      %558 = vmatpush.msra.mxu0 0.0
      %559 = vmatpush.msra.mxu0 0.0
      %560 = vmatpush.msra.mxu0 0.0
      %561 = vmatpush.msra.mxu0 0.0
      %562 = vmatpush.msra.mxu0 0.0
      %563 = vmatpush.msra.mxu0 0.0
      %564 = vmatpush.msra.mxu0 0.0
      %565 = vmatpush.msra.mxu0 0.0
      %566 = vmatpush.msra.mxu0 0.0
      %567 = vmatpush.msra.mxu0 0.0
      %568 = vmatpush.msra.mxu0 0.0
      %569 = vmatpush.msra.mxu0 0.0
      %570 = vmatpush.msra.mxu0 %v545
      %571 = vmatpush.msra.mxu0 %v544
      %572 = vmatpush.msra.mxu0 %v543
      %573 = vmatpush.msra.mxu0 %v542
      %574 = vmatmul.f32.gmra.mxu0 %v554
      %v575 = vpop.f32.mrf.mxu0
      %v576 = vadd.f32 0.0, %v575
      %577 = vmatmul.f32.gmra.mxu0 %v556
      %v578 = vpop.f32.mrf.mxu0
      %v579 = vadd.f32 0.0, %v578
      %580 = vdwg.mxu0
      %581 = vmatpush.msra.mxu0 0.0
      %582 = vmatpush.msra.mxu0 0.0
      %583 = vmatpush.msra.mxu0 0.0
      %584 = vmatpush.msra.mxu0 0.0
      %585 = vmatpush.msra.mxu0 0.0
      %586 = vmatpush.msra.mxu0 0.0
      %587 = vmatpush.msra.mxu0 0.0
      %588 = vmatpush.msra.mxu0 0.0
      %589 = vmatpush.msra.mxu0 0.0
      %590 = vmatpush.msra.mxu0 0.0
      %591 = vmatpush.msra.mxu0 0.0
      %592 = vmatpush.msra.mxu0 0.0
      %593 = vmatpush.msra.mxu0 %v540
      %594 = vmatpush.msra.mxu0 %v536
      %595 = vmatpush.msra.mxu0 %v532
      %596 = vmatpush.msra.mxu0 %v528
      %597 = vmatmul.f32.gmra.mxu0 %v554
      %v598 = vpop.f32.mrf.mxu0
      %v599 = vadd.f32 0.0, %v598
      %600 = vmatmul.f32.gmra.mxu0 %v556
      %v601 = vpop.f32.mrf.mxu0
      %v602 = vadd.f32 0.0, %v601
      %603 = vdwg.mxu0
      %v604 = vadd.f32 %v493, %v576
      %v605 = vadd.f32 %v516, %v599
      %v606 = vadd.f32 %v496, %v579
      %v607 = vadd.f32 %v519, %v602
      %608 = vrot.lane.b32.xlu0 %v375, 32
      %v609 = vpop.permute.xlu0 %608
      %610 = vrot.lane.b32.xlu0 %v376, 32
      %v611 = vpop.permute.xlu0 %610
      %612 = vrot.lane.b32.xlu0 %v335, 112
      %v613 = vpop.permute.xlu0 %612
      %614 = vrot.lane.b32.xlu0 %v364, 112
      %v615 = vpop.permute.xlu0 %614
      %616 = vrot.lane.b32.xlu0 %v338, 112
      %v617 = vpop.permute.xlu0 %616
      %618 = vrot.lane.b32.xlu0 %v367, 112
      %v619 = vpop.permute.xlu0 %618
      %620 = vrot.lane.b32.xlu0 %v341, 112
      %v621 = vpop.permute.xlu0 %620
      %622 = vrot.lane.b32.xlu0 %v370, 112
      %v623 = vpop.permute.xlu0 %622
      %624 = vrot.lane.b32.xlu0 %v344, 112
      %v625 = vpop.permute.xlu0 %624
      %626 = vrot.lane.b32.xlu0 %v373, 112
      %v627 = vpop.permute.xlu0 %626
      %vm628 = vcmask 916480
      %v629 = vsel %vm628, %v613, %v615
      %v630 = vsel %vm628, %v617, %v619
      %v631 = vsel %vm628, %v621, %v623
      %v632 = vsel %vm628, %v625, %v627
      %v641 = vsel %vm420, %v609, 0
      %v643 = vsel %vm420, %v611, 0
      %645 = vmatpush.msra.mxu0 0.0
      %646 = vmatpush.msra.mxu0 0.0
      %647 = vmatpush.msra.mxu0 0.0
      %648 = vmatpush.msra.mxu0 0.0
      %649 = vmatpush.msra.mxu0 0.0
      %650 = vmatpush.msra.mxu0 0.0
      %651 = vmatpush.msra.mxu0 0.0
      %652 = vmatpush.msra.mxu0 0.0
      %653 = vmatpush.msra.mxu0 0.0
      %654 = vmatpush.msra.mxu0 0.0
      %655 = vmatpush.msra.mxu0 0.0
      %656 = vmatpush.msra.mxu0 0.0
      %657 = vmatpush.msra.mxu0 %v632
      %658 = vmatpush.msra.mxu0 %v631
      %659 = vmatpush.msra.mxu0 %v630
      %660 = vmatpush.msra.mxu0 %v629
      %661 = vmatmul.f32.gmra.mxu0 %v641
      %v662 = vpop.f32.mrf.mxu0
      %v663 = vadd.f32 0.0, %v662
      %664 = vmatmul.f32.gmra.mxu0 %v643
      %v665 = vpop.f32.mrf.mxu0
      %v666 = vadd.f32 0.0, %v665
      %667 = vdwg.mxu0
      %668 = vmatpush.msra.mxu0 0.0
      %669 = vmatpush.msra.mxu0 0.0
      %670 = vmatpush.msra.mxu0 0.0
      %671 = vmatpush.msra.mxu0 0.0
      %672 = vmatpush.msra.mxu0 0.0
      %673 = vmatpush.msra.mxu0 0.0
      %674 = vmatpush.msra.mxu0 0.0
      %675 = vmatpush.msra.mxu0 0.0
      %676 = vmatpush.msra.mxu0 0.0
      %677 = vmatpush.msra.mxu0 0.0
      %678 = vmatpush.msra.mxu0 0.0
      %679 = vmatpush.msra.mxu0 0.0
      %680 = vmatpush.msra.mxu0 %v627
      %681 = vmatpush.msra.mxu0 %v623
      %682 = vmatpush.msra.mxu0 %v619
      %683 = vmatpush.msra.mxu0 %v615
      %684 = vmatmul.f32.gmra.mxu0 %v641
      %v685 = vpop.f32.mrf.mxu0
      %v686 = vadd.f32 0.0, %v685
      %687 = vmatmul.f32.gmra.mxu0 %v643
      %v688 = vpop.f32.mrf.mxu0
      %v689 = vadd.f32 0.0, %v688
      %690 = vdwg.mxu0
      %v691 = vadd.f32 %v604, %v663
      %v692 = vadd.f32 %v605, %v686
      %v693 = vadd.f32 %v606, %v666
      %v694 = vadd.f32 %v607, %v689
      %v695 = vld [vmem:[%s2 + $0x8] sm:$0xff]
      %v696 = vld [vmem:[%s2 + $0x20] sm:$0xff]
      %697 = vrot.lane.b32.xlu0 %v335, 111
      %v698 = vpop.permute.xlu0 %697
      %699 = vrot.lane.b32.xlu0 %v364, 111
      %v700 = vpop.permute.xlu0 %699
      %701 = vrot.lane.b32.xlu0 %v338, 111
      %v702 = vpop.permute.xlu0 %701
      %703 = vrot.lane.b32.xlu0 %v367, 111
      %v704 = vpop.permute.xlu0 %703
      %705 = vrot.lane.b32.xlu0 %v341, 111
      %v706 = vpop.permute.xlu0 %705
      %707 = vrot.lane.b32.xlu0 %v370, 111
      %v708 = vpop.permute.xlu0 %707
      %709 = vrot.lane.b32.xlu0 %v344, 111
      %v710 = vpop.permute.xlu0 %709
      %711 = vrot.lane.b32.xlu0 %v373, 111
      %v712 = vpop.permute.xlu0 %711
      %vm713 = vcmask 908288
      %v714 = vsel %vm713, %v698, %v700
      %v715 = vsel %vm713, %v702, %v704
      %v716 = vsel %vm713, %v706, %v708
      %v717 = vsel %vm713, %v710, %v712
      %v727 = vsel %vm420, %v695, 0
      %v730 = vsel %vm420, %v696, 0
      %732 = vmatpush.msra.mxu0 0.0
      %733 = vmatpush.msra.mxu0 0.0
      %734 = vmatpush.msra.mxu0 0.0
      %735 = vmatpush.msra.mxu0 0.0
      %736 = vmatpush.msra.mxu0 0.0
      %737 = vmatpush.msra.mxu0 0.0
      %738 = vmatpush.msra.mxu0 0.0
      %739 = vmatpush.msra.mxu0 0.0
      %740 = vmatpush.msra.mxu0 0.0
      %741 = vmatpush.msra.mxu0 0.0
      %742 = vmatpush.msra.mxu0 0.0
      %743 = vmatpush.msra.mxu0 0.0
      %744 = vmatpush.msra.mxu0 %v717
      %745 = vmatpush.msra.mxu0 %v716
      %746 = vmatpush.msra.mxu0 %v715
      %747 = vmatpush.msra.mxu0 %v714
      %748 = vmatmul.f32.gmra.mxu0 %v727
      %v749 = vpop.f32.mrf.mxu0
      %v750 = vadd.f32 0.0, %v749
      %751 = vmatmul.f32.gmra.mxu0 %v730
      %v752 = vpop.f32.mrf.mxu0
      %v753 = vadd.f32 0.0, %v752
      %754 = vdwg.mxu0
      %755 = vmatpush.msra.mxu0 0.0
      %756 = vmatpush.msra.mxu0 0.0
      %757 = vmatpush.msra.mxu0 0.0
      %758 = vmatpush.msra.mxu0 0.0
      %759 = vmatpush.msra.mxu0 0.0
      %760 = vmatpush.msra.mxu0 0.0
      %761 = vmatpush.msra.mxu0 0.0
      %762 = vmatpush.msra.mxu0 0.0
      %763 = vmatpush.msra.mxu0 0.0
      %764 = vmatpush.msra.mxu0 0.0
      %765 = vmatpush.msra.mxu0 0.0
      %766 = vmatpush.msra.mxu0 0.0
      %767 = vmatpush.msra.mxu0 %v712
      %768 = vmatpush.msra.mxu0 %v708
      %769 = vmatpush.msra.mxu0 %v704
      %770 = vmatpush.msra.mxu0 %v700
      %771 = vmatmul.f32.gmra.mxu0 %v727
      %v772 = vpop.f32.mrf.mxu0
      %v773 = vadd.f32 0.0, %v772
      %774 = vmatmul.f32.gmra.mxu0 %v730
      %v775 = vpop.f32.mrf.mxu0
      %v776 = vadd.f32 0.0, %v775
      %777 = vdwg.mxu0
      %v778 = vadd.f32 %v691, %v750
      %v779 = vadd.f32 %v692, %v773
      %v780 = vadd.f32 %v693, %v753
      %v781 = vadd.f32 %v694, %v776
      %782 = vrot.lane.b32.xlu0 %v695, 96
      %v783 = vpop.permute.xlu0 %782
      %784 = vrot.lane.b32.xlu0 %v696, 96
      %v785 = vpop.permute.xlu0 %784
      %786 = vrot.lane.b32.xlu0 %v335, 110
      %v787 = vpop.permute.xlu0 %786
      %788 = vrot.lane.b32.xlu0 %v364, 110
      %v789 = vpop.permute.xlu0 %788
      %790 = vrot.lane.b32.xlu0 %v338, 110
      %v791 = vpop.permute.xlu0 %790
      %792 = vrot.lane.b32.xlu0 %v367, 110
      %v793 = vpop.permute.xlu0 %792
      %794 = vrot.lane.b32.xlu0 %v341, 110
      %v795 = vpop.permute.xlu0 %794
      %796 = vrot.lane.b32.xlu0 %v370, 110
      %v797 = vpop.permute.xlu0 %796
      %798 = vrot.lane.b32.xlu0 %v344, 110
      %v799 = vpop.permute.xlu0 %798
      %800 = vrot.lane.b32.xlu0 %v373, 110
      %v801 = vpop.permute.xlu0 %800
      %vm802 = vcmask 900096
      %v803 = vsel %vm802, %v787, %v789
      %v804 = vsel %vm802, %v791, %v793
      %v805 = vsel %vm802, %v795, %v797
      %v806 = vsel %vm802, %v799, %v801
      %v815 = vsel %vm420, %v783, 0
      %v817 = vsel %vm420, %v785, 0
      %819 = vmatpush.msra.mxu0 0.0
      %820 = vmatpush.msra.mxu0 0.0
      %821 = vmatpush.msra.mxu0 0.0
      %822 = vmatpush.msra.mxu0 0.0
      %823 = vmatpush.msra.mxu0 0.0
      %824 = vmatpush.msra.mxu0 0.0
      %825 = vmatpush.msra.mxu0 0.0
      %826 = vmatpush.msra.mxu0 0.0
      %827 = vmatpush.msra.mxu0 0.0
      %828 = vmatpush.msra.mxu0 0.0
      %829 = vmatpush.msra.mxu0 0.0
      %830 = vmatpush.msra.mxu0 0.0
      %831 = vmatpush.msra.mxu0 %v806
      %832 = vmatpush.msra.mxu0 %v805
      %833 = vmatpush.msra.mxu0 %v804
      %834 = vmatpush.msra.mxu0 %v803
      %835 = vmatmul.f32.gmra.mxu0 %v815
      %v836 = vpop.f32.mrf.mxu0
      %v837 = vadd.f32 0.0, %v836
      %838 = vmatmul.f32.gmra.mxu0 %v817
      %v839 = vpop.f32.mrf.mxu0
      %v840 = vadd.f32 0.0, %v839
      %841 = vdwg.mxu0
      %842 = vmatpush.msra.mxu0 0.0
      %843 = vmatpush.msra.mxu0 0.0
      %844 = vmatpush.msra.mxu0 0.0
      %845 = vmatpush.msra.mxu0 0.0
      %846 = vmatpush.msra.mxu0 0.0
      %847 = vmatpush.msra.mxu0 0.0
      %848 = vmatpush.msra.mxu0 0.0
      %849 = vmatpush.msra.mxu0 0.0
      %850 = vmatpush.msra.mxu0 0.0
      %851 = vmatpush.msra.mxu0 0.0
      %852 = vmatpush.msra.mxu0 0.0
      %853 = vmatpush.msra.mxu0 0.0
      %854 = vmatpush.msra.mxu0 %v801
      %855 = vmatpush.msra.mxu0 %v797
      %856 = vmatpush.msra.mxu0 %v793
      %857 = vmatpush.msra.mxu0 %v789
      %858 = vmatmul.f32.gmra.mxu0 %v815
      %v859 = vpop.f32.mrf.mxu0
      %v860 = vadd.f32 0.0, %v859
      %861 = vmatmul.f32.gmra.mxu0 %v817
      %v862 = vpop.f32.mrf.mxu0
      %v863 = vadd.f32 0.0, %v862
      %864 = vdwg.mxu0
      %v865 = vadd.f32 %v778, %v837
      %v866 = vadd.f32 %v779, %v860
      %v867 = vadd.f32 %v780, %v840
      %v868 = vadd.f32 %v781, %v863
      %869 = vrot.lane.b32.xlu0 %v695, 64
      %v870 = vpop.permute.xlu0 %869
      %871 = vrot.lane.b32.xlu0 %v696, 64
      %v872 = vpop.permute.xlu0 %871
      %873 = vrot.lane.b32.xlu0 %v335, 96
      %v874 = vpop.permute.xlu0 %873
      %875 = vrot.lane.b32.xlu0 %v364, 96
      %v876 = vpop.permute.xlu0 %875
      %877 = vrot.lane.b32.xlu0 %v338, 96
      %v878 = vpop.permute.xlu0 %877
      %879 = vrot.lane.b32.xlu0 %v367, 96
      %v880 = vpop.permute.xlu0 %879
      %881 = vrot.lane.b32.xlu0 %v341, 96
      %v882 = vpop.permute.xlu0 %881
      %883 = vrot.lane.b32.xlu0 %v370, 96
      %v884 = vpop.permute.xlu0 %883
      %885 = vrot.lane.b32.xlu0 %v344, 96
      %v886 = vpop.permute.xlu0 %885
      %887 = vrot.lane.b32.xlu0 %v373, 96
      %v888 = vpop.permute.xlu0 %887
      %vm889 = vcmask 785408
      %v890 = vsel %vm889, %v874, %v876
      %v891 = vsel %vm889, %v878, %v880
      %v892 = vsel %vm889, %v882, %v884
      %v893 = vsel %vm889, %v886, %v888
      %v902 = vsel %vm420, %v870, 0
      %v904 = vsel %vm420, %v872, 0
      %906 = vmatpush.msra.mxu0 0.0
      %907 = vmatpush.msra.mxu0 0.0
      %908 = vmatpush.msra.mxu0 0.0
      %909 = vmatpush.msra.mxu0 0.0
      %910 = vmatpush.msra.mxu0 0.0
      %911 = vmatpush.msra.mxu0 0.0
      %912 = vmatpush.msra.mxu0 0.0
      %913 = vmatpush.msra.mxu0 0.0
      %914 = vmatpush.msra.mxu0 0.0
      %915 = vmatpush.msra.mxu0 0.0
      %916 = vmatpush.msra.mxu0 0.0
      %917 = vmatpush.msra.mxu0 0.0
      %918 = vmatpush.msra.mxu0 %v893
      %919 = vmatpush.msra.mxu0 %v892
      %920 = vmatpush.msra.mxu0 %v891
      %921 = vmatpush.msra.mxu0 %v890
      %922 = vmatmul.f32.gmra.mxu0 %v902
      %v923 = vpop.f32.mrf.mxu0
      %v924 = vadd.f32 0.0, %v923
      %925 = vmatmul.f32.gmra.mxu0 %v904
      %v926 = vpop.f32.mrf.mxu0
      %v927 = vadd.f32 0.0, %v926
      %928 = vdwg.mxu0
      %929 = vmatpush.msra.mxu0 0.0
      %930 = vmatpush.msra.mxu0 0.0
      %931 = vmatpush.msra.mxu0 0.0
      %932 = vmatpush.msra.mxu0 0.0
      %933 = vmatpush.msra.mxu0 0.0
      %934 = vmatpush.msra.mxu0 0.0
      %935 = vmatpush.msra.mxu0 0.0
      %936 = vmatpush.msra.mxu0 0.0
      %937 = vmatpush.msra.mxu0 0.0
      %938 = vmatpush.msra.mxu0 0.0
      %939 = vmatpush.msra.mxu0 0.0
      %940 = vmatpush.msra.mxu0 0.0
      %941 = vmatpush.msra.mxu0 %v888
      %942 = vmatpush.msra.mxu0 %v884
      %943 = vmatpush.msra.mxu0 %v880
      %944 = vmatpush.msra.mxu0 %v876
      %945 = vmatmul.f32.gmra.mxu0 %v902
      %v946 = vpop.f32.mrf.mxu0
      %v947 = vadd.f32 0.0, %v946
      %948 = vmatmul.f32.gmra.mxu0 %v904
      %v949 = vpop.f32.mrf.mxu0
      %v950 = vadd.f32 0.0, %v949
      %951 = vdwg.mxu0
      %v952 = vadd.f32 %v865, %v924
      %v953 = vadd.f32 %v866, %v947
      %v954 = vadd.f32 %v867, %v927
      %v955 = vadd.f32 %v868, %v950
      %956 = vrot.lane.b32.xlu0 %v695, 32
      %v957 = vpop.permute.xlu0 %956
      %958 = vrot.lane.b32.xlu0 %v696, 32
      %v959 = vpop.permute.xlu0 %958
      %960 = vrot.lane.b32.xlu0 %v335, 95
      %v961 = vpop.permute.xlu0 %960
      %962 = vrot.lane.b32.xlu0 %v364, 95
      %v963 = vpop.permute.xlu0 %962
      %964 = vrot.lane.b32.xlu0 %v338, 95
      %v965 = vpop.permute.xlu0 %964
      %966 = vrot.lane.b32.xlu0 %v367, 95
      %v967 = vpop.permute.xlu0 %966
      %968 = vrot.lane.b32.xlu0 %v341, 95
      %v969 = vpop.permute.xlu0 %968
      %970 = vrot.lane.b32.xlu0 %v370, 95
      %v971 = vpop.permute.xlu0 %970
      %972 = vrot.lane.b32.xlu0 %v344, 95
      %v973 = vpop.permute.xlu0 %972
      %974 = vrot.lane.b32.xlu0 %v373, 95
      %v975 = vpop.permute.xlu0 %974
      %vm976 = vcmask 777216
      %v977 = vsel %vm976, %v961, %v963
      %v978 = vsel %vm976, %v965, %v967
      %v979 = vsel %vm976, %v969, %v971
      %v980 = vsel %vm976, %v973, %v975
      %v989 = vsel %vm420, %v957, 0
      %v991 = vsel %vm420, %v959, 0
      %993 = vmatpush.msra.mxu0 0.0
      %994 = vmatpush.msra.mxu0 0.0
      %995 = vmatpush.msra.mxu0 0.0
      %996 = vmatpush.msra.mxu0 0.0
      %997 = vmatpush.msra.mxu0 0.0
      %998 = vmatpush.msra.mxu0 0.0
      %999 = vmatpush.msra.mxu0 0.0
      %1000 = vmatpush.msra.mxu0 0.0
      %1001 = vmatpush.msra.mxu0 0.0
      %1002 = vmatpush.msra.mxu0 0.0
      %1003 = vmatpush.msra.mxu0 0.0
      %1004 = vmatpush.msra.mxu0 0.0
      %1005 = vmatpush.msra.mxu0 %v980
      %1006 = vmatpush.msra.mxu0 %v979
      %1007 = vmatpush.msra.mxu0 %v978
      %1008 = vmatpush.msra.mxu0 %v977
      %1009 = vmatmul.f32.gmra.mxu0 %v989
      %v1010 = vpop.f32.mrf.mxu0
      %v1011 = vadd.f32 0.0, %v1010
      %1012 = vmatmul.f32.gmra.mxu0 %v991
      %v1013 = vpop.f32.mrf.mxu0
      %v1014 = vadd.f32 0.0, %v1013
      %1015 = vdwg.mxu0
      %1016 = vmatpush.msra.mxu0 0.0
      %1017 = vmatpush.msra.mxu0 0.0
      %1018 = vmatpush.msra.mxu0 0.0
      %1019 = vmatpush.msra.mxu0 0.0
      %1020 = vmatpush.msra.mxu0 0.0
      %1021 = vmatpush.msra.mxu0 0.0
      %1022 = vmatpush.msra.mxu0 0.0
      %1023 = vmatpush.msra.mxu0 0.0
      %1024 = vmatpush.msra.mxu0 0.0
      %1025 = vmatpush.msra.mxu0 0.0
      %1026 = vmatpush.msra.mxu0 0.0
      %1027 = vmatpush.msra.mxu0 0.0
      %1028 = vmatpush.msra.mxu0 %v975
      %1029 = vmatpush.msra.mxu0 %v971
      %1030 = vmatpush.msra.mxu0 %v967
      %1031 = vmatpush.msra.mxu0 %v963
      %1032 = vmatmul.f32.gmra.mxu0 %v989
      %v1033 = vpop.f32.mrf.mxu0
      %v1034 = vadd.f32 0.0, %v1033
      %1035 = vmatmul.f32.gmra.mxu0 %v991
      %v1036 = vpop.f32.mrf.mxu0
      %v1037 = vadd.f32 0.0, %v1036
      %1038 = vdwg.mxu0
      %v1039 = vadd.f32 %v952, %v1011
      %v1040 = vadd.f32 %v953, %v1034
      %v1041 = vadd.f32 %v954, %v1014
      %v1042 = vadd.f32 %v955, %v1037
      %v1043 = vld [vmem:[%s2 + $0x10] sm:$0xff]
      %v1044 = vld [vmem:[%s2 + $0x28] sm:$0xff]
      %1045 = vrot.lane.b32.xlu0 %v335, 94
      %v1046 = vpop.permute.xlu0 %1045
      %1047 = vrot.lane.b32.xlu0 %v364, 94
      %v1048 = vpop.permute.xlu0 %1047
      %1049 = vrot.lane.b32.xlu0 %v338, 94
      %v1050 = vpop.permute.xlu0 %1049
      %1051 = vrot.lane.b32.xlu0 %v367, 94
      %v1052 = vpop.permute.xlu0 %1051
      %1053 = vrot.lane.b32.xlu0 %v341, 94
      %v1054 = vpop.permute.xlu0 %1053
      %1055 = vrot.lane.b32.xlu0 %v370, 94
      %v1056 = vpop.permute.xlu0 %1055
      %1057 = vrot.lane.b32.xlu0 %v344, 94
      %v1058 = vpop.permute.xlu0 %1057
      %1059 = vrot.lane.b32.xlu0 %v373, 94
      %v1060 = vpop.permute.xlu0 %1059
      %vm1061 = vcmask 769024
      %v1062 = vsel %vm1061, %v1046, %v1048
      %v1063 = vsel %vm1061, %v1050, %v1052
      %v1064 = vsel %vm1061, %v1054, %v1056
      %v1065 = vsel %vm1061, %v1058, %v1060
      %v1075 = vsel %vm420, %v1043, 0
      %v1078 = vsel %vm420, %v1044, 0
      %1080 = vmatpush.msra.mxu0 0.0
      %1081 = vmatpush.msra.mxu0 0.0
      %1082 = vmatpush.msra.mxu0 0.0
      %1083 = vmatpush.msra.mxu0 0.0
      %1084 = vmatpush.msra.mxu0 0.0
      %1085 = vmatpush.msra.mxu0 0.0
      %1086 = vmatpush.msra.mxu0 0.0
      %1087 = vmatpush.msra.mxu0 0.0
      %1088 = vmatpush.msra.mxu0 0.0
      %1089 = vmatpush.msra.mxu0 0.0
      %1090 = vmatpush.msra.mxu0 0.0
      %1091 = vmatpush.msra.mxu0 0.0
      %1092 = vmatpush.msra.mxu0 %v1065
      %1093 = vmatpush.msra.mxu0 %v1064
      %1094 = vmatpush.msra.mxu0 %v1063
      %1095 = vmatpush.msra.mxu0 %v1062
      %1096 = vmatmul.f32.gmra.mxu0 %v1075
      %v1097 = vpop.f32.mrf.mxu0
      %v1098 = vadd.f32 0.0, %v1097
      %1099 = vmatmul.f32.gmra.mxu0 %v1078
      %v1100 = vpop.f32.mrf.mxu0
      %v1101 = vadd.f32 0.0, %v1100
      %1102 = vdwg.mxu0
      %1103 = vmatpush.msra.mxu0 0.0
      %1104 = vmatpush.msra.mxu0 0.0
      %1105 = vmatpush.msra.mxu0 0.0
      %1106 = vmatpush.msra.mxu0 0.0
      %1107 = vmatpush.msra.mxu0 0.0
      %1108 = vmatpush.msra.mxu0 0.0
      %1109 = vmatpush.msra.mxu0 0.0
      %1110 = vmatpush.msra.mxu0 0.0
      %1111 = vmatpush.msra.mxu0 0.0
      %1112 = vmatpush.msra.mxu0 0.0
      %1113 = vmatpush.msra.mxu0 0.0
      %1114 = vmatpush.msra.mxu0 0.0
      %1115 = vmatpush.msra.mxu0 %v1060
      %1116 = vmatpush.msra.mxu0 %v1056
      %1117 = vmatpush.msra.mxu0 %v1052
      %1118 = vmatpush.msra.mxu0 %v1048
      %1119 = vmatmul.f32.gmra.mxu0 %v1075
      %v1120 = vpop.f32.mrf.mxu0
      %v1121 = vadd.f32 0.0, %v1120
      %1122 = vmatmul.f32.gmra.mxu0 %v1078
      %v1123 = vpop.f32.mrf.mxu0
      %v1124 = vadd.f32 0.0, %v1123
      %1125 = vdwg.mxu0
      %v1126 = vadd.f32 %v1039, %v1098
      %v1127 = vadd.f32 %v1040, %v1121
      %v1128 = vadd.f32 %v1041, %v1101
      %v1129 = vadd.f32 %v1042, %v1124
      %v1130 = vld [vmem:[%s3] sm:$0xff]
      %v1131 = vld [vmem:[%s3 + $0x8] sm:$0xff]
      %1133 = vset.pattern.permute.xlu0 0
      %1134 = vperm.xlu0 %1133, %v1130
      %v1135 = vpop.permute.xlu0 %1134
      %1138 = vset.pattern.permute.xlu0 0
      %1139 = vperm.xlu0 %1138, %v1131
      %v1140 = vpop.permute.xlu0 %1139
      %v1142 = vadd.f32 %v1126, %v1135
      %v1143 = vadd.f32 %v1127, %v1135
      %v1144 = vadd.f32 %v1128, %v1140
      %v1145 = vadd.f32 %v1129, %v1140
      %v1146 = vmax.f32 %v1142, 0.0
      %v1147 = vmax.f32 %v1143, 0.0
      %v1148 = vmax.f32 %v1144, 0.0
      %v1149 = vmax.f32 %v1145, 0.0
      %v1150 = vld [vmem:[%s4] sm:$0xff]
      %v1151 = vld [vmem:[%s4 + $0x8] sm:$0xff]
      %v1152 = vld [vmem:[%s4 + $0x10] sm:$0xff]
      %v1153 = vld [vmem:[%s4 + $0x18] sm:$0xff]
      %v1154 = vld [vmem:[%s4 + $0x20] sm:$0xff]
      %v1155 = vld [vmem:[%s4 + $0x28] sm:$0xff]
      %v1156 = vld [vmem:[%s4 + $0x30] sm:$0xff]
      %v1157 = vld [vmem:[%s4 + $0x38] sm:$0xff]
      %v1158 = vld [vmem:[%s4 + $0x40] sm:$0xff]
      %v1159 = vld [vmem:[%s4 + $0x48] sm:$0xff]
      %v1160 = vld [vmem:[%s4 + $0x50] sm:$0xff]
      %v1161 = vld [vmem:[%s4 + $0x58] sm:$0xff]
      %v1162 = vld [vmem:[%s4 + $0x60] sm:$0xff]
      %v1163 = vld [vmem:[%s4 + $0x68] sm:$0xff]
      %v1164 = vld [vmem:[%s4 + $0x70] sm:$0xff]
      %v1165 = vld [vmem:[%s4 + $0x78] sm:$0xff]
      %v1166 = vld [vmem:[%s4 + $0x80] sm:$0xff]
      %v1167 = vld [vmem:[%s4 + $0x88] sm:$0xff]
      %v1168 = vld [vmem:[%s4 + $0x90] sm:$0xff]
      %v1169 = vld [vmem:[%s4 + $0x98] sm:$0xff]
      %v1170 = vld [vmem:[%s4 + $0xa0] sm:$0xff]
      %v1171 = vld [vmem:[%s4 + $0xa8] sm:$0xff]
      %v1172 = vld [vmem:[%s4 + $0xb0] sm:$0xff]
      %v1173 = vld [vmem:[%s4 + $0xb8] sm:$0xff]
      %v1174 = vld [vmem:[%s4 + $0xc0] sm:$0xff]
      %v1175 = vld [vmem:[%s4 + $0xc8] sm:$0xff]
      %v1176 = vld [vmem:[%s4 + $0xd0] sm:$0xff]
      %v1177 = vld [vmem:[%s4 + $0xd8] sm:$0xff]
      %v1178 = vld [vmem:[%s4 + $0xe0] sm:$0xff]
      %v1179 = vld [vmem:[%s4 + $0xe8] sm:$0xff]
      %v1180 = vld [vmem:[%s4 + $0xf0] sm:$0xff]
      %v1181 = vld [vmem:[%s4 + $0xf8] sm:$0xff]
      %v1182 = vld [vmem:[%s4 + $0x100] sm:$0xff]
      %v1183 = vld [vmem:[%s4 + $0x108] sm:$0xff]
      %v1184 = vld [vmem:[%s4 + $0x110] sm:$0xff]
      %v1185 = vld [vmem:[%s4 + $0x118] sm:$0xff]
      %v1186 = vld [vmem:[%s4 + $0x120] sm:$0xff]
      %v1187 = vld [vmem:[%s4 + $0x128] sm:$0xff]
      %v1188 = vld [vmem:[%s4 + $0x130] sm:$0xff]
      %v1189 = vld [vmem:[%s4 + $0x138] sm:$0xff]
      %v1190 = vld [vmem:[%s4 + $0x140] sm:$0xff]
      %v1191 = vld [vmem:[%s4 + $0x148] sm:$0xff]
      %v1192 = vld [vmem:[%s4 + $0x150] sm:$0xff]
      %v1193 = vld [vmem:[%s4 + $0x158] sm:$0xff]
      %v1194 = vld [vmem:[%s4 + $0x160] sm:$0xff]
      %v1195 = vld [vmem:[%s4 + $0x168] sm:$0xff]
      %v1196 = vld [vmem:[%s4 + $0x170] sm:$0xff]
      %v1197 = vld [vmem:[%s4 + $0x178] sm:$0xff]
      %v1198 = vld [vmem:[%s4 + $0x180] sm:$0xff]
      %v1199 = vld [vmem:[%s4 + $0x188] sm:$0xff]
      %v1200 = vld [vmem:[%s4 + $0x190] sm:$0xff]
      %v1201 = vld [vmem:[%s4 + $0x198] sm:$0xff]
      %v1202 = vld [vmem:[%s4 + $0x1a0] sm:$0xff]
      %v1203 = vld [vmem:[%s4 + $0x1a8] sm:$0xff]
      %v1204 = vld [vmem:[%s4 + $0x1b0] sm:$0xff]
      %v1205 = vld [vmem:[%s4 + $0x1b8] sm:$0xff]
      %v1206 = vld [vmem:[%s4 + $0x1c0] sm:$0xff]
      %v1207 = vld [vmem:[%s4 + $0x1c8] sm:$0xff]
      %v1208 = vld [vmem:[%s4 + $0x1d0] sm:$0xff]
      %v1209 = vld [vmem:[%s4 + $0x1d8] sm:$0xff]
      %v1210 = vld [vmem:[%s4 + $0x1e0] sm:$0xff]
      %v1211 = vld [vmem:[%s4 + $0x1e8] sm:$0xff]
      %v1212 = vld [vmem:[%s4 + $0x1f0] sm:$0xff]
      %v1213 = vld [vmem:[%s4 + $0x1f8] sm:$0xff]
      %v1214 = vld [vmem:[%s4 + $0x200] sm:$0xff]
      %v1215 = vld [vmem:[%s4 + $0x208] sm:$0xff]
      %v1216 = vld [vmem:[%s4 + $0x210] sm:$0xff]
      %v1217 = vld [vmem:[%s4 + $0x218] sm:$0xff]
      %v1218 = vld [vmem:[%s4 + $0x220] sm:$0xff]
      %v1219 = vld [vmem:[%s4 + $0x228] sm:$0xff]
      %v1220 = vld [vmem:[%s4 + $0x230] sm:$0xff]
      %v1221 = vld [vmem:[%s4 + $0x238] sm:$0xff]
      %v1222 = vld [vmem:[%s4 + $0x240] sm:$0xff]
      %v1223 = vld [vmem:[%s4 + $0x248] sm:$0xff]
      %v1224 = vld [vmem:[%s4 + $0x250] sm:$0xff]
      %v1225 = vld [vmem:[%s4 + $0x258] sm:$0xff]
      %v1226 = vld [vmem:[%s4 + $0x260] sm:$0xff]
      %v1227 = vld [vmem:[%s4 + $0x268] sm:$0xff]
      %v1228 = vld [vmem:[%s4 + $0x270] sm:$0xff]
      %v1229 = vld [vmem:[%s4 + $0x278] sm:$0xff]
      %v1230 = vld [vmem:[%s4 + $0x280] sm:$0xff]
      %v1231 = vld [vmem:[%s4 + $0x288] sm:$0xff]
      %v1232 = vld [vmem:[%s4 + $0x290] sm:$0xff]
      %v1233 = vld [vmem:[%s4 + $0x298] sm:$0xff]
      %v1234 = vld [vmem:[%s4 + $0x2a0] sm:$0xff]
      %v1235 = vld [vmem:[%s4 + $0x2a8] sm:$0xff]
      %v1236 = vld [vmem:[%s4 + $0x2b0] sm:$0xff]
      %v1237 = vld [vmem:[%s4 + $0x2b8] sm:$0xff]
      %v1238 = vld [vmem:[%s4 + $0x2c0] sm:$0xff]
      %v1239 = vld [vmem:[%s4 + $0x2c8] sm:$0xff]
      %v1240 = vld [vmem:[%s4 + $0x2d0] sm:$0xff]
      %v1241 = vld [vmem:[%s4 + $0x2d8] sm:$0xff]
      %v1242 = vld [vmem:[%s4 + $0x2e0] sm:$0xff]
      %v1243 = vld [vmem:[%s4 + $0x2e8] sm:$0xff]
      %v1244 = vld [vmem:[%s4 + $0x2f0] sm:$0xff]
      %v1245 = vld [vmem:[%s4 + $0x2f8] sm:$0xff]
      %v1246 = vld [vmem:[%s4 + $0x300] sm:$0xff]
      %v1247 = vld [vmem:[%s4 + $0x308] sm:$0xff]
      %v1248 = vld [vmem:[%s4 + $0x310] sm:$0xff]
      %v1249 = vld [vmem:[%s4 + $0x318] sm:$0xff]
      %v1250 = vld [vmem:[%s4 + $0x320] sm:$0xff]
      %v1251 = vld [vmem:[%s4 + $0x328] sm:$0xff]
      %v1252 = vld [vmem:[%s4 + $0x330] sm:$0xff]
      %v1253 = vld [vmem:[%s4 + $0x338] sm:$0xff]
      %v1254 = vld [vmem:[%s4 + $0x340] sm:$0xff]
      %v1255 = vld [vmem:[%s4 + $0x348] sm:$0xff]
      %v1256 = vld [vmem:[%s4 + $0x350] sm:$0xff]
      %v1257 = vld [vmem:[%s4 + $0x358] sm:$0xff]
      %v1258 = vld [vmem:[%s4 + $0x360] sm:$0xff]
      %v1259 = vld [vmem:[%s4 + $0x368] sm:$0xff]
      %v1260 = vld [vmem:[%s4 + $0x370] sm:$0xff]
      %v1261 = vld [vmem:[%s4 + $0x378] sm:$0xff]
      %v1262 = vld [vmem:[%s4 + $0x380] sm:$0xff]
      %v1263 = vld [vmem:[%s4 + $0x388] sm:$0xff]
      %v1264 = vld [vmem:[%s4 + $0x390] sm:$0xff]
      %v1265 = vld [vmem:[%s4 + $0x398] sm:$0xff]
      %v1266 = vld [vmem:[%s4 + $0x3a0] sm:$0xff]
      %v1267 = vld [vmem:[%s4 + $0x3a8] sm:$0xff]
      %v1268 = vld [vmem:[%s4 + $0x3b0] sm:$0xff]
      %v1269 = vld [vmem:[%s4 + $0x3b8] sm:$0xff]
      %v1270 = vld [vmem:[%s4 + $0x3c0] sm:$0xff]
      %v1271 = vld [vmem:[%s4 + $0x3c8] sm:$0xff]
      %v1272 = vld [vmem:[%s4 + $0x3d0] sm:$0xff]
      %v1273 = vld [vmem:[%s4 + $0x3d8] sm:$0xff]
      %v1274 = vld [vmem:[%s4 + $0x3e0] sm:$0xff]
      %v1275 = vld [vmem:[%s4 + $0x3e8] sm:$0xff]
      %v1276 = vld [vmem:[%s4 + $0x3f0] sm:$0xff]
      %v1277 = vld [vmem:[%s4 + $0x3f8] sm:$0xff]
      %v1278 = vld [vmem:[%s4 + $0x400] sm:$0xff]
      %v1279 = vld [vmem:[%s4 + $0x408] sm:$0xff]
      %v1280 = vld [vmem:[%s4 + $0x410] sm:$0xff]
      %v1281 = vld [vmem:[%s4 + $0x418] sm:$0xff]
      %v1282 = vld [vmem:[%s4 + $0x420] sm:$0xff]
      %v1283 = vld [vmem:[%s4 + $0x428] sm:$0xff]
      %v1284 = vld [vmem:[%s4 + $0x430] sm:$0xff]
      %v1285 = vld [vmem:[%s4 + $0x438] sm:$0xff]
      %v1286 = vld [vmem:[%s4 + $0x440] sm:$0xff]
      %v1287 = vld [vmem:[%s4 + $0x448] sm:$0xff]
      %v1288 = vld [vmem:[%s4 + $0x450] sm:$0xff]
      %v1289 = vld [vmem:[%s4 + $0x458] sm:$0xff]
      %v1290 = vld [vmem:[%s4 + $0x460] sm:$0xff]
      %v1291 = vld [vmem:[%s4 + $0x468] sm:$0xff]
      %v1292 = vld [vmem:[%s4 + $0x470] sm:$0xff]
      %v1293 = vld [vmem:[%s4 + $0x478] sm:$0xff]
      %v1294 = vld [vmem:[%s4 + $0x480] sm:$0xff]
      %v1295 = vld [vmem:[%s4 + $0x488] sm:$0xff]
      %v1296 = vld [vmem:[%s4 + $0x490] sm:$0xff]
      %v1297 = vld [vmem:[%s4 + $0x498] sm:$0xff]
      %v1298 = vld [vmem:[%s4 + $0x4a0] sm:$0xff]
      %v1299 = vld [vmem:[%s4 + $0x4a8] sm:$0xff]
      %v1300 = vld [vmem:[%s4 + $0x4b0] sm:$0xff]
      %v1301 = vld [vmem:[%s4 + $0x4b8] sm:$0xff]
      %v1302 = vld [vmem:[%s4 + $0x4c0] sm:$0xff]
      %v1303 = vld [vmem:[%s4 + $0x4c8] sm:$0xff]
      %v1304 = vld [vmem:[%s4 + $0x4d0] sm:$0xff]
      %v1305 = vld [vmem:[%s4 + $0x4d8] sm:$0xff]
      %v1306 = vld [vmem:[%s4 + $0x4e0] sm:$0xff]
      %v1307 = vld [vmem:[%s4 + $0x4e8] sm:$0xff]
      %v1308 = vld [vmem:[%s4 + $0x4f0] sm:$0xff]
      %v1309 = vld [vmem:[%s4 + $0x4f8] sm:$0xff]
      %v1310 = vld [vmem:[%s4 + $0x500] sm:$0xff]
      %v1311 = vld [vmem:[%s4 + $0x508] sm:$0xff]
      %v1312 = vld [vmem:[%s4 + $0x510] sm:$0xff]
      %v1313 = vld [vmem:[%s4 + $0x518] sm:$0xff]
      %v1314 = vld [vmem:[%s4 + $0x520] sm:$0xff]
      %v1315 = vld [vmem:[%s4 + $0x528] sm:$0xff]
      %v1316 = vld [vmem:[%s4 + $0x530] sm:$0xff]
      %v1317 = vld [vmem:[%s4 + $0x538] sm:$0xff]
      %v1318 = vld [vmem:[%s4 + $0x540] sm:$0xff]
      %v1319 = vld [vmem:[%s4 + $0x548] sm:$0xff]
      %v1320 = vld [vmem:[%s4 + $0x550] sm:$0xff]
      %v1321 = vld [vmem:[%s4 + $0x558] sm:$0xff]
      %v1322 = vld [vmem:[%s4 + $0x560] sm:$0xff]
      %v1323 = vld [vmem:[%s4 + $0x568] sm:$0xff]
      %v1324 = vld [vmem:[%s4 + $0x570] sm:$0xff]
      %v1325 = vld [vmem:[%s4 + $0x578] sm:$0xff]
      %v1326 = vld [vmem:[%s4 + $0x580] sm:$0xff]
      %v1327 = vld [vmem:[%s4 + $0x588] sm:$0xff]
      %v1328 = vld [vmem:[%s4 + $0x590] sm:$0xff]
      %v1329 = vld [vmem:[%s4 + $0x598] sm:$0xff]
      %v1330 = vld [vmem:[%s4 + $0x5a0] sm:$0xff]
      %v1331 = vld [vmem:[%s4 + $0x5a8] sm:$0xff]
      %v1332 = vld [vmem:[%s4 + $0x5b0] sm:$0xff]
      %v1333 = vld [vmem:[%s4 + $0x5b8] sm:$0xff]
      %v1334 = vld [vmem:[%s4 + $0x5c0] sm:$0xff]
      %v1335 = vld [vmem:[%s4 + $0x5c8] sm:$0xff]
      %v1336 = vld [vmem:[%s4 + $0x5d0] sm:$0xff]
      %v1337 = vld [vmem:[%s4 + $0x5d8] sm:$0xff]
      %v1338 = vld [vmem:[%s4 + $0x5e0] sm:$0xff]
      %v1339 = vld [vmem:[%s4 + $0x5e8] sm:$0xff]
      %v1340 = vld [vmem:[%s4 + $0x5f0] sm:$0xff]
      %v1341 = vld [vmem:[%s4 + $0x5f8] sm:$0xff]
      %v1342 = vld [vmem:[%s4 + $0x600] sm:$0xff]
      %v1343 = vld [vmem:[%s4 + $0x608] sm:$0xff]
      %v1344 = vld [vmem:[%s4 + $0x610] sm:$0xff]
      %v1345 = vld [vmem:[%s4 + $0x618] sm:$0xff]
      %v1346 = vld [vmem:[%s4 + $0x620] sm:$0xff]
      %v1347 = vld [vmem:[%s4 + $0x628] sm:$0xff]
      %v1348 = vld [vmem:[%s4 + $0x630] sm:$0xff]
      %v1349 = vld [vmem:[%s4 + $0x638] sm:$0xff]
      %v1350 = vld [vmem:[%s4 + $0x640] sm:$0xff]
      %v1351 = vld [vmem:[%s4 + $0x648] sm:$0xff]
      %v1352 = vld [vmem:[%s4 + $0x650] sm:$0xff]
      %v1353 = vld [vmem:[%s4 + $0x658] sm:$0xff]
      %v1354 = vld [vmem:[%s4 + $0x660] sm:$0xff]
      %v1355 = vld [vmem:[%s4 + $0x668] sm:$0xff]
      %v1356 = vld [vmem:[%s4 + $0x670] sm:$0xff]
      %v1357 = vld [vmem:[%s4 + $0x678] sm:$0xff]
      %v1358 = vld [vmem:[%s4 + $0x680] sm:$0xff]
      %v1359 = vld [vmem:[%s4 + $0x688] sm:$0xff]
      %v1360 = vld [vmem:[%s4 + $0x690] sm:$0xff]
      %v1361 = vld [vmem:[%s4 + $0x698] sm:$0xff]
      %v1362 = vld [vmem:[%s4 + $0x6a0] sm:$0xff]
      %v1363 = vld [vmem:[%s4 + $0x6a8] sm:$0xff]
      %v1364 = vld [vmem:[%s4 + $0x6b0] sm:$0xff]
      %v1365 = vld [vmem:[%s4 + $0x6b8] sm:$0xff]
      %v1366 = vld [vmem:[%s4 + $0x6c0] sm:$0x3f]
      %v1367 = vld [vmem:[%s4 + $0x6c8] sm:$0x3f]
      %v1368 = vld [vmem:[%s4 + $0x6d0] sm:$0x3f]
      %v1369 = vld [vmem:[%s4 + $0x6d8] sm:$0x3f]
      %v1370 = vld [vmem:[%s4 + $0x6e0] sm:$0x3f]
      %v1371 = vld [vmem:[%s4 + $0x6e8] sm:$0x3f]
      %v1372 = vld [vmem:[%s4 + $0x6f0] sm:$0x3f]
      %v1373 = vld [vmem:[%s4 + $0x6f8] sm:$0x3f]
      %v1375 = vsel %vm1061, %v1147, 0
      %v1378 = vsel %vm1061, %v1149, 0
      %vm1380 = vcmask 1045504
      %v1382 = vsel %vm1380, %v1366, 0
      %v1385 = vsel %vm1380, %v1367, 0
      %v1388 = vsel %vm1380, %v1368, 0
      %v1391 = vsel %vm1380, %v1369, 0
      %v1394 = vsel %vm1380, %v1370, 0
      %v1397 = vsel %vm1380, %v1371, 0
      %v1400 = vsel %vm1380, %v1372, 0
      %v1403 = vsel %vm1380, %v1373, 0
      %1405 = vmatpush.msra.mxu0 %v1270
      %1406 = vmatpush.msra.mxu0 %v1262
      %1407 = vmatpush.msra.mxu0 %v1254
      %1408 = vmatpush.msra.mxu0 %v1246
      %1409 = vmatpush.msra.mxu0 %v1238
      %1410 = vmatpush.msra.mxu0 %v1230
      %1411 = vmatpush.msra.mxu0 %v1222
      %1412 = vmatpush.msra.mxu0 %v1214
      %1413 = vmatpush.msra.mxu0 %v1206
      %1414 = vmatpush.msra.mxu0 %v1198
      %1415 = vmatpush.msra.mxu0 %v1190
      %1416 = vmatpush.msra.mxu0 %v1182
      %1417 = vmatpush.msra.mxu0 %v1174
      %1418 = vmatpush.msra.mxu0 %v1166
      %1419 = vmatpush.msra.mxu0 %v1158
      %1420 = vmatpush.msra.mxu0 %v1150
      %1421 = vmatmul.f32.gmra.mxu0 %v1146
      %v1422 = vpop.f32.mrf.mxu0
      %v1423 = vadd.f32 0.0, %v1422
      %1424 = vmatmul.f32.gmra.mxu0 %v1148
      %v1425 = vpop.f32.mrf.mxu0
      %v1426 = vadd.f32 0.0, %v1425
      %1427 = vdwg.mxu0
      %1428 = vmatpush.msra.mxu0 0.0
      %1429 = vmatpush.msra.mxu0 0.0
      %1430 = vmatpush.msra.mxu0 0.0
      %1431 = vmatpush.msra.mxu0 0.0
      %1432 = vmatpush.msra.mxu0 %v1382
      %1433 = vmatpush.msra.mxu0 %v1358
      %1434 = vmatpush.msra.mxu0 %v1350
      %1435 = vmatpush.msra.mxu0 %v1342
      %1436 = vmatpush.msra.mxu0 %v1334
      %1437 = vmatpush.msra.mxu0 %v1326
      %1438 = vmatpush.msra.mxu0 %v1318
      %1439 = vmatpush.msra.mxu0 %v1310
      %1440 = vmatpush.msra.mxu0 %v1302
      %1441 = vmatpush.msra.mxu0 %v1294
      %1442 = vmatpush.msra.mxu0 %v1286
      %1443 = vmatpush.msra.mxu0 %v1278
      %1444 = vmatmul.f32.gmra.mxu0 %v1375
      %v1445 = vpop.f32.mrf.mxu0
      %v1446 = vadd.f32 %v1423, %v1445
      %1447 = vmatmul.f32.gmra.mxu0 %v1378
      %v1448 = vpop.f32.mrf.mxu0
      %v1449 = vadd.f32 %v1426, %v1448
      %1450 = vdwg.mxu0
      %1451 = vmatpush.msra.mxu0 %v1271
      %1452 = vmatpush.msra.mxu0 %v1263
      %1453 = vmatpush.msra.mxu0 %v1255
      %1454 = vmatpush.msra.mxu0 %v1247
      %1455 = vmatpush.msra.mxu0 %v1239
      %1456 = vmatpush.msra.mxu0 %v1231
      %1457 = vmatpush.msra.mxu0 %v1223
      %1458 = vmatpush.msra.mxu0 %v1215
      %1459 = vmatpush.msra.mxu0 %v1207
      %1460 = vmatpush.msra.mxu0 %v1199
      %1461 = vmatpush.msra.mxu0 %v1191
      %1462 = vmatpush.msra.mxu0 %v1183
      %1463 = vmatpush.msra.mxu0 %v1175
      %1464 = vmatpush.msra.mxu0 %v1167
      %1465 = vmatpush.msra.mxu0 %v1159
      %1466 = vmatpush.msra.mxu0 %v1151
      %1467 = vmatmul.f32.gmra.mxu0 %v1146
      %v1468 = vpop.f32.mrf.mxu0
      %v1469 = vadd.f32 0.0, %v1468
      %1470 = vmatmul.f32.gmra.mxu0 %v1148
      %v1471 = vpop.f32.mrf.mxu0
      %v1472 = vadd.f32 0.0, %v1471
      %1473 = vdwg.mxu0
      %1474 = vmatpush.msra.mxu0 0.0
      %1475 = vmatpush.msra.mxu0 0.0
      %1476 = vmatpush.msra.mxu0 0.0
      %1477 = vmatpush.msra.mxu0 0.0
      %1478 = vmatpush.msra.mxu0 %v1385
      %1479 = vmatpush.msra.mxu0 %v1359
      %1480 = vmatpush.msra.mxu0 %v1351
      %1481 = vmatpush.msra.mxu0 %v1343
      %1482 = vmatpush.msra.mxu0 %v1335
      %1483 = vmatpush.msra.mxu0 %v1327
      %1484 = vmatpush.msra.mxu0 %v1319
      %1485 = vmatpush.msra.mxu0 %v1311
      %1486 = vmatpush.msra.mxu0 %v1303
      %1487 = vmatpush.msra.mxu0 %v1295
      %1488 = vmatpush.msra.mxu0 %v1287
      %1489 = vmatpush.msra.mxu0 %v1279
      %1490 = vmatmul.f32.gmra.mxu0 %v1375
      %v1491 = vpop.f32.mrf.mxu0
      %v1492 = vadd.f32 %v1469, %v1491
      %1493 = vmatmul.f32.gmra.mxu0 %v1378
      %v1494 = vpop.f32.mrf.mxu0
      %v1495 = vadd.f32 %v1472, %v1494
      %1496 = vdwg.mxu0
      %1497 = vmatpush.msra.mxu0 %v1272
      %1498 = vmatpush.msra.mxu0 %v1264
      %1499 = vmatpush.msra.mxu0 %v1256
      %1500 = vmatpush.msra.mxu0 %v1248
      %1501 = vmatpush.msra.mxu0 %v1240
      %1502 = vmatpush.msra.mxu0 %v1232
      %1503 = vmatpush.msra.mxu0 %v1224
      %1504 = vmatpush.msra.mxu0 %v1216
      %1505 = vmatpush.msra.mxu0 %v1208
      %1506 = vmatpush.msra.mxu0 %v1200
      %1507 = vmatpush.msra.mxu0 %v1192
      %1508 = vmatpush.msra.mxu0 %v1184
      %1509 = vmatpush.msra.mxu0 %v1176
      %1510 = vmatpush.msra.mxu0 %v1168
      %1511 = vmatpush.msra.mxu0 %v1160
      %1512 = vmatpush.msra.mxu0 %v1152
      %1513 = vmatmul.f32.gmra.mxu0 %v1146
      %v1514 = vpop.f32.mrf.mxu0
      %v1515 = vadd.f32 0.0, %v1514
      %1516 = vmatmul.f32.gmra.mxu0 %v1148
      %v1517 = vpop.f32.mrf.mxu0
      %v1518 = vadd.f32 0.0, %v1517
      %1519 = vdwg.mxu0
      %1520 = vmatpush.msra.mxu0 0.0
      %1521 = vmatpush.msra.mxu0 0.0
      %1522 = vmatpush.msra.mxu0 0.0
      %1523 = vmatpush.msra.mxu0 0.0
      %1524 = vmatpush.msra.mxu0 %v1388
      %1525 = vmatpush.msra.mxu0 %v1360
      %1526 = vmatpush.msra.mxu0 %v1352
      %1527 = vmatpush.msra.mxu0 %v1344
      %1528 = vmatpush.msra.mxu0 %v1336
      %1529 = vmatpush.msra.mxu0 %v1328
      %1530 = vmatpush.msra.mxu0 %v1320
      %1531 = vmatpush.msra.mxu0 %v1312
      %1532 = vmatpush.msra.mxu0 %v1304
      %1533 = vmatpush.msra.mxu0 %v1296
      %1534 = vmatpush.msra.mxu0 %v1288
      %1535 = vmatpush.msra.mxu0 %v1280
      %1536 = vmatmul.f32.gmra.mxu0 %v1375
      %v1537 = vpop.f32.mrf.mxu0
      %v1538 = vadd.f32 %v1515, %v1537
      %1539 = vmatmul.f32.gmra.mxu0 %v1378
      %v1540 = vpop.f32.mrf.mxu0
      %v1541 = vadd.f32 %v1518, %v1540
      %1542 = vdwg.mxu0
      %1543 = vmatpush.msra.mxu0 %v1273
      %1544 = vmatpush.msra.mxu0 %v1265
      %1545 = vmatpush.msra.mxu0 %v1257
      %1546 = vmatpush.msra.mxu0 %v1249
      %1547 = vmatpush.msra.mxu0 %v1241
      %1548 = vmatpush.msra.mxu0 %v1233
      %1549 = vmatpush.msra.mxu0 %v1225
      %1550 = vmatpush.msra.mxu0 %v1217
      %1551 = vmatpush.msra.mxu0 %v1209
      %1552 = vmatpush.msra.mxu0 %v1201
      %1553 = vmatpush.msra.mxu0 %v1193
      %1554 = vmatpush.msra.mxu0 %v1185
      %1555 = vmatpush.msra.mxu0 %v1177
      %1556 = vmatpush.msra.mxu0 %v1169
      %1557 = vmatpush.msra.mxu0 %v1161
      %1558 = vmatpush.msra.mxu0 %v1153
      %1559 = vmatmul.f32.gmra.mxu0 %v1146
      %v1560 = vpop.f32.mrf.mxu0
      %v1561 = vadd.f32 0.0, %v1560
      %1562 = vmatmul.f32.gmra.mxu0 %v1148
      %v1563 = vpop.f32.mrf.mxu0
      %v1564 = vadd.f32 0.0, %v1563
      %1565 = vdwg.mxu0
      %1566 = vmatpush.msra.mxu0 0.0
      %1567 = vmatpush.msra.mxu0 0.0
      %1568 = vmatpush.msra.mxu0 0.0
      %1569 = vmatpush.msra.mxu0 0.0
      %1570 = vmatpush.msra.mxu0 %v1391
      %1571 = vmatpush.msra.mxu0 %v1361
      %1572 = vmatpush.msra.mxu0 %v1353
      %1573 = vmatpush.msra.mxu0 %v1345
      %1574 = vmatpush.msra.mxu0 %v1337
      %1575 = vmatpush.msra.mxu0 %v1329
      %1576 = vmatpush.msra.mxu0 %v1321
      %1577 = vmatpush.msra.mxu0 %v1313
      %1578 = vmatpush.msra.mxu0 %v1305
      %1579 = vmatpush.msra.mxu0 %v1297
      %1580 = vmatpush.msra.mxu0 %v1289
      %1581 = vmatpush.msra.mxu0 %v1281
      %1582 = vmatmul.f32.gmra.mxu0 %v1375
      %v1583 = vpop.f32.mrf.mxu0
      %v1584 = vadd.f32 %v1561, %v1583
      %1585 = vmatmul.f32.gmra.mxu0 %v1378
      %v1586 = vpop.f32.mrf.mxu0
      %v1587 = vadd.f32 %v1564, %v1586
      %1588 = vdwg.mxu0
      %1589 = vmatpush.msra.mxu0 %v1274
      %1590 = vmatpush.msra.mxu0 %v1266
      %1591 = vmatpush.msra.mxu0 %v1258
      %1592 = vmatpush.msra.mxu0 %v1250
      %1593 = vmatpush.msra.mxu0 %v1242
      %1594 = vmatpush.msra.mxu0 %v1234
      %1595 = vmatpush.msra.mxu0 %v1226
      %1596 = vmatpush.msra.mxu0 %v1218
      %1597 = vmatpush.msra.mxu0 %v1210
      %1598 = vmatpush.msra.mxu0 %v1202
      %1599 = vmatpush.msra.mxu0 %v1194
      %1600 = vmatpush.msra.mxu0 %v1186
      %1601 = vmatpush.msra.mxu0 %v1178
      %1602 = vmatpush.msra.mxu0 %v1170
      %1603 = vmatpush.msra.mxu0 %v1162
      %1604 = vmatpush.msra.mxu0 %v1154
      %1605 = vmatmul.f32.gmra.mxu0 %v1146
      %v1606 = vpop.f32.mrf.mxu0
      %v1607 = vadd.f32 0.0, %v1606
      %1608 = vmatmul.f32.gmra.mxu0 %v1148
      %v1609 = vpop.f32.mrf.mxu0
      %v1610 = vadd.f32 0.0, %v1609
      %1611 = vdwg.mxu0
      %1612 = vmatpush.msra.mxu0 0.0
      %1613 = vmatpush.msra.mxu0 0.0
      %1614 = vmatpush.msra.mxu0 0.0
      %1615 = vmatpush.msra.mxu0 0.0
      %1616 = vmatpush.msra.mxu0 %v1394
      %1617 = vmatpush.msra.mxu0 %v1362
      %1618 = vmatpush.msra.mxu0 %v1354
      %1619 = vmatpush.msra.mxu0 %v1346
      %1620 = vmatpush.msra.mxu0 %v1338
      %1621 = vmatpush.msra.mxu0 %v1330
      %1622 = vmatpush.msra.mxu0 %v1322
      %1623 = vmatpush.msra.mxu0 %v1314
      %1624 = vmatpush.msra.mxu0 %v1306
      %1625 = vmatpush.msra.mxu0 %v1298
      %1626 = vmatpush.msra.mxu0 %v1290
      %1627 = vmatpush.msra.mxu0 %v1282
      %1628 = vmatmul.f32.gmra.mxu0 %v1375
      %v1629 = vpop.f32.mrf.mxu0
      %v1630 = vadd.f32 %v1607, %v1629
      %1631 = vmatmul.f32.gmra.mxu0 %v1378
      %v1632 = vpop.f32.mrf.mxu0
      %v1633 = vadd.f32 %v1610, %v1632
      %1634 = vdwg.mxu0
      %1635 = vmatpush.msra.mxu0 %v1275
      %1636 = vmatpush.msra.mxu0 %v1267
      %1637 = vmatpush.msra.mxu0 %v1259
      %1638 = vmatpush.msra.mxu0 %v1251
      %1639 = vmatpush.msra.mxu0 %v1243
      %1640 = vmatpush.msra.mxu0 %v1235
      %1641 = vmatpush.msra.mxu0 %v1227
      %1642 = vmatpush.msra.mxu0 %v1219
      %1643 = vmatpush.msra.mxu0 %v1211
      %1644 = vmatpush.msra.mxu0 %v1203
      %1645 = vmatpush.msra.mxu0 %v1195
      %1646 = vmatpush.msra.mxu0 %v1187
      %1647 = vmatpush.msra.mxu0 %v1179
      %1648 = vmatpush.msra.mxu0 %v1171
      %1649 = vmatpush.msra.mxu0 %v1163
      %1650 = vmatpush.msra.mxu0 %v1155
      %1651 = vmatmul.f32.gmra.mxu0 %v1146
      %v1652 = vpop.f32.mrf.mxu0
      %v1653 = vadd.f32 0.0, %v1652
      %1654 = vmatmul.f32.gmra.mxu0 %v1148
      %v1655 = vpop.f32.mrf.mxu0
      %v1656 = vadd.f32 0.0, %v1655
      %1657 = vdwg.mxu0
      %1658 = vmatpush.msra.mxu0 0.0
      %1659 = vmatpush.msra.mxu0 0.0
      %1660 = vmatpush.msra.mxu0 0.0
      %1661 = vmatpush.msra.mxu0 0.0
      %1662 = vmatpush.msra.mxu0 %v1397
      %1663 = vmatpush.msra.mxu0 %v1363
      %1664 = vmatpush.msra.mxu0 %v1355
      %1665 = vmatpush.msra.mxu0 %v1347
      %1666 = vmatpush.msra.mxu0 %v1339
      %1667 = vmatpush.msra.mxu0 %v1331
      %1668 = vmatpush.msra.mxu0 %v1323
      %1669 = vmatpush.msra.mxu0 %v1315
      %1670 = vmatpush.msra.mxu0 %v1307
      %1671 = vmatpush.msra.mxu0 %v1299
      %1672 = vmatpush.msra.mxu0 %v1291
      %1673 = vmatpush.msra.mxu0 %v1283
      %1674 = vmatmul.f32.gmra.mxu0 %v1375
      %v1675 = vpop.f32.mrf.mxu0
      %v1676 = vadd.f32 %v1653, %v1675
      %1677 = vmatmul.f32.gmra.mxu0 %v1378
      %v1678 = vpop.f32.mrf.mxu0
      %v1679 = vadd.f32 %v1656, %v1678
      %1680 = vdwg.mxu0
      %1681 = vmatpush.msra.mxu0 %v1276
      %1682 = vmatpush.msra.mxu0 %v1268
      %1683 = vmatpush.msra.mxu0 %v1260
      %1684 = vmatpush.msra.mxu0 %v1252
      %1685 = vmatpush.msra.mxu0 %v1244
      %1686 = vmatpush.msra.mxu0 %v1236
      %1687 = vmatpush.msra.mxu0 %v1228
      %1688 = vmatpush.msra.mxu0 %v1220
      %1689 = vmatpush.msra.mxu0 %v1212
      %1690 = vmatpush.msra.mxu0 %v1204
      %1691 = vmatpush.msra.mxu0 %v1196
      %1692 = vmatpush.msra.mxu0 %v1188
      %1693 = vmatpush.msra.mxu0 %v1180
      %1694 = vmatpush.msra.mxu0 %v1172
      %1695 = vmatpush.msra.mxu0 %v1164
      %1696 = vmatpush.msra.mxu0 %v1156
      %1697 = vmatmul.f32.gmra.mxu0 %v1146
      %v1698 = vpop.f32.mrf.mxu0
      %v1699 = vadd.f32 0.0, %v1698
      %1700 = vmatmul.f32.gmra.mxu0 %v1148
      %v1701 = vpop.f32.mrf.mxu0
      %v1702 = vadd.f32 0.0, %v1701
      %1703 = vdwg.mxu0
      %1704 = vmatpush.msra.mxu0 0.0
      %1705 = vmatpush.msra.mxu0 0.0
      %1706 = vmatpush.msra.mxu0 0.0
      %1707 = vmatpush.msra.mxu0 0.0
      %1708 = vmatpush.msra.mxu0 %v1400
      %1709 = vmatpush.msra.mxu0 %v1364
      %1710 = vmatpush.msra.mxu0 %v1356
      %1711 = vmatpush.msra.mxu0 %v1348
      %1712 = vmatpush.msra.mxu0 %v1340
      %1713 = vmatpush.msra.mxu0 %v1332
      %1714 = vmatpush.msra.mxu0 %v1324
      %1715 = vmatpush.msra.mxu0 %v1316
      %1716 = vmatpush.msra.mxu0 %v1308
      %1717 = vmatpush.msra.mxu0 %v1300
      %1718 = vmatpush.msra.mxu0 %v1292
      %1719 = vmatpush.msra.mxu0 %v1284
      %1720 = vmatmul.f32.gmra.mxu0 %v1375
      %v1721 = vpop.f32.mrf.mxu0
      %v1722 = vadd.f32 %v1699, %v1721
      %1723 = vmatmul.f32.gmra.mxu0 %v1378
      %v1724 = vpop.f32.mrf.mxu0
      %v1725 = vadd.f32 %v1702, %v1724
      %1726 = vdwg.mxu0
      %1727 = vmatpush.msra.mxu0 %v1277
      %1728 = vmatpush.msra.mxu0 %v1269
      %1729 = vmatpush.msra.mxu0 %v1261
      %1730 = vmatpush.msra.mxu0 %v1253
      %1731 = vmatpush.msra.mxu0 %v1245
      %1732 = vmatpush.msra.mxu0 %v1237
      %1733 = vmatpush.msra.mxu0 %v1229
      %1734 = vmatpush.msra.mxu0 %v1221
      %1735 = vmatpush.msra.mxu0 %v1213
      %1736 = vmatpush.msra.mxu0 %v1205
      %1737 = vmatpush.msra.mxu0 %v1197
      %1738 = vmatpush.msra.mxu0 %v1189
      %1739 = vmatpush.msra.mxu0 %v1181
      %1740 = vmatpush.msra.mxu0 %v1173
      %1741 = vmatpush.msra.mxu0 %v1165
      %1742 = vmatpush.msra.mxu0 %v1157
      %1743 = vmatmul.f32.gmra.mxu0 %v1146
      %v1744 = vpop.f32.mrf.mxu0
      %v1745 = vadd.f32 0.0, %v1744
      %1746 = vmatmul.f32.gmra.mxu0 %v1148
      %v1747 = vpop.f32.mrf.mxu0
      %v1748 = vadd.f32 0.0, %v1747
      %1749 = vdwg.mxu0
      %1750 = vmatpush.msra.mxu0 0.0
      %1751 = vmatpush.msra.mxu0 0.0
      %1752 = vmatpush.msra.mxu0 0.0
      %1753 = vmatpush.msra.mxu0 0.0
      %1754 = vmatpush.msra.mxu0 %v1403
      %1755 = vmatpush.msra.mxu0 %v1365
      %1756 = vmatpush.msra.mxu0 %v1357
      %1757 = vmatpush.msra.mxu0 %v1349
      %1758 = vmatpush.msra.mxu0 %v1341
      %1759 = vmatpush.msra.mxu0 %v1333
      %1760 = vmatpush.msra.mxu0 %v1325
      %1761 = vmatpush.msra.mxu0 %v1317
      %1762 = vmatpush.msra.mxu0 %v1309
      %1763 = vmatpush.msra.mxu0 %v1301
      %1764 = vmatpush.msra.mxu0 %v1293
      %1765 = vmatpush.msra.mxu0 %v1285
      %1766 = vmatmul.f32.gmra.mxu0 %v1375
      %v1767 = vpop.f32.mrf.mxu0
      %v1768 = vadd.f32 %v1745, %v1767
      %1769 = vmatmul.f32.gmra.mxu0 %v1378
      %v1770 = vpop.f32.mrf.mxu0
      %v1771 = vadd.f32 %v1748, %v1770
      %1772 = vdwg.mxu0
      %v1773 = vld [vmem:[%s5] sm:$0x7]
      %1775 = vst [vmem:[#allocation1] ss:$2 sm:$0xff] %v1773
      %v1776 = vld.sshfl [vmem:[#allocation1] sm:$0xff pattern:$0x75316420]
      %1777 = vrot.lane.b32.xlu0 %v1776, 112
      %v1778 = vpop.permute.xlu0 %1777
      %1793 = vrot.lane.b32.xlu0 %v1446, 127
      %v1794 = vpop.permute.xlu0 %1793
      %1795 = vrot.lane.b32.xlu0 %v1492, 127
      %v1796 = vpop.permute.xlu0 %1795
      %1797 = vrot.lane.b32.xlu0 %v1538, 127
      %v1798 = vpop.permute.xlu0 %1797
      %1799 = vrot.lane.b32.xlu0 %v1584, 127
      %v1800 = vpop.permute.xlu0 %1799
      %1801 = vrot.lane.b32.xlu0 %v1630, 127
      %v1802 = vpop.permute.xlu0 %1801
      %1803 = vrot.lane.b32.xlu0 %v1676, 127
      %v1804 = vpop.permute.xlu0 %1803
      %1805 = vrot.lane.b32.xlu0 %v1722, 127
      %v1806 = vpop.permute.xlu0 %1805
      %1807 = vrot.lane.b32.xlu0 %v1449, 127
      %v1808 = vpop.permute.xlu0 %1807
      %1809 = vrot.lane.b32.xlu0 %v1495, 127
      %v1810 = vpop.permute.xlu0 %1809
      %1811 = vrot.lane.b32.xlu0 %v1541, 127
      %v1812 = vpop.permute.xlu0 %1811
      %1813 = vrot.lane.b32.xlu0 %v1587, 127
      %v1814 = vpop.permute.xlu0 %1813
      %1815 = vrot.lane.b32.xlu0 %v1633, 127
      %v1816 = vpop.permute.xlu0 %1815
      %1817 = vrot.lane.b32.xlu0 %v1679, 127
      %v1818 = vpop.permute.xlu0 %1817
      %1819 = vrot.lane.b32.xlu0 %v1725, 127
      %v1820 = vpop.permute.xlu0 %1819
      %v1821 = vsel %vm407, %v1794, %v1796
      %v1822 = vsel %vm407, %v1796, %v1798
      %v1823 = vsel %vm407, %v1798, %v1800
      %v1824 = vsel %vm407, %v1800, %v1802
      %v1825 = vsel %vm407, %v1802, %v1804
      %v1826 = vsel %vm407, %v1804, %v1806
      %v1827 = vsel %vm407, %v1808, %v1810
      %v1828 = vsel %vm407, %v1810, %v1812
      %v1829 = vsel %vm407, %v1812, %v1814
      %v1830 = vsel %vm407, %v1814, %v1816
      %v1831 = vsel %vm407, %v1816, %v1818
      %v1832 = vsel %vm407, %v1818, %v1820
      %vm1847 = vcmask 130048
      %v1848 = vsel %vm1847, %v1778, 0
      %1850 = vmatpush.msra.mxu0 0.0
      %1851 = vmatpush.msra.mxu0 0.0
      %1852 = vmatpush.msra.mxu0 0.0
      %1853 = vmatpush.msra.mxu0 0.0
      %1854 = vmatpush.msra.mxu0 0.0
      %1855 = vmatpush.msra.mxu0 0.0
      %1856 = vmatpush.msra.mxu0 0.0
      %1857 = vmatpush.msra.mxu0 0.0
      %1858 = vmatpush.msra.mxu0 0.0
      %1859 = vmatpush.msra.mxu0 0.0
      %1860 = vmatpush.msra.mxu0 0.0
      %1861 = vmatpush.msra.mxu0 0.0
      %1862 = vmatpush.msra.mxu0 0.0
      %1863 = vmatpush.msra.mxu0 0.0
      %1864 = vmatpush.msra.mxu0 %v1827
      %1865 = vmatpush.msra.mxu0 %v1821
      %1866 = vmatmul.f32.gmra.mxu0 %v1848
      %v1867 = vpop.f32.mrf.mxu0
      %v1868 = vadd.f32 0.0, %v1867
      %1869 = vdwg.mxu0
      %1870 = vmatpush.msra.mxu0 0.0
      %1871 = vmatpush.msra.mxu0 0.0
      %1872 = vmatpush.msra.mxu0 0.0
      %1873 = vmatpush.msra.mxu0 0.0
      %1874 = vmatpush.msra.mxu0 0.0
      %1875 = vmatpush.msra.mxu0 0.0
      %1876 = vmatpush.msra.mxu0 0.0
      %1877 = vmatpush.msra.mxu0 0.0
      %1878 = vmatpush.msra.mxu0 0.0
      %1879 = vmatpush.msra.mxu0 0.0
      %1880 = vmatpush.msra.mxu0 0.0
      %1881 = vmatpush.msra.mxu0 0.0
      %1882 = vmatpush.msra.mxu0 0.0
      %1883 = vmatpush.msra.mxu0 0.0
      %1884 = vmatpush.msra.mxu0 %v1828
      %1885 = vmatpush.msra.mxu0 %v1822
      %1886 = vmatmul.f32.gmra.mxu0 %v1848
      %v1887 = vpop.f32.mrf.mxu0
      %v1888 = vadd.f32 0.0, %v1887
      %1889 = vdwg.mxu0
      %1890 = vmatpush.msra.mxu0 0.0
      %1891 = vmatpush.msra.mxu0 0.0
      %1892 = vmatpush.msra.mxu0 0.0
      %1893 = vmatpush.msra.mxu0 0.0
      %1894 = vmatpush.msra.mxu0 0.0
      %1895 = vmatpush.msra.mxu0 0.0
      %1896 = vmatpush.msra.mxu0 0.0
      %1897 = vmatpush.msra.mxu0 0.0
      %1898 = vmatpush.msra.mxu0 0.0
      %1899 = vmatpush.msra.mxu0 0.0
      %1900 = vmatpush.msra.mxu0 0.0
      %1901 = vmatpush.msra.mxu0 0.0
      %1902 = vmatpush.msra.mxu0 0.0
      %1903 = vmatpush.msra.mxu0 0.0
      %1904 = vmatpush.msra.mxu0 %v1829
      %1905 = vmatpush.msra.mxu0 %v1823
      %1906 = vmatmul.f32.gmra.mxu0 %v1848
      %v1907 = vpop.f32.mrf.mxu0
      %v1908 = vadd.f32 0.0, %v1907
      %1909 = vdwg.mxu0
      %1910 = vmatpush.msra.mxu0 0.0
      %1911 = vmatpush.msra.mxu0 0.0
      %1912 = vmatpush.msra.mxu0 0.0
      %1913 = vmatpush.msra.mxu0 0.0
      %1914 = vmatpush.msra.mxu0 0.0
      %1915 = vmatpush.msra.mxu0 0.0
      %1916 = vmatpush.msra.mxu0 0.0
      %1917 = vmatpush.msra.mxu0 0.0
      %1918 = vmatpush.msra.mxu0 0.0
      %1919 = vmatpush.msra.mxu0 0.0
      %1920 = vmatpush.msra.mxu0 0.0
      %1921 = vmatpush.msra.mxu0 0.0
      %1922 = vmatpush.msra.mxu0 0.0
      %1923 = vmatpush.msra.mxu0 0.0
      %1924 = vmatpush.msra.mxu0 %v1830
      %1925 = vmatpush.msra.mxu0 %v1824
      %1926 = vmatmul.f32.gmra.mxu0 %v1848
      %v1927 = vpop.f32.mrf.mxu0
      %v1928 = vadd.f32 0.0, %v1927
      %1929 = vdwg.mxu0
      %1930 = vmatpush.msra.mxu0 0.0
      %1931 = vmatpush.msra.mxu0 0.0
      %1932 = vmatpush.msra.mxu0 0.0
      %1933 = vmatpush.msra.mxu0 0.0
      %1934 = vmatpush.msra.mxu0 0.0
      %1935 = vmatpush.msra.mxu0 0.0
      %1936 = vmatpush.msra.mxu0 0.0
      %1937 = vmatpush.msra.mxu0 0.0
      %1938 = vmatpush.msra.mxu0 0.0
      %1939 = vmatpush.msra.mxu0 0.0
      %1940 = vmatpush.msra.mxu0 0.0
      %1941 = vmatpush.msra.mxu0 0.0
      %1942 = vmatpush.msra.mxu0 0.0
      %1943 = vmatpush.msra.mxu0 0.0
      %1944 = vmatpush.msra.mxu0 %v1831
      %1945 = vmatpush.msra.mxu0 %v1825
      %1946 = vmatmul.f32.gmra.mxu0 %v1848
      %v1947 = vpop.f32.mrf.mxu0
      %v1948 = vadd.f32 0.0, %v1947
      %1949 = vdwg.mxu0
      %1950 = vmatpush.msra.mxu0 0.0
      %1951 = vmatpush.msra.mxu0 0.0
      %1952 = vmatpush.msra.mxu0 0.0
      %1953 = vmatpush.msra.mxu0 0.0
      %1954 = vmatpush.msra.mxu0 0.0
      %1955 = vmatpush.msra.mxu0 0.0
      %1956 = vmatpush.msra.mxu0 0.0
      %1957 = vmatpush.msra.mxu0 0.0
      %1958 = vmatpush.msra.mxu0 0.0
      %1959 = vmatpush.msra.mxu0 0.0
      %1960 = vmatpush.msra.mxu0 0.0
      %1961 = vmatpush.msra.mxu0 0.0
      %1962 = vmatpush.msra.mxu0 0.0
      %1963 = vmatpush.msra.mxu0 0.0
      %1964 = vmatpush.msra.mxu0 %v1832
      %1965 = vmatpush.msra.mxu0 %v1826
      %1966 = vmatmul.f32.gmra.mxu0 %v1848
      %v1967 = vpop.f32.mrf.mxu0
      %v1968 = vadd.f32 0.0, %v1967
      %1969 = vdwg.mxu0
      %1970 = vmatpush.msra.mxu0 0.0
      %1971 = vmatpush.msra.mxu0 0.0
      %1972 = vmatpush.msra.mxu0 0.0
      %1973 = vmatpush.msra.mxu0 0.0
      %1974 = vmatpush.msra.mxu0 0.0
      %1975 = vmatpush.msra.mxu0 0.0
      %1976 = vmatpush.msra.mxu0 0.0
      %1977 = vmatpush.msra.mxu0 0.0
      %1978 = vmatpush.msra.mxu0 0.0
      %1979 = vmatpush.msra.mxu0 0.0
      %1980 = vmatpush.msra.mxu0 0.0
      %1981 = vmatpush.msra.mxu0 0.0
      %1982 = vmatpush.msra.mxu0 0.0
      %1983 = vmatpush.msra.mxu0 0.0
      %1984 = vmatpush.msra.mxu0 %v1820
      %1985 = vmatpush.msra.mxu0 %v1806
      %1986 = vmatmul.f32.gmra.mxu0 %v1848
      %v1987 = vpop.f32.mrf.mxu0
      %v1988 = vadd.f32 0.0, %v1987
      %1989 = vdwg.mxu0
      %v1990 = vsel %vm1847, %v1773, 0
      %1992 = vmatpush.msra.mxu0 0.0
      %1993 = vmatpush.msra.mxu0 0.0
      %1994 = vmatpush.msra.mxu0 0.0
      %1995 = vmatpush.msra.mxu0 0.0
      %1996 = vmatpush.msra.mxu0 0.0
      %1997 = vmatpush.msra.mxu0 0.0
      %1998 = vmatpush.msra.mxu0 0.0
      %1999 = vmatpush.msra.mxu0 0.0
      %2000 = vmatpush.msra.mxu0 0.0
      %2001 = vmatpush.msra.mxu0 0.0
      %2002 = vmatpush.msra.mxu0 0.0
      %2003 = vmatpush.msra.mxu0 0.0
      %2004 = vmatpush.msra.mxu0 0.0
      %2005 = vmatpush.msra.mxu0 0.0
      %2006 = vmatpush.msra.mxu0 %v1449
      %2007 = vmatpush.msra.mxu0 %v1446
      %2008 = vmatmul.f32.gmra.mxu0 %v1990
      %v2009 = vpop.f32.mrf.mxu0
      %v2010 = vadd.f32 %v1868, %v2009
      %2011 = vdwg.mxu0
      %2012 = vmatpush.msra.mxu0 0.0
      %2013 = vmatpush.msra.mxu0 0.0
      %2014 = vmatpush.msra.mxu0 0.0
      %2015 = vmatpush.msra.mxu0 0.0
      %2016 = vmatpush.msra.mxu0 0.0
      %2017 = vmatpush.msra.mxu0 0.0
      %2018 = vmatpush.msra.mxu0 0.0
      %2019 = vmatpush.msra.mxu0 0.0
      %2020 = vmatpush.msra.mxu0 0.0
      %2021 = vmatpush.msra.mxu0 0.0
      %2022 = vmatpush.msra.mxu0 0.0
      %2023 = vmatpush.msra.mxu0 0.0
      %2024 = vmatpush.msra.mxu0 0.0
      %2025 = vmatpush.msra.mxu0 0.0
      %2026 = vmatpush.msra.mxu0 %v1495
      %2027 = vmatpush.msra.mxu0 %v1492
      %2028 = vmatmul.f32.gmra.mxu0 %v1990
      %v2029 = vpop.f32.mrf.mxu0
      %v2030 = vadd.f32 %v1888, %v2029
      %2031 = vdwg.mxu0
      %2032 = vmatpush.msra.mxu0 0.0
      %2033 = vmatpush.msra.mxu0 0.0
      %2034 = vmatpush.msra.mxu0 0.0
      %2035 = vmatpush.msra.mxu0 0.0
      %2036 = vmatpush.msra.mxu0 0.0
      %2037 = vmatpush.msra.mxu0 0.0
      %2038 = vmatpush.msra.mxu0 0.0
      %2039 = vmatpush.msra.mxu0 0.0
      %2040 = vmatpush.msra.mxu0 0.0
      %2041 = vmatpush.msra.mxu0 0.0
      %2042 = vmatpush.msra.mxu0 0.0
      %2043 = vmatpush.msra.mxu0 0.0
      %2044 = vmatpush.msra.mxu0 0.0
      %2045 = vmatpush.msra.mxu0 0.0
      %2046 = vmatpush.msra.mxu0 %v1541
      %2047 = vmatpush.msra.mxu0 %v1538
      %2048 = vmatmul.f32.gmra.mxu0 %v1990
      %v2049 = vpop.f32.mrf.mxu0
      %v2050 = vadd.f32 %v1908, %v2049
      %2051 = vdwg.mxu0
      %2052 = vmatpush.msra.mxu0 0.0
      %2053 = vmatpush.msra.mxu0 0.0
      %2054 = vmatpush.msra.mxu0 0.0
      %2055 = vmatpush.msra.mxu0 0.0
      %2056 = vmatpush.msra.mxu0 0.0
      %2057 = vmatpush.msra.mxu0 0.0
      %2058 = vmatpush.msra.mxu0 0.0
      %2059 = vmatpush.msra.mxu0 0.0
      %2060 = vmatpush.msra.mxu0 0.0
      %2061 = vmatpush.msra.mxu0 0.0
      %2062 = vmatpush.msra.mxu0 0.0
      %2063 = vmatpush.msra.mxu0 0.0
      %2064 = vmatpush.msra.mxu0 0.0
      %2065 = vmatpush.msra.mxu0 0.0
      %2066 = vmatpush.msra.mxu0 %v1587
      %2067 = vmatpush.msra.mxu0 %v1584
      %2068 = vmatmul.f32.gmra.mxu0 %v1990
      %v2069 = vpop.f32.mrf.mxu0
      %v2070 = vadd.f32 %v1928, %v2069
      %2071 = vdwg.mxu0
      %2072 = vmatpush.msra.mxu0 0.0
      %2073 = vmatpush.msra.mxu0 0.0
      %2074 = vmatpush.msra.mxu0 0.0
      %2075 = vmatpush.msra.mxu0 0.0
      %2076 = vmatpush.msra.mxu0 0.0
      %2077 = vmatpush.msra.mxu0 0.0
      %2078 = vmatpush.msra.mxu0 0.0
      %2079 = vmatpush.msra.mxu0 0.0
      %2080 = vmatpush.msra.mxu0 0.0
      %2081 = vmatpush.msra.mxu0 0.0
      %2082 = vmatpush.msra.mxu0 0.0
      %2083 = vmatpush.msra.mxu0 0.0
      %2084 = vmatpush.msra.mxu0 0.0
      %2085 = vmatpush.msra.mxu0 0.0
      %2086 = vmatpush.msra.mxu0 %v1633
      %2087 = vmatpush.msra.mxu0 %v1630
      %2088 = vmatmul.f32.gmra.mxu0 %v1990
      %v2089 = vpop.f32.mrf.mxu0
      %v2090 = vadd.f32 %v1948, %v2089
      %2091 = vdwg.mxu0
      %2092 = vmatpush.msra.mxu0 0.0
      %2093 = vmatpush.msra.mxu0 0.0
      %2094 = vmatpush.msra.mxu0 0.0
      %2095 = vmatpush.msra.mxu0 0.0
      %2096 = vmatpush.msra.mxu0 0.0
      %2097 = vmatpush.msra.mxu0 0.0
      %2098 = vmatpush.msra.mxu0 0.0
      %2099 = vmatpush.msra.mxu0 0.0
      %2100 = vmatpush.msra.mxu0 0.0
      %2101 = vmatpush.msra.mxu0 0.0
      %2102 = vmatpush.msra.mxu0 0.0
      %2103 = vmatpush.msra.mxu0 0.0
      %2104 = vmatpush.msra.mxu0 0.0
      %2105 = vmatpush.msra.mxu0 0.0
      %2106 = vmatpush.msra.mxu0 %v1679
      %2107 = vmatpush.msra.mxu0 %v1676
      %2108 = vmatmul.f32.gmra.mxu0 %v1990
      %v2109 = vpop.f32.mrf.mxu0
      %v2110 = vadd.f32 %v1968, %v2109
      %2111 = vdwg.mxu0
      %2112 = vmatpush.msra.mxu0 0.0
      %2113 = vmatpush.msra.mxu0 0.0
      %2114 = vmatpush.msra.mxu0 0.0
      %2115 = vmatpush.msra.mxu0 0.0
      %2116 = vmatpush.msra.mxu0 0.0
      %2117 = vmatpush.msra.mxu0 0.0
      %2118 = vmatpush.msra.mxu0 0.0
      %2119 = vmatpush.msra.mxu0 0.0
      %2120 = vmatpush.msra.mxu0 0.0
      %2121 = vmatpush.msra.mxu0 0.0
      %2122 = vmatpush.msra.mxu0 0.0
      %2123 = vmatpush.msra.mxu0 0.0
      %2124 = vmatpush.msra.mxu0 0.0
      %2125 = vmatpush.msra.mxu0 0.0
      %2126 = vmatpush.msra.mxu0 %v1725
      %2127 = vmatpush.msra.mxu0 %v1722
      %2128 = vmatmul.f32.gmra.mxu0 %v1990
      %v2129 = vpop.f32.mrf.mxu0
      %v2130 = vadd.f32 %v1988, %v2129
      %2131 = vdwg.mxu0
      %v2132 = vld [vmem:[%s5] sm:$0x7]
      %2134 = vst [vmem:[#allocation1] ss:$2 sm:$0xff] %v2132
      %v2135 = vld.sshfl [vmem:[#allocation1] sm:$0xff pattern:$0x75316420]
      %2136 = vrot.lane.b32.xlu0 %v2135, 96
      %v2137 = vpop.permute.xlu0 %2136
      %2138 = vrot.lane.b32.xlu0 %v1446, 126
      %v2139 = vpop.permute.xlu0 %2138
      %2140 = vrot.lane.b32.xlu0 %v1492, 126
      %v2141 = vpop.permute.xlu0 %2140
      %2142 = vrot.lane.b32.xlu0 %v1538, 126
      %v2143 = vpop.permute.xlu0 %2142
      %2144 = vrot.lane.b32.xlu0 %v1584, 126
      %v2145 = vpop.permute.xlu0 %2144
      %2146 = vrot.lane.b32.xlu0 %v1630, 126
      %v2147 = vpop.permute.xlu0 %2146
      %2148 = vrot.lane.b32.xlu0 %v1676, 126
      %v2149 = vpop.permute.xlu0 %2148
      %2150 = vrot.lane.b32.xlu0 %v1722, 126
      %v2151 = vpop.permute.xlu0 %2150
      %2152 = vrot.lane.b32.xlu0 %v1449, 126
      %v2153 = vpop.permute.xlu0 %2152
      %2154 = vrot.lane.b32.xlu0 %v1495, 126
      %v2155 = vpop.permute.xlu0 %2154
      %2156 = vrot.lane.b32.xlu0 %v1541, 126
      %v2157 = vpop.permute.xlu0 %2156
      %2158 = vrot.lane.b32.xlu0 %v1587, 126
      %v2159 = vpop.permute.xlu0 %2158
      %2160 = vrot.lane.b32.xlu0 %v1633, 126
      %v2161 = vpop.permute.xlu0 %2160
      %2162 = vrot.lane.b32.xlu0 %v1679, 126
      %v2163 = vpop.permute.xlu0 %2162
      %2164 = vrot.lane.b32.xlu0 %v1725, 126
      %v2165 = vpop.permute.xlu0 %2164
      %v2166 = vsel %vm541, %v2139, %v2141
      %v2167 = vsel %vm541, %v2141, %v2143
      %v2168 = vsel %vm541, %v2143, %v2145
      %v2169 = vsel %vm541, %v2145, %v2147
      %v2170 = vsel %vm541, %v2147, %v2149
      %v2171 = vsel %vm541, %v2149, %v2151
      %v2172 = vsel %vm541, %v2153, %v2155
      %v2173 = vsel %vm541, %v2155, %v2157
      %v2174 = vsel %vm541, %v2157, %v2159
      %v2175 = vsel %vm541, %v2159, %v2161
      %v2176 = vsel %vm541, %v2161, %v2163
      %v2177 = vsel %vm541, %v2163, %v2165
      %v2192 = vsel %vm1847, %v2137, 0
      %2194 = vmatpush.msra.mxu0 0.0
      %2195 = vmatpush.msra.mxu0 0.0
      %2196 = vmatpush.msra.mxu0 0.0
      %2197 = vmatpush.msra.mxu0 0.0
      %2198 = vmatpush.msra.mxu0 0.0
      %2199 = vmatpush.msra.mxu0 0.0
      %2200 = vmatpush.msra.mxu0 0.0
      %2201 = vmatpush.msra.mxu0 0.0
      %2202 = vmatpush.msra.mxu0 0.0
      %2203 = vmatpush.msra.mxu0 0.0
      %2204 = vmatpush.msra.mxu0 0.0
      %2205 = vmatpush.msra.mxu0 0.0
      %2206 = vmatpush.msra.mxu0 0.0
      %2207 = vmatpush.msra.mxu0 0.0
      %2208 = vmatpush.msra.mxu0 %v2172
      %2209 = vmatpush.msra.mxu0 %v2166
      %2210 = vmatmul.f32.gmra.mxu0 %v2192
      %v2211 = vpop.f32.mrf.mxu0
      %v2212 = vadd.f32 0.0, %v2211
      %2213 = vdwg.mxu0
      %2214 = vmatpush.msra.mxu0 0.0
      %2215 = vmatpush.msra.mxu0 0.0
      %2216 = vmatpush.msra.mxu0 0.0
      %2217 = vmatpush.msra.mxu0 0.0
      %2218 = vmatpush.msra.mxu0 0.0
      %2219 = vmatpush.msra.mxu0 0.0
      %2220 = vmatpush.msra.mxu0 0.0
      %2221 = vmatpush.msra.mxu0 0.0
      %2222 = vmatpush.msra.mxu0 0.0
      %2223 = vmatpush.msra.mxu0 0.0
      %2224 = vmatpush.msra.mxu0 0.0
      %2225 = vmatpush.msra.mxu0 0.0
      %2226 = vmatpush.msra.mxu0 0.0
      %2227 = vmatpush.msra.mxu0 0.0
      %2228 = vmatpush.msra.mxu0 %v2173
      %2229 = vmatpush.msra.mxu0 %v2167
      %2230 = vmatmul.f32.gmra.mxu0 %v2192
      %v2231 = vpop.f32.mrf.mxu0
      %v2232 = vadd.f32 0.0, %v2231
      %2233 = vdwg.mxu0
      %2234 = vmatpush.msra.mxu0 0.0
      %2235 = vmatpush.msra.mxu0 0.0
      %2236 = vmatpush.msra.mxu0 0.0
      %2237 = vmatpush.msra.mxu0 0.0
      %2238 = vmatpush.msra.mxu0 0.0
      %2239 = vmatpush.msra.mxu0 0.0
      %2240 = vmatpush.msra.mxu0 0.0
      %2241 = vmatpush.msra.mxu0 0.0
      %2242 = vmatpush.msra.mxu0 0.0
      %2243 = vmatpush.msra.mxu0 0.0
      %2244 = vmatpush.msra.mxu0 0.0
      %2245 = vmatpush.msra.mxu0 0.0
      %2246 = vmatpush.msra.mxu0 0.0
      %2247 = vmatpush.msra.mxu0 0.0
      %2248 = vmatpush.msra.mxu0 %v2174
      %2249 = vmatpush.msra.mxu0 %v2168
      %2250 = vmatmul.f32.gmra.mxu0 %v2192
      %v2251 = vpop.f32.mrf.mxu0
      %v2252 = vadd.f32 0.0, %v2251
      %2253 = vdwg.mxu0
      %2254 = vmatpush.msra.mxu0 0.0
      %2255 = vmatpush.msra.mxu0 0.0
      %2256 = vmatpush.msra.mxu0 0.0
      %2257 = vmatpush.msra.mxu0 0.0
      %2258 = vmatpush.msra.mxu0 0.0
      %2259 = vmatpush.msra.mxu0 0.0
      %2260 = vmatpush.msra.mxu0 0.0
      %2261 = vmatpush.msra.mxu0 0.0
      %2262 = vmatpush.msra.mxu0 0.0
      %2263 = vmatpush.msra.mxu0 0.0
      %2264 = vmatpush.msra.mxu0 0.0
      %2265 = vmatpush.msra.mxu0 0.0
      %2266 = vmatpush.msra.mxu0 0.0
      %2267 = vmatpush.msra.mxu0 0.0
      %2268 = vmatpush.msra.mxu0 %v2175
      %2269 = vmatpush.msra.mxu0 %v2169
      %2270 = vmatmul.f32.gmra.mxu0 %v2192
      %v2271 = vpop.f32.mrf.mxu0
      %v2272 = vadd.f32 0.0, %v2271
      %2273 = vdwg.mxu0
      %2274 = vmatpush.msra.mxu0 0.0
      %2275 = vmatpush.msra.mxu0 0.0
      %2276 = vmatpush.msra.mxu0 0.0
      %2277 = vmatpush.msra.mxu0 0.0
      %2278 = vmatpush.msra.mxu0 0.0
      %2279 = vmatpush.msra.mxu0 0.0
      %2280 = vmatpush.msra.mxu0 0.0
      %2281 = vmatpush.msra.mxu0 0.0
      %2282 = vmatpush.msra.mxu0 0.0
      %2283 = vmatpush.msra.mxu0 0.0
      %2284 = vmatpush.msra.mxu0 0.0
      %2285 = vmatpush.msra.mxu0 0.0
      %2286 = vmatpush.msra.mxu0 0.0
      %2287 = vmatpush.msra.mxu0 0.0
      %2288 = vmatpush.msra.mxu0 %v2176
      %2289 = vmatpush.msra.mxu0 %v2170
      %2290 = vmatmul.f32.gmra.mxu0 %v2192
      %v2291 = vpop.f32.mrf.mxu0
      %v2292 = vadd.f32 0.0, %v2291
      %2293 = vdwg.mxu0
      %2294 = vmatpush.msra.mxu0 0.0
      %2295 = vmatpush.msra.mxu0 0.0
      %2296 = vmatpush.msra.mxu0 0.0
      %2297 = vmatpush.msra.mxu0 0.0
      %2298 = vmatpush.msra.mxu0 0.0
      %2299 = vmatpush.msra.mxu0 0.0
      %2300 = vmatpush.msra.mxu0 0.0
      %2301 = vmatpush.msra.mxu0 0.0
      %2302 = vmatpush.msra.mxu0 0.0
      %2303 = vmatpush.msra.mxu0 0.0
      %2304 = vmatpush.msra.mxu0 0.0
      %2305 = vmatpush.msra.mxu0 0.0
      %2306 = vmatpush.msra.mxu0 0.0
      %2307 = vmatpush.msra.mxu0 0.0
      %2308 = vmatpush.msra.mxu0 %v2177
      %2309 = vmatpush.msra.mxu0 %v2171
      %2310 = vmatmul.f32.gmra.mxu0 %v2192
      %v2311 = vpop.f32.mrf.mxu0
      %v2312 = vadd.f32 0.0, %v2311
      %2313 = vdwg.mxu0
      %2314 = vmatpush.msra.mxu0 0.0
      %2315 = vmatpush.msra.mxu0 0.0
      %2316 = vmatpush.msra.mxu0 0.0
      %2317 = vmatpush.msra.mxu0 0.0
      %2318 = vmatpush.msra.mxu0 0.0
      %2319 = vmatpush.msra.mxu0 0.0
      %2320 = vmatpush.msra.mxu0 0.0
      %2321 = vmatpush.msra.mxu0 0.0
      %2322 = vmatpush.msra.mxu0 0.0
      %2323 = vmatpush.msra.mxu0 0.0
      %2324 = vmatpush.msra.mxu0 0.0
      %2325 = vmatpush.msra.mxu0 0.0
      %2326 = vmatpush.msra.mxu0 0.0
      %2327 = vmatpush.msra.mxu0 0.0
      %2328 = vmatpush.msra.mxu0 %v2165
      %2329 = vmatpush.msra.mxu0 %v2151
      %2330 = vmatmul.f32.gmra.mxu0 %v2192
      %v2331 = vpop.f32.mrf.mxu0
      %v2332 = vadd.f32 0.0, %v2331
      %2333 = vdwg.mxu0
      %v2334 = vadd.f32 %v2010, %v2212
      %v2335 = vadd.f32 %v2030, %v2232
      %v2336 = vadd.f32 %v2050, %v2252
      %v2337 = vadd.f32 %v2070, %v2272
      %v2338 = vadd.f32 %v2090, %v2292
      %v2339 = vadd.f32 %v2110, %v2312
      %v2340 = vadd.f32 %v2130, %v2332
      %v2341 = vld [vmem:[%s5] sm:$0x7]
      %2343 = vst [vmem:[#allocation1] ss:$2 sm:$0xff] %v2341
      %v2344 = vld.sshfl [vmem:[#allocation1] sm:$0xff pattern:$0x75316420]
      %2345 = vrot.lane.b32.xlu0 %v2344, 80
      %v2346 = vpop.permute.xlu0 %2345
      %2347 = vrot.lane.b32.xlu0 %v1446, 98
      %v2348 = vpop.permute.xlu0 %2347
      %2349 = vrot.lane.b32.xlu0 %v1492, 98
      %v2350 = vpop.permute.xlu0 %2349
      %2351 = vrot.lane.b32.xlu0 %v1538, 98
      %v2352 = vpop.permute.xlu0 %2351
      %2353 = vrot.lane.b32.xlu0 %v1584, 98
      %v2354 = vpop.permute.xlu0 %2353
      %2355 = vrot.lane.b32.xlu0 %v1630, 98
      %v2356 = vpop.permute.xlu0 %2355
      %2357 = vrot.lane.b32.xlu0 %v1676, 98
      %v2358 = vpop.permute.xlu0 %2357
      %2359 = vrot.lane.b32.xlu0 %v1722, 98
      %v2360 = vpop.permute.xlu0 %2359
      %2361 = vrot.lane.b32.xlu0 %v1449, 98
      %v2362 = vpop.permute.xlu0 %2361
      %2363 = vrot.lane.b32.xlu0 %v1495, 98
      %v2364 = vpop.permute.xlu0 %2363
      %2365 = vrot.lane.b32.xlu0 %v1541, 98
      %v2366 = vpop.permute.xlu0 %2365
      %2367 = vrot.lane.b32.xlu0 %v1587, 98
      %v2368 = vpop.permute.xlu0 %2367
      %2369 = vrot.lane.b32.xlu0 %v1633, 98
      %v2370 = vpop.permute.xlu0 %2369
      %2371 = vrot.lane.b32.xlu0 %v1679, 98
      %v2372 = vpop.permute.xlu0 %2371
      %2373 = vrot.lane.b32.xlu0 %v1725, 98
      %v2374 = vpop.permute.xlu0 %2373
      %vm2375 = vcmask 801792
      %v2376 = vsel %vm2375, %v2348, %v2350
      %v2377 = vsel %vm2375, %v2350, %v2352
      %v2378 = vsel %vm2375, %v2352, %v2354
      %v2379 = vsel %vm2375, %v2354, %v2356
      %v2380 = vsel %vm2375, %v2356, %v2358
      %v2381 = vsel %vm2375, %v2358, %v2360
      %v2382 = vsel %vm2375, %v2362, %v2364
      %v2383 = vsel %vm2375, %v2364, %v2366
      %v2384 = vsel %vm2375, %v2366, %v2368
      %v2385 = vsel %vm2375, %v2368, %v2370
      %v2386 = vsel %vm2375, %v2370, %v2372
      %v2387 = vsel %vm2375, %v2372, %v2374
      %v2402 = vsel %vm1847, %v2346, 0
      %2404 = vmatpush.msra.mxu0 0.0
      %2405 = vmatpush.msra.mxu0 0.0
      %2406 = vmatpush.msra.mxu0 0.0
      %2407 = vmatpush.msra.mxu0 0.0
      %2408 = vmatpush.msra.mxu0 0.0
      %2409 = vmatpush.msra.mxu0 0.0
      %2410 = vmatpush.msra.mxu0 0.0
      %2411 = vmatpush.msra.mxu0 0.0
      %2412 = vmatpush.msra.mxu0 0.0
      %2413 = vmatpush.msra.mxu0 0.0
      %2414 = vmatpush.msra.mxu0 0.0
      %2415 = vmatpush.msra.mxu0 0.0
      %2416 = vmatpush.msra.mxu0 0.0
      %2417 = vmatpush.msra.mxu0 0.0
      %2418 = vmatpush.msra.mxu0 %v2382
      %2419 = vmatpush.msra.mxu0 %v2376
      %2420 = vmatmul.f32.gmra.mxu0 %v2402
      %v2421 = vpop.f32.mrf.mxu0
      %v2422 = vadd.f32 0.0, %v2421
      %2423 = vdwg.mxu0
      %2424 = vmatpush.msra.mxu0 0.0
      %2425 = vmatpush.msra.mxu0 0.0
      %2426 = vmatpush.msra.mxu0 0.0
      %2427 = vmatpush.msra.mxu0 0.0
      %2428 = vmatpush.msra.mxu0 0.0
      %2429 = vmatpush.msra.mxu0 0.0
      %2430 = vmatpush.msra.mxu0 0.0
      %2431 = vmatpush.msra.mxu0 0.0
      %2432 = vmatpush.msra.mxu0 0.0
      %2433 = vmatpush.msra.mxu0 0.0
      %2434 = vmatpush.msra.mxu0 0.0
      %2435 = vmatpush.msra.mxu0 0.0
      %2436 = vmatpush.msra.mxu0 0.0
      %2437 = vmatpush.msra.mxu0 0.0
      %2438 = vmatpush.msra.mxu0 %v2383
      %2439 = vmatpush.msra.mxu0 %v2377
      %2440 = vmatmul.f32.gmra.mxu0 %v2402
      %v2441 = vpop.f32.mrf.mxu0
      %v2442 = vadd.f32 0.0, %v2441
      %2443 = vdwg.mxu0
      %2444 = vmatpush.msra.mxu0 0.0
      %2445 = vmatpush.msra.mxu0 0.0
      %2446 = vmatpush.msra.mxu0 0.0
      %2447 = vmatpush.msra.mxu0 0.0
      %2448 = vmatpush.msra.mxu0 0.0
      %2449 = vmatpush.msra.mxu0 0.0
      %2450 = vmatpush.msra.mxu0 0.0
      %2451 = vmatpush.msra.mxu0 0.0
      %2452 = vmatpush.msra.mxu0 0.0
      %2453 = vmatpush.msra.mxu0 0.0
      %2454 = vmatpush.msra.mxu0 0.0
      %2455 = vmatpush.msra.mxu0 0.0
      %2456 = vmatpush.msra.mxu0 0.0
      %2457 = vmatpush.msra.mxu0 0.0
      %2458 = vmatpush.msra.mxu0 %v2384
      %2459 = vmatpush.msra.mxu0 %v2378
      %2460 = vmatmul.f32.gmra.mxu0 %v2402
      %v2461 = vpop.f32.mrf.mxu0
      %v2462 = vadd.f32 0.0, %v2461
      %2463 = vdwg.mxu0
      %2464 = vmatpush.msra.mxu0 0.0
      %2465 = vmatpush.msra.mxu0 0.0
      %2466 = vmatpush.msra.mxu0 0.0
      %2467 = vmatpush.msra.mxu0 0.0
      %2468 = vmatpush.msra.mxu0 0.0
      %2469 = vmatpush.msra.mxu0 0.0
      %2470 = vmatpush.msra.mxu0 0.0
      %2471 = vmatpush.msra.mxu0 0.0
      %2472 = vmatpush.msra.mxu0 0.0
      %2473 = vmatpush.msra.mxu0 0.0
      %2474 = vmatpush.msra.mxu0 0.0
      %2475 = vmatpush.msra.mxu0 0.0
      %2476 = vmatpush.msra.mxu0 0.0
      %2477 = vmatpush.msra.mxu0 0.0
      %2478 = vmatpush.msra.mxu0 %v2385
      %2479 = vmatpush.msra.mxu0 %v2379
      %2480 = vmatmul.f32.gmra.mxu0 %v2402
      %v2481 = vpop.f32.mrf.mxu0
      %v2482 = vadd.f32 0.0, %v2481
      %2483 = vdwg.mxu0
      %2484 = vmatpush.msra.mxu0 0.0
      %2485 = vmatpush.msra.mxu0 0.0
      %2486 = vmatpush.msra.mxu0 0.0
      %2487 = vmatpush.msra.mxu0 0.0
      %2488 = vmatpush.msra.mxu0 0.0
      %2489 = vmatpush.msra.mxu0 0.0
      %2490 = vmatpush.msra.mxu0 0.0
      %2491 = vmatpush.msra.mxu0 0.0
      %2492 = vmatpush.msra.mxu0 0.0
      %2493 = vmatpush.msra.mxu0 0.0
      %2494 = vmatpush.msra.mxu0 0.0
      %2495 = vmatpush.msra.mxu0 0.0
      %2496 = vmatpush.msra.mxu0 0.0
      %2497 = vmatpush.msra.mxu0 0.0
      %2498 = vmatpush.msra.mxu0 %v2386
      %2499 = vmatpush.msra.mxu0 %v2380
      %2500 = vmatmul.f32.gmra.mxu0 %v2402
      %v2501 = vpop.f32.mrf.mxu0
      %v2502 = vadd.f32 0.0, %v2501
      %2503 = vdwg.mxu0
      %2504 = vmatpush.msra.mxu0 0.0
      %2505 = vmatpush.msra.mxu0 0.0
      %2506 = vmatpush.msra.mxu0 0.0
      %2507 = vmatpush.msra.mxu0 0.0
      %2508 = vmatpush.msra.mxu0 0.0
      %2509 = vmatpush.msra.mxu0 0.0
      %2510 = vmatpush.msra.mxu0 0.0
      %2511 = vmatpush.msra.mxu0 0.0
      %2512 = vmatpush.msra.mxu0 0.0
      %2513 = vmatpush.msra.mxu0 0.0
      %2514 = vmatpush.msra.mxu0 0.0
      %2515 = vmatpush.msra.mxu0 0.0
      %2516 = vmatpush.msra.mxu0 0.0
      %2517 = vmatpush.msra.mxu0 0.0
      %2518 = vmatpush.msra.mxu0 %v2387
      %2519 = vmatpush.msra.mxu0 %v2381
      %2520 = vmatmul.f32.gmra.mxu0 %v2402
      %v2521 = vpop.f32.mrf.mxu0
      %v2522 = vadd.f32 0.0, %v2521
      %2523 = vdwg.mxu0
      %2524 = vmatpush.msra.mxu0 0.0
      %2525 = vmatpush.msra.mxu0 0.0
      %2526 = vmatpush.msra.mxu0 0.0
      %2527 = vmatpush.msra.mxu0 0.0
      %2528 = vmatpush.msra.mxu0 0.0
      %2529 = vmatpush.msra.mxu0 0.0
      %2530 = vmatpush.msra.mxu0 0.0
      %2531 = vmatpush.msra.mxu0 0.0
      %2532 = vmatpush.msra.mxu0 0.0
      %2533 = vmatpush.msra.mxu0 0.0
      %2534 = vmatpush.msra.mxu0 0.0
      %2535 = vmatpush.msra.mxu0 0.0
      %2536 = vmatpush.msra.mxu0 0.0
      %2537 = vmatpush.msra.mxu0 0.0
      %2538 = vmatpush.msra.mxu0 %v2374
      %2539 = vmatpush.msra.mxu0 %v2360
      %2540 = vmatmul.f32.gmra.mxu0 %v2402
      %v2541 = vpop.f32.mrf.mxu0
      %v2542 = vadd.f32 0.0, %v2541
      %2543 = vdwg.mxu0
      %v2544 = vadd.f32 %v2334, %v2422
      %v2545 = vadd.f32 %v2335, %v2442
      %v2546 = vadd.f32 %v2336, %v2462
      %v2547 = vadd.f32 %v2337, %v2482
      %v2548 = vadd.f32 %v2338, %v2502
      %v2549 = vadd.f32 %v2339, %v2522
      %v2550 = vadd.f32 %v2340, %v2542
      %v2551 = vld [vmem:[%s5] sm:$0x7]
      %2553 = vst [vmem:[#allocation1] ss:$2 sm:$0xff] %v2551
      %v2554 = vld.sshfl [vmem:[#allocation1] sm:$0xff pattern:$0x75316420]
      %2555 = vrot.lane.b32.xlu0 %v2554, 64
      %v2556 = vpop.permute.xlu0 %2555
      %2557 = vrot.lane.b32.xlu0 %v1446, 97
      %v2558 = vpop.permute.xlu0 %2557
      %2559 = vrot.lane.b32.xlu0 %v1492, 97
      %v2560 = vpop.permute.xlu0 %2559
      %2561 = vrot.lane.b32.xlu0 %v1538, 97
      %v2562 = vpop.permute.xlu0 %2561
      %2563 = vrot.lane.b32.xlu0 %v1584, 97
      %v2564 = vpop.permute.xlu0 %2563
      %2565 = vrot.lane.b32.xlu0 %v1630, 97
      %v2566 = vpop.permute.xlu0 %2565
      %2567 = vrot.lane.b32.xlu0 %v1676, 97
      %v2568 = vpop.permute.xlu0 %2567
      %2569 = vrot.lane.b32.xlu0 %v1722, 97
      %v2570 = vpop.permute.xlu0 %2569
      %2571 = vrot.lane.b32.xlu0 %v1449, 97
      %v2572 = vpop.permute.xlu0 %2571
      %2573 = vrot.lane.b32.xlu0 %v1495, 97
      %v2574 = vpop.permute.xlu0 %2573
      %2575 = vrot.lane.b32.xlu0 %v1541, 97
      %v2576 = vpop.permute.xlu0 %2575
      %2577 = vrot.lane.b32.xlu0 %v1587, 97
      %v2578 = vpop.permute.xlu0 %2577
      %2579 = vrot.lane.b32.xlu0 %v1633, 97
      %v2580 = vpop.permute.xlu0 %2579
      %2581 = vrot.lane.b32.xlu0 %v1679, 97
      %v2582 = vpop.permute.xlu0 %2581
      %2583 = vrot.lane.b32.xlu0 %v1725, 97
      %v2584 = vpop.permute.xlu0 %2583
      %vm2585 = vcmask 793600
      %v2586 = vsel %vm2585, %v2558, %v2560
      %v2587 = vsel %vm2585, %v2560, %v2562
      %v2588 = vsel %vm2585, %v2562, %v2564
      %v2589 = vsel %vm2585, %v2564, %v2566
      %v2590 = vsel %vm2585, %v2566, %v2568
      %v2591 = vsel %vm2585, %v2568, %v2570
      %v2592 = vsel %vm2585, %v2572, %v2574
      %v2593 = vsel %vm2585, %v2574, %v2576
      %v2594 = vsel %vm2585, %v2576, %v2578
      %v2595 = vsel %vm2585, %v2578, %v2580
      %v2596 = vsel %vm2585, %v2580, %v2582
      %v2597 = vsel %vm2585, %v2582, %v2584
      %v2612 = vsel %vm1847, %v2556, 0
      %2614 = vmatpush.msra.mxu0 0.0
      %2615 = vmatpush.msra.mxu0 0.0
      %2616 = vmatpush.msra.mxu0 0.0
      %2617 = vmatpush.msra.mxu0 0.0
      %2618 = vmatpush.msra.mxu0 0.0
      %2619 = vmatpush.msra.mxu0 0.0
      %2620 = vmatpush.msra.mxu0 0.0
      %2621 = vmatpush.msra.mxu0 0.0
      %2622 = vmatpush.msra.mxu0 0.0
      %2623 = vmatpush.msra.mxu0 0.0
      %2624 = vmatpush.msra.mxu0 0.0
      %2625 = vmatpush.msra.mxu0 0.0
      %2626 = vmatpush.msra.mxu0 0.0
      %2627 = vmatpush.msra.mxu0 0.0
      %2628 = vmatpush.msra.mxu0 %v2592
      %2629 = vmatpush.msra.mxu0 %v2586
      %2630 = vmatmul.f32.gmra.mxu0 %v2612
      %v2631 = vpop.f32.mrf.mxu0
      %v2632 = vadd.f32 0.0, %v2631
      %2633 = vdwg.mxu0
      %2634 = vmatpush.msra.mxu0 0.0
      %2635 = vmatpush.msra.mxu0 0.0
      %2636 = vmatpush.msra.mxu0 0.0
      %2637 = vmatpush.msra.mxu0 0.0
      %2638 = vmatpush.msra.mxu0 0.0
      %2639 = vmatpush.msra.mxu0 0.0
      %2640 = vmatpush.msra.mxu0 0.0
      %2641 = vmatpush.msra.mxu0 0.0
      %2642 = vmatpush.msra.mxu0 0.0
      %2643 = vmatpush.msra.mxu0 0.0
      %2644 = vmatpush.msra.mxu0 0.0
      %2645 = vmatpush.msra.mxu0 0.0
      %2646 = vmatpush.msra.mxu0 0.0
      %2647 = vmatpush.msra.mxu0 0.0
      %2648 = vmatpush.msra.mxu0 %v2593
      %2649 = vmatpush.msra.mxu0 %v2587
      %2650 = vmatmul.f32.gmra.mxu0 %v2612
      %v2651 = vpop.f32.mrf.mxu0
      %v2652 = vadd.f32 0.0, %v2651
      %2653 = vdwg.mxu0
      %2654 = vmatpush.msra.mxu0 0.0
      %2655 = vmatpush.msra.mxu0 0.0
      %2656 = vmatpush.msra.mxu0 0.0
      %2657 = vmatpush.msra.mxu0 0.0
      %2658 = vmatpush.msra.mxu0 0.0
      %2659 = vmatpush.msra.mxu0 0.0
      %2660 = vmatpush.msra.mxu0 0.0
      %2661 = vmatpush.msra.mxu0 0.0
      %2662 = vmatpush.msra.mxu0 0.0
      %2663 = vmatpush.msra.mxu0 0.0
      %2664 = vmatpush.msra.mxu0 0.0
      %2665 = vmatpush.msra.mxu0 0.0
      %2666 = vmatpush.msra.mxu0 0.0
      %2667 = vmatpush.msra.mxu0 0.0
      %2668 = vmatpush.msra.mxu0 %v2594
      %2669 = vmatpush.msra.mxu0 %v2588
      %2670 = vmatmul.f32.gmra.mxu0 %v2612
      %v2671 = vpop.f32.mrf.mxu0
      %v2672 = vadd.f32 0.0, %v2671
      %2673 = vdwg.mxu0
      %2674 = vmatpush.msra.mxu0 0.0
      %2675 = vmatpush.msra.mxu0 0.0
      %2676 = vmatpush.msra.mxu0 0.0
      %2677 = vmatpush.msra.mxu0 0.0
      %2678 = vmatpush.msra.mxu0 0.0
      %2679 = vmatpush.msra.mxu0 0.0
      %2680 = vmatpush.msra.mxu0 0.0
      %2681 = vmatpush.msra.mxu0 0.0
      %2682 = vmatpush.msra.mxu0 0.0
      %2683 = vmatpush.msra.mxu0 0.0
      %2684 = vmatpush.msra.mxu0 0.0
      %2685 = vmatpush.msra.mxu0 0.0
      %2686 = vmatpush.msra.mxu0 0.0
      %2687 = vmatpush.msra.mxu0 0.0
      %2688 = vmatpush.msra.mxu0 %v2595
      %2689 = vmatpush.msra.mxu0 %v2589
      %2690 = vmatmul.f32.gmra.mxu0 %v2612
      %v2691 = vpop.f32.mrf.mxu0
      %v2692 = vadd.f32 0.0, %v2691
      %2693 = vdwg.mxu0
      %2694 = vmatpush.msra.mxu0 0.0
      %2695 = vmatpush.msra.mxu0 0.0
      %2696 = vmatpush.msra.mxu0 0.0
      %2697 = vmatpush.msra.mxu0 0.0
      %2698 = vmatpush.msra.mxu0 0.0
      %2699 = vmatpush.msra.mxu0 0.0
      %2700 = vmatpush.msra.mxu0 0.0
      %2701 = vmatpush.msra.mxu0 0.0
      %2702 = vmatpush.msra.mxu0 0.0
      %2703 = vmatpush.msra.mxu0 0.0
      %2704 = vmatpush.msra.mxu0 0.0
      %2705 = vmatpush.msra.mxu0 0.0
      %2706 = vmatpush.msra.mxu0 0.0
      %2707 = vmatpush.msra.mxu0 0.0
      %2708 = vmatpush.msra.mxu0 %v2596
      %2709 = vmatpush.msra.mxu0 %v2590
      %2710 = vmatmul.f32.gmra.mxu0 %v2612
      %v2711 = vpop.f32.mrf.mxu0
      %v2712 = vadd.f32 0.0, %v2711
      %2713 = vdwg.mxu0
      %2714 = vmatpush.msra.mxu0 0.0
      %2715 = vmatpush.msra.mxu0 0.0
      %2716 = vmatpush.msra.mxu0 0.0
      %2717 = vmatpush.msra.mxu0 0.0
      %2718 = vmatpush.msra.mxu0 0.0
      %2719 = vmatpush.msra.mxu0 0.0
      %2720 = vmatpush.msra.mxu0 0.0
      %2721 = vmatpush.msra.mxu0 0.0
      %2722 = vmatpush.msra.mxu0 0.0
      %2723 = vmatpush.msra.mxu0 0.0
      %2724 = vmatpush.msra.mxu0 0.0
      %2725 = vmatpush.msra.mxu0 0.0
      %2726 = vmatpush.msra.mxu0 0.0
      %2727 = vmatpush.msra.mxu0 0.0
      %2728 = vmatpush.msra.mxu0 %v2597
      %2729 = vmatpush.msra.mxu0 %v2591
      %2730 = vmatmul.f32.gmra.mxu0 %v2612
      %v2731 = vpop.f32.mrf.mxu0
      %v2732 = vadd.f32 0.0, %v2731
      %2733 = vdwg.mxu0
      %2734 = vmatpush.msra.mxu0 0.0
      %2735 = vmatpush.msra.mxu0 0.0
      %2736 = vmatpush.msra.mxu0 0.0
      %2737 = vmatpush.msra.mxu0 0.0
      %2738 = vmatpush.msra.mxu0 0.0
      %2739 = vmatpush.msra.mxu0 0.0
      %2740 = vmatpush.msra.mxu0 0.0
      %2741 = vmatpush.msra.mxu0 0.0
      %2742 = vmatpush.msra.mxu0 0.0
      %2743 = vmatpush.msra.mxu0 0.0
      %2744 = vmatpush.msra.mxu0 0.0
      %2745 = vmatpush.msra.mxu0 0.0
      %2746 = vmatpush.msra.mxu0 0.0
      %2747 = vmatpush.msra.mxu0 0.0
      %2748 = vmatpush.msra.mxu0 %v2584
      %2749 = vmatpush.msra.mxu0 %v2570
      %2750 = vmatmul.f32.gmra.mxu0 %v2612
      %v2751 = vpop.f32.mrf.mxu0
      %v2752 = vadd.f32 0.0, %v2751
      %2753 = vdwg.mxu0
      %v2754 = vadd.f32 %v2544, %v2632
      %v2755 = vadd.f32 %v2545, %v2652
      %v2756 = vadd.f32 %v2546, %v2672
      %v2757 = vadd.f32 %v2547, %v2692
      %v2758 = vadd.f32 %v2548, %v2712
      %v2759 = vadd.f32 %v2549, %v2732
      %v2760 = vadd.f32 %v2550, %v2752
      %v2761 = vld [vmem:[%s5] sm:$0x7]
      %2763 = vst [vmem:[#allocation1] ss:$2 sm:$0xff] %v2761
      %v2764 = vld.sshfl [vmem:[#allocation1] sm:$0xff pattern:$0x75316420]
      %2765 = vrot.lane.b32.xlu0 %v2764, 48
      %v2766 = vpop.permute.xlu0 %2765
      %2767 = vrot.lane.b32.xlu0 %v1446, 96
      %v2768 = vpop.permute.xlu0 %2767
      %2769 = vrot.lane.b32.xlu0 %v1492, 96
      %v2770 = vpop.permute.xlu0 %2769
      %2771 = vrot.lane.b32.xlu0 %v1538, 96
      %v2772 = vpop.permute.xlu0 %2771
      %2773 = vrot.lane.b32.xlu0 %v1584, 96
      %v2774 = vpop.permute.xlu0 %2773
      %2775 = vrot.lane.b32.xlu0 %v1630, 96
      %v2776 = vpop.permute.xlu0 %2775
      %2777 = vrot.lane.b32.xlu0 %v1676, 96
      %v2778 = vpop.permute.xlu0 %2777
      %2779 = vrot.lane.b32.xlu0 %v1722, 96
      %v2780 = vpop.permute.xlu0 %2779
      %2781 = vrot.lane.b32.xlu0 %v1449, 96
      %v2782 = vpop.permute.xlu0 %2781
      %2783 = vrot.lane.b32.xlu0 %v1495, 96
      %v2784 = vpop.permute.xlu0 %2783
      %2785 = vrot.lane.b32.xlu0 %v1541, 96
      %v2786 = vpop.permute.xlu0 %2785
      %2787 = vrot.lane.b32.xlu0 %v1587, 96
      %v2788 = vpop.permute.xlu0 %2787
      %2789 = vrot.lane.b32.xlu0 %v1633, 96
      %v2790 = vpop.permute.xlu0 %2789
      %2791 = vrot.lane.b32.xlu0 %v1679, 96
      %v2792 = vpop.permute.xlu0 %2791
      %2793 = vrot.lane.b32.xlu0 %v1725, 96
      %v2794 = vpop.permute.xlu0 %2793
      %v2795 = vsel %vm889, %v2768, %v2770
      %v2796 = vsel %vm889, %v2770, %v2772
      %v2797 = vsel %vm889, %v2772, %v2774
      %v2798 = vsel %vm889, %v2774, %v2776
      %v2799 = vsel %vm889, %v2776, %v2778
      %v2800 = vsel %vm889, %v2778, %v2780
      %v2801 = vsel %vm889, %v2782, %v2784
      %v2802 = vsel %vm889, %v2784, %v2786
      %v2803 = vsel %vm889, %v2786, %v2788
      %v2804 = vsel %vm889, %v2788, %v2790
      %v2805 = vsel %vm889, %v2790, %v2792
      %v2806 = vsel %vm889, %v2792, %v2794
      %v2821 = vsel %vm1847, %v2766, 0
      %2823 = vmatpush.msra.mxu0 0.0
      %2824 = vmatpush.msra.mxu0 0.0
      %2825 = vmatpush.msra.mxu0 0.0
      %2826 = vmatpush.msra.mxu0 0.0
      %2827 = vmatpush.msra.mxu0 0.0
      %2828 = vmatpush.msra.mxu0 0.0
      %2829 = vmatpush.msra.mxu0 0.0
      %2830 = vmatpush.msra.mxu0 0.0
      %2831 = vmatpush.msra.mxu0 0.0
      %2832 = vmatpush.msra.mxu0 0.0
      %2833 = vmatpush.msra.mxu0 0.0
      %2834 = vmatpush.msra.mxu0 0.0
      %2835 = vmatpush.msra.mxu0 0.0
      %2836 = vmatpush.msra.mxu0 0.0
      %2837 = vmatpush.msra.mxu0 %v2801
      %2838 = vmatpush.msra.mxu0 %v2795
      %2839 = vmatmul.f32.gmra.mxu0 %v2821
      %v2840 = vpop.f32.mrf.mxu0
      %v2841 = vadd.f32 0.0, %v2840
      %2842 = vdwg.mxu0
      %2843 = vmatpush.msra.mxu0 0.0
      %2844 = vmatpush.msra.mxu0 0.0
      %2845 = vmatpush.msra.mxu0 0.0
      %2846 = vmatpush.msra.mxu0 0.0
      %2847 = vmatpush.msra.mxu0 0.0
      %2848 = vmatpush.msra.mxu0 0.0
      %2849 = vmatpush.msra.mxu0 0.0
      %2850 = vmatpush.msra.mxu0 0.0
      %2851 = vmatpush.msra.mxu0 0.0
      %2852 = vmatpush.msra.mxu0 0.0
      %2853 = vmatpush.msra.mxu0 0.0
      %2854 = vmatpush.msra.mxu0 0.0
      %2855 = vmatpush.msra.mxu0 0.0
      %2856 = vmatpush.msra.mxu0 0.0
      %2857 = vmatpush.msra.mxu0 %v2802
      %2858 = vmatpush.msra.mxu0 %v2796
      %2859 = vmatmul.f32.gmra.mxu0 %v2821
      %v2860 = vpop.f32.mrf.mxu0
      %v2861 = vadd.f32 0.0, %v2860
      %2862 = vdwg.mxu0
      %2863 = vmatpush.msra.mxu0 0.0
      %2864 = vmatpush.msra.mxu0 0.0
      %2865 = vmatpush.msra.mxu0 0.0
      %2866 = vmatpush.msra.mxu0 0.0
      %2867 = vmatpush.msra.mxu0 0.0
      %2868 = vmatpush.msra.mxu0 0.0
      %2869 = vmatpush.msra.mxu0 0.0
      %2870 = vmatpush.msra.mxu0 0.0
      %2871 = vmatpush.msra.mxu0 0.0
      %2872 = vmatpush.msra.mxu0 0.0
      %2873 = vmatpush.msra.mxu0 0.0
      %2874 = vmatpush.msra.mxu0 0.0
      %2875 = vmatpush.msra.mxu0 0.0
      %2876 = vmatpush.msra.mxu0 0.0
      %2877 = vmatpush.msra.mxu0 %v2803
      %2878 = vmatpush.msra.mxu0 %v2797
      %2879 = vmatmul.f32.gmra.mxu0 %v2821
      %v2880 = vpop.f32.mrf.mxu0
      %v2881 = vadd.f32 0.0, %v2880
      %2882 = vdwg.mxu0
      %2883 = vmatpush.msra.mxu0 0.0
      %2884 = vmatpush.msra.mxu0 0.0
      %2885 = vmatpush.msra.mxu0 0.0
      %2886 = vmatpush.msra.mxu0 0.0
      %2887 = vmatpush.msra.mxu0 0.0
      %2888 = vmatpush.msra.mxu0 0.0
      %2889 = vmatpush.msra.mxu0 0.0
      %2890 = vmatpush.msra.mxu0 0.0
      %2891 = vmatpush.msra.mxu0 0.0
      %2892 = vmatpush.msra.mxu0 0.0
      %2893 = vmatpush.msra.mxu0 0.0
      %2894 = vmatpush.msra.mxu0 0.0
      %2895 = vmatpush.msra.mxu0 0.0
      %2896 = vmatpush.msra.mxu0 0.0
      %2897 = vmatpush.msra.mxu0 %v2804
      %2898 = vmatpush.msra.mxu0 %v2798
      %2899 = vmatmul.f32.gmra.mxu0 %v2821
      %v2900 = vpop.f32.mrf.mxu0
      %v2901 = vadd.f32 0.0, %v2900
      %2902 = vdwg.mxu0
      %2903 = vmatpush.msra.mxu0 0.0
      %2904 = vmatpush.msra.mxu0 0.0
      %2905 = vmatpush.msra.mxu0 0.0
      %2906 = vmatpush.msra.mxu0 0.0
      %2907 = vmatpush.msra.mxu0 0.0
      %2908 = vmatpush.msra.mxu0 0.0
      %2909 = vmatpush.msra.mxu0 0.0
      %2910 = vmatpush.msra.mxu0 0.0
      %2911 = vmatpush.msra.mxu0 0.0
      %2912 = vmatpush.msra.mxu0 0.0
      %2913 = vmatpush.msra.mxu0 0.0
      %2914 = vmatpush.msra.mxu0 0.0
      %2915 = vmatpush.msra.mxu0 0.0
      %2916 = vmatpush.msra.mxu0 0.0
      %2917 = vmatpush.msra.mxu0 %v2805
      %2918 = vmatpush.msra.mxu0 %v2799
      %2919 = vmatmul.f32.gmra.mxu0 %v2821
      %v2920 = vpop.f32.mrf.mxu0
      %v2921 = vadd.f32 0.0, %v2920
      %2922 = vdwg.mxu0
      %2923 = vmatpush.msra.mxu0 0.0
      %2924 = vmatpush.msra.mxu0 0.0
      %2925 = vmatpush.msra.mxu0 0.0
      %2926 = vmatpush.msra.mxu0 0.0
      %2927 = vmatpush.msra.mxu0 0.0
      %2928 = vmatpush.msra.mxu0 0.0
      %2929 = vmatpush.msra.mxu0 0.0
      %2930 = vmatpush.msra.mxu0 0.0
      %2931 = vmatpush.msra.mxu0 0.0
      %2932 = vmatpush.msra.mxu0 0.0
      %2933 = vmatpush.msra.mxu0 0.0
      %2934 = vmatpush.msra.mxu0 0.0
      %2935 = vmatpush.msra.mxu0 0.0
      %2936 = vmatpush.msra.mxu0 0.0
      %2937 = vmatpush.msra.mxu0 %v2806
      %2938 = vmatpush.msra.mxu0 %v2800
      %2939 = vmatmul.f32.gmra.mxu0 %v2821
      %v2940 = vpop.f32.mrf.mxu0
      %v2941 = vadd.f32 0.0, %v2940
      %2942 = vdwg.mxu0
      %2943 = vmatpush.msra.mxu0 0.0
      %2944 = vmatpush.msra.mxu0 0.0
      %2945 = vmatpush.msra.mxu0 0.0
      %2946 = vmatpush.msra.mxu0 0.0
      %2947 = vmatpush.msra.mxu0 0.0
      %2948 = vmatpush.msra.mxu0 0.0
      %2949 = vmatpush.msra.mxu0 0.0
      %2950 = vmatpush.msra.mxu0 0.0
      %2951 = vmatpush.msra.mxu0 0.0
      %2952 = vmatpush.msra.mxu0 0.0
      %2953 = vmatpush.msra.mxu0 0.0
      %2954 = vmatpush.msra.mxu0 0.0
      %2955 = vmatpush.msra.mxu0 0.0
      %2956 = vmatpush.msra.mxu0 0.0
      %2957 = vmatpush.msra.mxu0 %v2794
      %2958 = vmatpush.msra.mxu0 %v2780
      %2959 = vmatmul.f32.gmra.mxu0 %v2821
      %v2960 = vpop.f32.mrf.mxu0
      %v2961 = vadd.f32 0.0, %v2960
      %2962 = vdwg.mxu0
      %v2963 = vadd.f32 %v2754, %v2841
      %v2964 = vadd.f32 %v2755, %v2861
      %v2965 = vadd.f32 %v2756, %v2881
      %v2966 = vadd.f32 %v2757, %v2901
      %v2967 = vadd.f32 %v2758, %v2921
      %v2968 = vadd.f32 %v2759, %v2941
      %v2969 = vadd.f32 %v2760, %v2961
      %v2970 = vld [vmem:[%s5] sm:$0x7]
      %2972 = vst [vmem:[#allocation1] ss:$2 sm:$0xff] %v2970
      %v2973 = vld.sshfl [vmem:[#allocation1] sm:$0xff pattern:$0x75316420]
      %2974 = vrot.lane.b32.xlu0 %v2973, 32
      %v2975 = vpop.permute.xlu0 %2974
      %2978 = vrot.lane.b32.xlu0 %v1446, 68
      %v2979 = vpop.permute.xlu0 %2978
      %2980 = vrot.lane.b32.xlu0 %v1492, 68
      %v2981 = vpop.permute.xlu0 %2980
      %2982 = vrot.lane.b32.xlu0 %v1538, 68
      %v2983 = vpop.permute.xlu0 %2982
      %2984 = vrot.lane.b32.xlu0 %v1584, 68
      %v2985 = vpop.permute.xlu0 %2984
      %2986 = vrot.lane.b32.xlu0 %v1630, 68
      %v2987 = vpop.permute.xlu0 %2986
      %2988 = vrot.lane.b32.xlu0 %v1676, 68
      %v2989 = vpop.permute.xlu0 %2988
      %2990 = vrot.lane.b32.xlu0 %v1722, 68
      %v2991 = vpop.permute.xlu0 %2990
      %2992 = vrot.lane.b32.xlu0 %v1768, 68
      %v2993 = vpop.permute.xlu0 %2992
      %2994 = vrot.lane.b32.xlu0 %v1449, 68
      %v2995 = vpop.permute.xlu0 %2994
      %2996 = vrot.lane.b32.xlu0 %v1495, 68
      %v2997 = vpop.permute.xlu0 %2996
      %2998 = vrot.lane.b32.xlu0 %v1541, 68
      %v2999 = vpop.permute.xlu0 %2998
      %3000 = vrot.lane.b32.xlu0 %v1587, 68
      %v3001 = vpop.permute.xlu0 %3000
      %3002 = vrot.lane.b32.xlu0 %v1633, 68
      %v3003 = vpop.permute.xlu0 %3002
      %3004 = vrot.lane.b32.xlu0 %v1679, 68
      %v3005 = vpop.permute.xlu0 %3004
      %3006 = vrot.lane.b32.xlu0 %v1725, 68
      %v3007 = vpop.permute.xlu0 %3006
      %3008 = vrot.lane.b32.xlu0 %v1771, 68
      %v3009 = vpop.permute.xlu0 %3008
      %vm3010 = vcmask 556032
      %v3011 = vsel %vm3010, %v2979, %v2981
      %v3012 = vsel %vm3010, %v2981, %v2983
      %v3013 = vsel %vm3010, %v2983, %v2985
      %v3014 = vsel %vm3010, %v2985, %v2987
      %v3015 = vsel %vm3010, %v2987, %v2989
      %v3016 = vsel %vm3010, %v2989, %v2991
      %v3017 = vsel %vm3010, %v2991, %v2993
      %v3018 = vsel %vm3010, %v2995, %v2997
      %v3019 = vsel %vm3010, %v2997, %v2999
      %v3020 = vsel %vm3010, %v2999, %v3001
      %v3021 = vsel %vm3010, %v3001, %v3003
      %v3022 = vsel %vm3010, %v3003, %v3005
      %v3023 = vsel %vm3010, %v3005, %v3007
      %v3024 = vsel %vm3010, %v3007, %v3009
      %v3039 = vsel %vm1847, %v2975, 0
      %3041 = vmatpush.msra.mxu0 0.0
      %3042 = vmatpush.msra.mxu0 0.0
      %3043 = vmatpush.msra.mxu0 0.0
      %3044 = vmatpush.msra.mxu0 0.0
      %3045 = vmatpush.msra.mxu0 0.0
      %3046 = vmatpush.msra.mxu0 0.0
      %3047 = vmatpush.msra.mxu0 0.0
      %3048 = vmatpush.msra.mxu0 0.0
      %3049 = vmatpush.msra.mxu0 0.0
      %3050 = vmatpush.msra.mxu0 0.0
      %3051 = vmatpush.msra.mxu0 0.0
      %3052 = vmatpush.msra.mxu0 0.0
      %3053 = vmatpush.msra.mxu0 0.0
      %3054 = vmatpush.msra.mxu0 0.0
      %3055 = vmatpush.msra.mxu0 %v3018
      %3056 = vmatpush.msra.mxu0 %v3011
      %3057 = vmatmul.f32.gmra.mxu0 %v3039
      %v3058 = vpop.f32.mrf.mxu0
      %v3059 = vadd.f32 0.0, %v3058
      %3060 = vdwg.mxu0
      %3061 = vmatpush.msra.mxu0 0.0
      %3062 = vmatpush.msra.mxu0 0.0
      %3063 = vmatpush.msra.mxu0 0.0
      %3064 = vmatpush.msra.mxu0 0.0
      %3065 = vmatpush.msra.mxu0 0.0
      %3066 = vmatpush.msra.mxu0 0.0
      %3067 = vmatpush.msra.mxu0 0.0
      %3068 = vmatpush.msra.mxu0 0.0
      %3069 = vmatpush.msra.mxu0 0.0
      %3070 = vmatpush.msra.mxu0 0.0
      %3071 = vmatpush.msra.mxu0 0.0
      %3072 = vmatpush.msra.mxu0 0.0
      %3073 = vmatpush.msra.mxu0 0.0
      %3074 = vmatpush.msra.mxu0 0.0
      %3075 = vmatpush.msra.mxu0 %v3019
      %3076 = vmatpush.msra.mxu0 %v3012
      %3077 = vmatmul.f32.gmra.mxu0 %v3039
      %v3078 = vpop.f32.mrf.mxu0
      %v3079 = vadd.f32 0.0, %v3078
      %3080 = vdwg.mxu0
      %3081 = vmatpush.msra.mxu0 0.0
      %3082 = vmatpush.msra.mxu0 0.0
      %3083 = vmatpush.msra.mxu0 0.0
      %3084 = vmatpush.msra.mxu0 0.0
      %3085 = vmatpush.msra.mxu0 0.0
      %3086 = vmatpush.msra.mxu0 0.0
      %3087 = vmatpush.msra.mxu0 0.0
      %3088 = vmatpush.msra.mxu0 0.0
      %3089 = vmatpush.msra.mxu0 0.0
      %3090 = vmatpush.msra.mxu0 0.0
      %3091 = vmatpush.msra.mxu0 0.0
      %3092 = vmatpush.msra.mxu0 0.0
      %3093 = vmatpush.msra.mxu0 0.0
      %3094 = vmatpush.msra.mxu0 0.0
      %3095 = vmatpush.msra.mxu0 %v3020
      %3096 = vmatpush.msra.mxu0 %v3013
      %3097 = vmatmul.f32.gmra.mxu0 %v3039
      %v3098 = vpop.f32.mrf.mxu0
      %v3099 = vadd.f32 0.0, %v3098
      %3100 = vdwg.mxu0
      %3101 = vmatpush.msra.mxu0 0.0
      %3102 = vmatpush.msra.mxu0 0.0
      %3103 = vmatpush.msra.mxu0 0.0
      %3104 = vmatpush.msra.mxu0 0.0
      %3105 = vmatpush.msra.mxu0 0.0
      %3106 = vmatpush.msra.mxu0 0.0
      %3107 = vmatpush.msra.mxu0 0.0
      %3108 = vmatpush.msra.mxu0 0.0
      %3109 = vmatpush.msra.mxu0 0.0
      %3110 = vmatpush.msra.mxu0 0.0
      %3111 = vmatpush.msra.mxu0 0.0
      %3112 = vmatpush.msra.mxu0 0.0
      %3113 = vmatpush.msra.mxu0 0.0
      %3114 = vmatpush.msra.mxu0 0.0
      %3115 = vmatpush.msra.mxu0 %v3021
      %3116 = vmatpush.msra.mxu0 %v3014
      %3117 = vmatmul.f32.gmra.mxu0 %v3039
      %v3118 = vpop.f32.mrf.mxu0
      %v3119 = vadd.f32 0.0, %v3118
      %3120 = vdwg.mxu0
      %3121 = vmatpush.msra.mxu0 0.0
      %3122 = vmatpush.msra.mxu0 0.0
      %3123 = vmatpush.msra.mxu0 0.0
      %3124 = vmatpush.msra.mxu0 0.0
      %3125 = vmatpush.msra.mxu0 0.0
      %3126 = vmatpush.msra.mxu0 0.0
      %3127 = vmatpush.msra.mxu0 0.0
      %3128 = vmatpush.msra.mxu0 0.0
      %3129 = vmatpush.msra.mxu0 0.0
      %3130 = vmatpush.msra.mxu0 0.0
      %3131 = vmatpush.msra.mxu0 0.0
      %3132 = vmatpush.msra.mxu0 0.0
      %3133 = vmatpush.msra.mxu0 0.0
      %3134 = vmatpush.msra.mxu0 0.0
      %3135 = vmatpush.msra.mxu0 %v3022
      %3136 = vmatpush.msra.mxu0 %v3015
      %3137 = vmatmul.f32.gmra.mxu0 %v3039
      %v3138 = vpop.f32.mrf.mxu0
      %v3139 = vadd.f32 0.0, %v3138
      %3140 = vdwg.mxu0
      %3141 = vmatpush.msra.mxu0 0.0
      %3142 = vmatpush.msra.mxu0 0.0
      %3143 = vmatpush.msra.mxu0 0.0
      %3144 = vmatpush.msra.mxu0 0.0
      %3145 = vmatpush.msra.mxu0 0.0
      %3146 = vmatpush.msra.mxu0 0.0
      %3147 = vmatpush.msra.mxu0 0.0
      %3148 = vmatpush.msra.mxu0 0.0
      %3149 = vmatpush.msra.mxu0 0.0
      %3150 = vmatpush.msra.mxu0 0.0
      %3151 = vmatpush.msra.mxu0 0.0
      %3152 = vmatpush.msra.mxu0 0.0
      %3153 = vmatpush.msra.mxu0 0.0
      %3154 = vmatpush.msra.mxu0 0.0
      %3155 = vmatpush.msra.mxu0 %v3023
      %3156 = vmatpush.msra.mxu0 %v3016
      %3157 = vmatmul.f32.gmra.mxu0 %v3039
      %v3158 = vpop.f32.mrf.mxu0
      %v3159 = vadd.f32 0.0, %v3158
      %3160 = vdwg.mxu0
      %3161 = vmatpush.msra.mxu0 0.0
      %3162 = vmatpush.msra.mxu0 0.0
      %3163 = vmatpush.msra.mxu0 0.0
      %3164 = vmatpush.msra.mxu0 0.0
      %3165 = vmatpush.msra.mxu0 0.0
      %3166 = vmatpush.msra.mxu0 0.0
      %3167 = vmatpush.msra.mxu0 0.0
      %3168 = vmatpush.msra.mxu0 0.0
      %3169 = vmatpush.msra.mxu0 0.0
      %3170 = vmatpush.msra.mxu0 0.0
      %3171 = vmatpush.msra.mxu0 0.0
      %3172 = vmatpush.msra.mxu0 0.0
      %3173 = vmatpush.msra.mxu0 0.0
      %3174 = vmatpush.msra.mxu0 0.0
      %3175 = vmatpush.msra.mxu0 %v3024
      %3176 = vmatpush.msra.mxu0 %v3017
      %3177 = vmatmul.f32.gmra.mxu0 %v3039
      %v3178 = vpop.f32.mrf.mxu0
      %v3179 = vadd.f32 0.0, %v3178
      %3180 = vdwg.mxu0
      %v3181 = vadd.f32 %v2963, %v3059
      %v3182 = vadd.f32 %v2964, %v3079
      %v3183 = vadd.f32 %v2965, %v3099
      %v3184 = vadd.f32 %v2966, %v3119
      %v3185 = vadd.f32 %v2967, %v3139
      %v3186 = vadd.f32 %v2968, %v3159
      %v3187 = vadd.f32 %v2969, %v3179
      %v3188 = vld [vmem:[%s5] sm:$0x7]
      %3190 = vst [vmem:[#allocation1] ss:$2 sm:$0xff] %v3188
      %v3191 = vld.sshfl [vmem:[#allocation1] sm:$0xff pattern:$0x75316420]
      %3192 = vrot.lane.b32.xlu0 %v3191, 16
      %v3193 = vpop.permute.xlu0 %3192
      %3194 = vrot.lane.b32.xlu0 %v1446, 67
      %v3195 = vpop.permute.xlu0 %3194
      %3196 = vrot.lane.b32.xlu0 %v1492, 67
      %v3197 = vpop.permute.xlu0 %3196
      %3198 = vrot.lane.b32.xlu0 %v1538, 67
      %v3199 = vpop.permute.xlu0 %3198
      %3200 = vrot.lane.b32.xlu0 %v1584, 67
      %v3201 = vpop.permute.xlu0 %3200
      %3202 = vrot.lane.b32.xlu0 %v1630, 67
      %v3203 = vpop.permute.xlu0 %3202
      %3204 = vrot.lane.b32.xlu0 %v1676, 67
      %v3205 = vpop.permute.xlu0 %3204
      %3206 = vrot.lane.b32.xlu0 %v1722, 67
      %v3207 = vpop.permute.xlu0 %3206
      %3208 = vrot.lane.b32.xlu0 %v1768, 67
      %v3209 = vpop.permute.xlu0 %3208
      %3210 = vrot.lane.b32.xlu0 %v1449, 67
      %v3211 = vpop.permute.xlu0 %3210
      %3212 = vrot.lane.b32.xlu0 %v1495, 67
      %v3213 = vpop.permute.xlu0 %3212
      %3214 = vrot.lane.b32.xlu0 %v1541, 67
      %v3215 = vpop.permute.xlu0 %3214
      %3216 = vrot.lane.b32.xlu0 %v1587, 67
      %v3217 = vpop.permute.xlu0 %3216
      %3218 = vrot.lane.b32.xlu0 %v1633, 67
      %v3219 = vpop.permute.xlu0 %3218
      %3220 = vrot.lane.b32.xlu0 %v1679, 67
      %v3221 = vpop.permute.xlu0 %3220
      %3222 = vrot.lane.b32.xlu0 %v1725, 67
      %v3223 = vpop.permute.xlu0 %3222
      %3224 = vrot.lane.b32.xlu0 %v1771, 67
      %v3225 = vpop.permute.xlu0 %3224
      %vm3226 = vcmask 547840
      %v3227 = vsel %vm3226, %v3195, %v3197
      %v3228 = vsel %vm3226, %v3197, %v3199
      %v3229 = vsel %vm3226, %v3199, %v3201
      %v3230 = vsel %vm3226, %v3201, %v3203
      %v3231 = vsel %vm3226, %v3203, %v3205
      %v3232 = vsel %vm3226, %v3205, %v3207
      %v3233 = vsel %vm3226, %v3207, %v3209
      %v3234 = vsel %vm3226, %v3211, %v3213
      %v3235 = vsel %vm3226, %v3213, %v3215
      %v3236 = vsel %vm3226, %v3215, %v3217
      %v3237 = vsel %vm3226, %v3217, %v3219
      %v3238 = vsel %vm3226, %v3219, %v3221
      %v3239 = vsel %vm3226, %v3221, %v3223
      %v3240 = vsel %vm3226, %v3223, %v3225
      %v3255 = vsel %vm1847, %v3193, 0
      %3257 = vmatpush.msra.mxu0 0.0
      %3258 = vmatpush.msra.mxu0 0.0
      %3259 = vmatpush.msra.mxu0 0.0
      %3260 = vmatpush.msra.mxu0 0.0
      %3261 = vmatpush.msra.mxu0 0.0
      %3262 = vmatpush.msra.mxu0 0.0
      %3263 = vmatpush.msra.mxu0 0.0
      %3264 = vmatpush.msra.mxu0 0.0
      %3265 = vmatpush.msra.mxu0 0.0
      %3266 = vmatpush.msra.mxu0 0.0
      %3267 = vmatpush.msra.mxu0 0.0
      %3268 = vmatpush.msra.mxu0 0.0
      %3269 = vmatpush.msra.mxu0 0.0
      %3270 = vmatpush.msra.mxu0 0.0
      %3271 = vmatpush.msra.mxu0 %v3234
      %3272 = vmatpush.msra.mxu0 %v3227
      %3273 = vmatmul.f32.gmra.mxu0 %v3255
      %v3274 = vpop.f32.mrf.mxu0
      %v3275 = vadd.f32 0.0, %v3274
      %3276 = vdwg.mxu0
      %3277 = vmatpush.msra.mxu0 0.0
      %3278 = vmatpush.msra.mxu0 0.0
      %3279 = vmatpush.msra.mxu0 0.0
      %3280 = vmatpush.msra.mxu0 0.0
      %3281 = vmatpush.msra.mxu0 0.0
      %3282 = vmatpush.msra.mxu0 0.0
      %3283 = vmatpush.msra.mxu0 0.0
      %3284 = vmatpush.msra.mxu0 0.0
      %3285 = vmatpush.msra.mxu0 0.0
      %3286 = vmatpush.msra.mxu0 0.0
      %3287 = vmatpush.msra.mxu0 0.0
      %3288 = vmatpush.msra.mxu0 0.0
      %3289 = vmatpush.msra.mxu0 0.0
      %3290 = vmatpush.msra.mxu0 0.0
      %3291 = vmatpush.msra.mxu0 %v3235
      %3292 = vmatpush.msra.mxu0 %v3228
      %3293 = vmatmul.f32.gmra.mxu0 %v3255
      %v3294 = vpop.f32.mrf.mxu0
      %v3295 = vadd.f32 0.0, %v3294
      %3296 = vdwg.mxu0
      %3297 = vmatpush.msra.mxu0 0.0
      %3298 = vmatpush.msra.mxu0 0.0
      %3299 = vmatpush.msra.mxu0 0.0
      %3300 = vmatpush.msra.mxu0 0.0
      %3301 = vmatpush.msra.mxu0 0.0
      %3302 = vmatpush.msra.mxu0 0.0
      %3303 = vmatpush.msra.mxu0 0.0
      %3304 = vmatpush.msra.mxu0 0.0
      %3305 = vmatpush.msra.mxu0 0.0
      %3306 = vmatpush.msra.mxu0 0.0
      %3307 = vmatpush.msra.mxu0 0.0
      %3308 = vmatpush.msra.mxu0 0.0
      %3309 = vmatpush.msra.mxu0 0.0
      %3310 = vmatpush.msra.mxu0 0.0
      %3311 = vmatpush.msra.mxu0 %v3236
      %3312 = vmatpush.msra.mxu0 %v3229
      %3313 = vmatmul.f32.gmra.mxu0 %v3255
      %v3314 = vpop.f32.mrf.mxu0
      %v3315 = vadd.f32 0.0, %v3314
      %3316 = vdwg.mxu0
      %3317 = vmatpush.msra.mxu0 0.0
      %3318 = vmatpush.msra.mxu0 0.0
      %3319 = vmatpush.msra.mxu0 0.0
      %3320 = vmatpush.msra.mxu0 0.0
      %3321 = vmatpush.msra.mxu0 0.0
      %3322 = vmatpush.msra.mxu0 0.0
      %3323 = vmatpush.msra.mxu0 0.0
      %3324 = vmatpush.msra.mxu0 0.0
      %3325 = vmatpush.msra.mxu0 0.0
      %3326 = vmatpush.msra.mxu0 0.0
      %3327 = vmatpush.msra.mxu0 0.0
      %3328 = vmatpush.msra.mxu0 0.0
      %3329 = vmatpush.msra.mxu0 0.0
      %3330 = vmatpush.msra.mxu0 0.0
      %3331 = vmatpush.msra.mxu0 %v3237
      %3332 = vmatpush.msra.mxu0 %v3230
      %3333 = vmatmul.f32.gmra.mxu0 %v3255
      %v3334 = vpop.f32.mrf.mxu0
      %v3335 = vadd.f32 0.0, %v3334
      %3336 = vdwg.mxu0
      %3337 = vmatpush.msra.mxu0 0.0
      %3338 = vmatpush.msra.mxu0 0.0
      %3339 = vmatpush.msra.mxu0 0.0
      %3340 = vmatpush.msra.mxu0 0.0
      %3341 = vmatpush.msra.mxu0 0.0
      %3342 = vmatpush.msra.mxu0 0.0
      %3343 = vmatpush.msra.mxu0 0.0
      %3344 = vmatpush.msra.mxu0 0.0
      %3345 = vmatpush.msra.mxu0 0.0
      %3346 = vmatpush.msra.mxu0 0.0
      %3347 = vmatpush.msra.mxu0 0.0
      %3348 = vmatpush.msra.mxu0 0.0
      %3349 = vmatpush.msra.mxu0 0.0
      %3350 = vmatpush.msra.mxu0 0.0
      %3351 = vmatpush.msra.mxu0 %v3238
      %3352 = vmatpush.msra.mxu0 %v3231
      %3353 = vmatmul.f32.gmra.mxu0 %v3255
      %v3354 = vpop.f32.mrf.mxu0
      %v3355 = vadd.f32 0.0, %v3354
      %3356 = vdwg.mxu0
      %3357 = vmatpush.msra.mxu0 0.0
      %3358 = vmatpush.msra.mxu0 0.0
      %3359 = vmatpush.msra.mxu0 0.0
      %3360 = vmatpush.msra.mxu0 0.0
      %3361 = vmatpush.msra.mxu0 0.0
      %3362 = vmatpush.msra.mxu0 0.0
      %3363 = vmatpush.msra.mxu0 0.0
      %3364 = vmatpush.msra.mxu0 0.0
      %3365 = vmatpush.msra.mxu0 0.0
      %3366 = vmatpush.msra.mxu0 0.0
      %3367 = vmatpush.msra.mxu0 0.0
      %3368 = vmatpush.msra.mxu0 0.0
      %3369 = vmatpush.msra.mxu0 0.0
      %3370 = vmatpush.msra.mxu0 0.0
      %3371 = vmatpush.msra.mxu0 %v3239
      %3372 = vmatpush.msra.mxu0 %v3232
      %3373 = vmatmul.f32.gmra.mxu0 %v3255
      %v3374 = vpop.f32.mrf.mxu0
      %v3375 = vadd.f32 0.0, %v3374
      %3376 = vdwg.mxu0
      %3377 = vmatpush.msra.mxu0 0.0
      %3378 = vmatpush.msra.mxu0 0.0
      %3379 = vmatpush.msra.mxu0 0.0
      %3380 = vmatpush.msra.mxu0 0.0
      %3381 = vmatpush.msra.mxu0 0.0
      %3382 = vmatpush.msra.mxu0 0.0
      %3383 = vmatpush.msra.mxu0 0.0
      %3384 = vmatpush.msra.mxu0 0.0
      %3385 = vmatpush.msra.mxu0 0.0
      %3386 = vmatpush.msra.mxu0 0.0
      %3387 = vmatpush.msra.mxu0 0.0
      %3388 = vmatpush.msra.mxu0 0.0
      %3389 = vmatpush.msra.mxu0 0.0
      %3390 = vmatpush.msra.mxu0 0.0
      %3391 = vmatpush.msra.mxu0 %v3240
      %3392 = vmatpush.msra.mxu0 %v3233
      %3393 = vmatmul.f32.gmra.mxu0 %v3255
      %v3394 = vpop.f32.mrf.mxu0
      %v3395 = vadd.f32 0.0, %v3394
      %3396 = vdwg.mxu0
      %v3397 = vadd.f32 %v3181, %v3275
      %v3398 = vadd.f32 %v3182, %v3295
      %v3399 = vadd.f32 %v3183, %v3315
      %v3400 = vadd.f32 %v3184, %v3335
      %v3401 = vadd.f32 %v3185, %v3355
      %v3402 = vadd.f32 %v3186, %v3375
      %v3403 = vadd.f32 %v3187, %v3395
      %v3404 = vld [vmem:[%s5 + $0x4] sm:$0x7]
      %3405 = vrot.lane.b32.xlu0 %v1446, 66
      %v3406 = vpop.permute.xlu0 %3405
      %3407 = vrot.lane.b32.xlu0 %v1492, 66
      %v3408 = vpop.permute.xlu0 %3407
      %3409 = vrot.lane.b32.xlu0 %v1538, 66
      %v3410 = vpop.permute.xlu0 %3409
      %3411 = vrot.lane.b32.xlu0 %v1584, 66
      %v3412 = vpop.permute.xlu0 %3411
      %3413 = vrot.lane.b32.xlu0 %v1630, 66
      %v3414 = vpop.permute.xlu0 %3413
      %3415 = vrot.lane.b32.xlu0 %v1676, 66
      %v3416 = vpop.permute.xlu0 %3415
      %3417 = vrot.lane.b32.xlu0 %v1722, 66
      %v3418 = vpop.permute.xlu0 %3417
      %3419 = vrot.lane.b32.xlu0 %v1768, 66
      %v3420 = vpop.permute.xlu0 %3419
      %3421 = vrot.lane.b32.xlu0 %v1449, 66
      %v3422 = vpop.permute.xlu0 %3421
      %3423 = vrot.lane.b32.xlu0 %v1495, 66
      %v3424 = vpop.permute.xlu0 %3423
      %3425 = vrot.lane.b32.xlu0 %v1541, 66
      %v3426 = vpop.permute.xlu0 %3425
      %3427 = vrot.lane.b32.xlu0 %v1587, 66
      %v3428 = vpop.permute.xlu0 %3427
      %3429 = vrot.lane.b32.xlu0 %v1633, 66
      %v3430 = vpop.permute.xlu0 %3429
      %3431 = vrot.lane.b32.xlu0 %v1679, 66
      %v3432 = vpop.permute.xlu0 %3431
      %3433 = vrot.lane.b32.xlu0 %v1725, 66
      %v3434 = vpop.permute.xlu0 %3433
      %3435 = vrot.lane.b32.xlu0 %v1771, 66
      %v3436 = vpop.permute.xlu0 %3435
      %vm3437 = vcmask 539648
      %v3438 = vsel %vm3437, %v3406, %v3408
      %v3439 = vsel %vm3437, %v3408, %v3410
      %v3440 = vsel %vm3437, %v3410, %v3412
      %v3441 = vsel %vm3437, %v3412, %v3414
      %v3442 = vsel %vm3437, %v3414, %v3416
      %v3443 = vsel %vm3437, %v3416, %v3418
      %v3444 = vsel %vm3437, %v3418, %v3420
      %v3445 = vsel %vm3437, %v3422, %v3424
      %v3446 = vsel %vm3437, %v3424, %v3426
      %v3447 = vsel %vm3437, %v3426, %v3428
      %v3448 = vsel %vm3437, %v3428, %v3430
      %v3449 = vsel %vm3437, %v3430, %v3432
      %v3450 = vsel %vm3437, %v3432, %v3434
      %v3451 = vsel %vm3437, %v3434, %v3436
      %v3467 = vsel %vm1847, %v3404, 0
      %3469 = vmatpush.msra.mxu0 0.0
      %3470 = vmatpush.msra.mxu0 0.0
      %3471 = vmatpush.msra.mxu0 0.0
      %3472 = vmatpush.msra.mxu0 0.0
      %3473 = vmatpush.msra.mxu0 0.0
      %3474 = vmatpush.msra.mxu0 0.0
      %3475 = vmatpush.msra.mxu0 0.0
      %3476 = vmatpush.msra.mxu0 0.0
      %3477 = vmatpush.msra.mxu0 0.0
      %3478 = vmatpush.msra.mxu0 0.0
      %3479 = vmatpush.msra.mxu0 0.0
      %3480 = vmatpush.msra.mxu0 0.0
      %3481 = vmatpush.msra.mxu0 0.0
      %3482 = vmatpush.msra.mxu0 0.0
      %3483 = vmatpush.msra.mxu0 %v3445
      %3484 = vmatpush.msra.mxu0 %v3438
      %3485 = vmatmul.f32.gmra.mxu0 %v3467
      %v3486 = vpop.f32.mrf.mxu0
      %v3487 = vadd.f32 0.0, %v3486
      %3488 = vdwg.mxu0
      %3489 = vmatpush.msra.mxu0 0.0
      %3490 = vmatpush.msra.mxu0 0.0
      %3491 = vmatpush.msra.mxu0 0.0
      %3492 = vmatpush.msra.mxu0 0.0
      %3493 = vmatpush.msra.mxu0 0.0
      %3494 = vmatpush.msra.mxu0 0.0
      %3495 = vmatpush.msra.mxu0 0.0
      %3496 = vmatpush.msra.mxu0 0.0
      %3497 = vmatpush.msra.mxu0 0.0
      %3498 = vmatpush.msra.mxu0 0.0
      %3499 = vmatpush.msra.mxu0 0.0
      %3500 = vmatpush.msra.mxu0 0.0
      %3501 = vmatpush.msra.mxu0 0.0
      %3502 = vmatpush.msra.mxu0 0.0
      %3503 = vmatpush.msra.mxu0 %v3446
      %3504 = vmatpush.msra.mxu0 %v3439
      %3505 = vmatmul.f32.gmra.mxu0 %v3467
      %v3506 = vpop.f32.mrf.mxu0
      %v3507 = vadd.f32 0.0, %v3506
      %3508 = vdwg.mxu0
      %3509 = vmatpush.msra.mxu0 0.0
      %3510 = vmatpush.msra.mxu0 0.0
      %3511 = vmatpush.msra.mxu0 0.0
      %3512 = vmatpush.msra.mxu0 0.0
      %3513 = vmatpush.msra.mxu0 0.0
      %3514 = vmatpush.msra.mxu0 0.0
      %3515 = vmatpush.msra.mxu0 0.0
      %3516 = vmatpush.msra.mxu0 0.0
      %3517 = vmatpush.msra.mxu0 0.0
      %3518 = vmatpush.msra.mxu0 0.0
      %3519 = vmatpush.msra.mxu0 0.0
      %3520 = vmatpush.msra.mxu0 0.0
      %3521 = vmatpush.msra.mxu0 0.0
      %3522 = vmatpush.msra.mxu0 0.0
      %3523 = vmatpush.msra.mxu0 %v3447
      %3524 = vmatpush.msra.mxu0 %v3440
      %3525 = vmatmul.f32.gmra.mxu0 %v3467
      %v3526 = vpop.f32.mrf.mxu0
      %v3527 = vadd.f32 0.0, %v3526
      %3528 = vdwg.mxu0
      %3529 = vmatpush.msra.mxu0 0.0
      %3530 = vmatpush.msra.mxu0 0.0
      %3531 = vmatpush.msra.mxu0 0.0
      %3532 = vmatpush.msra.mxu0 0.0
      %3533 = vmatpush.msra.mxu0 0.0
      %3534 = vmatpush.msra.mxu0 0.0
      %3535 = vmatpush.msra.mxu0 0.0
      %3536 = vmatpush.msra.mxu0 0.0
      %3537 = vmatpush.msra.mxu0 0.0
      %3538 = vmatpush.msra.mxu0 0.0
      %3539 = vmatpush.msra.mxu0 0.0
      %3540 = vmatpush.msra.mxu0 0.0
      %3541 = vmatpush.msra.mxu0 0.0
      %3542 = vmatpush.msra.mxu0 0.0
      %3543 = vmatpush.msra.mxu0 %v3448
      %3544 = vmatpush.msra.mxu0 %v3441
      %3545 = vmatmul.f32.gmra.mxu0 %v3467
      %v3546 = vpop.f32.mrf.mxu0
      %v3547 = vadd.f32 0.0, %v3546
      %3548 = vdwg.mxu0
      %3549 = vmatpush.msra.mxu0 0.0
      %3550 = vmatpush.msra.mxu0 0.0
      %3551 = vmatpush.msra.mxu0 0.0
      %3552 = vmatpush.msra.mxu0 0.0
      %3553 = vmatpush.msra.mxu0 0.0
      %3554 = vmatpush.msra.mxu0 0.0
      %3555 = vmatpush.msra.mxu0 0.0
      %3556 = vmatpush.msra.mxu0 0.0
      %3557 = vmatpush.msra.mxu0 0.0
      %3558 = vmatpush.msra.mxu0 0.0
      %3559 = vmatpush.msra.mxu0 0.0
      %3560 = vmatpush.msra.mxu0 0.0
      %3561 = vmatpush.msra.mxu0 0.0
      %3562 = vmatpush.msra.mxu0 0.0
      %3563 = vmatpush.msra.mxu0 %v3449
      %3564 = vmatpush.msra.mxu0 %v3442
      %3565 = vmatmul.f32.gmra.mxu0 %v3467
      %v3566 = vpop.f32.mrf.mxu0
      %v3567 = vadd.f32 0.0, %v3566
      %3568 = vdwg.mxu0
      %3569 = vmatpush.msra.mxu0 0.0
      %3570 = vmatpush.msra.mxu0 0.0
      %3571 = vmatpush.msra.mxu0 0.0
      %3572 = vmatpush.msra.mxu0 0.0
      %3573 = vmatpush.msra.mxu0 0.0
      %3574 = vmatpush.msra.mxu0 0.0
      %3575 = vmatpush.msra.mxu0 0.0
      %3576 = vmatpush.msra.mxu0 0.0
      %3577 = vmatpush.msra.mxu0 0.0
      %3578 = vmatpush.msra.mxu0 0.0
      %3579 = vmatpush.msra.mxu0 0.0
      %3580 = vmatpush.msra.mxu0 0.0
      %3581 = vmatpush.msra.mxu0 0.0
      %3582 = vmatpush.msra.mxu0 0.0
      %3583 = vmatpush.msra.mxu0 %v3450
      %3584 = vmatpush.msra.mxu0 %v3443
      %3585 = vmatmul.f32.gmra.mxu0 %v3467
      %v3586 = vpop.f32.mrf.mxu0
      %v3587 = vadd.f32 0.0, %v3586
      %3588 = vdwg.mxu0
      %3589 = vmatpush.msra.mxu0 0.0
      %3590 = vmatpush.msra.mxu0 0.0
      %3591 = vmatpush.msra.mxu0 0.0
      %3592 = vmatpush.msra.mxu0 0.0
      %3593 = vmatpush.msra.mxu0 0.0
      %3594 = vmatpush.msra.mxu0 0.0
      %3595 = vmatpush.msra.mxu0 0.0
      %3596 = vmatpush.msra.mxu0 0.0
      %3597 = vmatpush.msra.mxu0 0.0
      %3598 = vmatpush.msra.mxu0 0.0
      %3599 = vmatpush.msra.mxu0 0.0
      %3600 = vmatpush.msra.mxu0 0.0
      %3601 = vmatpush.msra.mxu0 0.0
      %3602 = vmatpush.msra.mxu0 0.0
      %3603 = vmatpush.msra.mxu0 %v3451
      %3604 = vmatpush.msra.mxu0 %v3444
      %3605 = vmatmul.f32.gmra.mxu0 %v3467
      %v3606 = vpop.f32.mrf.mxu0
      %v3607 = vadd.f32 0.0, %v3606
      %3608 = vdwg.mxu0
      %v3609 = vadd.f32 %v3397, %v3487
      %v3610 = vadd.f32 %v3398, %v3507
      %v3611 = vadd.f32 %v3399, %v3527
      %v3612 = vadd.f32 %v3400, %v3547
      %v3613 = vadd.f32 %v3401, %v3567
      %v3614 = vadd.f32 %v3402, %v3587
      %v3615 = vadd.f32 %v3403, %v3607
      %v3616 = vld [vmem:[%s6] sm:$0x7]
      %3618 = vset.pattern.permute.xlu0 0
      %3619 = vperm.xlu0 %3618, %v3616
      %v3620 = vpop.permute.xlu0 %3619
      %v3622 = vadd.f32 %v3609, %v3620
      %v3623 = vadd.f32 %v3610, %v3620
      %v3624 = vadd.f32 %v3611, %v3620
      %v3625 = vadd.f32 %v3612, %v3620
      %v3626 = vadd.f32 %v3613, %v3620
      %v3627 = vadd.f32 %v3614, %v3620
      %v3628 = vadd.f32 %v3615, %v3620
      %v3629 = vtanh.pop %v3622
      %v3630 = vtanh.pop %v3623
      %v3631 = vtanh.pop %v3624
      %v3632 = vtanh.pop %v3625
      %v3633 = vtanh.pop %v3626
      %v3634 = vtanh.pop %v3627
      %v3635 = vtanh.pop %v3628
      %vm3636 = vcmask 223232
      %3637 = vst.msk [vmem:[%s278] sm:$0x7] %vm3636, %v3629
      %3639 = vrot.lane.b32.xlu0 %v3629, 126
      %v3640 = vpop.permute.xlu0 %3639
      %vm3642 = vcmask 452832
      %3643 = vst.msk [vmem:[%s278] sm:$0x7] %vm3642, %v3640
      %3644 = vrot.lane.b32.xlu0 %v3629, 124
      %v3645 = vpop.permute.xlu0 %3644
      %vm3647 = vcmask 682432
      %3648 = vst.msk [vmem:[%s278] sm:$0x7] %vm3647, %v3645
      %3649 = vrot.lane.b32.xlu0 %v3629, 122
      %v3650 = vpop.permute.xlu0 %3649
      %vm3652 = vcmask 912032
      %3653 = vst.msk [vmem:[%s278] sm:$0x7] %vm3652, %v3650
      %v3655 = vrot.slane %v3630, 4
      %vm3656 = vcmask 1043456
      %v3657 = vsel %vm3656, %v3629, %v3655
      %3658 = vrot.lane.b32.xlu0 %v3657, 120
      %v3659 = vpop.permute.xlu0 %3658
      %v3660 = vrot.slane %v3659, 4
      %vm3661 = vcmask 982016
      %v3662 = vsel %vm3661, %v3659, %v3660
      %vm3664 = vcmask 1043328
      %vm3665 = vcmask 96260
      %vm3666 = vmor %vm3665, %vm3664
      %3667 = vst.msk [vmem:[%s278] sm:$0x77] %vm3666, %v3662
      %3668 = vrot.lane.b32.xlu0 %v3630, 118
      %v3669 = vpop.permute.xlu0 %3668
      %vm3671 = vcmask 321632
      %3672 = vst.msk [vmem:[%s278 + $0x4] sm:$0x7] %vm3671, %v3669
      %3673 = vrot.lane.b32.xlu0 %v3630, 116
      %v3674 = vpop.permute.xlu0 %3673
      %vm3676 = vcmask 551232
      %3677 = vst.msk [vmem:[%s278 + $0x4] sm:$0x7] %vm3676, %v3674
      %3678 = vrot.lane.b32.xlu0 %v3630, 114
      %v3679 = vpop.permute.xlu0 %3678
      %vm3681 = vcmask 780832
      %3682 = vst.msk [vmem:[%s278 + $0x4] sm:$0x7] %vm3681, %v3679
      %v3684 = vrot.slane %v3631, 4
      %v3685 = vsel %vm3656, %v3630, %v3684
      %3686 = vrot.lane.b32.xlu0 %v3685, 112
      %v3687 = vpop.permute.xlu0 %3686
      %v3688 = vrot.slane %v3687, 4
      %v3689 = vsel %vm628, %v3687, %v3688
      %vm3691 = vcmask 1010432
      %3692 = vst.msk [vmem:[%s278 + $0x4] sm:$0x7] %vm3691, %v3689
      %3693 = vrot.lane.b32.xlu0 %v3631, 110
      %v3694 = vpop.permute.xlu0 %3693
      %v3695 = vrot.slane %v3694, 4
      %v3696 = vsel %vm802, %v3695, %v3694
      %vm3698 = vcmask 1043424
      %vm3699 = vcmask 194564
      %vm3700 = vmor %vm3699, %vm3698
      %3701 = vst.msk [vmem:[%s278 + $0x4] sm:$0x77] %vm3700, %v3696
      %3702 = vrot.lane.b32.xlu0 %v3631, 108
      %v3703 = vpop.permute.xlu0 %3702
      %vm3705 = vcmask 420032
      %3706 = vst.msk [vmem:[%s278 + $0x8] sm:$0x7] %vm3705, %v3703
      %3707 = vrot.lane.b32.xlu0 %v3631, 106
      %v3708 = vpop.permute.xlu0 %3707
      %vm3710 = vcmask 649632
      %3711 = vst.msk [vmem:[%s278 + $0x8] sm:$0x7] %vm3710, %v3708
      %v3713 = vrot.slane %v3632, 4
      %v3714 = vsel %vm3656, %v3631, %v3713
      %3715 = vrot.lane.b32.xlu0 %v3714, 104
      %v3716 = vpop.permute.xlu0 %3715
      %v3717 = vrot.slane %v3716, 4
      %vm3718 = vcmask 850944
      %v3719 = vsel %vm3718, %v3716, %v3717
      %vm3721 = vcmask 879232
      %3722 = vst.msk [vmem:[%s278 + $0x8] sm:$0x7] %vm3721, %v3719
      %3723 = vrot.lane.b32.xlu0 %v3632, 102
      %v3724 = vpop.permute.xlu0 %3723
      %v3725 = vrot.slane %v3724, 4
      %vm3726 = vcmask 834560
      %v3727 = vsel %vm3726, %v3725, %v3724
      %vm3729 = vcmask 1043296
      %vm3730 = vcmask 63492
      %vm3731 = vmor %vm3730, %vm3729
      %3732 = vst.msk [vmem:[%s278 + $0x8] sm:$0x77] %vm3731, %v3727
      %3733 = vrot.lane.b32.xlu0 %v3632, 100
      %v3734 = vpop.permute.xlu0 %3733
      %vm3736 = vcmask 288832
      %3737 = vst.msk [vmem:[%s278 + $0xc] sm:$0x7] %vm3736, %v3734
      %3738 = vrot.lane.b32.xlu0 %v3632, 98
      %v3739 = vpop.permute.xlu0 %3738
      %vm3741 = vcmask 518432
      %3742 = vst.msk [vmem:[%s278 + $0xc] sm:$0x7] %vm3741, %v3739
      %3743 = vrot.lane.b32.xlu0 %v3632, 96
      %v3744 = vpop.permute.xlu0 %3743
      %vm3746 = vcmask 748032
      %3747 = vst.msk [vmem:[%s278 + $0xc] sm:$0x7] %vm3746, %v3744
      %v3749 = vrot.slane %v3633, 4
      %v3750 = vsel %vm3656, %v3632, %v3749
      %3751 = vrot.lane.b32.xlu0 %v3750, 94
      %v3752 = vpop.permute.xlu0 %3751
      %v3753 = vrot.slane %v3752, 4
      %v3754 = vsel %vm1061, %v3752, %v3753
      %vm3756 = vcmask 977632
      %3757 = vst.msk [vmem:[%s278 + $0xc] sm:$0x7] %vm3756, %v3754
      %3758 = vrot.lane.b32.xlu0 %v3633, 92
      %v3759 = vpop.permute.xlu0 %3758
      %v3760 = vrot.slane %v3759, 4
      %vm3761 = vcmask 752640
      %v3762 = vsel %vm3761, %v3760, %v3759
      %vm3764 = vcmask 1043392
      %vm3765 = vcmask 161796
      %vm3766 = vmor %vm3765, %vm3764
      %3767 = vst.msk [vmem:[%s278 + $0xc] sm:$0x77] %vm3766, %v3762
      %3768 = vrot.lane.b32.xlu0 %v3633, 90
      %v3769 = vpop.permute.xlu0 %3768
      %vm3771 = vcmask 387232
      %3772 = vst.msk [vmem:[%s278 + $0x10] sm:$0x7] %vm3771, %v3769
      %3773 = vrot.lane.b32.xlu0 %v3633, 88
      %v3774 = vpop.permute.xlu0 %3773
      %vm3776 = vcmask 616832
      %3777 = vst.msk [vmem:[%s278 + $0x10] sm:$0x7] %vm3776, %v3774
      %v3779 = vrot.slane %v3634, 4
      %v3780 = vsel %vm3656, %v3633, %v3779
      %3781 = vrot.lane.b32.xlu0 %v3780, 86
      %v3782 = vpop.permute.xlu0 %3781
      %v3783 = vrot.slane %v3782, 4
      %vm3784 = vcmask 703488
      %v3785 = vsel %vm3784, %v3782, %v3783
      %vm3787 = vcmask 846432
      %3788 = vst.msk [vmem:[%s278 + $0x10] sm:$0x7] %vm3787, %v3785
      %3789 = vrot.lane.b32.xlu0 %v3634, 84
      %v3790 = vpop.permute.xlu0 %3789
      %v3791 = vrot.slane %v3790, 4
      %vm3792 = vcmask 687104
      %v3793 = vsel %vm3792, %v3791, %v3790
      %vm3795 = vcmask 1043264
      %vm3796 = vcmask 30724
      %vm3797 = vmor %vm3796, %vm3795
      %3798 = vst.msk [vmem:[%s278 + $0x10] sm:$0x77] %vm3797, %v3793
      %3799 = vrot.lane.b32.xlu0 %v3634, 82
      %v3800 = vpop.permute.xlu0 %3799
      %vm3802 = vcmask 256032
      %3803 = vst.msk [vmem:[%s278 + $0x14] sm:$0x7] %vm3802, %v3800
      %3804 = vrot.lane.b32.xlu0 %v3634, 80
      %v3805 = vpop.permute.xlu0 %3804
      %vm3807 = vcmask 485632
      %3808 = vst.msk [vmem:[%s278 + $0x14] sm:$0x7] %vm3807, %v3805
      %v3810 = vrot.slane %v3635, 4
      %v3811 = vsel %vm3656, %v3634, %v3810
      %3812 = vrot.lane.b32.xlu0 %v3811, 78
      %v3813 = vpop.permute.xlu0 %3812
      %v3814 = vrot.slane %v3813, 4
      %vm3815 = vcmask 637952
      %v3816 = vsel %vm3815, %v3813, %v3814
      %vm3818 = vcmask 715232
      %3819 = vst.msk [vmem:[%s278 + $0x14] sm:$0x7] %vm3818, %v3816
      %3820 = vrot.lane.b32.xlu0 %v3635, 76
      %v3821 = vpop.permute.xlu0 %3820
      %vm3823 = vcmask 944832
      %3824 = vst.msk [vmem:[%s278 + $0x14] sm:$0x7] %vm3823, %v3821
      %3825 = vrot.lane.b32.xlu0 %v3635, 74
      %v3826 = vpop.permute.xlu0 %3825
      %v3827 = vrot.slane %v3826, 4
      %vm3828 = vcmask 605184
      %v3829 = vsel %vm3828, %v3827, %v3826
      %vm3831 = vcmask 1043360
      %vm3832 = vcmask 129028
      %vm3833 = vmor %vm3832, %vm3831
      %3834 = vst.msk [vmem:[%s278 + $0x14] sm:$0x77] %vm3833, %v3829
      %p3835 = scmp.lt.s32.totalorder %s18, 1
      %s3836 = scalar_select %p3835, %s18, 1
      %s3837 = smul.addr %s3836, 7
      %s3838 = smul.addr %s3837, 4
      %s3839 = scalar_lea.vmem %s7, %s3838
      // Predicated region
      $region49: #{autoencoder_vgg1_forward.3} parent=47 // pred_check
        %p3840 = pneg %p188
      $region50: #{autoencoder_vgg1_forward.3} parent=47 // pred_check_branch
        %3842 = sbr.rel (%p3840) target = $region52
      $region51: #{autoencoder_vgg1_forward.3} parent=47 // pred_region
        _
      $region52: #{autoencoder_vgg1_forward.3} parent=47 // pred_fallthru
        _
    $region48: #{autoencoder_vgg1_forward.3} parent=5 // pred_fallthru
      _
    %p3843 = scmp.le.s32.totalorder 2, %s13
    // Predicated region
    $region53: #{autoencoder_vgg1_forward.3} parent=5 // pred_check
      %p3844 = pneg %p3843
    $region54: #{autoencoder_vgg1_forward.3} parent=5 // pred_check_branch
      %3846 = sbr.rel (%p3844) target = $region56
    $region55: #{autoencoder_vgg1_forward.3} parent=5 // pred_region
      %s3847 = ssub.s32 %s13, 2
      // Predicated region
      $region57: #{autoencoder_vgg1_forward.3} parent=55 // pred_check
        %p3848 = pneg %p194
      $region58: #{autoencoder_vgg1_forward.3} parent=55 // pred_check_branch
        %3850 = sbr.rel (%p3848) target = $region60
      $region59: #{autoencoder_vgg1_forward.3} parent=55 // pred_region
        %p3851 = scmp.lt.s32.totalorder %s19, 1
        %s3852 = scalar_select %p3851, %s19, 1
        %s3853 = smul.addr %s3852, 7
        %s3854 = smul.addr %s3853, 4
        %s3855 = scalar_lea.vmem %s7, %s3854
      $region60: #{autoencoder_vgg1_forward.3} parent=55 // pred_fallthru
        _
    $region56: #{autoencoder_vgg1_forward.3} parent=5 // pred_fallthru
      _
  $region6: #{autoencoder_vgg1_forward.3} parent=0 // loop_footer
    %s17 = sadd.s32 1, %s13
  $region7: #{autoencoder_vgg1_forward.3} parent=0 // loop_footer_branch
    %12 = sbr.rel target = $region3
  $region8: #{autoencoder_vgg1_forward.3} parent=0 // loop_exit
    _

// kernel: autoencoder_vgg1_forward.2
$region0: #{autoencoder_vgg1_forward.2}
  #allocation0 [shape = 'u32[]', space=smem, size = 0x4, offset = 0x4, fixed_abs, tag = 'smem constant byte address 0x4 - core index']
  #allocation1 [shape = 'u32[72,128]{1,0:T(1,128)}', space=vmem, size = 0x9000, scoped, tag = 'internal scratch']
  %s0 = inlined_call_operand.vmem [shape: f32[2,3,900], index: 0, kind: input, shape index: {}]
  %s1 = inlined_call_operand.vmem [shape: f32[16,27], index: 1, kind: input, shape index: {}]
  %s2 = inlined_call_operand.vmem [shape: f32[16,1], index: 2, kind: input, shape index: {}]
  %s3 = inlined_call_operand.hbm [shape: f32[807,256], index: 3, kind: input, shape index: {}]
  %s4 = inlined_call_operand.vmem [shape: f32[32,144], index: 4, kind: input, shape index: {}]
  %s5 = inlined_call_operand.vmem [shape: f32[32,1], index: 5, kind: input, shape index: {}]
  %s6 = inlined_call_operand.hbm [shape: f32[49,32,64], index: 6, kind: input, shape index: {}]
  %s7 = inlined_call_operand.vmem [shape: f32[1,64], index: 7, kind: input, shape index: {}]
  %s8 = inlined_call_operand.vmem [shape: f32[64,1568], index: 8, kind: input, shape index: {}]
  %s9 = inlined_call_operand.vmem [shape: f32[1,1568], index: 9, kind: input, shape index: {}]
  %s10 = inlined_call_operand.hbm [shape: f32[2,1,64], index: 10, kind: output, shape index: {0}]
  %s11 = inlined_call_operand.vmem [shape: f32[2,1,1568], index: 11, kind: output, shape index: {1}]
  %12 = xla_tuple %s10, %s11
  %s13 = sld [smem:[#allocation0]]
  $region89: #{autoencoder_vgg1_forward.2} parent=0
    _
  %s15 = ssub.s32 1, %s13
  %s16 = scalar_select 0, %s15, %s13
  $region1: #{autoencoder_vgg1_forward.2} parent=0
    #allocation2 [shape = 'u8[827392]{0}', space=vmem, size = 0xca000, scoped, tag = 'input window, operand 3, single buffered']
    #allocation3 [shape = 's32[2]{0}', space=sflag, size = 0x8, scoped, tag = 'scoped memory for autoencoder_vgg1_forward.2']
    #allocation4 [shape = 's32[2]{0}', space=sflag, size = 0x8, scoped, tag = 'scoped memory for autoencoder_vgg1_forward.2']
    #allocation5 [shape = 'u8[802816]{0}', space=vmem, size = 0xc4000, scoped, tag = 'input window, operand 6, single buffered']
    #allocation6 [shape = 's32[1]{0}', space=sflag, size = 0x4, scoped, tag = 'scoped memory for autoencoder_vgg1_forward.2']
    #allocation7 [shape = 'u8[1024]{0}', space=vmem, size = 0x400, scoped, tag = 'output window, operand 0']
    %17 = vsyncpa [#allocation3], 0
    %18 = vsyncpa [#allocation6], 0
    %19 = vsyncpa [#allocation4], 0
    %s20 = scalar_lea.sflag [#allocation4], 1
    %21 = vsyncpa %s20, 0
    loop: start=0, step=1, limit=4
    $region2: #{autoencoder_vgg1_forward.2} parent=1 // loop_pre_header
      _
    $region3: #{autoencoder_vgg1_forward.2} parent=1 // loop_header
      %s23 = sphi 0, %s27
      %p24 = scmp.ge.s32.totalorder %s23, 4
      %s33 = sphi 0, %s35
      %s36 = sphi 0, %s33
      %s37 = sphi 0, %s36
      %s53 = sphi 0, %s37
      %s57 = sphi 0, %s57
      %s59 = sphi 0, %s57
      %s60 = sphi 0, %s59
      %s74 = sphi 0, %s60
      %s78 = sphi 0, %s78
      %s80 = sphi 0, %s78
      %s81 = sphi 0, %s80
      %s95 = sphi 0, %s81
      %s99 = sphi 0, %s99
      %s101 = sphi 0, %s99
      %s102 = sphi 0, %s101
      %s116 = sphi 0, %s102
      %s120 = sphi 0, %s120
      %s122 = sphi 0, %s120
      %s123 = sphi 0, %s122
      %s137 = sphi 0, %s123
      %s141 = sphi 0, %s141
      %s143 = sphi 0, %s141
      %s144 = sphi 0, %s143
      %s158 = sphi 0, %s144
      %s162 = sphi 0, %s162
      %s164 = sphi 0, %s162
      %s165 = sphi 0, %s164
      %s179 = sphi 0, %s165
      %s183 = sphi 0, %s183
      %s185 = sphi 0, %s183
      %s186 = sphi 0, %s185
      %s200 = sphi 0, %s186
      %s204 = sphi 0, %s204
      %s206 = sphi 0, %s204
      %s207 = sphi 0, %s206
      %s221 = sphi 0, %s207
      %s225 = sphi 0, %s225
      %s227 = sphi 0, %s225
      %s228 = sphi 0, %s227
      %s242 = sphi 0, %s228
      %s248 = sphi 0, %s250
      %s251 = sphi 0, %s248
      %s252 = sphi 0, %s251
      %s268 = sphi 0, %s252
      %s274 = sphi 0, %s276
      %s277 = sphi 0, %s274
      %s278 = sphi 0, %s277
      %s294 = sphi 0, %s278
    $region4: #{autoencoder_vgg1_forward.2} parent=1 // loop_header_branch
      %26 = sbr.rel (%p24) target = $region8
    $region5: #{autoencoder_vgg1_forward.2} parent=1 // loop_body
      %s28 = ssub.s32 %s23, 1
      %s29 = ssub.s32 %s23, 2
      %s30 = sadd.s32 %s23, 1
      %s31 = ssub.s32 %s23, %s30
      %p32 = scmp.eq.s32.totalorder %s31, 0
      %s34 = sadd.s32 %s33, 1
      %s35 = scalar_select %p32, %s33, %s34
      %p38 = pneg %p32
      %p39 = scmp.eq.s32.totalorder %s23, 1
      %p40 = por %p38, %p39
      %p41 = scmp.ne.s32.totalorder %s33, %s36
      %p42 = scmp.eq.s32.totalorder %s23, 0
      %p43 = por %p41, %p42
      %p44 = scmp.ne.s32.totalorder %s33, %s36
      %p45 = scmp.eq.s32.totalorder %s28, 1
      %p46 = por %p44, %p45
      %p47 = scmp.ne.s32.totalorder %s36, %s37
      %p48 = scmp.eq.s32.totalorder %s28, 0
      %p49 = por %p47, %p48
      %p50 = scmp.ne.s32.totalorder %s36, %s37
      %p51 = scmp.eq.s32.totalorder %s29, 1
      %p52 = por %p50, %p51
      %p54 = scmp.ne.s32.totalorder %s37, %s53
      %p55 = scmp.eq.s32.totalorder %s29, 0
      %p56 = por %p54, %p55
      %s58 = sadd.s32 %s57, 1
      %p61 = scmp.eq.s32.totalorder %s23, 1
      %p62 = scmp.ne.s32.totalorder %s57, %s59
      %p63 = scmp.eq.s32.totalorder %s23, 0
      %p64 = por %p62, %p63
      %p65 = scmp.ne.s32.totalorder %s57, %s59
      %p66 = scmp.eq.s32.totalorder %s28, 1
      %p67 = por %p65, %p66
      %p68 = scmp.ne.s32.totalorder %s59, %s60
      %p69 = scmp.eq.s32.totalorder %s28, 0
      %p70 = por %p68, %p69
      %p71 = scmp.ne.s32.totalorder %s59, %s60
      %p72 = scmp.eq.s32.totalorder %s29, 1
      %p73 = por %p71, %p72
      %p75 = scmp.ne.s32.totalorder %s60, %s74
      %p76 = scmp.eq.s32.totalorder %s29, 0
      %p77 = por %p75, %p76
      %s79 = sadd.s32 %s78, 1
      %p82 = scmp.eq.s32.totalorder %s23, 1
      %p83 = scmp.ne.s32.totalorder %s78, %s80
      %p84 = scmp.eq.s32.totalorder %s23, 0
      %p85 = por %p83, %p84
      %p86 = scmp.ne.s32.totalorder %s78, %s80
      %p87 = scmp.eq.s32.totalorder %s28, 1
      %p88 = por %p86, %p87
      %p89 = scmp.ne.s32.totalorder %s80, %s81
      %p90 = scmp.eq.s32.totalorder %s28, 0
      %p91 = por %p89, %p90
      %p92 = scmp.ne.s32.totalorder %s80, %s81
      %p93 = scmp.eq.s32.totalorder %s29, 1
      %p94 = por %p92, %p93
      %p96 = scmp.ne.s32.totalorder %s81, %s95
      %p97 = scmp.eq.s32.totalorder %s29, 0
      %p98 = por %p96, %p97
      %s100 = sadd.s32 %s99, 1
      %p103 = scmp.eq.s32.totalorder %s23, 1
      %p104 = scmp.ne.s32.totalorder %s99, %s101
      %p105 = scmp.eq.s32.totalorder %s23, 0
      %p106 = por %p104, %p105
      %p107 = scmp.ne.s32.totalorder %s99, %s101
      %p108 = scmp.eq.s32.totalorder %s28, 1
      %p109 = por %p107, %p108
      %p110 = scmp.ne.s32.totalorder %s101, %s102
      %p111 = scmp.eq.s32.totalorder %s28, 0
      %p112 = por %p110, %p111
      %p113 = scmp.ne.s32.totalorder %s101, %s102
      %p114 = scmp.eq.s32.totalorder %s29, 1
      %p115 = por %p113, %p114
      %p117 = scmp.ne.s32.totalorder %s102, %s116
      %p118 = scmp.eq.s32.totalorder %s29, 0
      %p119 = por %p117, %p118
      %s121 = sadd.s32 %s120, 1
      %p124 = scmp.eq.s32.totalorder %s23, 1
      %p125 = scmp.ne.s32.totalorder %s120, %s122
      %p126 = scmp.eq.s32.totalorder %s23, 0
      %p127 = por %p125, %p126
      %p128 = scmp.ne.s32.totalorder %s120, %s122
      %p129 = scmp.eq.s32.totalorder %s28, 1
      %p130 = por %p128, %p129
      %p131 = scmp.ne.s32.totalorder %s122, %s123
      %p132 = scmp.eq.s32.totalorder %s28, 0
      %p133 = por %p131, %p132
      %p134 = scmp.ne.s32.totalorder %s122, %s123
      %p135 = scmp.eq.s32.totalorder %s29, 1
      %p136 = por %p134, %p135
      %p138 = scmp.ne.s32.totalorder %s123, %s137
      %p139 = scmp.eq.s32.totalorder %s29, 0
      %p140 = por %p138, %p139
      %s142 = sadd.s32 %s141, 1
      %p145 = scmp.eq.s32.totalorder %s23, 1
      %p146 = scmp.ne.s32.totalorder %s141, %s143
      %p147 = scmp.eq.s32.totalorder %s23, 0
      %p148 = por %p146, %p147
      %p149 = scmp.ne.s32.totalorder %s141, %s143
      %p150 = scmp.eq.s32.totalorder %s28, 1
      %p151 = por %p149, %p150
      %p152 = scmp.ne.s32.totalorder %s143, %s144
      %p153 = scmp.eq.s32.totalorder %s28, 0
      %p154 = por %p152, %p153
      %p155 = scmp.ne.s32.totalorder %s143, %s144
      %p156 = scmp.eq.s32.totalorder %s29, 1
      %p157 = por %p155, %p156
      %p159 = scmp.ne.s32.totalorder %s144, %s158
      %p160 = scmp.eq.s32.totalorder %s29, 0
      %p161 = por %p159, %p160
      %s163 = sadd.s32 %s162, 1
      %p166 = scmp.eq.s32.totalorder %s23, 1
      %p167 = scmp.ne.s32.totalorder %s162, %s164
      %p168 = scmp.eq.s32.totalorder %s23, 0
      %p169 = por %p167, %p168
      %p170 = scmp.ne.s32.totalorder %s162, %s164
      %p171 = scmp.eq.s32.totalorder %s28, 1
      %p172 = por %p170, %p171
      %p173 = scmp.ne.s32.totalorder %s164, %s165
      %p174 = scmp.eq.s32.totalorder %s28, 0
      %p175 = por %p173, %p174
      %p176 = scmp.ne.s32.totalorder %s164, %s165
      %p177 = scmp.eq.s32.totalorder %s29, 1
      %p178 = por %p176, %p177
      %p180 = scmp.ne.s32.totalorder %s165, %s179
      %p181 = scmp.eq.s32.totalorder %s29, 0
      %p182 = por %p180, %p181
      %s184 = sadd.s32 %s183, 1
      %p187 = scmp.eq.s32.totalorder %s23, 1
      %p188 = scmp.ne.s32.totalorder %s183, %s185
      %p189 = scmp.eq.s32.totalorder %s23, 0
      %p190 = por %p188, %p189
      %p191 = scmp.ne.s32.totalorder %s183, %s185
      %p192 = scmp.eq.s32.totalorder %s28, 1
      %p193 = por %p191, %p192
      %p194 = scmp.ne.s32.totalorder %s185, %s186
      %p195 = scmp.eq.s32.totalorder %s28, 0
      %p196 = por %p194, %p195
      %p197 = scmp.ne.s32.totalorder %s185, %s186
      %p198 = scmp.eq.s32.totalorder %s29, 1
      %p199 = por %p197, %p198
      %p201 = scmp.ne.s32.totalorder %s186, %s200
      %p202 = scmp.eq.s32.totalorder %s29, 0
      %p203 = por %p201, %p202
      %s205 = sadd.s32 %s204, 1
      %p208 = scmp.eq.s32.totalorder %s23, 1
      %p209 = scmp.ne.s32.totalorder %s204, %s206
      %p210 = scmp.eq.s32.totalorder %s23, 0
      %p211 = por %p209, %p210
      %p212 = scmp.ne.s32.totalorder %s204, %s206
      %p213 = scmp.eq.s32.totalorder %s28, 1
      %p214 = por %p212, %p213
      %p215 = scmp.ne.s32.totalorder %s206, %s207
      %p216 = scmp.eq.s32.totalorder %s28, 0
      %p217 = por %p215, %p216
      %p218 = scmp.ne.s32.totalorder %s206, %s207
      %p219 = scmp.eq.s32.totalorder %s29, 1
      %p220 = por %p218, %p219
      %p222 = scmp.ne.s32.totalorder %s207, %s221
      %p223 = scmp.eq.s32.totalorder %s29, 0
      %p224 = por %p222, %p223
      %s226 = sadd.s32 %s225, 1
      %p229 = scmp.eq.s32.totalorder %s23, 1
      %p230 = scmp.ne.s32.totalorder %s225, %s227
      %p231 = scmp.eq.s32.totalorder %s23, 0
      %p232 = por %p230, %p231
      %p233 = scmp.ne.s32.totalorder %s225, %s227
      %p234 = scmp.eq.s32.totalorder %s28, 1
      %p235 = por %p233, %p234
      %p236 = scmp.ne.s32.totalorder %s227, %s228
      %p237 = scmp.eq.s32.totalorder %s28, 0
      %p238 = por %p236, %p237
      %p239 = scmp.ne.s32.totalorder %s227, %s228
      %p240 = scmp.eq.s32.totalorder %s29, 1
      %p241 = por %p239, %p240
      %p243 = scmp.ne.s32.totalorder %s228, %s242
      %p244 = scmp.eq.s32.totalorder %s29, 0
      %p245 = por %p243, %p244
      %s246 = ssub.s32 %s23, %s30
      %p247 = scmp.eq.s32.totalorder %s246, 0
      %s249 = sadd.s32 %s248, 1
      %s250 = scalar_select %p247, %s248, %s249
      %p253 = pneg %p247
      %p254 = scmp.eq.s32.totalorder %s23, 1
      %p255 = por %p253, %p254
      %p256 = scmp.ne.s32.totalorder %s248, %s251
      %p257 = scmp.eq.s32.totalorder %s23, 0
      %p258 = por %p256, %p257
      %p259 = scmp.ne.s32.totalorder %s248, %s251
      %p260 = scmp.eq.s32.totalorder %s28, 1
      %p261 = por %p259, %p260
      %p262 = scmp.ne.s32.totalorder %s251, %s252
      %p263 = scmp.eq.s32.totalorder %s28, 0
      %p264 = por %p262, %p263
      %p265 = scmp.ne.s32.totalorder %s251, %s252
      %p266 = scmp.eq.s32.totalorder %s29, 1
      %p267 = por %p265, %p266
      %p269 = scmp.ne.s32.totalorder %s252, %s268
      %p270 = scmp.eq.s32.totalorder %s29, 0
      %p271 = por %p269, %p270
      %s272 = ssub.s32 %s23, %s30
      %p273 = scmp.eq.s32.totalorder %s272, 0
      %s275 = sadd.s32 %s274, 1
      %s276 = scalar_select %p273, %s274, %s275
      %p279 = pneg %p273
      %p280 = scmp.eq.s32.totalorder %s23, 1
      %p281 = por %p279, %p280
      %p282 = scmp.ne.s32.totalorder %s274, %s277
      %p283 = scmp.eq.s32.totalorder %s23, 0
      %p284 = por %p282, %p283
      %p285 = scmp.ne.s32.totalorder %s274, %s277
      %p286 = scmp.eq.s32.totalorder %s28, 1
      %p287 = por %p285, %p286
      %p288 = scmp.ne.s32.totalorder %s277, %s278
      %p289 = scmp.eq.s32.totalorder %s28, 0
      %p290 = por %p288, %p289
      %p291 = scmp.ne.s32.totalorder %s277, %s278
      %p292 = scmp.eq.s32.totalorder %s29, 1
      %p293 = por %p291, %p292
      %p295 = scmp.ne.s32.totalorder %s278, %s294
      %p296 = scmp.eq.s32.totalorder %s29, 0
      %p297 = por %p295, %p296
      %p298 = scmp.le.s32.totalorder 1, %s23
      %p299 = scmp.lt.s32.totalorder %s23, 3
      %p300 = pnand %p298, %p299
      %p301 = pneg %p300
      // Predicated region
      $region9: #{autoencoder_vgg1_forward.2} parent=5 // pred_check
        _
      $region10: #{autoencoder_vgg1_forward.2} parent=5 // pred_check_branch
        %303 = sbr.rel (%p300) target = $region12
      $region11: #{autoencoder_vgg1_forward.2} parent=5 // pred_region
        %s304 = ssub.s32 %s23, 1
        // Predicated region
        $region13: #{autoencoder_vgg1_forward.2} parent=11 // pred_check
          %p305 = pneg %p70
        $region14: #{autoencoder_vgg1_forward.2} parent=11 // pred_check_branch
          %307 = sbr.rel (%p305) target = $region16
        $region15: #{autoencoder_vgg1_forward.2} parent=11 // pred_region
          _
        $region16: #{autoencoder_vgg1_forward.2} parent=11 // pred_fallthru
          _
        // Predicated region
        $region17: #{autoencoder_vgg1_forward.2} parent=11 // pred_check
          %p308 = pneg %p91
        $region18: #{autoencoder_vgg1_forward.2} parent=11 // pred_check_branch
          %310 = sbr.rel (%p308) target = $region20
        $region19: #{autoencoder_vgg1_forward.2} parent=11 // pred_region
          _
        $region20: #{autoencoder_vgg1_forward.2} parent=11 // pred_fallthru
          _
        // Predicated region
        $region21: #{autoencoder_vgg1_forward.2} parent=11 // pred_check
          %p311 = pneg %p112
        $region22: #{autoencoder_vgg1_forward.2} parent=11 // pred_check_branch
          %313 = sbr.rel (%p311) target = $region24
        $region23: #{autoencoder_vgg1_forward.2} parent=11 // pred_region
          %315 = vsyncadd [#allocation3], 0
          %s316 = sshll.u32 %s3, 4
          %s317 = int_to_ptr.hbm [resolvable:$true] %s316
          %s318 = sshll.u32 [#allocation2], 4
          %s319 = int_to_ptr.vmem [resolvable:$true] %s318
          %324 = dma.hbm_to_vmem [thread:$0]  %s317, 25856, %s319, [#allocation3], 256, 256, 16
        $region24: #{autoencoder_vgg1_forward.2} parent=11 // pred_fallthru
          _
        // Predicated region
        $region25: #{autoencoder_vgg1_forward.2} parent=11 // pred_check
          %p325 = pneg %p133
        $region26: #{autoencoder_vgg1_forward.2} parent=11 // pred_check_branch
          %327 = sbr.rel (%p325) target = $region28
        $region27: #{autoencoder_vgg1_forward.2} parent=11 // pred_region
          _
        $region28: #{autoencoder_vgg1_forward.2} parent=11 // pred_fallthru
          _
        // Predicated region
        $region29: #{autoencoder_vgg1_forward.2} parent=11 // pred_check
          %p328 = pneg %p154
        $region30: #{autoencoder_vgg1_forward.2} parent=11 // pred_check_branch
          %330 = sbr.rel (%p328) target = $region32
        $region31: #{autoencoder_vgg1_forward.2} parent=11 // pred_region
          _
        $region32: #{autoencoder_vgg1_forward.2} parent=11 // pred_fallthru
          _
        // Predicated region
        $region33: #{autoencoder_vgg1_forward.2} parent=11 // pred_check
          %p331 = pneg %p175
        $region34: #{autoencoder_vgg1_forward.2} parent=11 // pred_check_branch
          %333 = sbr.rel (%p331) target = $region36
        $region35: #{autoencoder_vgg1_forward.2} parent=11 // pred_region
          %335 = vsyncadd [#allocation6], 0
          %s336 = sshll.u32 %s6, 4
          %s337 = int_to_ptr.hbm [resolvable:$true] %s336
          %s338 = sshll.u32 [#allocation5], 4
          %s339 = int_to_ptr.vmem [resolvable:$true] %s338
          %344 = dma.hbm_to_vmem [thread:$0]  %s337, 25088, %s339, [#allocation6], 128, 128, 8
        $region36: #{autoencoder_vgg1_forward.2} parent=11 // pred_fallthru
          _
        // Predicated region
        $region37: #{autoencoder_vgg1_forward.2} parent=11 // pred_check
          %p345 = pneg %p196
        $region38: #{autoencoder_vgg1_forward.2} parent=11 // pred_check_branch
          %347 = sbr.rel (%p345) target = $region40
        $region39: #{autoencoder_vgg1_forward.2} parent=11 // pred_region
          _
        $region40: #{autoencoder_vgg1_forward.2} parent=11 // pred_fallthru
          _
        // Predicated region
        $region41: #{autoencoder_vgg1_forward.2} parent=11 // pred_check
          %p348 = pneg %p217
        $region42: #{autoencoder_vgg1_forward.2} parent=11 // pred_check_branch
          %350 = sbr.rel (%p348) target = $region44
        $region43: #{autoencoder_vgg1_forward.2} parent=11 // pred_region
          _
        $region44: #{autoencoder_vgg1_forward.2} parent=11 // pred_fallthru
          _
        // Predicated region
        $region45: #{autoencoder_vgg1_forward.2} parent=11 // pred_check
          %p351 = pneg %p238
        $region46: #{autoencoder_vgg1_forward.2} parent=11 // pred_check_branch
          %353 = sbr.rel (%p351) target = $region48
        $region47: #{autoencoder_vgg1_forward.2} parent=11 // pred_region
          _
        $region48: #{autoencoder_vgg1_forward.2} parent=11 // pred_fallthru
          _
      $region12: #{autoencoder_vgg1_forward.2} parent=5 // pred_fallthru
        _
      %p354 = scmp.lt.s32.totalorder %s23, 2
      // Predicated region
      $region49: #{autoencoder_vgg1_forward.2} parent=5 // pred_check
        %p355 = pneg %p354
      $region50: #{autoencoder_vgg1_forward.2} parent=5 // pred_check_branch
        %357 = sbr.rel (%p355) target = $region52
      $region51: #{autoencoder_vgg1_forward.2} parent=5 // pred_region
        // Predicated region
        $region53: #{autoencoder_vgg1_forward.2} parent=51 // pred_check
          %p358 = pneg %p43
        $region54: #{autoencoder_vgg1_forward.2} parent=51 // pred_check_branch
          %360 = sbr.rel (%p358) target = $region56
        $region55: #{autoencoder_vgg1_forward.2} parent=51 // pred_region
          %p361 = scmp.lt.s32.totalorder %s23, 1
          %s362 = scalar_select %p361, %s23, 1
          %s363 = smul.addr %s362, 8
          %s364 = smul.addr %s363, 4
          %s365 = scalar_lea.vmem %s0, %s364
        $region56: #{autoencoder_vgg1_forward.2} parent=51 // pred_fallthru
          _
      $region52: #{autoencoder_vgg1_forward.2} parent=5 // pred_fallthru
        _
      %p366 = scmp.le.s32.totalorder 1, %s23
      %p367 = scmp.lt.s32.totalorder %s23, 3
      %p368 = pnand %p366, %p367
      %p369 = pneg %p368
      // Predicated region
      $region57: #{autoencoder_vgg1_forward.2} parent=5 // pred_check
        _
      $region58: #{autoencoder_vgg1_forward.2} parent=5 // pred_check_branch
        %371 = sbr.rel (%p368) target = $region60
      $region59: #{autoencoder_vgg1_forward.2} parent=5 // pred_region
        %s372 = ssub.s32 %s23, 1
        // Predicated region
        $region61: #{autoencoder_vgg1_forward.2} parent=59 // pred_check
          %p373 = pneg %p112
        $region62: #{autoencoder_vgg1_forward.2} parent=59 // pred_check_branch
          %375 = sbr.rel (%p373) target = $region64
        $region63: #{autoencoder_vgg1_forward.2} parent=59 // pred_region
          %377 = dma.done [#allocation3], 25856
        $region64: #{autoencoder_vgg1_forward.2} parent=59 // pred_fallthru
          _
        // Predicated region
        $region65: #{autoencoder_vgg1_forward.2} parent=59 // pred_check
          %p378 = pneg %p175
        $region66: #{autoencoder_vgg1_forward.2} parent=59 // pred_check_branch
          %380 = sbr.rel (%p378) target = $region68
        $region67: #{autoencoder_vgg1_forward.2} parent=59 // pred_region
          %382 = dma.done [#allocation6], 25088
        $region68: #{autoencoder_vgg1_forward.2} parent=59 // pred_fallthru
          _
        %p383 = scmp.lt.s32.totalorder %s28, 1
        %s384 = scalar_select %p383, %s28, 1
        %s385 = smul.addr %s384, 8
        %s386 = smul.addr %s385, 4
        %s387 = scalar_lea.vmem %s0, %s386
        %p388 = pneg %p49
        %p389 = pneg %p46
        %p390 = pneg %p70
        %p391 = pneg %p67
        %p392 = pneg %p91
        %p393 = pneg %p88
        %p394 = pneg %p112
        %p395 = pneg %p109
        %p396 = pneg %p133
        %p397 = pneg %p130
        %p398 = pneg %p154
        %p399 = pneg %p151
        %p400 = pneg %p175
        %p401 = pneg %p172
        %p402 = pneg %p196
        %p403 = pneg %p193
        %p404 = pneg %p217
        %p405 = pneg %p214
        %p406 = pneg %p238
        %p407 = pneg %p235
        %p408 = pneg %p264
        %p409 = pneg %p261
        %s410 = sand.u32 %s251, 1
        %s411 = scalar_lea.sflag [#allocation4], %s410
        %s412 = sand.u32 %s251, 1
        %s413 = scalar_lea.vmem [#allocation7], %s412
        %p414 = pneg %p290
        %p415 = pneg %p287
        %p416 = scmp.lt.s32.totalorder %s28, 1
        %s417 = scalar_select %p416, %s28, 1
        %s418 = smul.addr %s417, 13
        %s419 = scalar_lea.vmem %s11, %s418
        %p420 = scmp.lt.s32.totalorder %s28, 1
        %s421 = scalar_select %p420, %s28, 1
        %s422 = smul.addr %s421, 8
        %s423 = smul.addr %s422, 4
        %s424 = scalar_lea.vmem %s0, %s423
        %p425 = scmp.lt.s32.totalorder %s28, 1
        %s426 = scalar_select %p425, %s28, 1
        %s427 = smul.addr %s426, 13
        %s428 = scalar_lea.vmem %s11, %s427
        %v429 = vld [vmem:[%s424] sm:$0x77]
        %v430 = vld [vmem:[%s424 + $0x8] sm:$0x77]
        %v431 = vld [vmem:[%s424 + $0x10] sm:$0x77]
        %v432 = vld [vmem:[%s424 + $0x18] sm:$0x77]
        %v433 = vld [vmem:[%s1] sm:$0xff]
        %v434 = vld [vmem:[%s1 + $0x8] sm:$0xff]
        %437 = vrot.lane.b32.xlu0 %v433, 125
        %v438 = vpop.permute.xlu0 %437
        %439 = vrot.lane.b32.xlu0 %v434, 125
        %v440 = vpop.permute.xlu0 %439
        %445 = vst [vmem:[#allocation1] ss:$2 sm:$0xff] %v429
        %s446 = scalar_lea.vmem [#allocation1], 16
        %447 = vst [vmem:[%s446] ss:$2 sm:$0xff] %v430
        %s448 = scalar_lea.vmem [#allocation1], 32
        %449 = vst [vmem:[%s448] ss:$2 sm:$0xff] %v431
        %s450 = scalar_lea.vmem [#allocation1], 48
        %451 = vst [vmem:[%s450] ss:$2 sm:$0xff] %v432
        %v452 = vld.sshfl [vmem:[#allocation1] sm:$0xff pattern:$0x75316420]
        %v453 = vld.sshfl [vmem:[#allocation1 + $0x8] sm:$0xff pattern:$0x75316420]
        %v454 = vld.sshfl [vmem:[#allocation1 + $0x10] sm:$0xff pattern:$0x75316420]
        %v455 = vld.sshfl [vmem:[#allocation1 + $0x18] sm:$0xff pattern:$0x75316420]
        %v456 = vld.sshfl [vmem:[#allocation1 + $0x20] sm:$0xff pattern:$0x75316420]
        %v457 = vld.sshfl [vmem:[#allocation1 + $0x28] sm:$0xff pattern:$0x75316420]
        %v458 = vld.sshfl [vmem:[#allocation1 + $0x30] sm:$0xff pattern:$0x75316420]
        %459 = vrot.lane.b32.xlu0 %v452, 127
        %v460 = vpop.permute.xlu0 %459
        %461 = vrot.lane.b32.xlu0 %v453, 127
        %v462 = vpop.permute.xlu0 %461
        %463 = vrot.lane.b32.xlu0 %v454, 127
        %v464 = vpop.permute.xlu0 %463
        %465 = vrot.lane.b32.xlu0 %v455, 127
        %v466 = vpop.permute.xlu0 %465
        %467 = vrot.lane.b32.xlu0 %v456, 127
        %v468 = vpop.permute.xlu0 %467
        %469 = vrot.lane.b32.xlu0 %v457, 127
        %v470 = vpop.permute.xlu0 %469
        %471 = vrot.lane.b32.xlu0 %v458, 127
        %v472 = vpop.permute.xlu0 %471
        %vm473 = vcmask 1039360
        %v474 = vsel %vm473, %v460, %v462
        %v475 = vsel %vm473, %v462, %v464
        %v476 = vsel %vm473, %v464, %v466
        %v477 = vsel %vm473, %v466, %v468
        %v478 = vsel %vm473, %v468, %v470
        %v479 = vsel %vm473, %v470, %v472
        %vm480 = vcmask 23552
        %v481 = vsel %vm480, %v438, 0
        %v483 = vsel %vm480, %v440, 0
        %vm485 = vcmask 1042432
        %v486 = vsel %vm485, %v474, 0
        %v488 = vsel %vm485, %v475, 0
        %v490 = vsel %vm485, %v476, 0
        %v492 = vsel %vm485, %v477, 0
        %v494 = vsel %vm485, %v478, 0
        %v496 = vsel %vm485, %v479, 0
        %v498 = vsel %vm485, %v472, 0
        %500 = vmatpush.msra.mxu0 0.0
        %501 = vmatpush.msra.mxu0 0.0
        %502 = vmatpush.msra.mxu0 0.0
        %503 = vmatpush.msra.mxu0 0.0
        %504 = vmatpush.msra.mxu0 0.0
        %505 = vmatpush.msra.mxu0 0.0
        %506 = vmatpush.msra.mxu0 0.0
        %507 = vmatpush.msra.mxu0 0.0
        %508 = vmatpush.msra.mxu0 0.0
        %509 = vmatpush.msra.mxu0 0.0
        %510 = vmatpush.msra.mxu0 0.0
        %511 = vmatpush.msra.mxu0 0.0
        %512 = vmatpush.msra.mxu0 0.0
        %513 = vmatpush.msra.mxu0 0.0
        %514 = vmatpush.msra.mxu0 0.0
        %515 = vmatpush.msra.mxu0 %v486
        %516 = vmatmul.f32.gmra.mxu0 %v481
        %v517 = vpop.f32.mrf.mxu0
        %v518 = vadd.f32 0.0, %v517
        %519 = vmatmul.f32.gmra.mxu0 %v483
        %v520 = vpop.f32.mrf.mxu0
        %v521 = vadd.f32 0.0, %v520
        %522 = vdwg.mxu0
        %523 = vmatpush.msra.mxu0 0.0
        %524 = vmatpush.msra.mxu0 0.0
        %525 = vmatpush.msra.mxu0 0.0
        %526 = vmatpush.msra.mxu0 0.0
        %527 = vmatpush.msra.mxu0 0.0
        %528 = vmatpush.msra.mxu0 0.0
        %529 = vmatpush.msra.mxu0 0.0
        %530 = vmatpush.msra.mxu0 0.0
        %531 = vmatpush.msra.mxu0 0.0
        %532 = vmatpush.msra.mxu0 0.0
        %533 = vmatpush.msra.mxu0 0.0
        %534 = vmatpush.msra.mxu0 0.0
        %535 = vmatpush.msra.mxu0 0.0
        %536 = vmatpush.msra.mxu0 0.0
        %537 = vmatpush.msra.mxu0 0.0
        %538 = vmatpush.msra.mxu0 %v488
        %539 = vmatmul.f32.gmra.mxu0 %v481
        %v540 = vpop.f32.mrf.mxu0
        %v541 = vadd.f32 0.0, %v540
        %542 = vmatmul.f32.gmra.mxu0 %v483
        %v543 = vpop.f32.mrf.mxu0
        %v544 = vadd.f32 0.0, %v543
        %545 = vdwg.mxu0
        %546 = vmatpush.msra.mxu0 0.0
        %547 = vmatpush.msra.mxu0 0.0
        %548 = vmatpush.msra.mxu0 0.0
        %549 = vmatpush.msra.mxu0 0.0
        %550 = vmatpush.msra.mxu0 0.0
        %551 = vmatpush.msra.mxu0 0.0
        %552 = vmatpush.msra.mxu0 0.0
        %553 = vmatpush.msra.mxu0 0.0
        %554 = vmatpush.msra.mxu0 0.0
        %555 = vmatpush.msra.mxu0 0.0
        %556 = vmatpush.msra.mxu0 0.0
        %557 = vmatpush.msra.mxu0 0.0
        %558 = vmatpush.msra.mxu0 0.0
        %559 = vmatpush.msra.mxu0 0.0
        %560 = vmatpush.msra.mxu0 0.0
        %561 = vmatpush.msra.mxu0 %v490
        %562 = vmatmul.f32.gmra.mxu0 %v481
        %v563 = vpop.f32.mrf.mxu0
        %v564 = vadd.f32 0.0, %v563
        %565 = vmatmul.f32.gmra.mxu0 %v483
        %v566 = vpop.f32.mrf.mxu0
        %v567 = vadd.f32 0.0, %v566
        %568 = vdwg.mxu0
        %569 = vmatpush.msra.mxu0 0.0
        %570 = vmatpush.msra.mxu0 0.0
        %571 = vmatpush.msra.mxu0 0.0
        %572 = vmatpush.msra.mxu0 0.0
        %573 = vmatpush.msra.mxu0 0.0
        %574 = vmatpush.msra.mxu0 0.0
        %575 = vmatpush.msra.mxu0 0.0
        %576 = vmatpush.msra.mxu0 0.0
        %577 = vmatpush.msra.mxu0 0.0
        %578 = vmatpush.msra.mxu0 0.0
        %579 = vmatpush.msra.mxu0 0.0
        %580 = vmatpush.msra.mxu0 0.0
        %581 = vmatpush.msra.mxu0 0.0
        %582 = vmatpush.msra.mxu0 0.0
        %583 = vmatpush.msra.mxu0 0.0
        %584 = vmatpush.msra.mxu0 %v492
        %585 = vmatmul.f32.gmra.mxu0 %v481
        %v586 = vpop.f32.mrf.mxu0
        %v587 = vadd.f32 0.0, %v586
        %588 = vmatmul.f32.gmra.mxu0 %v483
        %v589 = vpop.f32.mrf.mxu0
        %v590 = vadd.f32 0.0, %v589
        %591 = vdwg.mxu0
        %592 = vmatpush.msra.mxu0 0.0
        %593 = vmatpush.msra.mxu0 0.0
        %594 = vmatpush.msra.mxu0 0.0
        %595 = vmatpush.msra.mxu0 0.0
        %596 = vmatpush.msra.mxu0 0.0
        %597 = vmatpush.msra.mxu0 0.0
        %598 = vmatpush.msra.mxu0 0.0
        %599 = vmatpush.msra.mxu0 0.0
        %600 = vmatpush.msra.mxu0 0.0
        %601 = vmatpush.msra.mxu0 0.0
        %602 = vmatpush.msra.mxu0 0.0
        %603 = vmatpush.msra.mxu0 0.0
        %604 = vmatpush.msra.mxu0 0.0
        %605 = vmatpush.msra.mxu0 0.0
        %606 = vmatpush.msra.mxu0 0.0
        %607 = vmatpush.msra.mxu0 %v494
        %608 = vmatmul.f32.gmra.mxu0 %v481
        %v609 = vpop.f32.mrf.mxu0
        %v610 = vadd.f32 0.0, %v609
        %611 = vmatmul.f32.gmra.mxu0 %v483
        %v612 = vpop.f32.mrf.mxu0
        %v613 = vadd.f32 0.0, %v612
        %614 = vdwg.mxu0
        %615 = vmatpush.msra.mxu0 0.0
        %616 = vmatpush.msra.mxu0 0.0
        %617 = vmatpush.msra.mxu0 0.0
        %618 = vmatpush.msra.mxu0 0.0
        %619 = vmatpush.msra.mxu0 0.0
        %620 = vmatpush.msra.mxu0 0.0
        %621 = vmatpush.msra.mxu0 0.0
        %622 = vmatpush.msra.mxu0 0.0
        %623 = vmatpush.msra.mxu0 0.0
        %624 = vmatpush.msra.mxu0 0.0
        %625 = vmatpush.msra.mxu0 0.0
        %626 = vmatpush.msra.mxu0 0.0
        %627 = vmatpush.msra.mxu0 0.0
        %628 = vmatpush.msra.mxu0 0.0
        %629 = vmatpush.msra.mxu0 0.0
        %630 = vmatpush.msra.mxu0 %v496
        %631 = vmatmul.f32.gmra.mxu0 %v481
        %v632 = vpop.f32.mrf.mxu0
        %v633 = vadd.f32 0.0, %v632
        %634 = vmatmul.f32.gmra.mxu0 %v483
        %v635 = vpop.f32.mrf.mxu0
        %v636 = vadd.f32 0.0, %v635
        %637 = vdwg.mxu0
        %638 = vmatpush.msra.mxu0 0.0
        %639 = vmatpush.msra.mxu0 0.0
        %640 = vmatpush.msra.mxu0 0.0
        %641 = vmatpush.msra.mxu0 0.0
        %642 = vmatpush.msra.mxu0 0.0
        %643 = vmatpush.msra.mxu0 0.0
        %644 = vmatpush.msra.mxu0 0.0
        %645 = vmatpush.msra.mxu0 0.0
        %646 = vmatpush.msra.mxu0 0.0
        %647 = vmatpush.msra.mxu0 0.0
        %648 = vmatpush.msra.mxu0 0.0
        %649 = vmatpush.msra.mxu0 0.0
        %650 = vmatpush.msra.mxu0 0.0
        %651 = vmatpush.msra.mxu0 0.0
        %652 = vmatpush.msra.mxu0 0.0
        %653 = vmatpush.msra.mxu0 %v498
        %654 = vmatmul.f32.gmra.mxu0 %v481
        %v655 = vpop.f32.mrf.mxu0
        %v656 = vadd.f32 0.0, %v655
        %657 = vmatmul.f32.gmra.mxu0 %v483
        %v658 = vpop.f32.mrf.mxu0
        %v659 = vadd.f32 0.0, %v658
        %660 = vdwg.mxu0
        %661 = vst [vmem:[#allocation1] ss:$2 sm:$0xff] %v429
        %s662 = scalar_lea.vmem [#allocation1], 16
        %663 = vst [vmem:[%s662] ss:$2 sm:$0xff] %v430
        %s664 = scalar_lea.vmem [#allocation1], 32
        %665 = vst [vmem:[%s664] ss:$2 sm:$0xff] %v431
        %s666 = scalar_lea.vmem [#allocation1], 48
        %667 = vst [vmem:[%s666] ss:$2 sm:$0xff] %v432
        %v668 = vld.sshfl [vmem:[#allocation1] sm:$0xff pattern:$0x75316420]
        %v669 = vld.sshfl [vmem:[#allocation1 + $0x8] sm:$0xff pattern:$0x75316420]
        %v670 = vld.sshfl [vmem:[#allocation1 + $0x10] sm:$0xff pattern:$0x75316420]
        %v671 = vld.sshfl [vmem:[#allocation1 + $0x18] sm:$0xff pattern:$0x75316420]
        %v672 = vld.sshfl [vmem:[#allocation1 + $0x20] sm:$0xff pattern:$0x75316420]
        %v673 = vld.sshfl [vmem:[#allocation1 + $0x28] sm:$0xff pattern:$0x75316420]
        %v674 = vld.sshfl [vmem:[#allocation1 + $0x30] sm:$0xff pattern:$0x75316420]
        %v675 = vsel %vm480, %v433, 0
        %v677 = vsel %vm480, %v434, 0
        %v679 = vsel %vm485, %v668, 0
        %v681 = vsel %vm485, %v669, 0
        %v683 = vsel %vm485, %v670, 0
        %v685 = vsel %vm485, %v671, 0
        %v687 = vsel %vm485, %v672, 0
        %v689 = vsel %vm485, %v673, 0
        %v691 = vsel %vm485, %v674, 0
        %693 = vmatpush.msra.mxu0 0.0
        %694 = vmatpush.msra.mxu0 0.0
        %695 = vmatpush.msra.mxu0 0.0
        %696 = vmatpush.msra.mxu0 0.0
        %697 = vmatpush.msra.mxu0 0.0
        %698 = vmatpush.msra.mxu0 0.0
        %699 = vmatpush.msra.mxu0 0.0
        %700 = vmatpush.msra.mxu0 0.0
        %701 = vmatpush.msra.mxu0 0.0
        %702 = vmatpush.msra.mxu0 0.0
        %703 = vmatpush.msra.mxu0 0.0
        %704 = vmatpush.msra.mxu0 0.0
        %705 = vmatpush.msra.mxu0 0.0
        %706 = vmatpush.msra.mxu0 0.0
        %707 = vmatpush.msra.mxu0 0.0
        %708 = vmatpush.msra.mxu0 %v679
        %709 = vmatmul.f32.gmra.mxu0 %v675
        %v710 = vpop.f32.mrf.mxu0
        %v711 = vadd.f32 %v518, %v710
        %712 = vmatmul.f32.gmra.mxu0 %v677
        %v713 = vpop.f32.mrf.mxu0
        %v714 = vadd.f32 %v521, %v713
        %715 = vdwg.mxu0
        %716 = vmatpush.msra.mxu0 0.0
        %717 = vmatpush.msra.mxu0 0.0
        %718 = vmatpush.msra.mxu0 0.0
        %719 = vmatpush.msra.mxu0 0.0
        %720 = vmatpush.msra.mxu0 0.0
        %721 = vmatpush.msra.mxu0 0.0
        %722 = vmatpush.msra.mxu0 0.0
        %723 = vmatpush.msra.mxu0 0.0
        %724 = vmatpush.msra.mxu0 0.0
        %725 = vmatpush.msra.mxu0 0.0
        %726 = vmatpush.msra.mxu0 0.0
        %727 = vmatpush.msra.mxu0 0.0
        %728 = vmatpush.msra.mxu0 0.0
        %729 = vmatpush.msra.mxu0 0.0
        %730 = vmatpush.msra.mxu0 0.0
        %731 = vmatpush.msra.mxu0 %v681
        %732 = vmatmul.f32.gmra.mxu0 %v675
        %v733 = vpop.f32.mrf.mxu0
        %v734 = vadd.f32 %v541, %v733
        %735 = vmatmul.f32.gmra.mxu0 %v677
        %v736 = vpop.f32.mrf.mxu0
        %v737 = vadd.f32 %v544, %v736
        %738 = vdwg.mxu0
        %739 = vmatpush.msra.mxu0 0.0
        %740 = vmatpush.msra.mxu0 0.0
        %741 = vmatpush.msra.mxu0 0.0
        %742 = vmatpush.msra.mxu0 0.0
        %743 = vmatpush.msra.mxu0 0.0
        %744 = vmatpush.msra.mxu0 0.0
        %745 = vmatpush.msra.mxu0 0.0
        %746 = vmatpush.msra.mxu0 0.0
        %747 = vmatpush.msra.mxu0 0.0
        %748 = vmatpush.msra.mxu0 0.0
        %749 = vmatpush.msra.mxu0 0.0
        %750 = vmatpush.msra.mxu0 0.0
        %751 = vmatpush.msra.mxu0 0.0
        %752 = vmatpush.msra.mxu0 0.0
        %753 = vmatpush.msra.mxu0 0.0
        %754 = vmatpush.msra.mxu0 %v683
        %755 = vmatmul.f32.gmra.mxu0 %v675
        %v756 = vpop.f32.mrf.mxu0
        %v757 = vadd.f32 %v564, %v756
        %758 = vmatmul.f32.gmra.mxu0 %v677
        %v759 = vpop.f32.mrf.mxu0
        %v760 = vadd.f32 %v567, %v759
        %761 = vdwg.mxu0
        %762 = vmatpush.msra.mxu0 0.0
        %763 = vmatpush.msra.mxu0 0.0
        %764 = vmatpush.msra.mxu0 0.0
        %765 = vmatpush.msra.mxu0 0.0
        %766 = vmatpush.msra.mxu0 0.0
        %767 = vmatpush.msra.mxu0 0.0
        %768 = vmatpush.msra.mxu0 0.0
        %769 = vmatpush.msra.mxu0 0.0
        %770 = vmatpush.msra.mxu0 0.0
        %771 = vmatpush.msra.mxu0 0.0
        %772 = vmatpush.msra.mxu0 0.0
        %773 = vmatpush.msra.mxu0 0.0
        %774 = vmatpush.msra.mxu0 0.0
        %775 = vmatpush.msra.mxu0 0.0
        %776 = vmatpush.msra.mxu0 0.0
        %777 = vmatpush.msra.mxu0 %v685
        %778 = vmatmul.f32.gmra.mxu0 %v675
        %v779 = vpop.f32.mrf.mxu0
        %v780 = vadd.f32 %v587, %v779
        %781 = vmatmul.f32.gmra.mxu0 %v677
        %v782 = vpop.f32.mrf.mxu0
        %v783 = vadd.f32 %v590, %v782
        %784 = vdwg.mxu0
        %785 = vmatpush.msra.mxu0 0.0
        %786 = vmatpush.msra.mxu0 0.0
        %787 = vmatpush.msra.mxu0 0.0
        %788 = vmatpush.msra.mxu0 0.0
        %789 = vmatpush.msra.mxu0 0.0
        %790 = vmatpush.msra.mxu0 0.0
        %791 = vmatpush.msra.mxu0 0.0
        %792 = vmatpush.msra.mxu0 0.0
        %793 = vmatpush.msra.mxu0 0.0
        %794 = vmatpush.msra.mxu0 0.0
        %795 = vmatpush.msra.mxu0 0.0
        %796 = vmatpush.msra.mxu0 0.0
        %797 = vmatpush.msra.mxu0 0.0
        %798 = vmatpush.msra.mxu0 0.0
        %799 = vmatpush.msra.mxu0 0.0
        %800 = vmatpush.msra.mxu0 %v687
        %801 = vmatmul.f32.gmra.mxu0 %v675
        %v802 = vpop.f32.mrf.mxu0
        %v803 = vadd.f32 %v610, %v802
        %804 = vmatmul.f32.gmra.mxu0 %v677
        %v805 = vpop.f32.mrf.mxu0
        %v806 = vadd.f32 %v613, %v805
        %807 = vdwg.mxu0
        %808 = vmatpush.msra.mxu0 0.0
        %809 = vmatpush.msra.mxu0 0.0
        %810 = vmatpush.msra.mxu0 0.0
        %811 = vmatpush.msra.mxu0 0.0
        %812 = vmatpush.msra.mxu0 0.0
        %813 = vmatpush.msra.mxu0 0.0
        %814 = vmatpush.msra.mxu0 0.0
        %815 = vmatpush.msra.mxu0 0.0
        %816 = vmatpush.msra.mxu0 0.0
        %817 = vmatpush.msra.mxu0 0.0
        %818 = vmatpush.msra.mxu0 0.0
        %819 = vmatpush.msra.mxu0 0.0
        %820 = vmatpush.msra.mxu0 0.0
        %821 = vmatpush.msra.mxu0 0.0
        %822 = vmatpush.msra.mxu0 0.0
        %823 = vmatpush.msra.mxu0 %v689
        %824 = vmatmul.f32.gmra.mxu0 %v675
        %v825 = vpop.f32.mrf.mxu0
        %v826 = vadd.f32 %v633, %v825
        %827 = vmatmul.f32.gmra.mxu0 %v677
        %v828 = vpop.f32.mrf.mxu0
        %v829 = vadd.f32 %v636, %v828
        %830 = vdwg.mxu0
        %831 = vmatpush.msra.mxu0 0.0
        %832 = vmatpush.msra.mxu0 0.0
        %833 = vmatpush.msra.mxu0 0.0
        %834 = vmatpush.msra.mxu0 0.0
        %835 = vmatpush.msra.mxu0 0.0
        %836 = vmatpush.msra.mxu0 0.0
        %837 = vmatpush.msra.mxu0 0.0
        %838 = vmatpush.msra.mxu0 0.0
        %839 = vmatpush.msra.mxu0 0.0
        %840 = vmatpush.msra.mxu0 0.0
        %841 = vmatpush.msra.mxu0 0.0
        %842 = vmatpush.msra.mxu0 0.0
        %843 = vmatpush.msra.mxu0 0.0
        %844 = vmatpush.msra.mxu0 0.0
        %845 = vmatpush.msra.mxu0 0.0
        %846 = vmatpush.msra.mxu0 %v691
        %847 = vmatmul.f32.gmra.mxu0 %v675
        %v848 = vpop.f32.mrf.mxu0
        %v849 = vadd.f32 %v656, %v848
        %850 = vmatmul.f32.gmra.mxu0 %v677
        %v851 = vpop.f32.mrf.mxu0
        %v852 = vadd.f32 %v659, %v851
        %853 = vdwg.mxu0
        %v854 = vld [vmem:[%s1] sm:$0xff]
        %v855 = vld [vmem:[%s1 + $0x8] sm:$0xff]
        %858 = vrot.lane.b32.xlu0 %v854, 122
        %v859 = vpop.permute.xlu0 %858
        %860 = vrot.lane.b32.xlu0 %v855, 122
        %v861 = vpop.permute.xlu0 %860
        %862 = vst [vmem:[#allocation1] ss:$2 sm:$0xff] %v429
        %s863 = scalar_lea.vmem [#allocation1], 16
        %864 = vst [vmem:[%s863] ss:$2 sm:$0xff] %v430
        %s865 = scalar_lea.vmem [#allocation1], 32
        %866 = vst [vmem:[%s865] ss:$2 sm:$0xff] %v431
        %s867 = scalar_lea.vmem [#allocation1], 48
        %868 = vst [vmem:[%s867] ss:$2 sm:$0xff] %v432
        %v869 = vld.sshfl [vmem:[#allocation1] sm:$0xff pattern:$0x75316420]
        %v870 = vld.sshfl [vmem:[#allocation1 + $0x8] sm:$0xff pattern:$0x75316420]
        %v871 = vld.sshfl [vmem:[#allocation1 + $0x10] sm:$0xff pattern:$0x75316420]
        %v872 = vld.sshfl [vmem:[#allocation1 + $0x18] sm:$0xff pattern:$0x75316420]
        %v873 = vld.sshfl [vmem:[#allocation1 + $0x20] sm:$0xff pattern:$0x75316420]
        %v874 = vld.sshfl [vmem:[#allocation1 + $0x28] sm:$0xff pattern:$0x75316420]
        %v875 = vld.sshfl [vmem:[#allocation1 + $0x30] sm:$0xff pattern:$0x75316420]
        %876 = vrot.lane.b32.xlu0 %v869, 126
        %v877 = vpop.permute.xlu0 %876
        %878 = vrot.lane.b32.xlu0 %v870, 126
        %v879 = vpop.permute.xlu0 %878
        %880 = vrot.lane.b32.xlu0 %v871, 126
        %v881 = vpop.permute.xlu0 %880
        %882 = vrot.lane.b32.xlu0 %v872, 126
        %v883 = vpop.permute.xlu0 %882
        %884 = vrot.lane.b32.xlu0 %v873, 126
        %v885 = vpop.permute.xlu0 %884
        %886 = vrot.lane.b32.xlu0 %v874, 126
        %v887 = vpop.permute.xlu0 %886
        %888 = vrot.lane.b32.xlu0 %v875, 126
        %v889 = vpop.permute.xlu0 %888
        %vm890 = vcmask 1031168
        %v891 = vsel %vm890, %v877, %v879
        %v892 = vsel %vm890, %v879, %v881
        %v893 = vsel %vm890, %v881, %v883
        %v894 = vsel %vm890, %v883, %v885
        %v895 = vsel %vm890, %v885, %v887
        %v896 = vsel %vm890, %v887, %v889
        %v897 = vsel %vm480, %v859, 0
        %v899 = vsel %vm480, %v861, 0
        %v901 = vsel %vm485, %v891, 0
        %v903 = vsel %vm485, %v892, 0
        %v905 = vsel %vm485, %v893, 0
        %v907 = vsel %vm485, %v894, 0
        %v909 = vsel %vm485, %v895, 0
        %v911 = vsel %vm485, %v896, 0
        %v913 = vsel %vm485, %v889, 0
        %915 = vmatpush.msra.mxu0 0.0
        %916 = vmatpush.msra.mxu0 0.0
        %917 = vmatpush.msra.mxu0 0.0
        %918 = vmatpush.msra.mxu0 0.0
        %919 = vmatpush.msra.mxu0 0.0
        %920 = vmatpush.msra.mxu0 0.0
        %921 = vmatpush.msra.mxu0 0.0
        %922 = vmatpush.msra.mxu0 0.0
        %923 = vmatpush.msra.mxu0 0.0
        %924 = vmatpush.msra.mxu0 0.0
        %925 = vmatpush.msra.mxu0 0.0
        %926 = vmatpush.msra.mxu0 0.0
        %927 = vmatpush.msra.mxu0 0.0
        %928 = vmatpush.msra.mxu0 0.0
        %929 = vmatpush.msra.mxu0 0.0
        %930 = vmatpush.msra.mxu0 %v901
        %931 = vmatmul.f32.gmra.mxu0 %v897
        %v932 = vpop.f32.mrf.mxu0
        %v933 = vadd.f32 0.0, %v932
        %934 = vmatmul.f32.gmra.mxu0 %v899
        %v935 = vpop.f32.mrf.mxu0
        %v936 = vadd.f32 0.0, %v935
        %937 = vdwg.mxu0
        %938 = vmatpush.msra.mxu0 0.0
        %939 = vmatpush.msra.mxu0 0.0
        %940 = vmatpush.msra.mxu0 0.0
        %941 = vmatpush.msra.mxu0 0.0
        %942 = vmatpush.msra.mxu0 0.0
        %943 = vmatpush.msra.mxu0 0.0
        %944 = vmatpush.msra.mxu0 0.0
        %945 = vmatpush.msra.mxu0 0.0
        %946 = vmatpush.msra.mxu0 0.0
        %947 = vmatpush.msra.mxu0 0.0
        %948 = vmatpush.msra.mxu0 0.0
        %949 = vmatpush.msra.mxu0 0.0
        %950 = vmatpush.msra.mxu0 0.0
        %951 = vmatpush.msra.mxu0 0.0
        %952 = vmatpush.msra.mxu0 0.0
        %953 = vmatpush.msra.mxu0 %v903
        %954 = vmatmul.f32.gmra.mxu0 %v897
        %v955 = vpop.f32.mrf.mxu0
        %v956 = vadd.f32 0.0, %v955
        %957 = vmatmul.f32.gmra.mxu0 %v899
        %v958 = vpop.f32.mrf.mxu0
        %v959 = vadd.f32 0.0, %v958
        %960 = vdwg.mxu0
        %961 = vmatpush.msra.mxu0 0.0
        %962 = vmatpush.msra.mxu0 0.0
        %963 = vmatpush.msra.mxu0 0.0
        %964 = vmatpush.msra.mxu0 0.0
        %965 = vmatpush.msra.mxu0 0.0
        %966 = vmatpush.msra.mxu0 0.0
        %967 = vmatpush.msra.mxu0 0.0
        %968 = vmatpush.msra.mxu0 0.0
        %969 = vmatpush.msra.mxu0 0.0
        %970 = vmatpush.msra.mxu0 0.0
        %971 = vmatpush.msra.mxu0 0.0
        %972 = vmatpush.msra.mxu0 0.0
        %973 = vmatpush.msra.mxu0 0.0
        %974 = vmatpush.msra.mxu0 0.0
        %975 = vmatpush.msra.mxu0 0.0
        %976 = vmatpush.msra.mxu0 %v905
        %977 = vmatmul.f32.gmra.mxu0 %v897
        %v978 = vpop.f32.mrf.mxu0
        %v979 = vadd.f32 0.0, %v978
        %980 = vmatmul.f32.gmra.mxu0 %v899
        %v981 = vpop.f32.mrf.mxu0
        %v982 = vadd.f32 0.0, %v981
        %983 = vdwg.mxu0
        %984 = vmatpush.msra.mxu0 0.0
        %985 = vmatpush.msra.mxu0 0.0
        %986 = vmatpush.msra.mxu0 0.0
        %987 = vmatpush.msra.mxu0 0.0
        %988 = vmatpush.msra.mxu0 0.0
        %989 = vmatpush.msra.mxu0 0.0
        %990 = vmatpush.msra.mxu0 0.0
        %991 = vmatpush.msra.mxu0 0.0
        %992 = vmatpush.msra.mxu0 0.0
        %993 = vmatpush.msra.mxu0 0.0
        %994 = vmatpush.msra.mxu0 0.0
        %995 = vmatpush.msra.mxu0 0.0
        %996 = vmatpush.msra.mxu0 0.0
        %997 = vmatpush.msra.mxu0 0.0
        %998 = vmatpush.msra.mxu0 0.0
        %999 = vmatpush.msra.mxu0 %v907
        %1000 = vmatmul.f32.gmra.mxu0 %v897
        %v1001 = vpop.f32.mrf.mxu0
        %v1002 = vadd.f32 0.0, %v1001
        %1003 = vmatmul.f32.gmra.mxu0 %v899
        %v1004 = vpop.f32.mrf.mxu0
        %v1005 = vadd.f32 0.0, %v1004
        %1006 = vdwg.mxu0
        %1007 = vmatpush.msra.mxu0 0.0
        %1008 = vmatpush.msra.mxu0 0.0
        %1009 = vmatpush.msra.mxu0 0.0
        %1010 = vmatpush.msra.mxu0 0.0
        %1011 = vmatpush.msra.mxu0 0.0
        %1012 = vmatpush.msra.mxu0 0.0
        %1013 = vmatpush.msra.mxu0 0.0
        %1014 = vmatpush.msra.mxu0 0.0
        %1015 = vmatpush.msra.mxu0 0.0
        %1016 = vmatpush.msra.mxu0 0.0
        %1017 = vmatpush.msra.mxu0 0.0
        %1018 = vmatpush.msra.mxu0 0.0
        %1019 = vmatpush.msra.mxu0 0.0
        %1020 = vmatpush.msra.mxu0 0.0
        %1021 = vmatpush.msra.mxu0 0.0
        %1022 = vmatpush.msra.mxu0 %v909
        %1023 = vmatmul.f32.gmra.mxu0 %v897
        %v1024 = vpop.f32.mrf.mxu0
        %v1025 = vadd.f32 0.0, %v1024
        %1026 = vmatmul.f32.gmra.mxu0 %v899
        %v1027 = vpop.f32.mrf.mxu0
        %v1028 = vadd.f32 0.0, %v1027
        %1029 = vdwg.mxu0
        %1030 = vmatpush.msra.mxu0 0.0
        %1031 = vmatpush.msra.mxu0 0.0
        %1032 = vmatpush.msra.mxu0 0.0
        %1033 = vmatpush.msra.mxu0 0.0
        %1034 = vmatpush.msra.mxu0 0.0
        %1035 = vmatpush.msra.mxu0 0.0
        %1036 = vmatpush.msra.mxu0 0.0
        %1037 = vmatpush.msra.mxu0 0.0
        %1038 = vmatpush.msra.mxu0 0.0
        %1039 = vmatpush.msra.mxu0 0.0
        %1040 = vmatpush.msra.mxu0 0.0
        %1041 = vmatpush.msra.mxu0 0.0
        %1042 = vmatpush.msra.mxu0 0.0
        %1043 = vmatpush.msra.mxu0 0.0
        %1044 = vmatpush.msra.mxu0 0.0
        %1045 = vmatpush.msra.mxu0 %v911
        %1046 = vmatmul.f32.gmra.mxu0 %v897
        %v1047 = vpop.f32.mrf.mxu0
        %v1048 = vadd.f32 0.0, %v1047
        %1049 = vmatmul.f32.gmra.mxu0 %v899
        %v1050 = vpop.f32.mrf.mxu0
        %v1051 = vadd.f32 0.0, %v1050
        %1052 = vdwg.mxu0
        %1053 = vmatpush.msra.mxu0 0.0
        %1054 = vmatpush.msra.mxu0 0.0
        %1055 = vmatpush.msra.mxu0 0.0
        %1056 = vmatpush.msra.mxu0 0.0
        %1057 = vmatpush.msra.mxu0 0.0
        %1058 = vmatpush.msra.mxu0 0.0
        %1059 = vmatpush.msra.mxu0 0.0
        %1060 = vmatpush.msra.mxu0 0.0
        %1061 = vmatpush.msra.mxu0 0.0
        %1062 = vmatpush.msra.mxu0 0.0
        %1063 = vmatpush.msra.mxu0 0.0
        %1064 = vmatpush.msra.mxu0 0.0
        %1065 = vmatpush.msra.mxu0 0.0
        %1066 = vmatpush.msra.mxu0 0.0
        %1067 = vmatpush.msra.mxu0 0.0
        %1068 = vmatpush.msra.mxu0 %v913
        %1069 = vmatmul.f32.gmra.mxu0 %v897
        %v1070 = vpop.f32.mrf.mxu0
        %v1071 = vadd.f32 0.0, %v1070
        %1072 = vmatmul.f32.gmra.mxu0 %v899
        %v1073 = vpop.f32.mrf.mxu0
        %v1074 = vadd.f32 0.0, %v1073
        %1075 = vdwg.mxu0
        %v1076 = vadd.f32 %v711, %v933
        %v1077 = vadd.f32 %v734, %v956
        %v1078 = vadd.f32 %v757, %v979
        %v1079 = vadd.f32 %v780, %v1002
        %v1080 = vadd.f32 %v803, %v1025
        %v1081 = vadd.f32 %v826, %v1048
        %v1082 = vadd.f32 %v849, %v1071
        %v1083 = vadd.f32 %v714, %v936
        %v1084 = vadd.f32 %v737, %v959
        %v1085 = vadd.f32 %v760, %v982
        %v1086 = vadd.f32 %v783, %v1005
        %v1087 = vadd.f32 %v806, %v1028
        %v1088 = vadd.f32 %v829, %v1051
        %v1089 = vadd.f32 %v852, %v1074
        %v1090 = vld [vmem:[%s1] sm:$0xff]
        %v1091 = vld [vmem:[%s1 + $0x8] sm:$0xff]
        %1094 = vrot.lane.b32.xlu0 %v1090, 119
        %v1095 = vpop.permute.xlu0 %1094
        %1096 = vrot.lane.b32.xlu0 %v1091, 119
        %v1097 = vpop.permute.xlu0 %1096
        %1098 = vst [vmem:[#allocation1] ss:$2 sm:$0xff] %v429
        %s1099 = scalar_lea.vmem [#allocation1], 16
        %1100 = vst [vmem:[%s1099] ss:$2 sm:$0xff] %v430
        %s1101 = scalar_lea.vmem [#allocation1], 32
        %1102 = vst [vmem:[%s1101] ss:$2 sm:$0xff] %v431
        %s1103 = scalar_lea.vmem [#allocation1], 48
        %1104 = vst [vmem:[%s1103] ss:$2 sm:$0xff] %v432
        %v1105 = vld.sshfl [vmem:[#allocation1] sm:$0xff pattern:$0x75316420]
        %v1106 = vld.sshfl [vmem:[#allocation1 + $0x8] sm:$0xff pattern:$0x75316420]
        %v1107 = vld.sshfl [vmem:[#allocation1 + $0x10] sm:$0xff pattern:$0x75316420]
        %v1108 = vld.sshfl [vmem:[#allocation1 + $0x18] sm:$0xff pattern:$0x75316420]
        %v1109 = vld.sshfl [vmem:[#allocation1 + $0x20] sm:$0xff pattern:$0x75316420]
        %v1110 = vld.sshfl [vmem:[#allocation1 + $0x28] sm:$0xff pattern:$0x75316420]
        %v1111 = vld.sshfl [vmem:[#allocation1 + $0x30] sm:$0xff pattern:$0x75316420]
        %1112 = vrot.lane.b32.xlu0 %v1105, 98
        %v1113 = vpop.permute.xlu0 %1112
        %1114 = vrot.lane.b32.xlu0 %v1106, 98
        %v1115 = vpop.permute.xlu0 %1114
        %1116 = vrot.lane.b32.xlu0 %v1107, 98
        %v1117 = vpop.permute.xlu0 %1116
        %1118 = vrot.lane.b32.xlu0 %v1108, 98
        %v1119 = vpop.permute.xlu0 %1118
        %1120 = vrot.lane.b32.xlu0 %v1109, 98
        %v1121 = vpop.permute.xlu0 %1120
        %1122 = vrot.lane.b32.xlu0 %v1110, 98
        %v1123 = vpop.permute.xlu0 %1122
        %1124 = vrot.lane.b32.xlu0 %v1111, 98
        %v1125 = vpop.permute.xlu0 %1124
        %vm1126 = vcmask 801792
        %v1127 = vsel %vm1126, %v1113, %v1115
        %v1128 = vsel %vm1126, %v1115, %v1117
        %v1129 = vsel %vm1126, %v1117, %v1119
        %v1130 = vsel %vm1126, %v1119, %v1121
        %v1131 = vsel %vm1126, %v1121, %v1123
        %v1132 = vsel %vm1126, %v1123, %v1125
        %v1133 = vsel %vm480, %v1095, 0
        %v1135 = vsel %vm480, %v1097, 0
        %v1137 = vsel %vm485, %v1127, 0
        %v1139 = vsel %vm485, %v1128, 0
        %v1141 = vsel %vm485, %v1129, 0
        %v1143 = vsel %vm485, %v1130, 0
        %v1145 = vsel %vm485, %v1131, 0
        %v1147 = vsel %vm485, %v1132, 0
        %v1149 = vsel %vm485, %v1125, 0
        %1151 = vmatpush.msra.mxu0 0.0
        %1152 = vmatpush.msra.mxu0 0.0
        %1153 = vmatpush.msra.mxu0 0.0
        %1154 = vmatpush.msra.mxu0 0.0
        %1155 = vmatpush.msra.mxu0 0.0
        %1156 = vmatpush.msra.mxu0 0.0
        %1157 = vmatpush.msra.mxu0 0.0
        %1158 = vmatpush.msra.mxu0 0.0
        %1159 = vmatpush.msra.mxu0 0.0
        %1160 = vmatpush.msra.mxu0 0.0
        %1161 = vmatpush.msra.mxu0 0.0
        %1162 = vmatpush.msra.mxu0 0.0
        %1163 = vmatpush.msra.mxu0 0.0
        %1164 = vmatpush.msra.mxu0 0.0
        %1165 = vmatpush.msra.mxu0 0.0
        %1166 = vmatpush.msra.mxu0 %v1137
        %1167 = vmatmul.f32.gmra.mxu0 %v1133
        %v1168 = vpop.f32.mrf.mxu0
        %v1169 = vadd.f32 0.0, %v1168
        %1170 = vmatmul.f32.gmra.mxu0 %v1135
        %v1171 = vpop.f32.mrf.mxu0
        %v1172 = vadd.f32 0.0, %v1171
        %1173 = vdwg.mxu0
        %1174 = vmatpush.msra.mxu0 0.0
        %1175 = vmatpush.msra.mxu0 0.0
        %1176 = vmatpush.msra.mxu0 0.0
        %1177 = vmatpush.msra.mxu0 0.0
        %1178 = vmatpush.msra.mxu0 0.0
        %1179 = vmatpush.msra.mxu0 0.0
        %1180 = vmatpush.msra.mxu0 0.0
        %1181 = vmatpush.msra.mxu0 0.0
        %1182 = vmatpush.msra.mxu0 0.0
        %1183 = vmatpush.msra.mxu0 0.0
        %1184 = vmatpush.msra.mxu0 0.0
        %1185 = vmatpush.msra.mxu0 0.0
        %1186 = vmatpush.msra.mxu0 0.0
        %1187 = vmatpush.msra.mxu0 0.0
        %1188 = vmatpush.msra.mxu0 0.0
        %1189 = vmatpush.msra.mxu0 %v1139
        %1190 = vmatmul.f32.gmra.mxu0 %v1133
        %v1191 = vpop.f32.mrf.mxu0
        %v1192 = vadd.f32 0.0, %v1191
        %1193 = vmatmul.f32.gmra.mxu0 %v1135
        %v1194 = vpop.f32.mrf.mxu0
        %v1195 = vadd.f32 0.0, %v1194
        %1196 = vdwg.mxu0
        %1197 = vmatpush.msra.mxu0 0.0
        %1198 = vmatpush.msra.mxu0 0.0
        %1199 = vmatpush.msra.mxu0 0.0
        %1200 = vmatpush.msra.mxu0 0.0
        %1201 = vmatpush.msra.mxu0 0.0
        %1202 = vmatpush.msra.mxu0 0.0
        %1203 = vmatpush.msra.mxu0 0.0
        %1204 = vmatpush.msra.mxu0 0.0
        %1205 = vmatpush.msra.mxu0 0.0
        %1206 = vmatpush.msra.mxu0 0.0
        %1207 = vmatpush.msra.mxu0 0.0
        %1208 = vmatpush.msra.mxu0 0.0
        %1209 = vmatpush.msra.mxu0 0.0
        %1210 = vmatpush.msra.mxu0 0.0
        %1211 = vmatpush.msra.mxu0 0.0
        %1212 = vmatpush.msra.mxu0 %v1141
        %1213 = vmatmul.f32.gmra.mxu0 %v1133
        %v1214 = vpop.f32.mrf.mxu0
        %v1215 = vadd.f32 0.0, %v1214
        %1216 = vmatmul.f32.gmra.mxu0 %v1135
        %v1217 = vpop.f32.mrf.mxu0
        %v1218 = vadd.f32 0.0, %v1217
        %1219 = vdwg.mxu0
        %1220 = vmatpush.msra.mxu0 0.0
        %1221 = vmatpush.msra.mxu0 0.0
        %1222 = vmatpush.msra.mxu0 0.0
        %1223 = vmatpush.msra.mxu0 0.0
        %1224 = vmatpush.msra.mxu0 0.0
        %1225 = vmatpush.msra.mxu0 0.0
        %1226 = vmatpush.msra.mxu0 0.0
        %1227 = vmatpush.msra.mxu0 0.0
        %1228 = vmatpush.msra.mxu0 0.0
        %1229 = vmatpush.msra.mxu0 0.0
        %1230 = vmatpush.msra.mxu0 0.0
        %1231 = vmatpush.msra.mxu0 0.0
        %1232 = vmatpush.msra.mxu0 0.0
        %1233 = vmatpush.msra.mxu0 0.0
        %1234 = vmatpush.msra.mxu0 0.0
        %1235 = vmatpush.msra.mxu0 %v1143
        %1236 = vmatmul.f32.gmra.mxu0 %v1133
        %v1237 = vpop.f32.mrf.mxu0
        %v1238 = vadd.f32 0.0, %v1237
        %1239 = vmatmul.f32.gmra.mxu0 %v1135
        %v1240 = vpop.f32.mrf.mxu0
        %v1241 = vadd.f32 0.0, %v1240
        %1242 = vdwg.mxu0
        %1243 = vmatpush.msra.mxu0 0.0
        %1244 = vmatpush.msra.mxu0 0.0
        %1245 = vmatpush.msra.mxu0 0.0
        %1246 = vmatpush.msra.mxu0 0.0
        %1247 = vmatpush.msra.mxu0 0.0
        %1248 = vmatpush.msra.mxu0 0.0
        %1249 = vmatpush.msra.mxu0 0.0
        %1250 = vmatpush.msra.mxu0 0.0
        %1251 = vmatpush.msra.mxu0 0.0
        %1252 = vmatpush.msra.mxu0 0.0
        %1253 = vmatpush.msra.mxu0 0.0
        %1254 = vmatpush.msra.mxu0 0.0
        %1255 = vmatpush.msra.mxu0 0.0
        %1256 = vmatpush.msra.mxu0 0.0
        %1257 = vmatpush.msra.mxu0 0.0
        %1258 = vmatpush.msra.mxu0 %v1145
        %1259 = vmatmul.f32.gmra.mxu0 %v1133
        %v1260 = vpop.f32.mrf.mxu0
        %v1261 = vadd.f32 0.0, %v1260
        %1262 = vmatmul.f32.gmra.mxu0 %v1135
        %v1263 = vpop.f32.mrf.mxu0
        %v1264 = vadd.f32 0.0, %v1263
        %1265 = vdwg.mxu0
        %1266 = vmatpush.msra.mxu0 0.0
        %1267 = vmatpush.msra.mxu0 0.0
        %1268 = vmatpush.msra.mxu0 0.0
        %1269 = vmatpush.msra.mxu0 0.0
        %1270 = vmatpush.msra.mxu0 0.0
        %1271 = vmatpush.msra.mxu0 0.0
        %1272 = vmatpush.msra.mxu0 0.0
        %1273 = vmatpush.msra.mxu0 0.0
        %1274 = vmatpush.msra.mxu0 0.0
        %1275 = vmatpush.msra.mxu0 0.0
        %1276 = vmatpush.msra.mxu0 0.0
        %1277 = vmatpush.msra.mxu0 0.0
        %1278 = vmatpush.msra.mxu0 0.0
        %1279 = vmatpush.msra.mxu0 0.0
        %1280 = vmatpush.msra.mxu0 0.0
        %1281 = vmatpush.msra.mxu0 %v1147
        %1282 = vmatmul.f32.gmra.mxu0 %v1133
        %v1283 = vpop.f32.mrf.mxu0
        %v1284 = vadd.f32 0.0, %v1283
        %1285 = vmatmul.f32.gmra.mxu0 %v1135
        %v1286 = vpop.f32.mrf.mxu0
        %v1287 = vadd.f32 0.0, %v1286
        %1288 = vdwg.mxu0
        %1289 = vmatpush.msra.mxu0 0.0
        %1290 = vmatpush.msra.mxu0 0.0
        %1291 = vmatpush.msra.mxu0 0.0
        %1292 = vmatpush.msra.mxu0 0.0
        %1293 = vmatpush.msra.mxu0 0.0
        %1294 = vmatpush.msra.mxu0 0.0
        %1295 = vmatpush.msra.mxu0 0.0
        %1296 = vmatpush.msra.mxu0 0.0
        %1297 = vmatpush.msra.mxu0 0.0
        %1298 = vmatpush.msra.mxu0 0.0
        %1299 = vmatpush.msra.mxu0 0.0
        %1300 = vmatpush.msra.mxu0 0.0
        %1301 = vmatpush.msra.mxu0 0.0
        %1302 = vmatpush.msra.mxu0 0.0
        %1303 = vmatpush.msra.mxu0 0.0
        %1304 = vmatpush.msra.mxu0 %v1149
        %1305 = vmatmul.f32.gmra.mxu0 %v1133
        %v1306 = vpop.f32.mrf.mxu0
        %v1307 = vadd.f32 0.0, %v1306
        %1308 = vmatmul.f32.gmra.mxu0 %v1135
        %v1309 = vpop.f32.mrf.mxu0
        %v1310 = vadd.f32 0.0, %v1309
        %1311 = vdwg.mxu0
        %v1312 = vadd.f32 %v1076, %v1169
        %v1313 = vadd.f32 %v1077, %v1192
        %v1314 = vadd.f32 %v1078, %v1215
        %v1315 = vadd.f32 %v1079, %v1238
        %v1316 = vadd.f32 %v1080, %v1261
        %v1317 = vadd.f32 %v1081, %v1284
        %v1318 = vadd.f32 %v1082, %v1307
        %v1319 = vadd.f32 %v1083, %v1172
        %v1320 = vadd.f32 %v1084, %v1195
        %v1321 = vadd.f32 %v1085, %v1218
        %v1322 = vadd.f32 %v1086, %v1241
        %v1323 = vadd.f32 %v1087, %v1264
        %v1324 = vadd.f32 %v1088, %v1287
        %v1325 = vadd.f32 %v1089, %v1310
        %v1326 = vld [vmem:[%s1] sm:$0xff]
        %v1327 = vld [vmem:[%s1 + $0x8] sm:$0xff]
        %1330 = vrot.lane.b32.xlu0 %v1326, 116
        %v1331 = vpop.permute.xlu0 %1330
        %1332 = vrot.lane.b32.xlu0 %v1327, 116
        %v1333 = vpop.permute.xlu0 %1332
        %1334 = vst [vmem:[#allocation1] ss:$2 sm:$0xff] %v429
        %s1335 = scalar_lea.vmem [#allocation1], 16
        %1336 = vst [vmem:[%s1335] ss:$2 sm:$0xff] %v430
        %s1337 = scalar_lea.vmem [#allocation1], 32
        %1338 = vst [vmem:[%s1337] ss:$2 sm:$0xff] %v431
        %s1339 = scalar_lea.vmem [#allocation1], 48
        %1340 = vst [vmem:[%s1339] ss:$2 sm:$0xff] %v432
        %v1341 = vld.sshfl [vmem:[#allocation1] sm:$0xff pattern:$0x75316420]
        %v1342 = vld.sshfl [vmem:[#allocation1 + $0x8] sm:$0xff pattern:$0x75316420]
        %v1343 = vld.sshfl [vmem:[#allocation1 + $0x10] sm:$0xff pattern:$0x75316420]
        %v1344 = vld.sshfl [vmem:[#allocation1 + $0x18] sm:$0xff pattern:$0x75316420]
        %v1345 = vld.sshfl [vmem:[#allocation1 + $0x20] sm:$0xff pattern:$0x75316420]
        %v1346 = vld.sshfl [vmem:[#allocation1 + $0x28] sm:$0xff pattern:$0x75316420]
        %v1347 = vld.sshfl [vmem:[#allocation1 + $0x30] sm:$0xff pattern:$0x75316420]
        %1348 = vrot.lane.b32.xlu0 %v1341, 97
        %v1349 = vpop.permute.xlu0 %1348
        %1350 = vrot.lane.b32.xlu0 %v1342, 97
        %v1351 = vpop.permute.xlu0 %1350
        %1352 = vrot.lane.b32.xlu0 %v1343, 97
        %v1353 = vpop.permute.xlu0 %1352
        %1354 = vrot.lane.b32.xlu0 %v1344, 97
        %v1355 = vpop.permute.xlu0 %1354
        %1356 = vrot.lane.b32.xlu0 %v1345, 97
        %v1357 = vpop.permute.xlu0 %1356
        %1358 = vrot.lane.b32.xlu0 %v1346, 97
        %v1359 = vpop.permute.xlu0 %1358
        %1360 = vrot.lane.b32.xlu0 %v1347, 97
        %v1361 = vpop.permute.xlu0 %1360
        %vm1362 = vcmask 793600
        %v1363 = vsel %vm1362, %v1349, %v1351
        %v1364 = vsel %vm1362, %v1351, %v1353
        %v1365 = vsel %vm1362, %v1353, %v1355
        %v1366 = vsel %vm1362, %v1355, %v1357
        %v1367 = vsel %vm1362, %v1357, %v1359
        %v1368 = vsel %vm1362, %v1359, %v1361
        %v1369 = vsel %vm480, %v1331, 0
        %v1371 = vsel %vm480, %v1333, 0
        %v1373 = vsel %vm485, %v1363, 0
        %v1375 = vsel %vm485, %v1364, 0
        %v1377 = vsel %vm485, %v1365, 0
        %v1379 = vsel %vm485, %v1366, 0
        %v1381 = vsel %vm485, %v1367, 0
        %v1383 = vsel %vm485, %v1368, 0
        %v1385 = vsel %vm485, %v1361, 0
        %1387 = vmatpush.msra.mxu0 0.0
        %1388 = vmatpush.msra.mxu0 0.0
        %1389 = vmatpush.msra.mxu0 0.0
        %1390 = vmatpush.msra.mxu0 0.0
        %1391 = vmatpush.msra.mxu0 0.0
        %1392 = vmatpush.msra.mxu0 0.0
        %1393 = vmatpush.msra.mxu0 0.0
        %1394 = vmatpush.msra.mxu0 0.0
        %1395 = vmatpush.msra.mxu0 0.0
        %1396 = vmatpush.msra.mxu0 0.0
        %1397 = vmatpush.msra.mxu0 0.0
        %1398 = vmatpush.msra.mxu0 0.0
        %1399 = vmatpush.msra.mxu0 0.0
        %1400 = vmatpush.msra.mxu0 0.0
        %1401 = vmatpush.msra.mxu0 0.0
        %1402 = vmatpush.msra.mxu0 %v1373
        %1403 = vmatmul.f32.gmra.mxu0 %v1369
        %v1404 = vpop.f32.mrf.mxu0
        %v1405 = vadd.f32 0.0, %v1404
        %1406 = vmatmul.f32.gmra.mxu0 %v1371
        %v1407 = vpop.f32.mrf.mxu0
        %v1408 = vadd.f32 0.0, %v1407
        %1409 = vdwg.mxu0
        %1410 = vmatpush.msra.mxu0 0.0
        %1411 = vmatpush.msra.mxu0 0.0
        %1412 = vmatpush.msra.mxu0 0.0
        %1413 = vmatpush.msra.mxu0 0.0
        %1414 = vmatpush.msra.mxu0 0.0
        %1415 = vmatpush.msra.mxu0 0.0
        %1416 = vmatpush.msra.mxu0 0.0
        %1417 = vmatpush.msra.mxu0 0.0
        %1418 = vmatpush.msra.mxu0 0.0
        %1419 = vmatpush.msra.mxu0 0.0
        %1420 = vmatpush.msra.mxu0 0.0
        %1421 = vmatpush.msra.mxu0 0.0
        %1422 = vmatpush.msra.mxu0 0.0
        %1423 = vmatpush.msra.mxu0 0.0
        %1424 = vmatpush.msra.mxu0 0.0
        %1425 = vmatpush.msra.mxu0 %v1375
        %1426 = vmatmul.f32.gmra.mxu0 %v1369
        %v1427 = vpop.f32.mrf.mxu0
        %v1428 = vadd.f32 0.0, %v1427
        %1429 = vmatmul.f32.gmra.mxu0 %v1371
        %v1430 = vpop.f32.mrf.mxu0
        %v1431 = vadd.f32 0.0, %v1430
        %1432 = vdwg.mxu0
        %1433 = vmatpush.msra.mxu0 0.0
        %1434 = vmatpush.msra.mxu0 0.0
        %1435 = vmatpush.msra.mxu0 0.0
        %1436 = vmatpush.msra.mxu0 0.0
        %1437 = vmatpush.msra.mxu0 0.0
        %1438 = vmatpush.msra.mxu0 0.0
        %1439 = vmatpush.msra.mxu0 0.0
        %1440 = vmatpush.msra.mxu0 0.0
        %1441 = vmatpush.msra.mxu0 0.0
        %1442 = vmatpush.msra.mxu0 0.0
        %1443 = vmatpush.msra.mxu0 0.0
        %1444 = vmatpush.msra.mxu0 0.0
        %1445 = vmatpush.msra.mxu0 0.0
        %1446 = vmatpush.msra.mxu0 0.0
        %1447 = vmatpush.msra.mxu0 0.0
        %1448 = vmatpush.msra.mxu0 %v1377
        %1449 = vmatmul.f32.gmra.mxu0 %v1369
        %v1450 = vpop.f32.mrf.mxu0
        %v1451 = vadd.f32 0.0, %v1450
        %1452 = vmatmul.f32.gmra.mxu0 %v1371
        %v1453 = vpop.f32.mrf.mxu0
        %v1454 = vadd.f32 0.0, %v1453
        %1455 = vdwg.mxu0
        %1456 = vmatpush.msra.mxu0 0.0
        %1457 = vmatpush.msra.mxu0 0.0
        %1458 = vmatpush.msra.mxu0 0.0
        %1459 = vmatpush.msra.mxu0 0.0
        %1460 = vmatpush.msra.mxu0 0.0
        %1461 = vmatpush.msra.mxu0 0.0
        %1462 = vmatpush.msra.mxu0 0.0
        %1463 = vmatpush.msra.mxu0 0.0
        %1464 = vmatpush.msra.mxu0 0.0
        %1465 = vmatpush.msra.mxu0 0.0
        %1466 = vmatpush.msra.mxu0 0.0
        %1467 = vmatpush.msra.mxu0 0.0
        %1468 = vmatpush.msra.mxu0 0.0
        %1469 = vmatpush.msra.mxu0 0.0
        %1470 = vmatpush.msra.mxu0 0.0
        %1471 = vmatpush.msra.mxu0 %v1379
        %1472 = vmatmul.f32.gmra.mxu0 %v1369
        %v1473 = vpop.f32.mrf.mxu0
        %v1474 = vadd.f32 0.0, %v1473
        %1475 = vmatmul.f32.gmra.mxu0 %v1371
        %v1476 = vpop.f32.mrf.mxu0
        %v1477 = vadd.f32 0.0, %v1476
        %1478 = vdwg.mxu0
        %1479 = vmatpush.msra.mxu0 0.0
        %1480 = vmatpush.msra.mxu0 0.0
        %1481 = vmatpush.msra.mxu0 0.0
        %1482 = vmatpush.msra.mxu0 0.0
        %1483 = vmatpush.msra.mxu0 0.0
        %1484 = vmatpush.msra.mxu0 0.0
        %1485 = vmatpush.msra.mxu0 0.0
        %1486 = vmatpush.msra.mxu0 0.0
        %1487 = vmatpush.msra.mxu0 0.0
        %1488 = vmatpush.msra.mxu0 0.0
        %1489 = vmatpush.msra.mxu0 0.0
        %1490 = vmatpush.msra.mxu0 0.0
        %1491 = vmatpush.msra.mxu0 0.0
        %1492 = vmatpush.msra.mxu0 0.0
        %1493 = vmatpush.msra.mxu0 0.0
        %1494 = vmatpush.msra.mxu0 %v1381
        %1495 = vmatmul.f32.gmra.mxu0 %v1369
        %v1496 = vpop.f32.mrf.mxu0
        %v1497 = vadd.f32 0.0, %v1496
        %1498 = vmatmul.f32.gmra.mxu0 %v1371
        %v1499 = vpop.f32.mrf.mxu0
        %v1500 = vadd.f32 0.0, %v1499
        %1501 = vdwg.mxu0
        %1502 = vmatpush.msra.mxu0 0.0
        %1503 = vmatpush.msra.mxu0 0.0
        %1504 = vmatpush.msra.mxu0 0.0
        %1505 = vmatpush.msra.mxu0 0.0
        %1506 = vmatpush.msra.mxu0 0.0
        %1507 = vmatpush.msra.mxu0 0.0
        %1508 = vmatpush.msra.mxu0 0.0
        %1509 = vmatpush.msra.mxu0 0.0
        %1510 = vmatpush.msra.mxu0 0.0
        %1511 = vmatpush.msra.mxu0 0.0
        %1512 = vmatpush.msra.mxu0 0.0
        %1513 = vmatpush.msra.mxu0 0.0
        %1514 = vmatpush.msra.mxu0 0.0
        %1515 = vmatpush.msra.mxu0 0.0
        %1516 = vmatpush.msra.mxu0 0.0
        %1517 = vmatpush.msra.mxu0 %v1383
        %1518 = vmatmul.f32.gmra.mxu0 %v1369
        %v1519 = vpop.f32.mrf.mxu0
        %v1520 = vadd.f32 0.0, %v1519
        %1521 = vmatmul.f32.gmra.mxu0 %v1371
        %v1522 = vpop.f32.mrf.mxu0
        %v1523 = vadd.f32 0.0, %v1522
        %1524 = vdwg.mxu0
        %1525 = vmatpush.msra.mxu0 0.0
        %1526 = vmatpush.msra.mxu0 0.0
        %1527 = vmatpush.msra.mxu0 0.0
        %1528 = vmatpush.msra.mxu0 0.0
        %1529 = vmatpush.msra.mxu0 0.0
        %1530 = vmatpush.msra.mxu0 0.0
        %1531 = vmatpush.msra.mxu0 0.0
        %1532 = vmatpush.msra.mxu0 0.0
        %1533 = vmatpush.msra.mxu0 0.0
        %1534 = vmatpush.msra.mxu0 0.0
        %1535 = vmatpush.msra.mxu0 0.0
        %1536 = vmatpush.msra.mxu0 0.0
        %1537 = vmatpush.msra.mxu0 0.0
        %1538 = vmatpush.msra.mxu0 0.0
        %1539 = vmatpush.msra.mxu0 0.0
        %1540 = vmatpush.msra.mxu0 %v1385
        %1541 = vmatmul.f32.gmra.mxu0 %v1369
        %v1542 = vpop.f32.mrf.mxu0
        %v1543 = vadd.f32 0.0, %v1542
        %1544 = vmatmul.f32.gmra.mxu0 %v1371
        %v1545 = vpop.f32.mrf.mxu0
        %v1546 = vadd.f32 0.0, %v1545
        %1547 = vdwg.mxu0
        %v1548 = vadd.f32 %v1312, %v1405
        %v1549 = vadd.f32 %v1313, %v1428
        %v1550 = vadd.f32 %v1314, %v1451
        %v1551 = vadd.f32 %v1315, %v1474
        %v1552 = vadd.f32 %v1316, %v1497
        %v1553 = vadd.f32 %v1317, %v1520
        %v1554 = vadd.f32 %v1318, %v1543
        %v1555 = vadd.f32 %v1319, %v1408
        %v1556 = vadd.f32 %v1320, %v1431
        %v1557 = vadd.f32 %v1321, %v1454
        %v1558 = vadd.f32 %v1322, %v1477
        %v1559 = vadd.f32 %v1323, %v1500
        %v1560 = vadd.f32 %v1324, %v1523
        %v1561 = vadd.f32 %v1325, %v1546
        %v1562 = vld [vmem:[%s1] sm:$0xff]
        %v1563 = vld [vmem:[%s1 + $0x8] sm:$0xff]
        %1566 = vrot.lane.b32.xlu0 %v1562, 113
        %v1567 = vpop.permute.xlu0 %1566
        %1568 = vrot.lane.b32.xlu0 %v1563, 113
        %v1569 = vpop.permute.xlu0 %1568
        %1570 = vst [vmem:[#allocation1] ss:$2 sm:$0xff] %v429
        %s1571 = scalar_lea.vmem [#allocation1], 16
        %1572 = vst [vmem:[%s1571] ss:$2 sm:$0xff] %v430
        %s1573 = scalar_lea.vmem [#allocation1], 32
        %1574 = vst [vmem:[%s1573] ss:$2 sm:$0xff] %v431
        %s1575 = scalar_lea.vmem [#allocation1], 48
        %1576 = vst [vmem:[%s1575] ss:$2 sm:$0xff] %v432
        %v1577 = vld.sshfl [vmem:[#allocation1] sm:$0xff pattern:$0x75316420]
        %v1578 = vld.sshfl [vmem:[#allocation1 + $0x8] sm:$0xff pattern:$0x75316420]
        %v1579 = vld.sshfl [vmem:[#allocation1 + $0x10] sm:$0xff pattern:$0x75316420]
        %v1580 = vld.sshfl [vmem:[#allocation1 + $0x18] sm:$0xff pattern:$0x75316420]
        %v1581 = vld.sshfl [vmem:[#allocation1 + $0x20] sm:$0xff pattern:$0x75316420]
        %v1582 = vld.sshfl [vmem:[#allocation1 + $0x28] sm:$0xff pattern:$0x75316420]
        %v1583 = vld.sshfl [vmem:[#allocation1 + $0x30] sm:$0xff pattern:$0x75316420]
        %1584 = vrot.lane.b32.xlu0 %v1577, 96
        %v1585 = vpop.permute.xlu0 %1584
        %1586 = vrot.lane.b32.xlu0 %v1578, 96
        %v1587 = vpop.permute.xlu0 %1586
        %1588 = vrot.lane.b32.xlu0 %v1579, 96
        %v1589 = vpop.permute.xlu0 %1588
        %1590 = vrot.lane.b32.xlu0 %v1580, 96
        %v1591 = vpop.permute.xlu0 %1590
        %1592 = vrot.lane.b32.xlu0 %v1581, 96
        %v1593 = vpop.permute.xlu0 %1592
        %1594 = vrot.lane.b32.xlu0 %v1582, 96
        %v1595 = vpop.permute.xlu0 %1594
        %1596 = vrot.lane.b32.xlu0 %v1583, 96
        %v1597 = vpop.permute.xlu0 %1596
        %vm1598 = vcmask 785408
        %v1599 = vsel %vm1598, %v1585, %v1587
        %v1600 = vsel %vm1598, %v1587, %v1589
        %v1601 = vsel %vm1598, %v1589, %v1591
        %v1602 = vsel %vm1598, %v1591, %v1593
        %v1603 = vsel %vm1598, %v1593, %v1595
        %v1604 = vsel %vm1598, %v1595, %v1597
        %v1605 = vsel %vm480, %v1567, 0
        %v1607 = vsel %vm480, %v1569, 0
        %v1609 = vsel %vm485, %v1599, 0
        %v1611 = vsel %vm485, %v1600, 0
        %v1613 = vsel %vm485, %v1601, 0
        %v1615 = vsel %vm485, %v1602, 0
        %v1617 = vsel %vm485, %v1603, 0
        %v1619 = vsel %vm485, %v1604, 0
        %v1621 = vsel %vm485, %v1597, 0
        %1623 = vmatpush.msra.mxu0 0.0
        %1624 = vmatpush.msra.mxu0 0.0
        %1625 = vmatpush.msra.mxu0 0.0
        %1626 = vmatpush.msra.mxu0 0.0
        %1627 = vmatpush.msra.mxu0 0.0
        %1628 = vmatpush.msra.mxu0 0.0
        %1629 = vmatpush.msra.mxu0 0.0
        %1630 = vmatpush.msra.mxu0 0.0
        %1631 = vmatpush.msra.mxu0 0.0
        %1632 = vmatpush.msra.mxu0 0.0
        %1633 = vmatpush.msra.mxu0 0.0
        %1634 = vmatpush.msra.mxu0 0.0
        %1635 = vmatpush.msra.mxu0 0.0
        %1636 = vmatpush.msra.mxu0 0.0
        %1637 = vmatpush.msra.mxu0 0.0
        %1638 = vmatpush.msra.mxu0 %v1609
        %1639 = vmatmul.f32.gmra.mxu0 %v1605
        %v1640 = vpop.f32.mrf.mxu0
        %v1641 = vadd.f32 0.0, %v1640
        %1642 = vmatmul.f32.gmra.mxu0 %v1607
        %v1643 = vpop.f32.mrf.mxu0
        %v1644 = vadd.f32 0.0, %v1643
        %1645 = vdwg.mxu0
        %1646 = vmatpush.msra.mxu0 0.0
        %1647 = vmatpush.msra.mxu0 0.0
        %1648 = vmatpush.msra.mxu0 0.0
        %1649 = vmatpush.msra.mxu0 0.0
        %1650 = vmatpush.msra.mxu0 0.0
        %1651 = vmatpush.msra.mxu0 0.0
        %1652 = vmatpush.msra.mxu0 0.0
        %1653 = vmatpush.msra.mxu0 0.0
        %1654 = vmatpush.msra.mxu0 0.0
        %1655 = vmatpush.msra.mxu0 0.0
        %1656 = vmatpush.msra.mxu0 0.0
        %1657 = vmatpush.msra.mxu0 0.0
        %1658 = vmatpush.msra.mxu0 0.0
        %1659 = vmatpush.msra.mxu0 0.0
        %1660 = vmatpush.msra.mxu0 0.0
        %1661 = vmatpush.msra.mxu0 %v1611
        %1662 = vmatmul.f32.gmra.mxu0 %v1605
        %v1663 = vpop.f32.mrf.mxu0
        %v1664 = vadd.f32 0.0, %v1663
        %1665 = vmatmul.f32.gmra.mxu0 %v1607
        %v1666 = vpop.f32.mrf.mxu0
        %v1667 = vadd.f32 0.0, %v1666
        %1668 = vdwg.mxu0
        %1669 = vmatpush.msra.mxu0 0.0
        %1670 = vmatpush.msra.mxu0 0.0
        %1671 = vmatpush.msra.mxu0 0.0
        %1672 = vmatpush.msra.mxu0 0.0
        %1673 = vmatpush.msra.mxu0 0.0
        %1674 = vmatpush.msra.mxu0 0.0
        %1675 = vmatpush.msra.mxu0 0.0
        %1676 = vmatpush.msra.mxu0 0.0
        %1677 = vmatpush.msra.mxu0 0.0
        %1678 = vmatpush.msra.mxu0 0.0
        %1679 = vmatpush.msra.mxu0 0.0
        %1680 = vmatpush.msra.mxu0 0.0
        %1681 = vmatpush.msra.mxu0 0.0
        %1682 = vmatpush.msra.mxu0 0.0
        %1683 = vmatpush.msra.mxu0 0.0
        %1684 = vmatpush.msra.mxu0 %v1613
        %1685 = vmatmul.f32.gmra.mxu0 %v1605
        %v1686 = vpop.f32.mrf.mxu0
        %v1687 = vadd.f32 0.0, %v1686
        %1688 = vmatmul.f32.gmra.mxu0 %v1607
        %v1689 = vpop.f32.mrf.mxu0
        %v1690 = vadd.f32 0.0, %v1689
        %1691 = vdwg.mxu0
        %1692 = vmatpush.msra.mxu0 0.0
        %1693 = vmatpush.msra.mxu0 0.0
        %1694 = vmatpush.msra.mxu0 0.0
        %1695 = vmatpush.msra.mxu0 0.0
        %1696 = vmatpush.msra.mxu0 0.0
        %1697 = vmatpush.msra.mxu0 0.0
        %1698 = vmatpush.msra.mxu0 0.0
        %1699 = vmatpush.msra.mxu0 0.0
        %1700 = vmatpush.msra.mxu0 0.0
        %1701 = vmatpush.msra.mxu0 0.0
        %1702 = vmatpush.msra.mxu0 0.0
        %1703 = vmatpush.msra.mxu0 0.0
        %1704 = vmatpush.msra.mxu0 0.0
        %1705 = vmatpush.msra.mxu0 0.0
        %1706 = vmatpush.msra.mxu0 0.0
        %1707 = vmatpush.msra.mxu0 %v1615
        %1708 = vmatmul.f32.gmra.mxu0 %v1605
        %v1709 = vpop.f32.mrf.mxu0
        %v1710 = vadd.f32 0.0, %v1709
        %1711 = vmatmul.f32.gmra.mxu0 %v1607
        %v1712 = vpop.f32.mrf.mxu0
        %v1713 = vadd.f32 0.0, %v1712
        %1714 = vdwg.mxu0
        %1715 = vmatpush.msra.mxu0 0.0
        %1716 = vmatpush.msra.mxu0 0.0
        %1717 = vmatpush.msra.mxu0 0.0
        %1718 = vmatpush.msra.mxu0 0.0
        %1719 = vmatpush.msra.mxu0 0.0
        %1720 = vmatpush.msra.mxu0 0.0
        %1721 = vmatpush.msra.mxu0 0.0
        %1722 = vmatpush.msra.mxu0 0.0
        %1723 = vmatpush.msra.mxu0 0.0
        %1724 = vmatpush.msra.mxu0 0.0
        %1725 = vmatpush.msra.mxu0 0.0
        %1726 = vmatpush.msra.mxu0 0.0
        %1727 = vmatpush.msra.mxu0 0.0
        %1728 = vmatpush.msra.mxu0 0.0
        %1729 = vmatpush.msra.mxu0 0.0
        %1730 = vmatpush.msra.mxu0 %v1617
        %1731 = vmatmul.f32.gmra.mxu0 %v1605
        %v1732 = vpop.f32.mrf.mxu0
        %v1733 = vadd.f32 0.0, %v1732
        %1734 = vmatmul.f32.gmra.mxu0 %v1607
        %v1735 = vpop.f32.mrf.mxu0
        %v1736 = vadd.f32 0.0, %v1735
        %1737 = vdwg.mxu0
        %1738 = vmatpush.msra.mxu0 0.0
        %1739 = vmatpush.msra.mxu0 0.0
        %1740 = vmatpush.msra.mxu0 0.0
        %1741 = vmatpush.msra.mxu0 0.0
        %1742 = vmatpush.msra.mxu0 0.0
        %1743 = vmatpush.msra.mxu0 0.0
        %1744 = vmatpush.msra.mxu0 0.0
        %1745 = vmatpush.msra.mxu0 0.0
        %1746 = vmatpush.msra.mxu0 0.0
        %1747 = vmatpush.msra.mxu0 0.0
        %1748 = vmatpush.msra.mxu0 0.0
        %1749 = vmatpush.msra.mxu0 0.0
        %1750 = vmatpush.msra.mxu0 0.0
        %1751 = vmatpush.msra.mxu0 0.0
        %1752 = vmatpush.msra.mxu0 0.0
        %1753 = vmatpush.msra.mxu0 %v1619
        %1754 = vmatmul.f32.gmra.mxu0 %v1605
        %v1755 = vpop.f32.mrf.mxu0
        %v1756 = vadd.f32 0.0, %v1755
        %1757 = vmatmul.f32.gmra.mxu0 %v1607
        %v1758 = vpop.f32.mrf.mxu0
        %v1759 = vadd.f32 0.0, %v1758
        %1760 = vdwg.mxu0
        %1761 = vmatpush.msra.mxu0 0.0
        %1762 = vmatpush.msra.mxu0 0.0
        %1763 = vmatpush.msra.mxu0 0.0
        %1764 = vmatpush.msra.mxu0 0.0
        %1765 = vmatpush.msra.mxu0 0.0
        %1766 = vmatpush.msra.mxu0 0.0
        %1767 = vmatpush.msra.mxu0 0.0
        %1768 = vmatpush.msra.mxu0 0.0
        %1769 = vmatpush.msra.mxu0 0.0
        %1770 = vmatpush.msra.mxu0 0.0
        %1771 = vmatpush.msra.mxu0 0.0
        %1772 = vmatpush.msra.mxu0 0.0
        %1773 = vmatpush.msra.mxu0 0.0
        %1774 = vmatpush.msra.mxu0 0.0
        %1775 = vmatpush.msra.mxu0 0.0
        %1776 = vmatpush.msra.mxu0 %v1621
        %1777 = vmatmul.f32.gmra.mxu0 %v1605
        %v1778 = vpop.f32.mrf.mxu0
        %v1779 = vadd.f32 0.0, %v1778
        %1780 = vmatmul.f32.gmra.mxu0 %v1607
        %v1781 = vpop.f32.mrf.mxu0
        %v1782 = vadd.f32 0.0, %v1781
        %1783 = vdwg.mxu0
        %v1784 = vadd.f32 %v1548, %v1641
        %v1785 = vadd.f32 %v1549, %v1664
        %v1786 = vadd.f32 %v1550, %v1687
        %v1787 = vadd.f32 %v1551, %v1710
        %v1788 = vadd.f32 %v1552, %v1733
        %v1789 = vadd.f32 %v1553, %v1756
        %v1790 = vadd.f32 %v1554, %v1779
        %v1791 = vadd.f32 %v1555, %v1644
        %v1792 = vadd.f32 %v1556, %v1667
        %v1793 = vadd.f32 %v1557, %v1690
        %v1794 = vadd.f32 %v1558, %v1713
        %v1795 = vadd.f32 %v1559, %v1736
        %v1796 = vadd.f32 %v1560, %v1759
        %v1797 = vadd.f32 %v1561, %v1782
        %v1798 = vld [vmem:[%s1] sm:$0xff]
        %v1799 = vld [vmem:[%s1 + $0x8] sm:$0xff]
        %1802 = vrot.lane.b32.xlu0 %v1798, 110
        %v1803 = vpop.permute.xlu0 %1802
        %1804 = vrot.lane.b32.xlu0 %v1799, 110
        %v1805 = vpop.permute.xlu0 %1804
        %1806 = vst [vmem:[#allocation1] ss:$2 sm:$0xff] %v429
        %s1807 = scalar_lea.vmem [#allocation1], 16
        %1808 = vst [vmem:[%s1807] ss:$2 sm:$0xff] %v430
        %s1809 = scalar_lea.vmem [#allocation1], 32
        %1810 = vst [vmem:[%s1809] ss:$2 sm:$0xff] %v431
        %s1811 = scalar_lea.vmem [#allocation1], 48
        %1812 = vst [vmem:[%s1811] ss:$2 sm:$0xff] %v432
        %v1813 = vld.sshfl [vmem:[#allocation1] sm:$0xff pattern:$0x75316420]
        %v1814 = vld.sshfl [vmem:[#allocation1 + $0x8] sm:$0xff pattern:$0x75316420]
        %v1815 = vld.sshfl [vmem:[#allocation1 + $0x10] sm:$0xff pattern:$0x75316420]
        %v1816 = vld.sshfl [vmem:[#allocation1 + $0x18] sm:$0xff pattern:$0x75316420]
        %v1817 = vld.sshfl [vmem:[#allocation1 + $0x20] sm:$0xff pattern:$0x75316420]
        %v1818 = vld.sshfl [vmem:[#allocation1 + $0x28] sm:$0xff pattern:$0x75316420]
        %v1819 = vld.sshfl [vmem:[#allocation1 + $0x30] sm:$0xff pattern:$0x75316420]
        %1820 = vrot.lane.b32.xlu0 %v1813, 68
        %v1821 = vpop.permute.xlu0 %1820
        %1822 = vrot.lane.b32.xlu0 %v1814, 68
        %v1823 = vpop.permute.xlu0 %1822
        %1824 = vrot.lane.b32.xlu0 %v1815, 68
        %v1825 = vpop.permute.xlu0 %1824
        %1826 = vrot.lane.b32.xlu0 %v1816, 68
        %v1827 = vpop.permute.xlu0 %1826
        %1828 = vrot.lane.b32.xlu0 %v1817, 68
        %v1829 = vpop.permute.xlu0 %1828
        %1830 = vrot.lane.b32.xlu0 %v1818, 68
        %v1831 = vpop.permute.xlu0 %1830
        %1832 = vrot.lane.b32.xlu0 %v1819, 68
        %v1833 = vpop.permute.xlu0 %1832
        %vm1834 = vcmask 556032
        %v1835 = vsel %vm1834, %v1821, %v1823
        %v1836 = vsel %vm1834, %v1823, %v1825
        %v1837 = vsel %vm1834, %v1825, %v1827
        %v1838 = vsel %vm1834, %v1827, %v1829
        %v1839 = vsel %vm1834, %v1829, %v1831
        %v1840 = vsel %vm1834, %v1831, %v1833
        %v1841 = vsel %vm480, %v1803, 0
        %v1843 = vsel %vm480, %v1805, 0
        %v1845 = vsel %vm485, %v1835, 0
        %v1847 = vsel %vm485, %v1836, 0
        %v1849 = vsel %vm485, %v1837, 0
        %v1851 = vsel %vm485, %v1838, 0
        %v1853 = vsel %vm485, %v1839, 0
        %v1855 = vsel %vm485, %v1840, 0
        %v1857 = vsel %vm485, %v1833, 0
        %1859 = vmatpush.msra.mxu0 0.0
        %1860 = vmatpush.msra.mxu0 0.0
        %1861 = vmatpush.msra.mxu0 0.0
        %1862 = vmatpush.msra.mxu0 0.0
        %1863 = vmatpush.msra.mxu0 0.0
        %1864 = vmatpush.msra.mxu0 0.0
        %1865 = vmatpush.msra.mxu0 0.0
        %1866 = vmatpush.msra.mxu0 0.0
        %1867 = vmatpush.msra.mxu0 0.0
        %1868 = vmatpush.msra.mxu0 0.0
        %1869 = vmatpush.msra.mxu0 0.0
        %1870 = vmatpush.msra.mxu0 0.0
        %1871 = vmatpush.msra.mxu0 0.0
        %1872 = vmatpush.msra.mxu0 0.0
        %1873 = vmatpush.msra.mxu0 0.0
        %1874 = vmatpush.msra.mxu0 %v1845
        %1875 = vmatmul.f32.gmra.mxu0 %v1841
        %v1876 = vpop.f32.mrf.mxu0
        %v1877 = vadd.f32 0.0, %v1876
        %1878 = vmatmul.f32.gmra.mxu0 %v1843
        %v1879 = vpop.f32.mrf.mxu0
        %v1880 = vadd.f32 0.0, %v1879
        %1881 = vdwg.mxu0
        %1882 = vmatpush.msra.mxu0 0.0
        %1883 = vmatpush.msra.mxu0 0.0
        %1884 = vmatpush.msra.mxu0 0.0
        %1885 = vmatpush.msra.mxu0 0.0
        %1886 = vmatpush.msra.mxu0 0.0
        %1887 = vmatpush.msra.mxu0 0.0
        %1888 = vmatpush.msra.mxu0 0.0
        %1889 = vmatpush.msra.mxu0 0.0
        %1890 = vmatpush.msra.mxu0 0.0
        %1891 = vmatpush.msra.mxu0 0.0
        %1892 = vmatpush.msra.mxu0 0.0
        %1893 = vmatpush.msra.mxu0 0.0
        %1894 = vmatpush.msra.mxu0 0.0
        %1895 = vmatpush.msra.mxu0 0.0
        %1896 = vmatpush.msra.mxu0 0.0
        %1897 = vmatpush.msra.mxu0 %v1847
        %1898 = vmatmul.f32.gmra.mxu0 %v1841
        %v1899 = vpop.f32.mrf.mxu0
        %v1900 = vadd.f32 0.0, %v1899
        %1901 = vmatmul.f32.gmra.mxu0 %v1843
        %v1902 = vpop.f32.mrf.mxu0
        %v1903 = vadd.f32 0.0, %v1902
        %1904 = vdwg.mxu0
        %1905 = vmatpush.msra.mxu0 0.0
        %1906 = vmatpush.msra.mxu0 0.0
        %1907 = vmatpush.msra.mxu0 0.0
        %1908 = vmatpush.msra.mxu0 0.0
        %1909 = vmatpush.msra.mxu0 0.0
        %1910 = vmatpush.msra.mxu0 0.0
        %1911 = vmatpush.msra.mxu0 0.0
        %1912 = vmatpush.msra.mxu0 0.0
        %1913 = vmatpush.msra.mxu0 0.0
        %1914 = vmatpush.msra.mxu0 0.0
        %1915 = vmatpush.msra.mxu0 0.0
        %1916 = vmatpush.msra.mxu0 0.0
        %1917 = vmatpush.msra.mxu0 0.0
        %1918 = vmatpush.msra.mxu0 0.0
        %1919 = vmatpush.msra.mxu0 0.0
        %1920 = vmatpush.msra.mxu0 %v1849
        %1921 = vmatmul.f32.gmra.mxu0 %v1841
        %v1922 = vpop.f32.mrf.mxu0
        %v1923 = vadd.f32 0.0, %v1922
        %1924 = vmatmul.f32.gmra.mxu0 %v1843
        %v1925 = vpop.f32.mrf.mxu0
        %v1926 = vadd.f32 0.0, %v1925
        %1927 = vdwg.mxu0
        %1928 = vmatpush.msra.mxu0 0.0
        %1929 = vmatpush.msra.mxu0 0.0
        %1930 = vmatpush.msra.mxu0 0.0
        %1931 = vmatpush.msra.mxu0 0.0
        %1932 = vmatpush.msra.mxu0 0.0
        %1933 = vmatpush.msra.mxu0 0.0
        %1934 = vmatpush.msra.mxu0 0.0
        %1935 = vmatpush.msra.mxu0 0.0
        %1936 = vmatpush.msra.mxu0 0.0
        %1937 = vmatpush.msra.mxu0 0.0
        %1938 = vmatpush.msra.mxu0 0.0
        %1939 = vmatpush.msra.mxu0 0.0
        %1940 = vmatpush.msra.mxu0 0.0
        %1941 = vmatpush.msra.mxu0 0.0
        %1942 = vmatpush.msra.mxu0 0.0
        %1943 = vmatpush.msra.mxu0 %v1851
        %1944 = vmatmul.f32.gmra.mxu0 %v1841
        %v1945 = vpop.f32.mrf.mxu0
        %v1946 = vadd.f32 0.0, %v1945
        %1947 = vmatmul.f32.gmra.mxu0 %v1843
        %v1948 = vpop.f32.mrf.mxu0
        %v1949 = vadd.f32 0.0, %v1948
        %1950 = vdwg.mxu0
        %1951 = vmatpush.msra.mxu0 0.0
        %1952 = vmatpush.msra.mxu0 0.0
        %1953 = vmatpush.msra.mxu0 0.0
        %1954 = vmatpush.msra.mxu0 0.0
        %1955 = vmatpush.msra.mxu0 0.0
        %1956 = vmatpush.msra.mxu0 0.0
        %1957 = vmatpush.msra.mxu0 0.0
        %1958 = vmatpush.msra.mxu0 0.0
        %1959 = vmatpush.msra.mxu0 0.0
        %1960 = vmatpush.msra.mxu0 0.0
        %1961 = vmatpush.msra.mxu0 0.0
        %1962 = vmatpush.msra.mxu0 0.0
        %1963 = vmatpush.msra.mxu0 0.0
        %1964 = vmatpush.msra.mxu0 0.0
        %1965 = vmatpush.msra.mxu0 0.0
        %1966 = vmatpush.msra.mxu0 %v1853
        %1967 = vmatmul.f32.gmra.mxu0 %v1841
        %v1968 = vpop.f32.mrf.mxu0
        %v1969 = vadd.f32 0.0, %v1968
        %1970 = vmatmul.f32.gmra.mxu0 %v1843
        %v1971 = vpop.f32.mrf.mxu0
        %v1972 = vadd.f32 0.0, %v1971
        %1973 = vdwg.mxu0
        %1974 = vmatpush.msra.mxu0 0.0
        %1975 = vmatpush.msra.mxu0 0.0
        %1976 = vmatpush.msra.mxu0 0.0
        %1977 = vmatpush.msra.mxu0 0.0
        %1978 = vmatpush.msra.mxu0 0.0
        %1979 = vmatpush.msra.mxu0 0.0
        %1980 = vmatpush.msra.mxu0 0.0
        %1981 = vmatpush.msra.mxu0 0.0
        %1982 = vmatpush.msra.mxu0 0.0
        %1983 = vmatpush.msra.mxu0 0.0
        %1984 = vmatpush.msra.mxu0 0.0
        %1985 = vmatpush.msra.mxu0 0.0
        %1986 = vmatpush.msra.mxu0 0.0
        %1987 = vmatpush.msra.mxu0 0.0
        %1988 = vmatpush.msra.mxu0 0.0
        %1989 = vmatpush.msra.mxu0 %v1855
        %1990 = vmatmul.f32.gmra.mxu0 %v1841
        %v1991 = vpop.f32.mrf.mxu0
        %v1992 = vadd.f32 0.0, %v1991
        %1993 = vmatmul.f32.gmra.mxu0 %v1843
        %v1994 = vpop.f32.mrf.mxu0
        %v1995 = vadd.f32 0.0, %v1994
        %1996 = vdwg.mxu0
        %1997 = vmatpush.msra.mxu0 0.0
        %1998 = vmatpush.msra.mxu0 0.0
        %1999 = vmatpush.msra.mxu0 0.0
        %2000 = vmatpush.msra.mxu0 0.0
        %2001 = vmatpush.msra.mxu0 0.0
        %2002 = vmatpush.msra.mxu0 0.0
        %2003 = vmatpush.msra.mxu0 0.0
        %2004 = vmatpush.msra.mxu0 0.0
        %2005 = vmatpush.msra.mxu0 0.0
        %2006 = vmatpush.msra.mxu0 0.0
        %2007 = vmatpush.msra.mxu0 0.0
        %2008 = vmatpush.msra.mxu0 0.0
        %2009 = vmatpush.msra.mxu0 0.0
        %2010 = vmatpush.msra.mxu0 0.0
        %2011 = vmatpush.msra.mxu0 0.0
        %2012 = vmatpush.msra.mxu0 %v1857
        %2013 = vmatmul.f32.gmra.mxu0 %v1841
        %v2014 = vpop.f32.mrf.mxu0
        %v2015 = vadd.f32 0.0, %v2014
        %2016 = vmatmul.f32.gmra.mxu0 %v1843
        %v2017 = vpop.f32.mrf.mxu0
        %v2018 = vadd.f32 0.0, %v2017
        %2019 = vdwg.mxu0
        %v2020 = vadd.f32 %v1784, %v1877
        %v2021 = vadd.f32 %v1785, %v1900
        %v2022 = vadd.f32 %v1786, %v1923
        %v2023 = vadd.f32 %v1787, %v1946
        %v2024 = vadd.f32 %v1788, %v1969
        %v2025 = vadd.f32 %v1789, %v1992
        %v2026 = vadd.f32 %v1790, %v2015
        %v2027 = vadd.f32 %v1791, %v1880
        %v2028 = vadd.f32 %v1792, %v1903
        %v2029 = vadd.f32 %v1793, %v1926
        %v2030 = vadd.f32 %v1794, %v1949
        %v2031 = vadd.f32 %v1795, %v1972
        %v2032 = vadd.f32 %v1796, %v1995
        %v2033 = vadd.f32 %v1797, %v2018
        %v2034 = vld [vmem:[%s1] sm:$0xff]
        %v2035 = vld [vmem:[%s1 + $0x8] sm:$0xff]
        %2038 = vrot.lane.b32.xlu0 %v2034, 107
        %v2039 = vpop.permute.xlu0 %2038
        %2040 = vrot.lane.b32.xlu0 %v2035, 107
        %v2041 = vpop.permute.xlu0 %2040
        %2042 = vst [vmem:[#allocation1] ss:$2 sm:$0xff] %v429
        %s2043 = scalar_lea.vmem [#allocation1], 16
        %2044 = vst [vmem:[%s2043] ss:$2 sm:$0xff] %v430
        %s2045 = scalar_lea.vmem [#allocation1], 32
        %2046 = vst [vmem:[%s2045] ss:$2 sm:$0xff] %v431
        %s2047 = scalar_lea.vmem [#allocation1], 48
        %2048 = vst [vmem:[%s2047] ss:$2 sm:$0xff] %v432
        %v2049 = vld.sshfl [vmem:[#allocation1] sm:$0xff pattern:$0x75316420]
        %v2050 = vld.sshfl [vmem:[#allocation1 + $0x8] sm:$0xff pattern:$0x75316420]
        %v2051 = vld.sshfl [vmem:[#allocation1 + $0x10] sm:$0xff pattern:$0x75316420]
        %v2052 = vld.sshfl [vmem:[#allocation1 + $0x18] sm:$0xff pattern:$0x75316420]
        %v2053 = vld.sshfl [vmem:[#allocation1 + $0x20] sm:$0xff pattern:$0x75316420]
        %v2054 = vld.sshfl [vmem:[#allocation1 + $0x28] sm:$0xff pattern:$0x75316420]
        %v2055 = vld.sshfl [vmem:[#allocation1 + $0x30] sm:$0xff pattern:$0x75316420]
        %2056 = vrot.lane.b32.xlu0 %v2049, 67
        %v2057 = vpop.permute.xlu0 %2056
        %2058 = vrot.lane.b32.xlu0 %v2050, 67
        %v2059 = vpop.permute.xlu0 %2058
        %2060 = vrot.lane.b32.xlu0 %v2051, 67
        %v2061 = vpop.permute.xlu0 %2060
        %2062 = vrot.lane.b32.xlu0 %v2052, 67
        %v2063 = vpop.permute.xlu0 %2062
        %2064 = vrot.lane.b32.xlu0 %v2053, 67
        %v2065 = vpop.permute.xlu0 %2064
        %2066 = vrot.lane.b32.xlu0 %v2054, 67
        %v2067 = vpop.permute.xlu0 %2066
        %2068 = vrot.lane.b32.xlu0 %v2055, 67
        %v2069 = vpop.permute.xlu0 %2068
        %vm2070 = vcmask 547840
        %v2071 = vsel %vm2070, %v2057, %v2059
        %v2072 = vsel %vm2070, %v2059, %v2061
        %v2073 = vsel %vm2070, %v2061, %v2063
        %v2074 = vsel %vm2070, %v2063, %v2065
        %v2075 = vsel %vm2070, %v2065, %v2067
        %v2076 = vsel %vm2070, %v2067, %v2069
        %v2077 = vsel %vm480, %v2039, 0
        %v2079 = vsel %vm480, %v2041, 0
        %v2081 = vsel %vm485, %v2071, 0
        %v2083 = vsel %vm485, %v2072, 0
        %v2085 = vsel %vm485, %v2073, 0
        %v2087 = vsel %vm485, %v2074, 0
        %v2089 = vsel %vm485, %v2075, 0
        %v2091 = vsel %vm485, %v2076, 0
        %v2093 = vsel %vm485, %v2069, 0
        %2095 = vmatpush.msra.mxu0 0.0
        %2096 = vmatpush.msra.mxu0 0.0
        %2097 = vmatpush.msra.mxu0 0.0
        %2098 = vmatpush.msra.mxu0 0.0
        %2099 = vmatpush.msra.mxu0 0.0
        %2100 = vmatpush.msra.mxu0 0.0
        %2101 = vmatpush.msra.mxu0 0.0
        %2102 = vmatpush.msra.mxu0 0.0
        %2103 = vmatpush.msra.mxu0 0.0
        %2104 = vmatpush.msra.mxu0 0.0
        %2105 = vmatpush.msra.mxu0 0.0
        %2106 = vmatpush.msra.mxu0 0.0
        %2107 = vmatpush.msra.mxu0 0.0
        %2108 = vmatpush.msra.mxu0 0.0
        %2109 = vmatpush.msra.mxu0 0.0
        %2110 = vmatpush.msra.mxu0 %v2081
        %2111 = vmatmul.f32.gmra.mxu0 %v2077
        %v2112 = vpop.f32.mrf.mxu0
        %v2113 = vadd.f32 0.0, %v2112
        %2114 = vmatmul.f32.gmra.mxu0 %v2079
        %v2115 = vpop.f32.mrf.mxu0
        %v2116 = vadd.f32 0.0, %v2115
        %2117 = vdwg.mxu0
        %2118 = vmatpush.msra.mxu0 0.0
        %2119 = vmatpush.msra.mxu0 0.0
        %2120 = vmatpush.msra.mxu0 0.0
        %2121 = vmatpush.msra.mxu0 0.0
        %2122 = vmatpush.msra.mxu0 0.0
        %2123 = vmatpush.msra.mxu0 0.0
        %2124 = vmatpush.msra.mxu0 0.0
        %2125 = vmatpush.msra.mxu0 0.0
        %2126 = vmatpush.msra.mxu0 0.0
        %2127 = vmatpush.msra.mxu0 0.0
        %2128 = vmatpush.msra.mxu0 0.0
        %2129 = vmatpush.msra.mxu0 0.0
        %2130 = vmatpush.msra.mxu0 0.0
        %2131 = vmatpush.msra.mxu0 0.0
        %2132 = vmatpush.msra.mxu0 0.0
        %2133 = vmatpush.msra.mxu0 %v2083
        %2134 = vmatmul.f32.gmra.mxu0 %v2077
        %v2135 = vpop.f32.mrf.mxu0
        %v2136 = vadd.f32 0.0, %v2135
        %2137 = vmatmul.f32.gmra.mxu0 %v2079
        %v2138 = vpop.f32.mrf.mxu0
        %v2139 = vadd.f32 0.0, %v2138
        %2140 = vdwg.mxu0
        %2141 = vmatpush.msra.mxu0 0.0
        %2142 = vmatpush.msra.mxu0 0.0
        %2143 = vmatpush.msra.mxu0 0.0
        %2144 = vmatpush.msra.mxu0 0.0
        %2145 = vmatpush.msra.mxu0 0.0
        %2146 = vmatpush.msra.mxu0 0.0
        %2147 = vmatpush.msra.mxu0 0.0
        %2148 = vmatpush.msra.mxu0 0.0
        %2149 = vmatpush.msra.mxu0 0.0
        %2150 = vmatpush.msra.mxu0 0.0
        %2151 = vmatpush.msra.mxu0 0.0
        %2152 = vmatpush.msra.mxu0 0.0
        %2153 = vmatpush.msra.mxu0 0.0
        %2154 = vmatpush.msra.mxu0 0.0
        %2155 = vmatpush.msra.mxu0 0.0
        %2156 = vmatpush.msra.mxu0 %v2085
        %2157 = vmatmul.f32.gmra.mxu0 %v2077
        %v2158 = vpop.f32.mrf.mxu0
        %v2159 = vadd.f32 0.0, %v2158
        %2160 = vmatmul.f32.gmra.mxu0 %v2079
        %v2161 = vpop.f32.mrf.mxu0
        %v2162 = vadd.f32 0.0, %v2161
        %2163 = vdwg.mxu0
        %2164 = vmatpush.msra.mxu0 0.0
        %2165 = vmatpush.msra.mxu0 0.0
        %2166 = vmatpush.msra.mxu0 0.0
        %2167 = vmatpush.msra.mxu0 0.0
        %2168 = vmatpush.msra.mxu0 0.0
        %2169 = vmatpush.msra.mxu0 0.0
        %2170 = vmatpush.msra.mxu0 0.0
        %2171 = vmatpush.msra.mxu0 0.0
        %2172 = vmatpush.msra.mxu0 0.0
        %2173 = vmatpush.msra.mxu0 0.0
        %2174 = vmatpush.msra.mxu0 0.0
        %2175 = vmatpush.msra.mxu0 0.0
        %2176 = vmatpush.msra.mxu0 0.0
        %2177 = vmatpush.msra.mxu0 0.0
        %2178 = vmatpush.msra.mxu0 0.0
        %2179 = vmatpush.msra.mxu0 %v2087
        %2180 = vmatmul.f32.gmra.mxu0 %v2077
        %v2181 = vpop.f32.mrf.mxu0
        %v2182 = vadd.f32 0.0, %v2181
        %2183 = vmatmul.f32.gmra.mxu0 %v2079
        %v2184 = vpop.f32.mrf.mxu0
        %v2185 = vadd.f32 0.0, %v2184
        %2186 = vdwg.mxu0
        %2187 = vmatpush.msra.mxu0 0.0
        %2188 = vmatpush.msra.mxu0 0.0
        %2189 = vmatpush.msra.mxu0 0.0
        %2190 = vmatpush.msra.mxu0 0.0
        %2191 = vmatpush.msra.mxu0 0.0
        %2192 = vmatpush.msra.mxu0 0.0
        %2193 = vmatpush.msra.mxu0 0.0
        %2194 = vmatpush.msra.mxu0 0.0
        %2195 = vmatpush.msra.mxu0 0.0
        %2196 = vmatpush.msra.mxu0 0.0
        %2197 = vmatpush.msra.mxu0 0.0
        %2198 = vmatpush.msra.mxu0 0.0
        %2199 = vmatpush.msra.mxu0 0.0
        %2200 = vmatpush.msra.mxu0 0.0
        %2201 = vmatpush.msra.mxu0 0.0
        %2202 = vmatpush.msra.mxu0 %v2089
        %2203 = vmatmul.f32.gmra.mxu0 %v2077
        %v2204 = vpop.f32.mrf.mxu0
        %v2205 = vadd.f32 0.0, %v2204
        %2206 = vmatmul.f32.gmra.mxu0 %v2079
        %v2207 = vpop.f32.mrf.mxu0
        %v2208 = vadd.f32 0.0, %v2207
        %2209 = vdwg.mxu0
        %2210 = vmatpush.msra.mxu0 0.0
        %2211 = vmatpush.msra.mxu0 0.0
        %2212 = vmatpush.msra.mxu0 0.0
        %2213 = vmatpush.msra.mxu0 0.0
        %2214 = vmatpush.msra.mxu0 0.0
        %2215 = vmatpush.msra.mxu0 0.0
        %2216 = vmatpush.msra.mxu0 0.0
        %2217 = vmatpush.msra.mxu0 0.0
        %2218 = vmatpush.msra.mxu0 0.0
        %2219 = vmatpush.msra.mxu0 0.0
        %2220 = vmatpush.msra.mxu0 0.0
        %2221 = vmatpush.msra.mxu0 0.0
        %2222 = vmatpush.msra.mxu0 0.0
        %2223 = vmatpush.msra.mxu0 0.0
        %2224 = vmatpush.msra.mxu0 0.0
        %2225 = vmatpush.msra.mxu0 %v2091
        %2226 = vmatmul.f32.gmra.mxu0 %v2077
        %v2227 = vpop.f32.mrf.mxu0
        %v2228 = vadd.f32 0.0, %v2227
        %2229 = vmatmul.f32.gmra.mxu0 %v2079
        %v2230 = vpop.f32.mrf.mxu0
        %v2231 = vadd.f32 0.0, %v2230
        %2232 = vdwg.mxu0
        %2233 = vmatpush.msra.mxu0 0.0
        %2234 = vmatpush.msra.mxu0 0.0
        %2235 = vmatpush.msra.mxu0 0.0
        %2236 = vmatpush.msra.mxu0 0.0
        %2237 = vmatpush.msra.mxu0 0.0
        %2238 = vmatpush.msra.mxu0 0.0
        %2239 = vmatpush.msra.mxu0 0.0
        %2240 = vmatpush.msra.mxu0 0.0
        %2241 = vmatpush.msra.mxu0 0.0
        %2242 = vmatpush.msra.mxu0 0.0
        %2243 = vmatpush.msra.mxu0 0.0
        %2244 = vmatpush.msra.mxu0 0.0
        %2245 = vmatpush.msra.mxu0 0.0
        %2246 = vmatpush.msra.mxu0 0.0
        %2247 = vmatpush.msra.mxu0 0.0
        %2248 = vmatpush.msra.mxu0 %v2093
        %2249 = vmatmul.f32.gmra.mxu0 %v2077
        %v2250 = vpop.f32.mrf.mxu0
        %v2251 = vadd.f32 0.0, %v2250
        %2252 = vmatmul.f32.gmra.mxu0 %v2079
        %v2253 = vpop.f32.mrf.mxu0
        %v2254 = vadd.f32 0.0, %v2253
        %2255 = vdwg.mxu0
        %v2256 = vadd.f32 %v2020, %v2113
        %v2257 = vadd.f32 %v2021, %v2136
        %v2258 = vadd.f32 %v2022, %v2159
        %v2259 = vadd.f32 %v2023, %v2182
        %v2260 = vadd.f32 %v2024, %v2205
        %v2261 = vadd.f32 %v2025, %v2228
        %v2262 = vadd.f32 %v2026, %v2251
        %v2263 = vadd.f32 %v2027, %v2116
        %v2264 = vadd.f32 %v2028, %v2139
        %v2265 = vadd.f32 %v2029, %v2162
        %v2266 = vadd.f32 %v2030, %v2185
        %v2267 = vadd.f32 %v2031, %v2208
        %v2268 = vadd.f32 %v2032, %v2231
        %v2269 = vadd.f32 %v2033, %v2254
        %v2270 = vld [vmem:[%s1] sm:$0xff]
        %v2271 = vld [vmem:[%s1 + $0x8] sm:$0xff]
        %2274 = vrot.lane.b32.xlu0 %v2270, 104
        %v2275 = vpop.permute.xlu0 %2274
        %2276 = vrot.lane.b32.xlu0 %v2271, 104
        %v2277 = vpop.permute.xlu0 %2276
        %2278 = vst [vmem:[#allocation1] ss:$2 sm:$0xff] %v429
        %s2279 = scalar_lea.vmem [#allocation1], 16
        %2280 = vst [vmem:[%s2279] ss:$2 sm:$0xff] %v430
        %s2281 = scalar_lea.vmem [#allocation1], 32
        %2282 = vst [vmem:[%s2281] ss:$2 sm:$0xff] %v431
        %s2283 = scalar_lea.vmem [#allocation1], 48
        %2284 = vst [vmem:[%s2283] ss:$2 sm:$0xff] %v432
        %v2285 = vld.sshfl [vmem:[#allocation1] sm:$0xff pattern:$0x75316420]
        %v2286 = vld.sshfl [vmem:[#allocation1 + $0x8] sm:$0xff pattern:$0x75316420]
        %v2287 = vld.sshfl [vmem:[#allocation1 + $0x10] sm:$0xff pattern:$0x75316420]
        %v2288 = vld.sshfl [vmem:[#allocation1 + $0x18] sm:$0xff pattern:$0x75316420]
        %v2289 = vld.sshfl [vmem:[#allocation1 + $0x20] sm:$0xff pattern:$0x75316420]
        %v2290 = vld.sshfl [vmem:[#allocation1 + $0x28] sm:$0xff pattern:$0x75316420]
        %v2291 = vld.sshfl [vmem:[#allocation1 + $0x30] sm:$0xff pattern:$0x75316420]
        %2292 = vrot.lane.b32.xlu0 %v2285, 66
        %v2293 = vpop.permute.xlu0 %2292
        %2294 = vrot.lane.b32.xlu0 %v2286, 66
        %v2295 = vpop.permute.xlu0 %2294
        %2296 = vrot.lane.b32.xlu0 %v2287, 66
        %v2297 = vpop.permute.xlu0 %2296
        %2298 = vrot.lane.b32.xlu0 %v2288, 66
        %v2299 = vpop.permute.xlu0 %2298
        %2300 = vrot.lane.b32.xlu0 %v2289, 66
        %v2301 = vpop.permute.xlu0 %2300
        %2302 = vrot.lane.b32.xlu0 %v2290, 66
        %v2303 = vpop.permute.xlu0 %2302
        %2304 = vrot.lane.b32.xlu0 %v2291, 66
        %v2305 = vpop.permute.xlu0 %2304
        %vm2306 = vcmask 539648
        %v2307 = vsel %vm2306, %v2293, %v2295
        %v2308 = vsel %vm2306, %v2295, %v2297
        %v2309 = vsel %vm2306, %v2297, %v2299
        %v2310 = vsel %vm2306, %v2299, %v2301
        %v2311 = vsel %vm2306, %v2301, %v2303
        %v2312 = vsel %vm2306, %v2303, %v2305
        %v2313 = vsel %vm480, %v2275, 0
        %v2315 = vsel %vm480, %v2277, 0
        %v2317 = vsel %vm485, %v2307, 0
        %v2319 = vsel %vm485, %v2308, 0
        %v2321 = vsel %vm485, %v2309, 0
        %v2323 = vsel %vm485, %v2310, 0
        %v2325 = vsel %vm485, %v2311, 0
        %v2327 = vsel %vm485, %v2312, 0
        %v2329 = vsel %vm485, %v2305, 0
        %2331 = vmatpush.msra.mxu0 0.0
        %2332 = vmatpush.msra.mxu0 0.0
        %2333 = vmatpush.msra.mxu0 0.0
        %2334 = vmatpush.msra.mxu0 0.0
        %2335 = vmatpush.msra.mxu0 0.0
        %2336 = vmatpush.msra.mxu0 0.0
        %2337 = vmatpush.msra.mxu0 0.0
        %2338 = vmatpush.msra.mxu0 0.0
        %2339 = vmatpush.msra.mxu0 0.0
        %2340 = vmatpush.msra.mxu0 0.0
        %2341 = vmatpush.msra.mxu0 0.0
        %2342 = vmatpush.msra.mxu0 0.0
        %2343 = vmatpush.msra.mxu0 0.0
        %2344 = vmatpush.msra.mxu0 0.0
        %2345 = vmatpush.msra.mxu0 0.0
        %2346 = vmatpush.msra.mxu0 %v2317
        %2347 = vmatmul.f32.gmra.mxu0 %v2313
        %v2348 = vpop.f32.mrf.mxu0
        %v2349 = vadd.f32 0.0, %v2348
        %2350 = vmatmul.f32.gmra.mxu0 %v2315
        %v2351 = vpop.f32.mrf.mxu0
        %v2352 = vadd.f32 0.0, %v2351
        %2353 = vdwg.mxu0
        %2354 = vmatpush.msra.mxu0 0.0
        %2355 = vmatpush.msra.mxu0 0.0
        %2356 = vmatpush.msra.mxu0 0.0
        %2357 = vmatpush.msra.mxu0 0.0
        %2358 = vmatpush.msra.mxu0 0.0
        %2359 = vmatpush.msra.mxu0 0.0
        %2360 = vmatpush.msra.mxu0 0.0
        %2361 = vmatpush.msra.mxu0 0.0
        %2362 = vmatpush.msra.mxu0 0.0
        %2363 = vmatpush.msra.mxu0 0.0
        %2364 = vmatpush.msra.mxu0 0.0
        %2365 = vmatpush.msra.mxu0 0.0
        %2366 = vmatpush.msra.mxu0 0.0
        %2367 = vmatpush.msra.mxu0 0.0
        %2368 = vmatpush.msra.mxu0 0.0
        %2369 = vmatpush.msra.mxu0 %v2319
        %2370 = vmatmul.f32.gmra.mxu0 %v2313
        %v2371 = vpop.f32.mrf.mxu0
        %v2372 = vadd.f32 0.0, %v2371
        %2373 = vmatmul.f32.gmra.mxu0 %v2315
        %v2374 = vpop.f32.mrf.mxu0
        %v2375 = vadd.f32 0.0, %v2374
        %2376 = vdwg.mxu0
        %2377 = vmatpush.msra.mxu0 0.0
        %2378 = vmatpush.msra.mxu0 0.0
        %2379 = vmatpush.msra.mxu0 0.0
        %2380 = vmatpush.msra.mxu0 0.0
        %2381 = vmatpush.msra.mxu0 0.0
        %2382 = vmatpush.msra.mxu0 0.0
        %2383 = vmatpush.msra.mxu0 0.0
        %2384 = vmatpush.msra.mxu0 0.0
        %2385 = vmatpush.msra.mxu0 0.0
        %2386 = vmatpush.msra.mxu0 0.0
        %2387 = vmatpush.msra.mxu0 0.0
        %2388 = vmatpush.msra.mxu0 0.0
        %2389 = vmatpush.msra.mxu0 0.0
        %2390 = vmatpush.msra.mxu0 0.0
        %2391 = vmatpush.msra.mxu0 0.0
        %2392 = vmatpush.msra.mxu0 %v2321
        %2393 = vmatmul.f32.gmra.mxu0 %v2313
        %v2394 = vpop.f32.mrf.mxu0
        %v2395 = vadd.f32 0.0, %v2394
        %2396 = vmatmul.f32.gmra.mxu0 %v2315
        %v2397 = vpop.f32.mrf.mxu0
        %v2398 = vadd.f32 0.0, %v2397
        %2399 = vdwg.mxu0
        %2400 = vmatpush.msra.mxu0 0.0
        %2401 = vmatpush.msra.mxu0 0.0
        %2402 = vmatpush.msra.mxu0 0.0
        %2403 = vmatpush.msra.mxu0 0.0
        %2404 = vmatpush.msra.mxu0 0.0
        %2405 = vmatpush.msra.mxu0 0.0
        %2406 = vmatpush.msra.mxu0 0.0
        %2407 = vmatpush.msra.mxu0 0.0
        %2408 = vmatpush.msra.mxu0 0.0
        %2409 = vmatpush.msra.mxu0 0.0
        %2410 = vmatpush.msra.mxu0 0.0
        %2411 = vmatpush.msra.mxu0 0.0
        %2412 = vmatpush.msra.mxu0 0.0
        %2413 = vmatpush.msra.mxu0 0.0
        %2414 = vmatpush.msra.mxu0 0.0
        %2415 = vmatpush.msra.mxu0 %v2323
        %2416 = vmatmul.f32.gmra.mxu0 %v2313
        %v2417 = vpop.f32.mrf.mxu0
        %v2418 = vadd.f32 0.0, %v2417
        %2419 = vmatmul.f32.gmra.mxu0 %v2315
        %v2420 = vpop.f32.mrf.mxu0
        %v2421 = vadd.f32 0.0, %v2420
        %2422 = vdwg.mxu0
        %2423 = vmatpush.msra.mxu0 0.0
        %2424 = vmatpush.msra.mxu0 0.0
        %2425 = vmatpush.msra.mxu0 0.0
        %2426 = vmatpush.msra.mxu0 0.0
        %2427 = vmatpush.msra.mxu0 0.0
        %2428 = vmatpush.msra.mxu0 0.0
        %2429 = vmatpush.msra.mxu0 0.0
        %2430 = vmatpush.msra.mxu0 0.0
        %2431 = vmatpush.msra.mxu0 0.0
        %2432 = vmatpush.msra.mxu0 0.0
        %2433 = vmatpush.msra.mxu0 0.0
        %2434 = vmatpush.msra.mxu0 0.0
        %2435 = vmatpush.msra.mxu0 0.0
        %2436 = vmatpush.msra.mxu0 0.0
        %2437 = vmatpush.msra.mxu0 0.0
        %2438 = vmatpush.msra.mxu0 %v2325
        %2439 = vmatmul.f32.gmra.mxu0 %v2313
        %v2440 = vpop.f32.mrf.mxu0
        %v2441 = vadd.f32 0.0, %v2440
        %2442 = vmatmul.f32.gmra.mxu0 %v2315
        %v2443 = vpop.f32.mrf.mxu0
        %v2444 = vadd.f32 0.0, %v2443
        %2445 = vdwg.mxu0
        %2446 = vmatpush.msra.mxu0 0.0
        %2447 = vmatpush.msra.mxu0 0.0
        %2448 = vmatpush.msra.mxu0 0.0
        %2449 = vmatpush.msra.mxu0 0.0
        %2450 = vmatpush.msra.mxu0 0.0
        %2451 = vmatpush.msra.mxu0 0.0
        %2452 = vmatpush.msra.mxu0 0.0
        %2453 = vmatpush.msra.mxu0 0.0
        %2454 = vmatpush.msra.mxu0 0.0
        %2455 = vmatpush.msra.mxu0 0.0
        %2456 = vmatpush.msra.mxu0 0.0
        %2457 = vmatpush.msra.mxu0 0.0
        %2458 = vmatpush.msra.mxu0 0.0
        %2459 = vmatpush.msra.mxu0 0.0
        %2460 = vmatpush.msra.mxu0 0.0
        %2461 = vmatpush.msra.mxu0 %v2327
        %2462 = vmatmul.f32.gmra.mxu0 %v2313
        %v2463 = vpop.f32.mrf.mxu0
        %v2464 = vadd.f32 0.0, %v2463
        %2465 = vmatmul.f32.gmra.mxu0 %v2315
        %v2466 = vpop.f32.mrf.mxu0
        %v2467 = vadd.f32 0.0, %v2466
        %2468 = vdwg.mxu0
        %2469 = vmatpush.msra.mxu0 0.0
        %2470 = vmatpush.msra.mxu0 0.0
        %2471 = vmatpush.msra.mxu0 0.0
        %2472 = vmatpush.msra.mxu0 0.0
        %2473 = vmatpush.msra.mxu0 0.0
        %2474 = vmatpush.msra.mxu0 0.0
        %2475 = vmatpush.msra.mxu0 0.0
        %2476 = vmatpush.msra.mxu0 0.0
        %2477 = vmatpush.msra.mxu0 0.0
        %2478 = vmatpush.msra.mxu0 0.0
        %2479 = vmatpush.msra.mxu0 0.0
        %2480 = vmatpush.msra.mxu0 0.0
        %2481 = vmatpush.msra.mxu0 0.0
        %2482 = vmatpush.msra.mxu0 0.0
        %2483 = vmatpush.msra.mxu0 0.0
        %2484 = vmatpush.msra.mxu0 %v2329
        %2485 = vmatmul.f32.gmra.mxu0 %v2313
        %v2486 = vpop.f32.mrf.mxu0
        %v2487 = vadd.f32 0.0, %v2486
        %2488 = vmatmul.f32.gmra.mxu0 %v2315
        %v2489 = vpop.f32.mrf.mxu0
        %v2490 = vadd.f32 0.0, %v2489
        %2491 = vdwg.mxu0
        %v2492 = vadd.f32 %v2256, %v2349
        %v2493 = vadd.f32 %v2257, %v2372
        %v2494 = vadd.f32 %v2258, %v2395
        %v2495 = vadd.f32 %v2259, %v2418
        %v2496 = vadd.f32 %v2260, %v2441
        %v2497 = vadd.f32 %v2261, %v2464
        %v2498 = vadd.f32 %v2262, %v2487
        %v2499 = vadd.f32 %v2263, %v2352
        %v2500 = vadd.f32 %v2264, %v2375
        %v2501 = vadd.f32 %v2265, %v2398
        %v2502 = vadd.f32 %v2266, %v2421
        %v2503 = vadd.f32 %v2267, %v2444
        %v2504 = vadd.f32 %v2268, %v2467
        %v2505 = vadd.f32 %v2269, %v2490
        %v2506 = vld [vmem:[%s2] sm:$0xff]
        %v2507 = vld [vmem:[%s2 + $0x8] sm:$0xff]
        %2509 = vset.pattern.permute.xlu0 0
        %2510 = vperm.xlu0 %2509, %v2506
        %v2511 = vpop.permute.xlu0 %2510
        %2514 = vset.pattern.permute.xlu0 0
        %2515 = vperm.xlu0 %2514, %v2507
        %v2516 = vpop.permute.xlu0 %2515
        %v2518 = vadd.f32 %v2492, %v2511
        %v2519 = vadd.f32 %v2493, %v2511
        %v2520 = vadd.f32 %v2494, %v2511
        %v2521 = vadd.f32 %v2495, %v2511
        %v2522 = vadd.f32 %v2496, %v2511
        %v2523 = vadd.f32 %v2497, %v2511
        %v2524 = vadd.f32 %v2498, %v2511
        %v2525 = vadd.f32 %v2499, %v2516
        %v2526 = vadd.f32 %v2500, %v2516
        %v2527 = vadd.f32 %v2501, %v2516
        %v2528 = vadd.f32 %v2502, %v2516
        %v2529 = vadd.f32 %v2503, %v2516
        %v2530 = vadd.f32 %v2504, %v2516
        %v2531 = vadd.f32 %v2505, %v2516
        %v2532 = vmax.f32 %v2518, 0.0
        %v2533 = vmax.f32 %v2519, 0.0
        %v2534 = vmax.f32 %v2520, 0.0
        %v2535 = vmax.f32 %v2521, 0.0
        %v2536 = vmax.f32 %v2522, 0.0
        %v2537 = vmax.f32 %v2523, 0.0
        %v2538 = vmax.f32 %v2524, 0.0
        %v2539 = vmax.f32 %v2525, 0.0
        %v2540 = vmax.f32 %v2526, 0.0
        %v2541 = vmax.f32 %v2527, 0.0
        %v2542 = vmax.f32 %v2528, 0.0
        %v2543 = vmax.f32 %v2529, 0.0
        %v2544 = vmax.f32 %v2530, 0.0
        %v2545 = vmax.f32 %v2531, 0.0
        %v2546 = vld [vmem:[#allocation2] sm:$0xff]
        %v2547 = vld [vmem:[#allocation2 + $0x8] sm:$0xff]
        %v2548 = vld [vmem:[#allocation2 + $0x10] sm:$0xff]
        %v2549 = vld [vmem:[#allocation2 + $0x18] sm:$0xff]
        %v2550 = vld [vmem:[#allocation2 + $0x20] sm:$0xff]
        %v2551 = vld [vmem:[#allocation2 + $0x28] sm:$0xff]
        %v2552 = vld [vmem:[#allocation2 + $0x30] sm:$0xff]
        %v2553 = vld [vmem:[#allocation2 + $0x38] sm:$0xff]
        %v2554 = vld [vmem:[#allocation2 + $0x40] sm:$0xff]
        %v2555 = vld [vmem:[#allocation2 + $0x48] sm:$0xff]
        %v2556 = vld [vmem:[#allocation2 + $0x50] sm:$0xff]
        %v2557 = vld [vmem:[#allocation2 + $0x58] sm:$0xff]
        %v2558 = vld [vmem:[#allocation2 + $0x60] sm:$0xff]
        %v2559 = vld [vmem:[#allocation2 + $0x68] sm:$0xff]
        %v2560 = vld [vmem:[#allocation2 + $0x70] sm:$0xff]
        %v2561 = vld [vmem:[#allocation2 + $0x78] sm:$0xff]
        %v2562 = vld [vmem:[#allocation2 + $0x80] sm:$0xff]
        %v2563 = vld [vmem:[#allocation2 + $0x88] sm:$0xff]
        %v2564 = vld [vmem:[#allocation2 + $0x90] sm:$0xff]
        %v2565 = vld [vmem:[#allocation2 + $0x98] sm:$0xff]
        %v2566 = vld [vmem:[#allocation2 + $0xa0] sm:$0xff]
        %v2567 = vld [vmem:[#allocation2 + $0xa8] sm:$0xff]
        %v2568 = vld [vmem:[#allocation2 + $0xb0] sm:$0xff]
        %v2569 = vld [vmem:[#allocation2 + $0xb8] sm:$0xff]
        %v2570 = vld [vmem:[#allocation2 + $0xc0] sm:$0xff]
        %v2571 = vld [vmem:[#allocation2 + $0xc8] sm:$0xff]
        %v2572 = vld [vmem:[#allocation2 + $0xd0] sm:$0xff]
        %v2573 = vld [vmem:[#allocation2 + $0xd8] sm:$0xff]
        %v2574 = vld [vmem:[#allocation2 + $0xe0] sm:$0xff]
        %v2575 = vld [vmem:[#allocation2 + $0xe8] sm:$0xff]
        %v2576 = vld [vmem:[#allocation2 + $0xf0] sm:$0xff]
        %v2577 = vld [vmem:[#allocation2 + $0xf8] sm:$0xff]
        %v2578 = vld [vmem:[#allocation2 + $0x100] sm:$0xff]
        %v2579 = vld [vmem:[#allocation2 + $0x108] sm:$0xff]
        %v2580 = vld [vmem:[#allocation2 + $0x110] sm:$0xff]
        %v2581 = vld [vmem:[#allocation2 + $0x118] sm:$0xff]
        %v2582 = vld [vmem:[#allocation2 + $0x120] sm:$0xff]
        %v2583 = vld [vmem:[#allocation2 + $0x128] sm:$0xff]
        %v2584 = vld [vmem:[#allocation2 + $0x130] sm:$0xff]
        %v2585 = vld [vmem:[#allocation2 + $0x138] sm:$0xff]
        %v2586 = vld [vmem:[#allocation2 + $0x140] sm:$0xff]
        %v2587 = vld [vmem:[#allocation2 + $0x148] sm:$0xff]
        %v2588 = vld [vmem:[#allocation2 + $0x150] sm:$0xff]
        %v2589 = vld [vmem:[#allocation2 + $0x158] sm:$0xff]
        %v2590 = vld [vmem:[#allocation2 + $0x160] sm:$0xff]
        %v2591 = vld [vmem:[#allocation2 + $0x168] sm:$0xff]
        %v2592 = vld [vmem:[#allocation2 + $0x170] sm:$0xff]
        %v2593 = vld [vmem:[#allocation2 + $0x178] sm:$0xff]
        %v2594 = vld [vmem:[#allocation2 + $0x180] sm:$0xff]
        %v2595 = vld [vmem:[#allocation2 + $0x188] sm:$0xff]
        %v2596 = vld [vmem:[#allocation2 + $0x190] sm:$0xff]
        %v2597 = vld [vmem:[#allocation2 + $0x198] sm:$0xff]
        %v2598 = vld [vmem:[#allocation2 + $0x1a0] sm:$0xff]
        %v2599 = vld [vmem:[#allocation2 + $0x1a8] sm:$0xff]
        %v2600 = vld [vmem:[#allocation2 + $0x1b0] sm:$0xff]
        %v2601 = vld [vmem:[#allocation2 + $0x1b8] sm:$0xff]
        %v2602 = vld [vmem:[#allocation2 + $0x1c0] sm:$0xff]
        %v2603 = vld [vmem:[#allocation2 + $0x1c8] sm:$0xff]
        %v2604 = vld [vmem:[#allocation2 + $0x1d0] sm:$0xff]
        %v2605 = vld [vmem:[#allocation2 + $0x1d8] sm:$0xff]
        %v2606 = vld [vmem:[#allocation2 + $0x1e0] sm:$0xff]
        %v2607 = vld [vmem:[#allocation2 + $0x1e8] sm:$0xff]
        %v2608 = vld [vmem:[#allocation2 + $0x1f0] sm:$0xff]
        %v2609 = vld [vmem:[#allocation2 + $0x1f8] sm:$0xff]
        %v2610 = vld [vmem:[#allocation2 + $0x200] sm:$0xff]
        %v2611 = vld [vmem:[#allocation2 + $0x208] sm:$0xff]
        %v2612 = vld [vmem:[#allocation2 + $0x210] sm:$0xff]
        %v2613 = vld [vmem:[#allocation2 + $0x218] sm:$0xff]
        %v2614 = vld [vmem:[#allocation2 + $0x220] sm:$0xff]
        %v2615 = vld [vmem:[#allocation2 + $0x228] sm:$0xff]
        %v2616 = vld [vmem:[#allocation2 + $0x230] sm:$0xff]
        %v2617 = vld [vmem:[#allocation2 + $0x238] sm:$0xff]
        %v2618 = vld [vmem:[#allocation2 + $0x240] sm:$0xff]
        %v2619 = vld [vmem:[#allocation2 + $0x248] sm:$0xff]
        %v2620 = vld [vmem:[#allocation2 + $0x250] sm:$0xff]
        %v2621 = vld [vmem:[#allocation2 + $0x258] sm:$0xff]
        %v2622 = vld [vmem:[#allocation2 + $0x260] sm:$0xff]
        %v2623 = vld [vmem:[#allocation2 + $0x268] sm:$0xff]
        %v2624 = vld [vmem:[#allocation2 + $0x270] sm:$0xff]
        %v2625 = vld [vmem:[#allocation2 + $0x278] sm:$0xff]
        %v2626 = vld [vmem:[#allocation2 + $0x280] sm:$0xff]
        %v2627 = vld [vmem:[#allocation2 + $0x288] sm:$0xff]
        %v2628 = vld [vmem:[#allocation2 + $0x290] sm:$0xff]
        %v2629 = vld [vmem:[#allocation2 + $0x298] sm:$0xff]
        %v2630 = vld [vmem:[#allocation2 + $0x2a0] sm:$0xff]
        %v2631 = vld [vmem:[#allocation2 + $0x2a8] sm:$0xff]
        %v2632 = vld [vmem:[#allocation2 + $0x2b0] sm:$0xff]
        %v2633 = vld [vmem:[#allocation2 + $0x2b8] sm:$0xff]
        %v2634 = vld [vmem:[#allocation2 + $0x2c0] sm:$0xff]
        %v2635 = vld [vmem:[#allocation2 + $0x2c8] sm:$0xff]
        %v2636 = vld [vmem:[#allocation2 + $0x2d0] sm:$0xff]
        %v2637 = vld [vmem:[#allocation2 + $0x2d8] sm:$0xff]
        %v2638 = vld [vmem:[#allocation2 + $0x2e0] sm:$0xff]
        %v2639 = vld [vmem:[#allocation2 + $0x2e8] sm:$0xff]
        %v2640 = vld [vmem:[#allocation2 + $0x2f0] sm:$0xff]
        %v2641 = vld [vmem:[#allocation2 + $0x2f8] sm:$0xff]
        %v2642 = vld [vmem:[#allocation2 + $0x300] sm:$0xff]
        %v2643 = vld [vmem:[#allocation2 + $0x308] sm:$0xff]
        %v2644 = vld [vmem:[#allocation2 + $0x310] sm:$0xff]
        %v2645 = vld [vmem:[#allocation2 + $0x318] sm:$0xff]
        %v2646 = vld [vmem:[#allocation2 + $0x320] sm:$0xff]
        %v2647 = vld [vmem:[#allocation2 + $0x328] sm:$0xff]
        %v2648 = vld [vmem:[#allocation2 + $0x330] sm:$0xff]
        %v2649 = vld [vmem:[#allocation2 + $0x338] sm:$0xff]
        %v2650 = vld [vmem:[#allocation2 + $0x340] sm:$0xff]
        %v2651 = vld [vmem:[#allocation2 + $0x348] sm:$0xff]
        %v2652 = vld [vmem:[#allocation2 + $0x350] sm:$0xff]
        %v2653 = vld [vmem:[#allocation2 + $0x358] sm:$0xff]
        %v2654 = vld [vmem:[#allocation2 + $0x360] sm:$0xff]
        %v2655 = vld [vmem:[#allocation2 + $0x368] sm:$0xff]
        %v2656 = vld [vmem:[#allocation2 + $0x370] sm:$0xff]
        %v2657 = vld [vmem:[#allocation2 + $0x378] sm:$0xff]
        %v2658 = vld [vmem:[#allocation2 + $0x380] sm:$0xff]
        %v2659 = vld [vmem:[#allocation2 + $0x388] sm:$0xff]
        %v2660 = vld [vmem:[#allocation2 + $0x390] sm:$0xff]
        %v2661 = vld [vmem:[#allocation2 + $0x398] sm:$0xff]
        %v2662 = vld [vmem:[#allocation2 + $0x3a0] sm:$0xff]
        %v2663 = vld [vmem:[#allocation2 + $0x3a8] sm:$0xff]
        %v2664 = vld [vmem:[#allocation2 + $0x3b0] sm:$0xff]
        %v2665 = vld [vmem:[#allocation2 + $0x3b8] sm:$0xff]
        %v2666 = vld [vmem:[#allocation2 + $0x3c0] sm:$0xff]
        %v2667 = vld [vmem:[#allocation2 + $0x3c8] sm:$0xff]
        %v2668 = vld [vmem:[#allocation2 + $0x3d0] sm:$0xff]
        %v2669 = vld [vmem:[#allocation2 + $0x3d8] sm:$0xff]
        %v2670 = vld [vmem:[#allocation2 + $0x3e0] sm:$0xff]
        %v2671 = vld [vmem:[#allocation2 + $0x3e8] sm:$0xff]
        %v2672 = vld [vmem:[#allocation2 + $0x3f0] sm:$0xff]
        %v2673 = vld [vmem:[#allocation2 + $0x3f8] sm:$0xff]
        %v2674 = vld [vmem:[#allocation2 + $0x400] sm:$0xff]
        %v2675 = vld [vmem:[#allocation2 + $0x408] sm:$0xff]
        %v2676 = vld [vmem:[#allocation2 + $0x410] sm:$0xff]
        %v2677 = vld [vmem:[#allocation2 + $0x418] sm:$0xff]
        %v2678 = vld [vmem:[#allocation2 + $0x420] sm:$0xff]
        %v2679 = vld [vmem:[#allocation2 + $0x428] sm:$0xff]
        %v2680 = vld [vmem:[#allocation2 + $0x430] sm:$0xff]
        %v2681 = vld [vmem:[#allocation2 + $0x438] sm:$0xff]
        %v2682 = vld [vmem:[#allocation2 + $0x440] sm:$0xff]
        %v2683 = vld [vmem:[#allocation2 + $0x448] sm:$0xff]
        %v2684 = vld [vmem:[#allocation2 + $0x450] sm:$0xff]
        %v2685 = vld [vmem:[#allocation2 + $0x458] sm:$0xff]
        %v2686 = vld [vmem:[#allocation2 + $0x460] sm:$0xff]
        %v2687 = vld [vmem:[#allocation2 + $0x468] sm:$0xff]
        %v2688 = vld [vmem:[#allocation2 + $0x470] sm:$0xff]
        %v2689 = vld [vmem:[#allocation2 + $0x478] sm:$0xff]
        %v2690 = vld [vmem:[#allocation2 + $0x480] sm:$0xff]
        %v2691 = vld [vmem:[#allocation2 + $0x488] sm:$0xff]
        %v2692 = vld [vmem:[#allocation2 + $0x490] sm:$0xff]
        %v2693 = vld [vmem:[#allocation2 + $0x498] sm:$0xff]
        %v2694 = vld [vmem:[#allocation2 + $0x4a0] sm:$0xff]
        %v2695 = vld [vmem:[#allocation2 + $0x4a8] sm:$0xff]
        %v2696 = vld [vmem:[#allocation2 + $0x4b0] sm:$0xff]
        %v2697 = vld [vmem:[#allocation2 + $0x4b8] sm:$0xff]
        %v2698 = vld [vmem:[#allocation2 + $0x4c0] sm:$0xff]
        %v2699 = vld [vmem:[#allocation2 + $0x4c8] sm:$0xff]
        %v2700 = vld [vmem:[#allocation2 + $0x4d0] sm:$0xff]
        %v2701 = vld [vmem:[#allocation2 + $0x4d8] sm:$0xff]
        %v2702 = vld [vmem:[#allocation2 + $0x4e0] sm:$0xff]
        %v2703 = vld [vmem:[#allocation2 + $0x4e8] sm:$0xff]
        %v2704 = vld [vmem:[#allocation2 + $0x4f0] sm:$0xff]
        %v2705 = vld [vmem:[#allocation2 + $0x4f8] sm:$0xff]
        %v2706 = vld [vmem:[#allocation2 + $0x500] sm:$0xff]
        %v2707 = vld [vmem:[#allocation2 + $0x508] sm:$0xff]
        %v2708 = vld [vmem:[#allocation2 + $0x510] sm:$0xff]
        %v2709 = vld [vmem:[#allocation2 + $0x518] sm:$0xff]
        %v2710 = vld [vmem:[#allocation2 + $0x520] sm:$0xff]
        %v2711 = vld [vmem:[#allocation2 + $0x528] sm:$0xff]
        %v2712 = vld [vmem:[#allocation2 + $0x530] sm:$0xff]
        %v2713 = vld [vmem:[#allocation2 + $0x538] sm:$0xff]
        %v2714 = vld [vmem:[#allocation2 + $0x540] sm:$0xff]
        %v2715 = vld [vmem:[#allocation2 + $0x548] sm:$0xff]
        %v2716 = vld [vmem:[#allocation2 + $0x550] sm:$0xff]
        %v2717 = vld [vmem:[#allocation2 + $0x558] sm:$0xff]
        %v2718 = vld [vmem:[#allocation2 + $0x560] sm:$0xff]
        %v2719 = vld [vmem:[#allocation2 + $0x568] sm:$0xff]
        %v2720 = vld [vmem:[#allocation2 + $0x570] sm:$0xff]
        %v2721 = vld [vmem:[#allocation2 + $0x578] sm:$0xff]
        %v2722 = vld [vmem:[#allocation2 + $0x580] sm:$0xff]
        %v2723 = vld [vmem:[#allocation2 + $0x588] sm:$0xff]
        %v2724 = vld [vmem:[#allocation2 + $0x590] sm:$0xff]
        %v2725 = vld [vmem:[#allocation2 + $0x598] sm:$0xff]
        %v2726 = vld [vmem:[#allocation2 + $0x5a0] sm:$0xff]
        %v2727 = vld [vmem:[#allocation2 + $0x5a8] sm:$0xff]
        %v2728 = vld [vmem:[#allocation2 + $0x5b0] sm:$0xff]
        %v2729 = vld [vmem:[#allocation2 + $0x5b8] sm:$0xff]
        %v2730 = vld [vmem:[#allocation2 + $0x5c0] sm:$0xff]
        %v2731 = vld [vmem:[#allocation2 + $0x5c8] sm:$0xff]
        %v2732 = vld [vmem:[#allocation2 + $0x5d0] sm:$0xff]
        %v2733 = vld [vmem:[#allocation2 + $0x5d8] sm:$0xff]
        %v2734 = vld [vmem:[#allocation2 + $0x5e0] sm:$0xff]
        %v2735 = vld [vmem:[#allocation2 + $0x5e8] sm:$0xff]
        %v2736 = vld [vmem:[#allocation2 + $0x5f0] sm:$0xff]
        %v2737 = vld [vmem:[#allocation2 + $0x5f8] sm:$0xff]
        %v2738 = vld [vmem:[#allocation2 + $0x600] sm:$0xff]
        %v2739 = vld [vmem:[#allocation2 + $0x608] sm:$0xff]
        %v2740 = vld [vmem:[#allocation2 + $0x610] sm:$0xff]
        %v2741 = vld [vmem:[#allocation2 + $0x618] sm:$0xff]
        %v2742 = vld [vmem:[#allocation2 + $0x620] sm:$0xff]
        %v2743 = vld [vmem:[#allocation2 + $0x628] sm:$0xff]
        %v2744 = vld [vmem:[#allocation2 + $0x630] sm:$0xff]
        %v2745 = vld [vmem:[#allocation2 + $0x638] sm:$0xff]
        %v2746 = vld [vmem:[#allocation2 + $0x640] sm:$0x7f]
        %v2747 = vld [vmem:[#allocation2 + $0x648] sm:$0x7f]
        %vm2748 = vcmask 318464
        %v2750 = vsel %vm2748, %v2538, 0
        %v2753 = vsel %vm2748, %v2545, 0
        %vm2755 = vcmask 1046528
        %v2757 = vsel %vm2755, %v2746, 0
        %v2760 = vsel %vm2755, %v2747, 0
        %2762 = vmatpush.msra.mxu0 %v2576
        %2763 = vmatpush.msra.mxu0 %v2574
        %2764 = vmatpush.msra.mxu0 %v2572
        %2765 = vmatpush.msra.mxu0 %v2570
        %2766 = vmatpush.msra.mxu0 %v2568
        %2767 = vmatpush.msra.mxu0 %v2566
        %2768 = vmatpush.msra.mxu0 %v2564
        %2769 = vmatpush.msra.mxu0 %v2562
        %2770 = vmatpush.msra.mxu0 %v2560
        %2771 = vmatpush.msra.mxu0 %v2558
        %2772 = vmatpush.msra.mxu0 %v2556
        %2773 = vmatpush.msra.mxu0 %v2554
        %2774 = vmatpush.msra.mxu0 %v2552
        %2775 = vmatpush.msra.mxu0 %v2550
        %2776 = vmatpush.msra.mxu0 %v2548
        %2777 = vmatpush.msra.mxu0 %v2546
        %2778 = vmatmul.f32.gmra.mxu0 %v2532
        %v2779 = vpop.f32.mrf.mxu0
        %v2780 = vadd.f32 0.0, %v2779
        %2781 = vmatmul.f32.gmra.mxu0 %v2539
        %v2782 = vpop.f32.mrf.mxu0
        %v2783 = vadd.f32 0.0, %v2782
        %2784 = vdwg.mxu0
        %2785 = vmatpush.msra.mxu0 %v2608
        %2786 = vmatpush.msra.mxu0 %v2606
        %2787 = vmatpush.msra.mxu0 %v2604
        %2788 = vmatpush.msra.mxu0 %v2602
        %2789 = vmatpush.msra.mxu0 %v2600
        %2790 = vmatpush.msra.mxu0 %v2598
        %2791 = vmatpush.msra.mxu0 %v2596
        %2792 = vmatpush.msra.mxu0 %v2594
        %2793 = vmatpush.msra.mxu0 %v2592
        %2794 = vmatpush.msra.mxu0 %v2590
        %2795 = vmatpush.msra.mxu0 %v2588
        %2796 = vmatpush.msra.mxu0 %v2586
        %2797 = vmatpush.msra.mxu0 %v2584
        %2798 = vmatpush.msra.mxu0 %v2582
        %2799 = vmatpush.msra.mxu0 %v2580
        %2800 = vmatpush.msra.mxu0 %v2578
        %2801 = vmatmul.f32.gmra.mxu0 %v2533
        %v2802 = vpop.f32.mrf.mxu0
        %v2803 = vadd.f32 %v2780, %v2802
        %2804 = vmatmul.f32.gmra.mxu0 %v2540
        %v2805 = vpop.f32.mrf.mxu0
        %v2806 = vadd.f32 %v2783, %v2805
        %2807 = vdwg.mxu0
        %2808 = vmatpush.msra.mxu0 %v2640
        %2809 = vmatpush.msra.mxu0 %v2638
        %2810 = vmatpush.msra.mxu0 %v2636
        %2811 = vmatpush.msra.mxu0 %v2634
        %2812 = vmatpush.msra.mxu0 %v2632
        %2813 = vmatpush.msra.mxu0 %v2630
        %2814 = vmatpush.msra.mxu0 %v2628
        %2815 = vmatpush.msra.mxu0 %v2626
        %2816 = vmatpush.msra.mxu0 %v2624
        %2817 = vmatpush.msra.mxu0 %v2622
        %2818 = vmatpush.msra.mxu0 %v2620
        %2819 = vmatpush.msra.mxu0 %v2618
        %2820 = vmatpush.msra.mxu0 %v2616
        %2821 = vmatpush.msra.mxu0 %v2614
        %2822 = vmatpush.msra.mxu0 %v2612
        %2823 = vmatpush.msra.mxu0 %v2610
        %2824 = vmatmul.f32.gmra.mxu0 %v2534
        %v2825 = vpop.f32.mrf.mxu0
        %v2826 = vadd.f32 %v2803, %v2825
        %2827 = vmatmul.f32.gmra.mxu0 %v2541
        %v2828 = vpop.f32.mrf.mxu0
        %v2829 = vadd.f32 %v2806, %v2828
        %2830 = vdwg.mxu0
        %2831 = vmatpush.msra.mxu0 %v2672
        %2832 = vmatpush.msra.mxu0 %v2670
        %2833 = vmatpush.msra.mxu0 %v2668
        %2834 = vmatpush.msra.mxu0 %v2666
        %2835 = vmatpush.msra.mxu0 %v2664
        %2836 = vmatpush.msra.mxu0 %v2662
        %2837 = vmatpush.msra.mxu0 %v2660
        %2838 = vmatpush.msra.mxu0 %v2658
        %2839 = vmatpush.msra.mxu0 %v2656
        %2840 = vmatpush.msra.mxu0 %v2654
        %2841 = vmatpush.msra.mxu0 %v2652
        %2842 = vmatpush.msra.mxu0 %v2650
        %2843 = vmatpush.msra.mxu0 %v2648
        %2844 = vmatpush.msra.mxu0 %v2646
        %2845 = vmatpush.msra.mxu0 %v2644
        %2846 = vmatpush.msra.mxu0 %v2642
        %2847 = vmatmul.f32.gmra.mxu0 %v2535
        %v2848 = vpop.f32.mrf.mxu0
        %v2849 = vadd.f32 %v2826, %v2848
        %2850 = vmatmul.f32.gmra.mxu0 %v2542
        %v2851 = vpop.f32.mrf.mxu0
        %v2852 = vadd.f32 %v2829, %v2851
        %2853 = vdwg.mxu0
        %2854 = vmatpush.msra.mxu0 %v2704
        %2855 = vmatpush.msra.mxu0 %v2702
        %2856 = vmatpush.msra.mxu0 %v2700
        %2857 = vmatpush.msra.mxu0 %v2698
        %2858 = vmatpush.msra.mxu0 %v2696
        %2859 = vmatpush.msra.mxu0 %v2694
        %2860 = vmatpush.msra.mxu0 %v2692
        %2861 = vmatpush.msra.mxu0 %v2690
        %2862 = vmatpush.msra.mxu0 %v2688
        %2863 = vmatpush.msra.mxu0 %v2686
        %2864 = vmatpush.msra.mxu0 %v2684
        %2865 = vmatpush.msra.mxu0 %v2682
        %2866 = vmatpush.msra.mxu0 %v2680
        %2867 = vmatpush.msra.mxu0 %v2678
        %2868 = vmatpush.msra.mxu0 %v2676
        %2869 = vmatpush.msra.mxu0 %v2674
        %2870 = vmatmul.f32.gmra.mxu0 %v2536
        %v2871 = vpop.f32.mrf.mxu0
        %v2872 = vadd.f32 %v2849, %v2871
        %2873 = vmatmul.f32.gmra.mxu0 %v2543
        %v2874 = vpop.f32.mrf.mxu0
        %v2875 = vadd.f32 %v2852, %v2874
        %2876 = vdwg.mxu0
        %2877 = vmatpush.msra.mxu0 %v2736
        %2878 = vmatpush.msra.mxu0 %v2734
        %2879 = vmatpush.msra.mxu0 %v2732
        %2880 = vmatpush.msra.mxu0 %v2730
        %2881 = vmatpush.msra.mxu0 %v2728
        %2882 = vmatpush.msra.mxu0 %v2726
        %2883 = vmatpush.msra.mxu0 %v2724
        %2884 = vmatpush.msra.mxu0 %v2722
        %2885 = vmatpush.msra.mxu0 %v2720
        %2886 = vmatpush.msra.mxu0 %v2718
        %2887 = vmatpush.msra.mxu0 %v2716
        %2888 = vmatpush.msra.mxu0 %v2714
        %2889 = vmatpush.msra.mxu0 %v2712
        %2890 = vmatpush.msra.mxu0 %v2710
        %2891 = vmatpush.msra.mxu0 %v2708
        %2892 = vmatpush.msra.mxu0 %v2706
        %2893 = vmatmul.f32.gmra.mxu0 %v2537
        %v2894 = vpop.f32.mrf.mxu0
        %v2895 = vadd.f32 %v2872, %v2894
        %2896 = vmatmul.f32.gmra.mxu0 %v2544
        %v2897 = vpop.f32.mrf.mxu0
        %v2898 = vadd.f32 %v2875, %v2897
        %2899 = vdwg.mxu0
        %2900 = vmatpush.msra.mxu0 0.0
        %2901 = vmatpush.msra.mxu0 0.0
        %2902 = vmatpush.msra.mxu0 0.0
        %2903 = vmatpush.msra.mxu0 0.0
        %2904 = vmatpush.msra.mxu0 0.0
        %2905 = vmatpush.msra.mxu0 0.0
        %2906 = vmatpush.msra.mxu0 0.0
        %2907 = vmatpush.msra.mxu0 0.0
        %2908 = vmatpush.msra.mxu0 0.0
        %2909 = vmatpush.msra.mxu0 0.0
        %2910 = vmatpush.msra.mxu0 0.0
        %2911 = vmatpush.msra.mxu0 %v2757
        %2912 = vmatpush.msra.mxu0 %v2744
        %2913 = vmatpush.msra.mxu0 %v2742
        %2914 = vmatpush.msra.mxu0 %v2740
        %2915 = vmatpush.msra.mxu0 %v2738
        %2916 = vmatmul.f32.gmra.mxu0 %v2750
        %v2917 = vpop.f32.mrf.mxu0
        %v2918 = vadd.f32 %v2895, %v2917
        %2919 = vmatmul.f32.gmra.mxu0 %v2753
        %v2920 = vpop.f32.mrf.mxu0
        %v2921 = vadd.f32 %v2898, %v2920
        %2922 = vdwg.mxu0
        %2923 = vmatpush.msra.mxu0 %v2577
        %2924 = vmatpush.msra.mxu0 %v2575
        %2925 = vmatpush.msra.mxu0 %v2573
        %2926 = vmatpush.msra.mxu0 %v2571
        %2927 = vmatpush.msra.mxu0 %v2569
        %2928 = vmatpush.msra.mxu0 %v2567
        %2929 = vmatpush.msra.mxu0 %v2565
        %2930 = vmatpush.msra.mxu0 %v2563
        %2931 = vmatpush.msra.mxu0 %v2561
        %2932 = vmatpush.msra.mxu0 %v2559
        %2933 = vmatpush.msra.mxu0 %v2557
        %2934 = vmatpush.msra.mxu0 %v2555
        %2935 = vmatpush.msra.mxu0 %v2553
        %2936 = vmatpush.msra.mxu0 %v2551
        %2937 = vmatpush.msra.mxu0 %v2549
        %2938 = vmatpush.msra.mxu0 %v2547
        %2939 = vmatmul.f32.gmra.mxu0 %v2532
        %v2940 = vpop.f32.mrf.mxu0
        %v2941 = vadd.f32 0.0, %v2940
        %2942 = vmatmul.f32.gmra.mxu0 %v2539
        %v2943 = vpop.f32.mrf.mxu0
        %v2944 = vadd.f32 0.0, %v2943
        %2945 = vdwg.mxu0
        %2946 = vmatpush.msra.mxu0 %v2609
        %2947 = vmatpush.msra.mxu0 %v2607
        %2948 = vmatpush.msra.mxu0 %v2605
        %2949 = vmatpush.msra.mxu0 %v2603
        %2950 = vmatpush.msra.mxu0 %v2601
        %2951 = vmatpush.msra.mxu0 %v2599
        %2952 = vmatpush.msra.mxu0 %v2597
        %2953 = vmatpush.msra.mxu0 %v2595
        %2954 = vmatpush.msra.mxu0 %v2593
        %2955 = vmatpush.msra.mxu0 %v2591
        %2956 = vmatpush.msra.mxu0 %v2589
        %2957 = vmatpush.msra.mxu0 %v2587
        %2958 = vmatpush.msra.mxu0 %v2585
        %2959 = vmatpush.msra.mxu0 %v2583
        %2960 = vmatpush.msra.mxu0 %v2581
        %2961 = vmatpush.msra.mxu0 %v2579
        %2962 = vmatmul.f32.gmra.mxu0 %v2533
        %v2963 = vpop.f32.mrf.mxu0
        %v2964 = vadd.f32 %v2941, %v2963
        %2965 = vmatmul.f32.gmra.mxu0 %v2540
        %v2966 = vpop.f32.mrf.mxu0
        %v2967 = vadd.f32 %v2944, %v2966
        %2968 = vdwg.mxu0
        %2969 = vmatpush.msra.mxu0 %v2641
        %2970 = vmatpush.msra.mxu0 %v2639
        %2971 = vmatpush.msra.mxu0 %v2637
        %2972 = vmatpush.msra.mxu0 %v2635
        %2973 = vmatpush.msra.mxu0 %v2633
        %2974 = vmatpush.msra.mxu0 %v2631
        %2975 = vmatpush.msra.mxu0 %v2629
        %2976 = vmatpush.msra.mxu0 %v2627
        %2977 = vmatpush.msra.mxu0 %v2625
        %2978 = vmatpush.msra.mxu0 %v2623
        %2979 = vmatpush.msra.mxu0 %v2621
        %2980 = vmatpush.msra.mxu0 %v2619
        %2981 = vmatpush.msra.mxu0 %v2617
        %2982 = vmatpush.msra.mxu0 %v2615
        %2983 = vmatpush.msra.mxu0 %v2613
        %2984 = vmatpush.msra.mxu0 %v2611
        %2985 = vmatmul.f32.gmra.mxu0 %v2534
        %v2986 = vpop.f32.mrf.mxu0
        %v2987 = vadd.f32 %v2964, %v2986
        %2988 = vmatmul.f32.gmra.mxu0 %v2541
        %v2989 = vpop.f32.mrf.mxu0
        %v2990 = vadd.f32 %v2967, %v2989
        %2991 = vdwg.mxu0
        %2992 = vmatpush.msra.mxu0 %v2673
        %2993 = vmatpush.msra.mxu0 %v2671
        %2994 = vmatpush.msra.mxu0 %v2669
        %2995 = vmatpush.msra.mxu0 %v2667
        %2996 = vmatpush.msra.mxu0 %v2665
        %2997 = vmatpush.msra.mxu0 %v2663
        %2998 = vmatpush.msra.mxu0 %v2661
        %2999 = vmatpush.msra.mxu0 %v2659
        %3000 = vmatpush.msra.mxu0 %v2657
        %3001 = vmatpush.msra.mxu0 %v2655
        %3002 = vmatpush.msra.mxu0 %v2653
        %3003 = vmatpush.msra.mxu0 %v2651
        %3004 = vmatpush.msra.mxu0 %v2649
        %3005 = vmatpush.msra.mxu0 %v2647
        %3006 = vmatpush.msra.mxu0 %v2645
        %3007 = vmatpush.msra.mxu0 %v2643
        %3008 = vmatmul.f32.gmra.mxu0 %v2535
        %v3009 = vpop.f32.mrf.mxu0
        %v3010 = vadd.f32 %v2987, %v3009
        %3011 = vmatmul.f32.gmra.mxu0 %v2542
        %v3012 = vpop.f32.mrf.mxu0
        %v3013 = vadd.f32 %v2990, %v3012
        %3014 = vdwg.mxu0
        %3015 = vmatpush.msra.mxu0 %v2705
        %3016 = vmatpush.msra.mxu0 %v2703
        %3017 = vmatpush.msra.mxu0 %v2701
        %3018 = vmatpush.msra.mxu0 %v2699
        %3019 = vmatpush.msra.mxu0 %v2697
        %3020 = vmatpush.msra.mxu0 %v2695
        %3021 = vmatpush.msra.mxu0 %v2693
        %3022 = vmatpush.msra.mxu0 %v2691
        %3023 = vmatpush.msra.mxu0 %v2689
        %3024 = vmatpush.msra.mxu0 %v2687
        %3025 = vmatpush.msra.mxu0 %v2685
        %3026 = vmatpush.msra.mxu0 %v2683
        %3027 = vmatpush.msra.mxu0 %v2681
        %3028 = vmatpush.msra.mxu0 %v2679
        %3029 = vmatpush.msra.mxu0 %v2677
        %3030 = vmatpush.msra.mxu0 %v2675
        %3031 = vmatmul.f32.gmra.mxu0 %v2536
        %v3032 = vpop.f32.mrf.mxu0
        %v3033 = vadd.f32 %v3010, %v3032
        %3034 = vmatmul.f32.gmra.mxu0 %v2543
        %v3035 = vpop.f32.mrf.mxu0
        %v3036 = vadd.f32 %v3013, %v3035
        %3037 = vdwg.mxu0
        %3038 = vmatpush.msra.mxu0 %v2737
        %3039 = vmatpush.msra.mxu0 %v2735
        %3040 = vmatpush.msra.mxu0 %v2733
        %3041 = vmatpush.msra.mxu0 %v2731
        %3042 = vmatpush.msra.mxu0 %v2729
        %3043 = vmatpush.msra.mxu0 %v2727
        %3044 = vmatpush.msra.mxu0 %v2725
        %3045 = vmatpush.msra.mxu0 %v2723
        %3046 = vmatpush.msra.mxu0 %v2721
        %3047 = vmatpush.msra.mxu0 %v2719
        %3048 = vmatpush.msra.mxu0 %v2717
        %3049 = vmatpush.msra.mxu0 %v2715
        %3050 = vmatpush.msra.mxu0 %v2713
        %3051 = vmatpush.msra.mxu0 %v2711
        %3052 = vmatpush.msra.mxu0 %v2709
        %3053 = vmatpush.msra.mxu0 %v2707
        %3054 = vmatmul.f32.gmra.mxu0 %v2537
        %v3055 = vpop.f32.mrf.mxu0
        %v3056 = vadd.f32 %v3033, %v3055
        %3057 = vmatmul.f32.gmra.mxu0 %v2544
        %v3058 = vpop.f32.mrf.mxu0
        %v3059 = vadd.f32 %v3036, %v3058
        %3060 = vdwg.mxu0
        %3061 = vmatpush.msra.mxu0 0.0
        %3062 = vmatpush.msra.mxu0 0.0
        %3063 = vmatpush.msra.mxu0 0.0
        %3064 = vmatpush.msra.mxu0 0.0
        %3065 = vmatpush.msra.mxu0 0.0
        %3066 = vmatpush.msra.mxu0 0.0
        %3067 = vmatpush.msra.mxu0 0.0
        %3068 = vmatpush.msra.mxu0 0.0
        %3069 = vmatpush.msra.mxu0 0.0
        %3070 = vmatpush.msra.mxu0 0.0
        %3071 = vmatpush.msra.mxu0 0.0
        %3072 = vmatpush.msra.mxu0 %v2760
        %3073 = vmatpush.msra.mxu0 %v2745
        %3074 = vmatpush.msra.mxu0 %v2743
        %3075 = vmatpush.msra.mxu0 %v2741
        %3076 = vmatpush.msra.mxu0 %v2739
        %3077 = vmatmul.f32.gmra.mxu0 %v2750
        %v3078 = vpop.f32.mrf.mxu0
        %v3079 = vadd.f32 %v3056, %v3078
        %3080 = vmatmul.f32.gmra.mxu0 %v2753
        %v3081 = vpop.f32.mrf.mxu0
        %v3082 = vadd.f32 %v3059, %v3081
        %3083 = vdwg.mxu0
        %v3084 = vld [vmem:[%s4] sm:$0xff]
        %v3085 = vld [vmem:[%s4 + $0x10] sm:$0xff]
        %v3086 = vld [vmem:[%s4 + $0x20] sm:$0xff]
        %v3087 = vld [vmem:[%s4 + $0x30] sm:$0xff]
        %3092 = vrot.lane.b32.xlu0 %v3084, 112
        %v3093 = vpop.permute.xlu0 %3092
        %3094 = vrot.lane.b32.xlu0 %v3085, 112
        %v3095 = vpop.permute.xlu0 %3094
        %3096 = vrot.lane.b32.xlu0 %v3086, 112
        %v3097 = vpop.permute.xlu0 %3096
        %3098 = vrot.lane.b32.xlu0 %v3087, 112
        %v3099 = vpop.permute.xlu0 %3098
        %3104 = vrot.lane.b32.xlu0 %v2918, 127
        %v3105 = vpop.permute.xlu0 %3104
        %3106 = vrot.lane.b32.xlu0 %v3079, 127
        %v3107 = vpop.permute.xlu0 %3106
        %3108 = vrot.lane.b32.xlu0 %v2921, 127
        %v3109 = vpop.permute.xlu0 %3108
        %3110 = vrot.lane.b32.xlu0 %v3082, 127
        %v3111 = vpop.permute.xlu0 %3110
        %v3112 = vsel %vm473, %v3105, %v3107
        %v3113 = vsel %vm473, %v3109, %v3111
        %vm3118 = vcmask 130048
        %v3119 = vsel %vm3118, %v3093, 0
        %v3121 = vsel %vm3118, %v3095, 0
        %v3123 = vsel %vm3118, %v3097, 0
        %v3125 = vsel %vm3118, %v3099, 0
        %3127 = vmatpush.msra.mxu0 0.0
        %3128 = vmatpush.msra.mxu0 0.0
        %3129 = vmatpush.msra.mxu0 0.0
        %3130 = vmatpush.msra.mxu0 0.0
        %3131 = vmatpush.msra.mxu0 0.0
        %3132 = vmatpush.msra.mxu0 0.0
        %3133 = vmatpush.msra.mxu0 0.0
        %3134 = vmatpush.msra.mxu0 0.0
        %3135 = vmatpush.msra.mxu0 0.0
        %3136 = vmatpush.msra.mxu0 0.0
        %3137 = vmatpush.msra.mxu0 0.0
        %3138 = vmatpush.msra.mxu0 0.0
        %3139 = vmatpush.msra.mxu0 0.0
        %3140 = vmatpush.msra.mxu0 0.0
        %3141 = vmatpush.msra.mxu0 %v3113
        %3142 = vmatpush.msra.mxu0 %v3112
        %3143 = vmatmul.f32.gmra.mxu0 %v3119
        %v3144 = vpop.f32.mrf.mxu0
        %v3145 = vadd.f32 0.0, %v3144
        %3146 = vmatmul.f32.gmra.mxu0 %v3121
        %v3147 = vpop.f32.mrf.mxu0
        %v3148 = vadd.f32 0.0, %v3147
        %3149 = vmatmul.f32.gmra.mxu0 %v3123
        %v3150 = vpop.f32.mrf.mxu0
        %v3151 = vadd.f32 0.0, %v3150
        %3152 = vmatmul.f32.gmra.mxu0 %v3125
        %v3153 = vpop.f32.mrf.mxu0
        %v3154 = vadd.f32 0.0, %v3153
        %3155 = vdwg.mxu0
        %3156 = vmatpush.msra.mxu0 0.0
        %3157 = vmatpush.msra.mxu0 0.0
        %3158 = vmatpush.msra.mxu0 0.0
        %3159 = vmatpush.msra.mxu0 0.0
        %3160 = vmatpush.msra.mxu0 0.0
        %3161 = vmatpush.msra.mxu0 0.0
        %3162 = vmatpush.msra.mxu0 0.0
        %3163 = vmatpush.msra.mxu0 0.0
        %3164 = vmatpush.msra.mxu0 0.0
        %3165 = vmatpush.msra.mxu0 0.0
        %3166 = vmatpush.msra.mxu0 0.0
        %3167 = vmatpush.msra.mxu0 0.0
        %3168 = vmatpush.msra.mxu0 0.0
        %3169 = vmatpush.msra.mxu0 0.0
        %3170 = vmatpush.msra.mxu0 %v3111
        %3171 = vmatpush.msra.mxu0 %v3107
        %3172 = vmatmul.f32.gmra.mxu0 %v3119
        %v3173 = vpop.f32.mrf.mxu0
        %v3174 = vadd.f32 0.0, %v3173
        %3175 = vmatmul.f32.gmra.mxu0 %v3121
        %v3176 = vpop.f32.mrf.mxu0
        %v3177 = vadd.f32 0.0, %v3176
        %3178 = vmatmul.f32.gmra.mxu0 %v3123
        %v3179 = vpop.f32.mrf.mxu0
        %v3180 = vadd.f32 0.0, %v3179
        %3181 = vmatmul.f32.gmra.mxu0 %v3125
        %v3182 = vpop.f32.mrf.mxu0
        %v3183 = vadd.f32 0.0, %v3182
        %3184 = vdwg.mxu0
        %v3185 = vsel %vm3118, %v3084, 0
        %v3187 = vsel %vm3118, %v3085, 0
        %v3189 = vsel %vm3118, %v3086, 0
        %v3191 = vsel %vm3118, %v3087, 0
        %3193 = vmatpush.msra.mxu0 0.0
        %3194 = vmatpush.msra.mxu0 0.0
        %3195 = vmatpush.msra.mxu0 0.0
        %3196 = vmatpush.msra.mxu0 0.0
        %3197 = vmatpush.msra.mxu0 0.0
        %3198 = vmatpush.msra.mxu0 0.0
        %3199 = vmatpush.msra.mxu0 0.0
        %3200 = vmatpush.msra.mxu0 0.0
        %3201 = vmatpush.msra.mxu0 0.0
        %3202 = vmatpush.msra.mxu0 0.0
        %3203 = vmatpush.msra.mxu0 0.0
        %3204 = vmatpush.msra.mxu0 0.0
        %3205 = vmatpush.msra.mxu0 0.0
        %3206 = vmatpush.msra.mxu0 0.0
        %3207 = vmatpush.msra.mxu0 %v2921
        %3208 = vmatpush.msra.mxu0 %v2918
        %3209 = vmatmul.f32.gmra.mxu0 %v3185
        %v3210 = vpop.f32.mrf.mxu0
        %v3211 = vadd.f32 %v3145, %v3210
        %3212 = vmatmul.f32.gmra.mxu0 %v3187
        %v3213 = vpop.f32.mrf.mxu0
        %v3214 = vadd.f32 %v3148, %v3213
        %3215 = vmatmul.f32.gmra.mxu0 %v3189
        %v3216 = vpop.f32.mrf.mxu0
        %v3217 = vadd.f32 %v3151, %v3216
        %3218 = vmatmul.f32.gmra.mxu0 %v3191
        %v3219 = vpop.f32.mrf.mxu0
        %v3220 = vadd.f32 %v3154, %v3219
        %3221 = vdwg.mxu0
        %3222 = vmatpush.msra.mxu0 0.0
        %3223 = vmatpush.msra.mxu0 0.0
        %3224 = vmatpush.msra.mxu0 0.0
        %3225 = vmatpush.msra.mxu0 0.0
        %3226 = vmatpush.msra.mxu0 0.0
        %3227 = vmatpush.msra.mxu0 0.0
        %3228 = vmatpush.msra.mxu0 0.0
        %3229 = vmatpush.msra.mxu0 0.0
        %3230 = vmatpush.msra.mxu0 0.0
        %3231 = vmatpush.msra.mxu0 0.0
        %3232 = vmatpush.msra.mxu0 0.0
        %3233 = vmatpush.msra.mxu0 0.0
        %3234 = vmatpush.msra.mxu0 0.0
        %3235 = vmatpush.msra.mxu0 0.0
        %3236 = vmatpush.msra.mxu0 %v3082
        %3237 = vmatpush.msra.mxu0 %v3079
        %3238 = vmatmul.f32.gmra.mxu0 %v3185
        %v3239 = vpop.f32.mrf.mxu0
        %v3240 = vadd.f32 %v3174, %v3239
        %3241 = vmatmul.f32.gmra.mxu0 %v3187
        %v3242 = vpop.f32.mrf.mxu0
        %v3243 = vadd.f32 %v3177, %v3242
        %3244 = vmatmul.f32.gmra.mxu0 %v3189
        %v3245 = vpop.f32.mrf.mxu0
        %v3246 = vadd.f32 %v3180, %v3245
        %3247 = vmatmul.f32.gmra.mxu0 %v3191
        %v3248 = vpop.f32.mrf.mxu0
        %v3249 = vadd.f32 %v3183, %v3248
        %3250 = vdwg.mxu0
        %3251 = vrot.lane.b32.xlu0 %v3084, 96
        %v3252 = vpop.permute.xlu0 %3251
        %3253 = vrot.lane.b32.xlu0 %v3085, 96
        %v3254 = vpop.permute.xlu0 %3253
        %3255 = vrot.lane.b32.xlu0 %v3086, 96
        %v3256 = vpop.permute.xlu0 %3255
        %3257 = vrot.lane.b32.xlu0 %v3087, 96
        %v3258 = vpop.permute.xlu0 %3257
        %3259 = vrot.lane.b32.xlu0 %v2918, 126
        %v3260 = vpop.permute.xlu0 %3259
        %3261 = vrot.lane.b32.xlu0 %v3079, 126
        %v3262 = vpop.permute.xlu0 %3261
        %3263 = vrot.lane.b32.xlu0 %v2921, 126
        %v3264 = vpop.permute.xlu0 %3263
        %3265 = vrot.lane.b32.xlu0 %v3082, 126
        %v3266 = vpop.permute.xlu0 %3265
        %v3267 = vsel %vm890, %v3260, %v3262
        %v3268 = vsel %vm890, %v3264, %v3266
        %v3273 = vsel %vm3118, %v3252, 0
        %v3275 = vsel %vm3118, %v3254, 0
        %v3277 = vsel %vm3118, %v3256, 0
        %v3279 = vsel %vm3118, %v3258, 0
        %3281 = vmatpush.msra.mxu0 0.0
        %3282 = vmatpush.msra.mxu0 0.0
        %3283 = vmatpush.msra.mxu0 0.0
        %3284 = vmatpush.msra.mxu0 0.0
        %3285 = vmatpush.msra.mxu0 0.0
        %3286 = vmatpush.msra.mxu0 0.0
        %3287 = vmatpush.msra.mxu0 0.0
        %3288 = vmatpush.msra.mxu0 0.0
        %3289 = vmatpush.msra.mxu0 0.0
        %3290 = vmatpush.msra.mxu0 0.0
        %3291 = vmatpush.msra.mxu0 0.0
        %3292 = vmatpush.msra.mxu0 0.0
        %3293 = vmatpush.msra.mxu0 0.0
        %3294 = vmatpush.msra.mxu0 0.0
        %3295 = vmatpush.msra.mxu0 %v3268
        %3296 = vmatpush.msra.mxu0 %v3267
        %3297 = vmatmul.f32.gmra.mxu0 %v3273
        %v3298 = vpop.f32.mrf.mxu0
        %v3299 = vadd.f32 0.0, %v3298
        %3300 = vmatmul.f32.gmra.mxu0 %v3275
        %v3301 = vpop.f32.mrf.mxu0
        %v3302 = vadd.f32 0.0, %v3301
        %3303 = vmatmul.f32.gmra.mxu0 %v3277
        %v3304 = vpop.f32.mrf.mxu0
        %v3305 = vadd.f32 0.0, %v3304
        %3306 = vmatmul.f32.gmra.mxu0 %v3279
        %v3307 = vpop.f32.mrf.mxu0
        %v3308 = vadd.f32 0.0, %v3307
        %3309 = vdwg.mxu0
        %3310 = vmatpush.msra.mxu0 0.0
        %3311 = vmatpush.msra.mxu0 0.0
        %3312 = vmatpush.msra.mxu0 0.0
        %3313 = vmatpush.msra.mxu0 0.0
        %3314 = vmatpush.msra.mxu0 0.0
        %3315 = vmatpush.msra.mxu0 0.0
        %3316 = vmatpush.msra.mxu0 0.0
        %3317 = vmatpush.msra.mxu0 0.0
        %3318 = vmatpush.msra.mxu0 0.0
        %3319 = vmatpush.msra.mxu0 0.0
        %3320 = vmatpush.msra.mxu0 0.0
        %3321 = vmatpush.msra.mxu0 0.0
        %3322 = vmatpush.msra.mxu0 0.0
        %3323 = vmatpush.msra.mxu0 0.0
        %3324 = vmatpush.msra.mxu0 %v3266
        %3325 = vmatpush.msra.mxu0 %v3262
        %3326 = vmatmul.f32.gmra.mxu0 %v3273
        %v3327 = vpop.f32.mrf.mxu0
        %v3328 = vadd.f32 0.0, %v3327
        %3329 = vmatmul.f32.gmra.mxu0 %v3275
        %v3330 = vpop.f32.mrf.mxu0
        %v3331 = vadd.f32 0.0, %v3330
        %3332 = vmatmul.f32.gmra.mxu0 %v3277
        %v3333 = vpop.f32.mrf.mxu0
        %v3334 = vadd.f32 0.0, %v3333
        %3335 = vmatmul.f32.gmra.mxu0 %v3279
        %v3336 = vpop.f32.mrf.mxu0
        %v3337 = vadd.f32 0.0, %v3336
        %3338 = vdwg.mxu0
        %v3339 = vadd.f32 %v3211, %v3299
        %v3340 = vadd.f32 %v3240, %v3328
        %v3341 = vadd.f32 %v3214, %v3302
        %v3342 = vadd.f32 %v3243, %v3331
        %v3343 = vadd.f32 %v3217, %v3305
        %v3344 = vadd.f32 %v3246, %v3334
        %v3345 = vadd.f32 %v3220, %v3308
        %v3346 = vadd.f32 %v3249, %v3337
        %3347 = vrot.lane.b32.xlu0 %v3084, 80
        %v3348 = vpop.permute.xlu0 %3347
        %3349 = vrot.lane.b32.xlu0 %v3085, 80
        %v3350 = vpop.permute.xlu0 %3349
        %3351 = vrot.lane.b32.xlu0 %v3086, 80
        %v3352 = vpop.permute.xlu0 %3351
        %3353 = vrot.lane.b32.xlu0 %v3087, 80
        %v3354 = vpop.permute.xlu0 %3353
        %3355 = vrot.lane.b32.xlu0 %v2918, 112
        %v3356 = vpop.permute.xlu0 %3355
        %3357 = vrot.lane.b32.xlu0 %v3079, 112
        %v3358 = vpop.permute.xlu0 %3357
        %3359 = vrot.lane.b32.xlu0 %v2921, 112
        %v3360 = vpop.permute.xlu0 %3359
        %3361 = vrot.lane.b32.xlu0 %v3082, 112
        %v3362 = vpop.permute.xlu0 %3361
        %vm3363 = vcmask 916480
        %v3364 = vsel %vm3363, %v3356, %v3358
        %v3365 = vsel %vm3363, %v3360, %v3362
        %v3370 = vsel %vm3118, %v3348, 0
        %v3372 = vsel %vm3118, %v3350, 0
        %v3374 = vsel %vm3118, %v3352, 0
        %v3376 = vsel %vm3118, %v3354, 0
        %3378 = vmatpush.msra.mxu0 0.0
        %3379 = vmatpush.msra.mxu0 0.0
        %3380 = vmatpush.msra.mxu0 0.0
        %3381 = vmatpush.msra.mxu0 0.0
        %3382 = vmatpush.msra.mxu0 0.0
        %3383 = vmatpush.msra.mxu0 0.0
        %3384 = vmatpush.msra.mxu0 0.0
        %3385 = vmatpush.msra.mxu0 0.0
        %3386 = vmatpush.msra.mxu0 0.0
        %3387 = vmatpush.msra.mxu0 0.0
        %3388 = vmatpush.msra.mxu0 0.0
        %3389 = vmatpush.msra.mxu0 0.0
        %3390 = vmatpush.msra.mxu0 0.0
        %3391 = vmatpush.msra.mxu0 0.0
        %3392 = vmatpush.msra.mxu0 %v3365
        %3393 = vmatpush.msra.mxu0 %v3364
        %3394 = vmatmul.f32.gmra.mxu0 %v3370
        %v3395 = vpop.f32.mrf.mxu0
        %v3396 = vadd.f32 0.0, %v3395
        %3397 = vmatmul.f32.gmra.mxu0 %v3372
        %v3398 = vpop.f32.mrf.mxu0
        %v3399 = vadd.f32 0.0, %v3398
        %3400 = vmatmul.f32.gmra.mxu0 %v3374
        %v3401 = vpop.f32.mrf.mxu0
        %v3402 = vadd.f32 0.0, %v3401
        %3403 = vmatmul.f32.gmra.mxu0 %v3376
        %v3404 = vpop.f32.mrf.mxu0
        %v3405 = vadd.f32 0.0, %v3404
        %3406 = vdwg.mxu0
        %3407 = vmatpush.msra.mxu0 0.0
        %3408 = vmatpush.msra.mxu0 0.0
        %3409 = vmatpush.msra.mxu0 0.0
        %3410 = vmatpush.msra.mxu0 0.0
        %3411 = vmatpush.msra.mxu0 0.0
        %3412 = vmatpush.msra.mxu0 0.0
        %3413 = vmatpush.msra.mxu0 0.0
        %3414 = vmatpush.msra.mxu0 0.0
        %3415 = vmatpush.msra.mxu0 0.0
        %3416 = vmatpush.msra.mxu0 0.0
        %3417 = vmatpush.msra.mxu0 0.0
        %3418 = vmatpush.msra.mxu0 0.0
        %3419 = vmatpush.msra.mxu0 0.0
        %3420 = vmatpush.msra.mxu0 0.0
        %3421 = vmatpush.msra.mxu0 %v3362
        %3422 = vmatpush.msra.mxu0 %v3358
        %3423 = vmatmul.f32.gmra.mxu0 %v3370
        %v3424 = vpop.f32.mrf.mxu0
        %v3425 = vadd.f32 0.0, %v3424
        %3426 = vmatmul.f32.gmra.mxu0 %v3372
        %v3427 = vpop.f32.mrf.mxu0
        %v3428 = vadd.f32 0.0, %v3427
        %3429 = vmatmul.f32.gmra.mxu0 %v3374
        %v3430 = vpop.f32.mrf.mxu0
        %v3431 = vadd.f32 0.0, %v3430
        %3432 = vmatmul.f32.gmra.mxu0 %v3376
        %v3433 = vpop.f32.mrf.mxu0
        %v3434 = vadd.f32 0.0, %v3433
        %3435 = vdwg.mxu0
        %v3436 = vadd.f32 %v3339, %v3396
        %v3437 = vadd.f32 %v3340, %v3425
        %v3438 = vadd.f32 %v3341, %v3399
        %v3439 = vadd.f32 %v3342, %v3428
        %v3440 = vadd.f32 %v3343, %v3402
        %v3441 = vadd.f32 %v3344, %v3431
        %v3442 = vadd.f32 %v3345, %v3405
        %v3443 = vadd.f32 %v3346, %v3434
        %3444 = vrot.lane.b32.xlu0 %v3084, 64
        %v3445 = vpop.permute.xlu0 %3444
        %3446 = vrot.lane.b32.xlu0 %v3085, 64
        %v3447 = vpop.permute.xlu0 %3446
        %3448 = vrot.lane.b32.xlu0 %v3086, 64
        %v3449 = vpop.permute.xlu0 %3448
        %3450 = vrot.lane.b32.xlu0 %v3087, 64
        %v3451 = vpop.permute.xlu0 %3450
        %3452 = vrot.lane.b32.xlu0 %v2918, 111
        %v3453 = vpop.permute.xlu0 %3452
        %3454 = vrot.lane.b32.xlu0 %v3079, 111
        %v3455 = vpop.permute.xlu0 %3454
        %3456 = vrot.lane.b32.xlu0 %v2921, 111
        %v3457 = vpop.permute.xlu0 %3456
        %3458 = vrot.lane.b32.xlu0 %v3082, 111
        %v3459 = vpop.permute.xlu0 %3458
        %vm3460 = vcmask 908288
        %v3461 = vsel %vm3460, %v3453, %v3455
        %v3462 = vsel %vm3460, %v3457, %v3459
        %v3467 = vsel %vm3118, %v3445, 0
        %v3469 = vsel %vm3118, %v3447, 0
        %v3471 = vsel %vm3118, %v3449, 0
        %v3473 = vsel %vm3118, %v3451, 0
        %3475 = vmatpush.msra.mxu0 0.0
        %3476 = vmatpush.msra.mxu0 0.0
        %3477 = vmatpush.msra.mxu0 0.0
        %3478 = vmatpush.msra.mxu0 0.0
        %3479 = vmatpush.msra.mxu0 0.0
        %3480 = vmatpush.msra.mxu0 0.0
        %3481 = vmatpush.msra.mxu0 0.0
        %3482 = vmatpush.msra.mxu0 0.0
        %3483 = vmatpush.msra.mxu0 0.0
        %3484 = vmatpush.msra.mxu0 0.0
        %3485 = vmatpush.msra.mxu0 0.0
        %3486 = vmatpush.msra.mxu0 0.0
        %3487 = vmatpush.msra.mxu0 0.0
        %3488 = vmatpush.msra.mxu0 0.0
        %3489 = vmatpush.msra.mxu0 %v3462
        %3490 = vmatpush.msra.mxu0 %v3461
        %3491 = vmatmul.f32.gmra.mxu0 %v3467
        %v3492 = vpop.f32.mrf.mxu0
        %v3493 = vadd.f32 0.0, %v3492
        %3494 = vmatmul.f32.gmra.mxu0 %v3469
        %v3495 = vpop.f32.mrf.mxu0
        %v3496 = vadd.f32 0.0, %v3495
        %3497 = vmatmul.f32.gmra.mxu0 %v3471
        %v3498 = vpop.f32.mrf.mxu0
        %v3499 = vadd.f32 0.0, %v3498
        %3500 = vmatmul.f32.gmra.mxu0 %v3473
        %v3501 = vpop.f32.mrf.mxu0
        %v3502 = vadd.f32 0.0, %v3501
        %3503 = vdwg.mxu0
        %3504 = vmatpush.msra.mxu0 0.0
        %3505 = vmatpush.msra.mxu0 0.0
        %3506 = vmatpush.msra.mxu0 0.0
        %3507 = vmatpush.msra.mxu0 0.0
        %3508 = vmatpush.msra.mxu0 0.0
        %3509 = vmatpush.msra.mxu0 0.0
        %3510 = vmatpush.msra.mxu0 0.0
        %3511 = vmatpush.msra.mxu0 0.0
        %3512 = vmatpush.msra.mxu0 0.0
        %3513 = vmatpush.msra.mxu0 0.0
        %3514 = vmatpush.msra.mxu0 0.0
        %3515 = vmatpush.msra.mxu0 0.0
        %3516 = vmatpush.msra.mxu0 0.0
        %3517 = vmatpush.msra.mxu0 0.0
        %3518 = vmatpush.msra.mxu0 %v3459
        %3519 = vmatpush.msra.mxu0 %v3455
        %3520 = vmatmul.f32.gmra.mxu0 %v3467
        %v3521 = vpop.f32.mrf.mxu0
        %v3522 = vadd.f32 0.0, %v3521
        %3523 = vmatmul.f32.gmra.mxu0 %v3469
        %v3524 = vpop.f32.mrf.mxu0
        %v3525 = vadd.f32 0.0, %v3524
        %3526 = vmatmul.f32.gmra.mxu0 %v3471
        %v3527 = vpop.f32.mrf.mxu0
        %v3528 = vadd.f32 0.0, %v3527
        %3529 = vmatmul.f32.gmra.mxu0 %v3473
        %v3530 = vpop.f32.mrf.mxu0
        %v3531 = vadd.f32 0.0, %v3530
        %3532 = vdwg.mxu0
        %v3533 = vadd.f32 %v3436, %v3493
        %v3534 = vadd.f32 %v3437, %v3522
        %v3535 = vadd.f32 %v3438, %v3496
        %v3536 = vadd.f32 %v3439, %v3525
        %v3537 = vadd.f32 %v3440, %v3499
        %v3538 = vadd.f32 %v3441, %v3528
        %v3539 = vadd.f32 %v3442, %v3502
        %v3540 = vadd.f32 %v3443, %v3531
        %3541 = vrot.lane.b32.xlu0 %v3084, 48
        %v3542 = vpop.permute.xlu0 %3541
        %3543 = vrot.lane.b32.xlu0 %v3085, 48
        %v3544 = vpop.permute.xlu0 %3543
        %3545 = vrot.lane.b32.xlu0 %v3086, 48
        %v3546 = vpop.permute.xlu0 %3545
        %3547 = vrot.lane.b32.xlu0 %v3087, 48
        %v3548 = vpop.permute.xlu0 %3547
        %3549 = vrot.lane.b32.xlu0 %v2918, 110
        %v3550 = vpop.permute.xlu0 %3549
        %3551 = vrot.lane.b32.xlu0 %v3079, 110
        %v3552 = vpop.permute.xlu0 %3551
        %3553 = vrot.lane.b32.xlu0 %v2921, 110
        %v3554 = vpop.permute.xlu0 %3553
        %3555 = vrot.lane.b32.xlu0 %v3082, 110
        %v3556 = vpop.permute.xlu0 %3555
        %vm3557 = vcmask 900096
        %v3558 = vsel %vm3557, %v3550, %v3552
        %v3559 = vsel %vm3557, %v3554, %v3556
        %v3564 = vsel %vm3118, %v3542, 0
        %v3566 = vsel %vm3118, %v3544, 0
        %v3568 = vsel %vm3118, %v3546, 0
        %v3570 = vsel %vm3118, %v3548, 0
        %3572 = vmatpush.msra.mxu0 0.0
        %3573 = vmatpush.msra.mxu0 0.0
        %3574 = vmatpush.msra.mxu0 0.0
        %3575 = vmatpush.msra.mxu0 0.0
        %3576 = vmatpush.msra.mxu0 0.0
        %3577 = vmatpush.msra.mxu0 0.0
        %3578 = vmatpush.msra.mxu0 0.0
        %3579 = vmatpush.msra.mxu0 0.0
        %3580 = vmatpush.msra.mxu0 0.0
        %3581 = vmatpush.msra.mxu0 0.0
        %3582 = vmatpush.msra.mxu0 0.0
        %3583 = vmatpush.msra.mxu0 0.0
        %3584 = vmatpush.msra.mxu0 0.0
        %3585 = vmatpush.msra.mxu0 0.0
        %3586 = vmatpush.msra.mxu0 %v3559
        %3587 = vmatpush.msra.mxu0 %v3558
        %3588 = vmatmul.f32.gmra.mxu0 %v3564
        %v3589 = vpop.f32.mrf.mxu0
        %v3590 = vadd.f32 0.0, %v3589
        %3591 = vmatmul.f32.gmra.mxu0 %v3566
        %v3592 = vpop.f32.mrf.mxu0
        %v3593 = vadd.f32 0.0, %v3592
        %3594 = vmatmul.f32.gmra.mxu0 %v3568
        %v3595 = vpop.f32.mrf.mxu0
        %v3596 = vadd.f32 0.0, %v3595
        %3597 = vmatmul.f32.gmra.mxu0 %v3570
        %v3598 = vpop.f32.mrf.mxu0
        %v3599 = vadd.f32 0.0, %v3598
        %3600 = vdwg.mxu0
        %3601 = vmatpush.msra.mxu0 0.0
        %3602 = vmatpush.msra.mxu0 0.0
        %3603 = vmatpush.msra.mxu0 0.0
        %3604 = vmatpush.msra.mxu0 0.0
        %3605 = vmatpush.msra.mxu0 0.0
        %3606 = vmatpush.msra.mxu0 0.0
        %3607 = vmatpush.msra.mxu0 0.0
        %3608 = vmatpush.msra.mxu0 0.0
        %3609 = vmatpush.msra.mxu0 0.0
        %3610 = vmatpush.msra.mxu0 0.0
        %3611 = vmatpush.msra.mxu0 0.0
        %3612 = vmatpush.msra.mxu0 0.0
        %3613 = vmatpush.msra.mxu0 0.0
        %3614 = vmatpush.msra.mxu0 0.0
        %3615 = vmatpush.msra.mxu0 %v3556
        %3616 = vmatpush.msra.mxu0 %v3552
        %3617 = vmatmul.f32.gmra.mxu0 %v3564
        %v3618 = vpop.f32.mrf.mxu0
        %v3619 = vadd.f32 0.0, %v3618
        %3620 = vmatmul.f32.gmra.mxu0 %v3566
        %v3621 = vpop.f32.mrf.mxu0
        %v3622 = vadd.f32 0.0, %v3621
        %3623 = vmatmul.f32.gmra.mxu0 %v3568
        %v3624 = vpop.f32.mrf.mxu0
        %v3625 = vadd.f32 0.0, %v3624
        %3626 = vmatmul.f32.gmra.mxu0 %v3570
        %v3627 = vpop.f32.mrf.mxu0
        %v3628 = vadd.f32 0.0, %v3627
        %3629 = vdwg.mxu0
        %v3630 = vadd.f32 %v3533, %v3590
        %v3631 = vadd.f32 %v3534, %v3619
        %v3632 = vadd.f32 %v3535, %v3593
        %v3633 = vadd.f32 %v3536, %v3622
        %v3634 = vadd.f32 %v3537, %v3596
        %v3635 = vadd.f32 %v3538, %v3625
        %v3636 = vadd.f32 %v3539, %v3599
        %v3637 = vadd.f32 %v3540, %v3628
        %3638 = vrot.lane.b32.xlu0 %v3084, 32
        %v3639 = vpop.permute.xlu0 %3638
        %3640 = vrot.lane.b32.xlu0 %v3085, 32
        %v3641 = vpop.permute.xlu0 %3640
        %3642 = vrot.lane.b32.xlu0 %v3086, 32
        %v3643 = vpop.permute.xlu0 %3642
        %3644 = vrot.lane.b32.xlu0 %v3087, 32
        %v3645 = vpop.permute.xlu0 %3644
        %3646 = vrot.lane.b32.xlu0 %v2918, 96
        %v3647 = vpop.permute.xlu0 %3646
        %3648 = vrot.lane.b32.xlu0 %v3079, 96
        %v3649 = vpop.permute.xlu0 %3648
        %3650 = vrot.lane.b32.xlu0 %v2921, 96
        %v3651 = vpop.permute.xlu0 %3650
        %3652 = vrot.lane.b32.xlu0 %v3082, 96
        %v3653 = vpop.permute.xlu0 %3652
        %v3654 = vsel %vm1598, %v3647, %v3649
        %v3655 = vsel %vm1598, %v3651, %v3653
        %v3660 = vsel %vm3118, %v3639, 0
        %v3662 = vsel %vm3118, %v3641, 0
        %v3664 = vsel %vm3118, %v3643, 0
        %v3666 = vsel %vm3118, %v3645, 0
        %3668 = vmatpush.msra.mxu0 0.0
        %3669 = vmatpush.msra.mxu0 0.0
        %3670 = vmatpush.msra.mxu0 0.0
        %3671 = vmatpush.msra.mxu0 0.0
        %3672 = vmatpush.msra.mxu0 0.0
        %3673 = vmatpush.msra.mxu0 0.0
        %3674 = vmatpush.msra.mxu0 0.0
        %3675 = vmatpush.msra.mxu0 0.0
        %3676 = vmatpush.msra.mxu0 0.0
        %3677 = vmatpush.msra.mxu0 0.0
        %3678 = vmatpush.msra.mxu0 0.0
        %3679 = vmatpush.msra.mxu0 0.0
        %3680 = vmatpush.msra.mxu0 0.0
        %3681 = vmatpush.msra.mxu0 0.0
        %3682 = vmatpush.msra.mxu0 %v3655
        %3683 = vmatpush.msra.mxu0 %v3654
        %3684 = vmatmul.f32.gmra.mxu0 %v3660
        %v3685 = vpop.f32.mrf.mxu0
        %v3686 = vadd.f32 0.0, %v3685
        %3687 = vmatmul.f32.gmra.mxu0 %v3662
        %v3688 = vpop.f32.mrf.mxu0
        %v3689 = vadd.f32 0.0, %v3688
        %3690 = vmatmul.f32.gmra.mxu0 %v3664
        %v3691 = vpop.f32.mrf.mxu0
        %v3692 = vadd.f32 0.0, %v3691
        %3693 = vmatmul.f32.gmra.mxu0 %v3666
        %v3694 = vpop.f32.mrf.mxu0
        %v3695 = vadd.f32 0.0, %v3694
        %3696 = vdwg.mxu0
        %3697 = vmatpush.msra.mxu0 0.0
        %3698 = vmatpush.msra.mxu0 0.0
        %3699 = vmatpush.msra.mxu0 0.0
        %3700 = vmatpush.msra.mxu0 0.0
        %3701 = vmatpush.msra.mxu0 0.0
        %3702 = vmatpush.msra.mxu0 0.0
        %3703 = vmatpush.msra.mxu0 0.0
        %3704 = vmatpush.msra.mxu0 0.0
        %3705 = vmatpush.msra.mxu0 0.0
        %3706 = vmatpush.msra.mxu0 0.0
        %3707 = vmatpush.msra.mxu0 0.0
        %3708 = vmatpush.msra.mxu0 0.0
        %3709 = vmatpush.msra.mxu0 0.0
        %3710 = vmatpush.msra.mxu0 0.0
        %3711 = vmatpush.msra.mxu0 %v3653
        %3712 = vmatpush.msra.mxu0 %v3649
        %3713 = vmatmul.f32.gmra.mxu0 %v3660
        %v3714 = vpop.f32.mrf.mxu0
        %v3715 = vadd.f32 0.0, %v3714
        %3716 = vmatmul.f32.gmra.mxu0 %v3662
        %v3717 = vpop.f32.mrf.mxu0
        %v3718 = vadd.f32 0.0, %v3717
        %3719 = vmatmul.f32.gmra.mxu0 %v3664
        %v3720 = vpop.f32.mrf.mxu0
        %v3721 = vadd.f32 0.0, %v3720
        %3722 = vmatmul.f32.gmra.mxu0 %v3666
        %v3723 = vpop.f32.mrf.mxu0
        %v3724 = vadd.f32 0.0, %v3723
        %3725 = vdwg.mxu0
        %v3726 = vadd.f32 %v3630, %v3686
        %v3727 = vadd.f32 %v3631, %v3715
        %v3728 = vadd.f32 %v3632, %v3689
        %v3729 = vadd.f32 %v3633, %v3718
        %v3730 = vadd.f32 %v3634, %v3692
        %v3731 = vadd.f32 %v3635, %v3721
        %v3732 = vadd.f32 %v3636, %v3695
        %v3733 = vadd.f32 %v3637, %v3724
        %3734 = vrot.lane.b32.xlu0 %v3084, 16
        %v3735 = vpop.permute.xlu0 %3734
        %3736 = vrot.lane.b32.xlu0 %v3085, 16
        %v3737 = vpop.permute.xlu0 %3736
        %3738 = vrot.lane.b32.xlu0 %v3086, 16
        %v3739 = vpop.permute.xlu0 %3738
        %3740 = vrot.lane.b32.xlu0 %v3087, 16
        %v3741 = vpop.permute.xlu0 %3740
        %3742 = vrot.lane.b32.xlu0 %v2918, 95
        %v3743 = vpop.permute.xlu0 %3742
        %3744 = vrot.lane.b32.xlu0 %v3079, 95
        %v3745 = vpop.permute.xlu0 %3744
        %3746 = vrot.lane.b32.xlu0 %v2921, 95
        %v3747 = vpop.permute.xlu0 %3746
        %3748 = vrot.lane.b32.xlu0 %v3082, 95
        %v3749 = vpop.permute.xlu0 %3748
        %vm3750 = vcmask 777216
        %v3751 = vsel %vm3750, %v3743, %v3745
        %v3752 = vsel %vm3750, %v3747, %v3749
        %v3757 = vsel %vm3118, %v3735, 0
        %v3759 = vsel %vm3118, %v3737, 0
        %v3761 = vsel %vm3118, %v3739, 0
        %v3763 = vsel %vm3118, %v3741, 0
        %3765 = vmatpush.msra.mxu0 0.0
        %3766 = vmatpush.msra.mxu0 0.0
        %3767 = vmatpush.msra.mxu0 0.0
        %3768 = vmatpush.msra.mxu0 0.0
        %3769 = vmatpush.msra.mxu0 0.0
        %3770 = vmatpush.msra.mxu0 0.0
        %3771 = vmatpush.msra.mxu0 0.0
        %3772 = vmatpush.msra.mxu0 0.0
        %3773 = vmatpush.msra.mxu0 0.0
        %3774 = vmatpush.msra.mxu0 0.0
        %3775 = vmatpush.msra.mxu0 0.0
        %3776 = vmatpush.msra.mxu0 0.0
        %3777 = vmatpush.msra.mxu0 0.0
        %3778 = vmatpush.msra.mxu0 0.0
        %3779 = vmatpush.msra.mxu0 %v3752
        %3780 = vmatpush.msra.mxu0 %v3751
        %3781 = vmatmul.f32.gmra.mxu0 %v3757
        %v3782 = vpop.f32.mrf.mxu0
        %v3783 = vadd.f32 0.0, %v3782
        %3784 = vmatmul.f32.gmra.mxu0 %v3759
        %v3785 = vpop.f32.mrf.mxu0
        %v3786 = vadd.f32 0.0, %v3785
        %3787 = vmatmul.f32.gmra.mxu0 %v3761
        %v3788 = vpop.f32.mrf.mxu0
        %v3789 = vadd.f32 0.0, %v3788
        %3790 = vmatmul.f32.gmra.mxu0 %v3763
        %v3791 = vpop.f32.mrf.mxu0
        %v3792 = vadd.f32 0.0, %v3791
        %3793 = vdwg.mxu0
        %3794 = vmatpush.msra.mxu0 0.0
        %3795 = vmatpush.msra.mxu0 0.0
        %3796 = vmatpush.msra.mxu0 0.0
        %3797 = vmatpush.msra.mxu0 0.0
        %3798 = vmatpush.msra.mxu0 0.0
        %3799 = vmatpush.msra.mxu0 0.0
        %3800 = vmatpush.msra.mxu0 0.0
        %3801 = vmatpush.msra.mxu0 0.0
        %3802 = vmatpush.msra.mxu0 0.0
        %3803 = vmatpush.msra.mxu0 0.0
        %3804 = vmatpush.msra.mxu0 0.0
        %3805 = vmatpush.msra.mxu0 0.0
        %3806 = vmatpush.msra.mxu0 0.0
        %3807 = vmatpush.msra.mxu0 0.0
        %3808 = vmatpush.msra.mxu0 %v3749
        %3809 = vmatpush.msra.mxu0 %v3745
        %3810 = vmatmul.f32.gmra.mxu0 %v3757
        %v3811 = vpop.f32.mrf.mxu0
        %v3812 = vadd.f32 0.0, %v3811
        %3813 = vmatmul.f32.gmra.mxu0 %v3759
        %v3814 = vpop.f32.mrf.mxu0
        %v3815 = vadd.f32 0.0, %v3814
        %3816 = vmatmul.f32.gmra.mxu0 %v3761
        %v3817 = vpop.f32.mrf.mxu0
        %v3818 = vadd.f32 0.0, %v3817
        %3819 = vmatmul.f32.gmra.mxu0 %v3763
        %v3820 = vpop.f32.mrf.mxu0
        %v3821 = vadd.f32 0.0, %v3820
        %3822 = vdwg.mxu0
        %v3823 = vadd.f32 %v3726, %v3783
        %v3824 = vadd.f32 %v3727, %v3812
        %v3825 = vadd.f32 %v3728, %v3786
        %v3826 = vadd.f32 %v3729, %v3815
        %v3827 = vadd.f32 %v3730, %v3789
        %v3828 = vadd.f32 %v3731, %v3818
        %v3829 = vadd.f32 %v3732, %v3792
        %v3830 = vadd.f32 %v3733, %v3821
        %v3831 = vld [vmem:[%s4 + $0x8] sm:$0xff]
        %v3832 = vld [vmem:[%s4 + $0x18] sm:$0xff]
        %v3833 = vld [vmem:[%s4 + $0x28] sm:$0xff]
        %v3834 = vld [vmem:[%s4 + $0x38] sm:$0xff]
        %3835 = vrot.lane.b32.xlu0 %v2918, 94
        %v3836 = vpop.permute.xlu0 %3835
        %3837 = vrot.lane.b32.xlu0 %v3079, 94
        %v3838 = vpop.permute.xlu0 %3837
        %3839 = vrot.lane.b32.xlu0 %v2921, 94
        %v3840 = vpop.permute.xlu0 %3839
        %3841 = vrot.lane.b32.xlu0 %v3082, 94
        %v3842 = vpop.permute.xlu0 %3841
        %vm3843 = vcmask 769024
        %v3844 = vsel %vm3843, %v3836, %v3838
        %v3845 = vsel %vm3843, %v3840, %v3842
        %v3851 = vsel %vm3118, %v3831, 0
        %v3854 = vsel %vm3118, %v3832, 0
        %v3857 = vsel %vm3118, %v3833, 0
        %v3860 = vsel %vm3118, %v3834, 0
        %3862 = vmatpush.msra.mxu0 0.0
        %3863 = vmatpush.msra.mxu0 0.0
        %3864 = vmatpush.msra.mxu0 0.0
        %3865 = vmatpush.msra.mxu0 0.0
        %3866 = vmatpush.msra.mxu0 0.0
        %3867 = vmatpush.msra.mxu0 0.0
        %3868 = vmatpush.msra.mxu0 0.0
        %3869 = vmatpush.msra.mxu0 0.0
        %3870 = vmatpush.msra.mxu0 0.0
        %3871 = vmatpush.msra.mxu0 0.0
        %3872 = vmatpush.msra.mxu0 0.0
        %3873 = vmatpush.msra.mxu0 0.0
        %3874 = vmatpush.msra.mxu0 0.0
        %3875 = vmatpush.msra.mxu0 0.0
        %3876 = vmatpush.msra.mxu0 %v3845
        %3877 = vmatpush.msra.mxu0 %v3844
        %3878 = vmatmul.f32.gmra.mxu0 %v3851
        %v3879 = vpop.f32.mrf.mxu0
        %v3880 = vadd.f32 0.0, %v3879
        %3881 = vmatmul.f32.gmra.mxu0 %v3854
        %v3882 = vpop.f32.mrf.mxu0
        %v3883 = vadd.f32 0.0, %v3882
        %3884 = vmatmul.f32.gmra.mxu0 %v3857
        %v3885 = vpop.f32.mrf.mxu0
        %v3886 = vadd.f32 0.0, %v3885
        %3887 = vmatmul.f32.gmra.mxu0 %v3860
        %v3888 = vpop.f32.mrf.mxu0
        %v3889 = vadd.f32 0.0, %v3888
        %3890 = vdwg.mxu0
        %3891 = vmatpush.msra.mxu0 0.0
        %3892 = vmatpush.msra.mxu0 0.0
        %3893 = vmatpush.msra.mxu0 0.0
        %3894 = vmatpush.msra.mxu0 0.0
        %3895 = vmatpush.msra.mxu0 0.0
        %3896 = vmatpush.msra.mxu0 0.0
        %3897 = vmatpush.msra.mxu0 0.0
        %3898 = vmatpush.msra.mxu0 0.0
        %3899 = vmatpush.msra.mxu0 0.0
        %3900 = vmatpush.msra.mxu0 0.0
        %3901 = vmatpush.msra.mxu0 0.0
        %3902 = vmatpush.msra.mxu0 0.0
        %3903 = vmatpush.msra.mxu0 0.0
        %3904 = vmatpush.msra.mxu0 0.0
        %3905 = vmatpush.msra.mxu0 %v3842
        %3906 = vmatpush.msra.mxu0 %v3838
        %3907 = vmatmul.f32.gmra.mxu0 %v3851
        %v3908 = vpop.f32.mrf.mxu0
        %v3909 = vadd.f32 0.0, %v3908
        %3910 = vmatmul.f32.gmra.mxu0 %v3854
        %v3911 = vpop.f32.mrf.mxu0
        %v3912 = vadd.f32 0.0, %v3911
        %3913 = vmatmul.f32.gmra.mxu0 %v3857
        %v3914 = vpop.f32.mrf.mxu0
        %v3915 = vadd.f32 0.0, %v3914
        %3916 = vmatmul.f32.gmra.mxu0 %v3860
        %v3917 = vpop.f32.mrf.mxu0
        %v3918 = vadd.f32 0.0, %v3917
        %3919 = vdwg.mxu0
        %v3920 = vadd.f32 %v3823, %v3880
        %v3921 = vadd.f32 %v3824, %v3909
        %v3922 = vadd.f32 %v3825, %v3883
        %v3923 = vadd.f32 %v3826, %v3912
        %v3924 = vadd.f32 %v3827, %v3886
        %v3925 = vadd.f32 %v3828, %v3915
        %v3926 = vadd.f32 %v3829, %v3889
        %v3927 = vadd.f32 %v3830, %v3918
        %v3928 = vld [vmem:[%s5] sm:$0xff]
        %v3929 = vld [vmem:[%s5 + $0x8] sm:$0xff]
        %v3930 = vld [vmem:[%s5 + $0x10] sm:$0xff]
        %v3931 = vld [vmem:[%s5 + $0x18] sm:$0xff]
        %3933 = vset.pattern.permute.xlu0 0
        %3934 = vperm.xlu0 %3933, %v3928
        %v3935 = vpop.permute.xlu0 %3934
        %3938 = vset.pattern.permute.xlu0 0
        %3939 = vperm.xlu0 %3938, %v3929
        %v3940 = vpop.permute.xlu0 %3939
        %3943 = vset.pattern.permute.xlu0 0
        %3944 = vperm.xlu0 %3943, %v3930
        %v3945 = vpop.permute.xlu0 %3944
        %3948 = vset.pattern.permute.xlu0 0
        %3949 = vperm.xlu0 %3948, %v3931
        %v3950 = vpop.permute.xlu0 %3949
        %v3952 = vadd.f32 %v3920, %v3935
        %v3953 = vadd.f32 %v3921, %v3935
        %v3954 = vadd.f32 %v3922, %v3940
        %v3955 = vadd.f32 %v3923, %v3940
        %v3956 = vadd.f32 %v3924, %v3945
        %v3957 = vadd.f32 %v3925, %v3945
        %v3958 = vadd.f32 %v3926, %v3950
        %v3959 = vadd.f32 %v3927, %v3950
        %v3960 = vmax.f32 %v3952, 0.0
        %v3961 = vmax.f32 %v3953, 0.0
        %v3962 = vmax.f32 %v3954, 0.0
        %v3963 = vmax.f32 %v3955, 0.0
        %v3964 = vmax.f32 %v3956, 0.0
        %v3965 = vmax.f32 %v3957, 0.0
        %v3966 = vmax.f32 %v3958, 0.0
        %v3967 = vmax.f32 %v3959, 0.0
        %v3968 = vld [vmem:[#allocation5] sm:$0xff]
        %v3969 = vld [vmem:[#allocation5 + $0x8] sm:$0xff]
        %v3970 = vld [vmem:[#allocation5 + $0x10] sm:$0xff]
        %v3971 = vld [vmem:[#allocation5 + $0x18] sm:$0xff]
        %3973 = vset.pattern.permute.xlu0 0
        %3974 = vperm.xlu0 %3973, %v3960
        %v3975 = vpop.permute.xlu0 %3974
        %3978 = vset.pattern.permute.xlu0 0
        %3979 = vperm.xlu0 %3978, %v3962
        %v3980 = vpop.permute.xlu0 %3979
        %3983 = vset.pattern.permute.xlu0 0
        %3984 = vperm.xlu0 %3983, %v3964
        %v3985 = vpop.permute.xlu0 %3984
        %3988 = vset.pattern.permute.xlu0 0
        %3989 = vperm.xlu0 %3988, %v3966
        %v3990 = vpop.permute.xlu0 %3989
        %v3992 = vmul.f32 %v3975, %v3968
        %v3993 = vmul.f32 %v3980, %v3969
        %v3994 = vmul.f32 %v3985, %v3970
        %v3995 = vmul.f32 %v3990, %v3971
        %v3996 = vadd.f32 %v3992, 0.0
        %v3997 = vadd.f32 %v3993, 0.0
        %v3998 = vadd.f32 %v3994, 0.0
        %v3999 = vadd.f32 %v3995, 0.0
        %s4000 = scalar_lea.vmem [#allocation5], 32
        %v4001 = vld [vmem:[%s4000] sm:$0xff]
        %v4002 = vld [vmem:[%s4000 + $0x8] sm:$0xff]
        %v4003 = vld [vmem:[%s4000 + $0x10] sm:$0xff]
        %v4004 = vld [vmem:[%s4000 + $0x18] sm:$0xff]
        %4005 = vset.pattern.permute.xlu0 2
        %4006 = vperm.xlu0 %4005, %v3960
        %v4007 = vpop.permute.xlu0 %4006
        %4009 = vset.pattern.permute.xlu0 2
        %4010 = vperm.xlu0 %4009, %v3962
        %v4011 = vpop.permute.xlu0 %4010
        %4013 = vset.pattern.permute.xlu0 2
        %4014 = vperm.xlu0 %4013, %v3964
        %v4015 = vpop.permute.xlu0 %4014
        %4017 = vset.pattern.permute.xlu0 2
        %4018 = vperm.xlu0 %4017, %v3966
        %v4019 = vpop.permute.xlu0 %4018
        %v4021 = vmul.f32 %v4007, %v4001
        %v4022 = vmul.f32 %v4011, %v4002
        %v4023 = vmul.f32 %v4015, %v4003
        %v4024 = vmul.f32 %v4019, %v4004
        %v4025 = vadd.f32 %v3996, %v4021
        %v4026 = vadd.f32 %v3997, %v4022
        %v4027 = vadd.f32 %v3998, %v4023
        %v4028 = vadd.f32 %v3999, %v4024
        %s4029 = scalar_lea.vmem [#allocation5], 64
        %v4030 = vld [vmem:[%s4029] sm:$0xff]
        %v4031 = vld [vmem:[%s4029 + $0x8] sm:$0xff]
        %v4032 = vld [vmem:[%s4029 + $0x10] sm:$0xff]
        %v4033 = vld [vmem:[%s4029 + $0x18] sm:$0xff]
        %4034 = vset.pattern.permute.xlu0 4
        %4035 = vperm.xlu0 %4034, %v3960
        %v4036 = vpop.permute.xlu0 %4035
        %4038 = vset.pattern.permute.xlu0 4
        %4039 = vperm.xlu0 %4038, %v3962
        %v4040 = vpop.permute.xlu0 %4039
        %4042 = vset.pattern.permute.xlu0 4
        %4043 = vperm.xlu0 %4042, %v3964
        %v4044 = vpop.permute.xlu0 %4043
        %4046 = vset.pattern.permute.xlu0 4
        %4047 = vperm.xlu0 %4046, %v3966
        %v4048 = vpop.permute.xlu0 %4047
        %v4050 = vmul.f32 %v4036, %v4030
        %v4051 = vmul.f32 %v4040, %v4031
        %v4052 = vmul.f32 %v4044, %v4032
        %v4053 = vmul.f32 %v4048, %v4033
        %v4054 = vadd.f32 %v4025, %v4050
        %v4055 = vadd.f32 %v4026, %v4051
        %v4056 = vadd.f32 %v4027, %v4052
        %v4057 = vadd.f32 %v4028, %v4053
        %s4058 = scalar_lea.vmem [#allocation5], 96
        %v4059 = vld [vmem:[%s4058] sm:$0xff]
        %v4060 = vld [vmem:[%s4058 + $0x8] sm:$0xff]
        %v4061 = vld [vmem:[%s4058 + $0x10] sm:$0xff]
        %v4062 = vld [vmem:[%s4058 + $0x18] sm:$0xff]
        %4063 = vset.pattern.permute.xlu0 6
        %4064 = vperm.xlu0 %4063, %v3960
        %v4065 = vpop.permute.xlu0 %4064
        %4067 = vset.pattern.permute.xlu0 6
        %4068 = vperm.xlu0 %4067, %v3962
        %v4069 = vpop.permute.xlu0 %4068
        %4071 = vset.pattern.permute.xlu0 6
        %4072 = vperm.xlu0 %4071, %v3964
        %v4073 = vpop.permute.xlu0 %4072
        %4075 = vset.pattern.permute.xlu0 6
        %4076 = vperm.xlu0 %4075, %v3966
        %v4077 = vpop.permute.xlu0 %4076
        %v4079 = vmul.f32 %v4065, %v4059
        %v4080 = vmul.f32 %v4069, %v4060
        %v4081 = vmul.f32 %v4073, %v4061
        %v4082 = vmul.f32 %v4077, %v4062
        %v4083 = vadd.f32 %v4054, %v4079
        %v4084 = vadd.f32 %v4055, %v4080
        %v4085 = vadd.f32 %v4056, %v4081
        %v4086 = vadd.f32 %v4057, %v4082
        %s4087 = scalar_lea.vmem [#allocation5], 128
        %v4088 = vld [vmem:[%s4087] sm:$0xff]
        %v4089 = vld [vmem:[%s4087 + $0x8] sm:$0xff]
        %v4090 = vld [vmem:[%s4087 + $0x10] sm:$0xff]
        %v4091 = vld [vmem:[%s4087 + $0x18] sm:$0xff]
        %4092 = vset.pattern.permute.xlu0 8
        %4093 = vperm.xlu0 %4092, %v3960
        %v4094 = vpop.permute.xlu0 %4093
        %4096 = vset.pattern.permute.xlu0 8
        %4097 = vperm.xlu0 %4096, %v3962
        %v4098 = vpop.permute.xlu0 %4097
        %4100 = vset.pattern.permute.xlu0 8
        %4101 = vperm.xlu0 %4100, %v3964
        %v4102 = vpop.permute.xlu0 %4101
        %4104 = vset.pattern.permute.xlu0 8
        %4105 = vperm.xlu0 %4104, %v3966
        %v4106 = vpop.permute.xlu0 %4105
        %v4108 = vmul.f32 %v4094, %v4088
        %v4109 = vmul.f32 %v4098, %v4089
        %v4110 = vmul.f32 %v4102, %v4090
        %v4111 = vmul.f32 %v4106, %v4091
        %v4112 = vadd.f32 %v4083, %v4108
        %v4113 = vadd.f32 %v4084, %v4109
        %v4114 = vadd.f32 %v4085, %v4110
        %v4115 = vadd.f32 %v4086, %v4111
        %s4116 = scalar_lea.vmem [#allocation5], 160
        %v4117 = vld [vmem:[%s4116] sm:$0xff]
        %v4118 = vld [vmem:[%s4116 + $0x8] sm:$0xff]
        %v4119 = vld [vmem:[%s4116 + $0x10] sm:$0xff]
        %v4120 = vld [vmem:[%s4116 + $0x18] sm:$0xff]
        %4121 = vset.pattern.permute.xlu0 10
        %4122 = vperm.xlu0 %4121, %v3960
        %v4123 = vpop.permute.xlu0 %4122
        %4125 = vset.pattern.permute.xlu0 10
        %4126 = vperm.xlu0 %4125, %v3962
        %v4127 = vpop.permute.xlu0 %4126
        %4129 = vset.pattern.permute.xlu0 10
        %4130 = vperm.xlu0 %4129, %v3964
        %v4131 = vpop.permute.xlu0 %4130
        %4133 = vset.pattern.permute.xlu0 10
        %4134 = vperm.xlu0 %4133, %v3966
        %v4135 = vpop.permute.xlu0 %4134
        %v4137 = vmul.f32 %v4123, %v4117
        %v4138 = vmul.f32 %v4127, %v4118
        %v4139 = vmul.f32 %v4131, %v4119
        %v4140 = vmul.f32 %v4135, %v4120
        %v4141 = vadd.f32 %v4112, %v4137
        %v4142 = vadd.f32 %v4113, %v4138
        %v4143 = vadd.f32 %v4114, %v4139
        %v4144 = vadd.f32 %v4115, %v4140
        %s4145 = scalar_lea.vmem [#allocation5], 192
        %v4146 = vld [vmem:[%s4145] sm:$0xff]
        %v4147 = vld [vmem:[%s4145 + $0x8] sm:$0xff]
        %v4148 = vld [vmem:[%s4145 + $0x10] sm:$0xff]
        %v4149 = vld [vmem:[%s4145 + $0x18] sm:$0xff]
        %4150 = vset.pattern.permute.xlu0 12
        %4151 = vperm.xlu0 %4150, %v3960
        %v4152 = vpop.permute.xlu0 %4151
        %4154 = vset.pattern.permute.xlu0 12
        %4155 = vperm.xlu0 %4154, %v3962
        %v4156 = vpop.permute.xlu0 %4155
        %4158 = vset.pattern.permute.xlu0 12
        %4159 = vperm.xlu0 %4158, %v3964
        %v4160 = vpop.permute.xlu0 %4159
        %4162 = vset.pattern.permute.xlu0 12
        %4163 = vperm.xlu0 %4162, %v3966
        %v4164 = vpop.permute.xlu0 %4163
        %v4166 = vmul.f32 %v4152, %v4146
        %v4167 = vmul.f32 %v4156, %v4147
        %v4168 = vmul.f32 %v4160, %v4148
        %v4169 = vmul.f32 %v4164, %v4149
        %v4170 = vadd.f32 %v4141, %v4166
        %v4171 = vadd.f32 %v4142, %v4167
        %v4172 = vadd.f32 %v4143, %v4168
        %v4173 = vadd.f32 %v4144, %v4169
        %s4174 = scalar_lea.vmem [#allocation5], 224
        %v4175 = vld [vmem:[%s4174] sm:$0xff]
        %v4176 = vld [vmem:[%s4174 + $0x8] sm:$0xff]
        %v4177 = vld [vmem:[%s4174 + $0x10] sm:$0xff]
        %v4178 = vld [vmem:[%s4174 + $0x18] sm:$0xff]
        %4179 = vset.pattern.permute.xlu0 32
        %4180 = vperm.xlu0 %4179, %v3960
        %v4181 = vpop.permute.xlu0 %4180
        %4183 = vset.pattern.permute.xlu0 32
        %4184 = vperm.xlu0 %4183, %v3962
        %v4185 = vpop.permute.xlu0 %4184
        %4187 = vset.pattern.permute.xlu0 32
        %4188 = vperm.xlu0 %4187, %v3964
        %v4189 = vpop.permute.xlu0 %4188
        %4191 = vset.pattern.permute.xlu0 32
        %4192 = vperm.xlu0 %4191, %v3966
        %v4193 = vpop.permute.xlu0 %4192
        %v4195 = vmul.f32 %v4181, %v4175
        %v4196 = vmul.f32 %v4185, %v4176
        %v4197 = vmul.f32 %v4189, %v4177
        %v4198 = vmul.f32 %v4193, %v4178
        %v4199 = vadd.f32 %v4170, %v4195
        %v4200 = vadd.f32 %v4171, %v4196
        %v4201 = vadd.f32 %v4172, %v4197
        %v4202 = vadd.f32 %v4173, %v4198
        %s4203 = scalar_lea.vmem [#allocation5], 256
        %v4204 = vld [vmem:[%s4203] sm:$0xff]
        %v4205 = vld [vmem:[%s4203 + $0x8] sm:$0xff]
        %v4206 = vld [vmem:[%s4203 + $0x10] sm:$0xff]
        %v4207 = vld [vmem:[%s4203 + $0x18] sm:$0xff]
        %4208 = vset.pattern.permute.xlu0 34
        %4209 = vperm.xlu0 %4208, %v3960
        %v4210 = vpop.permute.xlu0 %4209
        %4212 = vset.pattern.permute.xlu0 34
        %4213 = vperm.xlu0 %4212, %v3962
        %v4214 = vpop.permute.xlu0 %4213
        %4216 = vset.pattern.permute.xlu0 34
        %4217 = vperm.xlu0 %4216, %v3964
        %v4218 = vpop.permute.xlu0 %4217
        %4220 = vset.pattern.permute.xlu0 34
        %4221 = vperm.xlu0 %4220, %v3966
        %v4222 = vpop.permute.xlu0 %4221
        %v4224 = vmul.f32 %v4210, %v4204
        %v4225 = vmul.f32 %v4214, %v4205
        %v4226 = vmul.f32 %v4218, %v4206
        %v4227 = vmul.f32 %v4222, %v4207
        %v4228 = vadd.f32 %v4199, %v4224
        %v4229 = vadd.f32 %v4200, %v4225
        %v4230 = vadd.f32 %v4201, %v4226
        %v4231 = vadd.f32 %v4202, %v4227
        %s4232 = scalar_lea.vmem [#allocation5], 288
        %v4233 = vld [vmem:[%s4232] sm:$0xff]
        %v4234 = vld [vmem:[%s4232 + $0x8] sm:$0xff]
        %v4235 = vld [vmem:[%s4232 + $0x10] sm:$0xff]
        %v4236 = vld [vmem:[%s4232 + $0x18] sm:$0xff]
        %4237 = vset.pattern.permute.xlu0 36
        %4238 = vperm.xlu0 %4237, %v3960
        %v4239 = vpop.permute.xlu0 %4238
        %4241 = vset.pattern.permute.xlu0 36
        %4242 = vperm.xlu0 %4241, %v3962
        %v4243 = vpop.permute.xlu0 %4242
        %4245 = vset.pattern.permute.xlu0 36
        %4246 = vperm.xlu0 %4245, %v3964
        %v4247 = vpop.permute.xlu0 %4246
        %4249 = vset.pattern.permute.xlu0 36
        %4250 = vperm.xlu0 %4249, %v3966
        %v4251 = vpop.permute.xlu0 %4250
        %v4253 = vmul.f32 %v4239, %v4233
        %v4254 = vmul.f32 %v4243, %v4234
        %v4255 = vmul.f32 %v4247, %v4235
        %v4256 = vmul.f32 %v4251, %v4236
        %v4257 = vadd.f32 %v4228, %v4253
        %v4258 = vadd.f32 %v4229, %v4254
        %v4259 = vadd.f32 %v4230, %v4255
        %v4260 = vadd.f32 %v4231, %v4256
        %s4261 = scalar_lea.vmem [#allocation5], 320
        %v4262 = vld [vmem:[%s4261] sm:$0xff]
        %v4263 = vld [vmem:[%s4261 + $0x8] sm:$0xff]
        %v4264 = vld [vmem:[%s4261 + $0x10] sm:$0xff]
        %v4265 = vld [vmem:[%s4261 + $0x18] sm:$0xff]
        %4266 = vset.pattern.permute.xlu0 38
        %4267 = vperm.xlu0 %4266, %v3960
        %v4268 = vpop.permute.xlu0 %4267
        %4270 = vset.pattern.permute.xlu0 38
        %4271 = vperm.xlu0 %4270, %v3962
        %v4272 = vpop.permute.xlu0 %4271
        %4274 = vset.pattern.permute.xlu0 38
        %4275 = vperm.xlu0 %4274, %v3964
        %v4276 = vpop.permute.xlu0 %4275
        %4278 = vset.pattern.permute.xlu0 38
        %4279 = vperm.xlu0 %4278, %v3966
        %v4280 = vpop.permute.xlu0 %4279
        %v4282 = vmul.f32 %v4268, %v4262
        %v4283 = vmul.f32 %v4272, %v4263
        %v4284 = vmul.f32 %v4276, %v4264
        %v4285 = vmul.f32 %v4280, %v4265
        %v4286 = vadd.f32 %v4257, %v4282
        %v4287 = vadd.f32 %v4258, %v4283
        %v4288 = vadd.f32 %v4259, %v4284
        %v4289 = vadd.f32 %v4260, %v4285
        %s4290 = scalar_lea.vmem [#allocation5], 352
        %v4291 = vld [vmem:[%s4290] sm:$0xff]
        %v4292 = vld [vmem:[%s4290 + $0x8] sm:$0xff]
        %v4293 = vld [vmem:[%s4290 + $0x10] sm:$0xff]
        %v4294 = vld [vmem:[%s4290 + $0x18] sm:$0xff]
        %4295 = vset.pattern.permute.xlu0 40
        %4296 = vperm.xlu0 %4295, %v3960
        %v4297 = vpop.permute.xlu0 %4296
        %4299 = vset.pattern.permute.xlu0 40
        %4300 = vperm.xlu0 %4299, %v3962
        %v4301 = vpop.permute.xlu0 %4300
        %4303 = vset.pattern.permute.xlu0 40
        %4304 = vperm.xlu0 %4303, %v3964
        %v4305 = vpop.permute.xlu0 %4304
        %4307 = vset.pattern.permute.xlu0 40
        %4308 = vperm.xlu0 %4307, %v3966
        %v4309 = vpop.permute.xlu0 %4308
        %v4311 = vmul.f32 %v4297, %v4291
        %v4312 = vmul.f32 %v4301, %v4292
        %v4313 = vmul.f32 %v4305, %v4293
        %v4314 = vmul.f32 %v4309, %v4294
        %v4315 = vadd.f32 %v4286, %v4311
        %v4316 = vadd.f32 %v4287, %v4312
        %v4317 = vadd.f32 %v4288, %v4313
        %v4318 = vadd.f32 %v4289, %v4314
        %s4319 = scalar_lea.vmem [#allocation5], 384
        %v4320 = vld [vmem:[%s4319] sm:$0xff]
        %v4321 = vld [vmem:[%s4319 + $0x8] sm:$0xff]
        %v4322 = vld [vmem:[%s4319 + $0x10] sm:$0xff]
        %v4323 = vld [vmem:[%s4319 + $0x18] sm:$0xff]
        %4324 = vset.pattern.permute.xlu0 42
        %4325 = vperm.xlu0 %4324, %v3960
        %v4326 = vpop.permute.xlu0 %4325
        %4328 = vset.pattern.permute.xlu0 42
        %4329 = vperm.xlu0 %4328, %v3962
        %v4330 = vpop.permute.xlu0 %4329
        %4332 = vset.pattern.permute.xlu0 42
        %4333 = vperm.xlu0 %4332, %v3964
        %v4334 = vpop.permute.xlu0 %4333
        %4336 = vset.pattern.permute.xlu0 42
        %4337 = vperm.xlu0 %4336, %v3966
        %v4338 = vpop.permute.xlu0 %4337
        %v4340 = vmul.f32 %v4326, %v4320
        %v4341 = vmul.f32 %v4330, %v4321
        %v4342 = vmul.f32 %v4334, %v4322
        %v4343 = vmul.f32 %v4338, %v4323
        %v4344 = vadd.f32 %v4315, %v4340
        %v4345 = vadd.f32 %v4316, %v4341
        %v4346 = vadd.f32 %v4317, %v4342
        %v4347 = vadd.f32 %v4318, %v4343
        %s4348 = scalar_lea.vmem [#allocation5], 416
        %v4349 = vld [vmem:[%s4348] sm:$0xff]
        %v4350 = vld [vmem:[%s4348 + $0x8] sm:$0xff]
        %v4351 = vld [vmem:[%s4348 + $0x10] sm:$0xff]
        %v4352 = vld [vmem:[%s4348 + $0x18] sm:$0xff]
        %4353 = vset.pattern.permute.xlu0 44
        %4354 = vperm.xlu0 %4353, %v3960
        %v4355 = vpop.permute.xlu0 %4354
        %4357 = vset.pattern.permute.xlu0 44
        %4358 = vperm.xlu0 %4357, %v3962
        %v4359 = vpop.permute.xlu0 %4358
        %4361 = vset.pattern.permute.xlu0 44
        %4362 = vperm.xlu0 %4361, %v3964
        %v4363 = vpop.permute.xlu0 %4362
        %4365 = vset.pattern.permute.xlu0 44
        %4366 = vperm.xlu0 %4365, %v3966
        %v4367 = vpop.permute.xlu0 %4366
        %v4369 = vmul.f32 %v4355, %v4349
        %v4370 = vmul.f32 %v4359, %v4350
        %v4371 = vmul.f32 %v4363, %v4351
        %v4372 = vmul.f32 %v4367, %v4352
        %v4373 = vadd.f32 %v4344, %v4369
        %v4374 = vadd.f32 %v4345, %v4370
        %v4375 = vadd.f32 %v4346, %v4371
        %v4376 = vadd.f32 %v4347, %v4372
        %s4377 = scalar_lea.vmem [#allocation5], 448
        %v4378 = vld [vmem:[%s4377] sm:$0xff]
        %v4379 = vld [vmem:[%s4377 + $0x8] sm:$0xff]
        %v4380 = vld [vmem:[%s4377 + $0x10] sm:$0xff]
        %v4381 = vld [vmem:[%s4377 + $0x18] sm:$0xff]
        %4382 = vset.pattern.permute.xlu0 64
        %4383 = vperm.xlu0 %4382, %v3960
        %v4384 = vpop.permute.xlu0 %4383
        %4386 = vset.pattern.permute.xlu0 64
        %4387 = vperm.xlu0 %4386, %v3962
        %v4388 = vpop.permute.xlu0 %4387
        %4390 = vset.pattern.permute.xlu0 64
        %4391 = vperm.xlu0 %4390, %v3964
        %v4392 = vpop.permute.xlu0 %4391
        %4394 = vset.pattern.permute.xlu0 64
        %4395 = vperm.xlu0 %4394, %v3966
        %v4396 = vpop.permute.xlu0 %4395
        %v4398 = vmul.f32 %v4384, %v4378
        %v4399 = vmul.f32 %v4388, %v4379
        %v4400 = vmul.f32 %v4392, %v4380
        %v4401 = vmul.f32 %v4396, %v4381
        %v4402 = vadd.f32 %v4373, %v4398
        %v4403 = vadd.f32 %v4374, %v4399
        %v4404 = vadd.f32 %v4375, %v4400
        %v4405 = vadd.f32 %v4376, %v4401
        %s4406 = scalar_lea.vmem [#allocation5], 480
        %v4407 = vld [vmem:[%s4406] sm:$0xff]
        %v4408 = vld [vmem:[%s4406 + $0x8] sm:$0xff]
        %v4409 = vld [vmem:[%s4406 + $0x10] sm:$0xff]
        %v4410 = vld [vmem:[%s4406 + $0x18] sm:$0xff]
        %4411 = vset.pattern.permute.xlu0 66
        %4412 = vperm.xlu0 %4411, %v3960
        %v4413 = vpop.permute.xlu0 %4412
        %4415 = vset.pattern.permute.xlu0 66
        %4416 = vperm.xlu0 %4415, %v3962
        %v4417 = vpop.permute.xlu0 %4416
        %4419 = vset.pattern.permute.xlu0 66
        %4420 = vperm.xlu0 %4419, %v3964
        %v4421 = vpop.permute.xlu0 %4420
        %4423 = vset.pattern.permute.xlu0 66
        %4424 = vperm.xlu0 %4423, %v3966
        %v4425 = vpop.permute.xlu0 %4424
        %v4427 = vmul.f32 %v4413, %v4407
        %v4428 = vmul.f32 %v4417, %v4408
        %v4429 = vmul.f32 %v4421, %v4409
        %v4430 = vmul.f32 %v4425, %v4410
        %v4431 = vadd.f32 %v4402, %v4427
        %v4432 = vadd.f32 %v4403, %v4428
        %v4433 = vadd.f32 %v4404, %v4429
        %v4434 = vadd.f32 %v4405, %v4430
        %s4435 = scalar_lea.vmem [#allocation5], 512
        %v4436 = vld [vmem:[%s4435] sm:$0xff]
        %v4437 = vld [vmem:[%s4435 + $0x8] sm:$0xff]
        %v4438 = vld [vmem:[%s4435 + $0x10] sm:$0xff]
        %v4439 = vld [vmem:[%s4435 + $0x18] sm:$0xff]
        %4440 = vset.pattern.permute.xlu0 68
        %4441 = vperm.xlu0 %4440, %v3960
        %v4442 = vpop.permute.xlu0 %4441
        %4444 = vset.pattern.permute.xlu0 68
        %4445 = vperm.xlu0 %4444, %v3962
        %v4446 = vpop.permute.xlu0 %4445
        %4448 = vset.pattern.permute.xlu0 68
        %4449 = vperm.xlu0 %4448, %v3964
        %v4450 = vpop.permute.xlu0 %4449
        %4452 = vset.pattern.permute.xlu0 68
        %4453 = vperm.xlu0 %4452, %v3966
        %v4454 = vpop.permute.xlu0 %4453
        %v4456 = vmul.f32 %v4442, %v4436
        %v4457 = vmul.f32 %v4446, %v4437
        %v4458 = vmul.f32 %v4450, %v4438
        %v4459 = vmul.f32 %v4454, %v4439
        %v4460 = vadd.f32 %v4431, %v4456
        %v4461 = vadd.f32 %v4432, %v4457
        %v4462 = vadd.f32 %v4433, %v4458
        %v4463 = vadd.f32 %v4434, %v4459
        %s4464 = scalar_lea.vmem [#allocation5], 544
        %v4465 = vld [vmem:[%s4464] sm:$0xff]
        %v4466 = vld [vmem:[%s4464 + $0x8] sm:$0xff]
        %v4467 = vld [vmem:[%s4464 + $0x10] sm:$0xff]
        %v4468 = vld [vmem:[%s4464 + $0x18] sm:$0xff]
        %4469 = vset.pattern.permute.xlu0 70
        %4470 = vperm.xlu0 %4469, %v3960
        %v4471 = vpop.permute.xlu0 %4470
        %4473 = vset.pattern.permute.xlu0 70
        %4474 = vperm.xlu0 %4473, %v3962
        %v4475 = vpop.permute.xlu0 %4474
        %4477 = vset.pattern.permute.xlu0 70
        %4478 = vperm.xlu0 %4477, %v3964
        %v4479 = vpop.permute.xlu0 %4478
        %4481 = vset.pattern.permute.xlu0 70
        %4482 = vperm.xlu0 %4481, %v3966
        %v4483 = vpop.permute.xlu0 %4482
        %v4485 = vmul.f32 %v4471, %v4465
        %v4486 = vmul.f32 %v4475, %v4466
        %v4487 = vmul.f32 %v4479, %v4467
        %v4488 = vmul.f32 %v4483, %v4468
        %v4489 = vadd.f32 %v4460, %v4485
        %v4490 = vadd.f32 %v4461, %v4486
        %v4491 = vadd.f32 %v4462, %v4487
        %v4492 = vadd.f32 %v4463, %v4488
        %s4493 = scalar_lea.vmem [#allocation5], 576
        %v4494 = vld [vmem:[%s4493] sm:$0xff]
        %v4495 = vld [vmem:[%s4493 + $0x8] sm:$0xff]
        %v4496 = vld [vmem:[%s4493 + $0x10] sm:$0xff]
        %v4497 = vld [vmem:[%s4493 + $0x18] sm:$0xff]
        %4498 = vset.pattern.permute.xlu0 72
        %4499 = vperm.xlu0 %4498, %v3960
        %v4500 = vpop.permute.xlu0 %4499
        %4502 = vset.pattern.permute.xlu0 72
        %4503 = vperm.xlu0 %4502, %v3962
        %v4504 = vpop.permute.xlu0 %4503
        %4506 = vset.pattern.permute.xlu0 72
        %4507 = vperm.xlu0 %4506, %v3964
        %v4508 = vpop.permute.xlu0 %4507
        %4510 = vset.pattern.permute.xlu0 72
        %4511 = vperm.xlu0 %4510, %v3966
        %v4512 = vpop.permute.xlu0 %4511
        %v4514 = vmul.f32 %v4500, %v4494
        %v4515 = vmul.f32 %v4504, %v4495
        %v4516 = vmul.f32 %v4508, %v4496
        %v4517 = vmul.f32 %v4512, %v4497
        %v4518 = vadd.f32 %v4489, %v4514
        %v4519 = vadd.f32 %v4490, %v4515
        %v4520 = vadd.f32 %v4491, %v4516
        %v4521 = vadd.f32 %v4492, %v4517
        %s4522 = scalar_lea.vmem [#allocation5], 608
        %v4523 = vld [vmem:[%s4522] sm:$0xff]
        %v4524 = vld [vmem:[%s4522 + $0x8] sm:$0xff]
        %v4525 = vld [vmem:[%s4522 + $0x10] sm:$0xff]
        %v4526 = vld [vmem:[%s4522 + $0x18] sm:$0xff]
        %4527 = vset.pattern.permute.xlu0 74
        %4528 = vperm.xlu0 %4527, %v3960
        %v4529 = vpop.permute.xlu0 %4528
        %4531 = vset.pattern.permute.xlu0 74
        %4532 = vperm.xlu0 %4531, %v3962
        %v4533 = vpop.permute.xlu0 %4532
        %4535 = vset.pattern.permute.xlu0 74
        %4536 = vperm.xlu0 %4535, %v3964
        %v4537 = vpop.permute.xlu0 %4536
        %4539 = vset.pattern.permute.xlu0 74
        %4540 = vperm.xlu0 %4539, %v3966
        %v4541 = vpop.permute.xlu0 %4540
        %v4543 = vmul.f32 %v4529, %v4523
        %v4544 = vmul.f32 %v4533, %v4524
        %v4545 = vmul.f32 %v4537, %v4525
        %v4546 = vmul.f32 %v4541, %v4526
        %v4547 = vadd.f32 %v4518, %v4543
        %v4548 = vadd.f32 %v4519, %v4544
        %v4549 = vadd.f32 %v4520, %v4545
        %v4550 = vadd.f32 %v4521, %v4546
        %s4551 = scalar_lea.vmem [#allocation5], 640
        %v4552 = vld [vmem:[%s4551] sm:$0xff]
        %v4553 = vld [vmem:[%s4551 + $0x8] sm:$0xff]
        %v4554 = vld [vmem:[%s4551 + $0x10] sm:$0xff]
        %v4555 = vld [vmem:[%s4551 + $0x18] sm:$0xff]
        %4556 = vset.pattern.permute.xlu0 76
        %4557 = vperm.xlu0 %4556, %v3960
        %v4558 = vpop.permute.xlu0 %4557
        %4560 = vset.pattern.permute.xlu0 76
        %4561 = vperm.xlu0 %4560, %v3962
        %v4562 = vpop.permute.xlu0 %4561
        %4564 = vset.pattern.permute.xlu0 76
        %4565 = vperm.xlu0 %4564, %v3964
        %v4566 = vpop.permute.xlu0 %4565
        %4568 = vset.pattern.permute.xlu0 76
        %4569 = vperm.xlu0 %4568, %v3966
        %v4570 = vpop.permute.xlu0 %4569
        %v4572 = vmul.f32 %v4558, %v4552
        %v4573 = vmul.f32 %v4562, %v4553
        %v4574 = vmul.f32 %v4566, %v4554
        %v4575 = vmul.f32 %v4570, %v4555
        %v4576 = vadd.f32 %v4547, %v4572
        %v4577 = vadd.f32 %v4548, %v4573
        %v4578 = vadd.f32 %v4549, %v4574
        %v4579 = vadd.f32 %v4550, %v4575
        %s4580 = scalar_lea.vmem [#allocation5], 672
        %v4581 = vld [vmem:[%s4580] sm:$0xff]
        %v4582 = vld [vmem:[%s4580 + $0x8] sm:$0xff]
        %v4583 = vld [vmem:[%s4580 + $0x10] sm:$0xff]
        %v4584 = vld [vmem:[%s4580 + $0x18] sm:$0xff]
        %4585 = vset.pattern.permute.xlu0 96
        %4586 = vperm.xlu0 %4585, %v3960
        %v4587 = vpop.permute.xlu0 %4586
        %4589 = vset.pattern.permute.xlu0 96
        %4590 = vperm.xlu0 %4589, %v3962
        %v4591 = vpop.permute.xlu0 %4590
        %4593 = vset.pattern.permute.xlu0 96
        %4594 = vperm.xlu0 %4593, %v3964
        %v4595 = vpop.permute.xlu0 %4594
        %4597 = vset.pattern.permute.xlu0 96
        %4598 = vperm.xlu0 %4597, %v3966
        %v4599 = vpop.permute.xlu0 %4598
        %v4601 = vmul.f32 %v4587, %v4581
        %v4602 = vmul.f32 %v4591, %v4582
        %v4603 = vmul.f32 %v4595, %v4583
        %v4604 = vmul.f32 %v4599, %v4584
        %v4605 = vadd.f32 %v4576, %v4601
        %v4606 = vadd.f32 %v4577, %v4602
        %v4607 = vadd.f32 %v4578, %v4603
        %v4608 = vadd.f32 %v4579, %v4604
        %s4609 = scalar_lea.vmem [#allocation5], 704
        %v4610 = vld [vmem:[%s4609] sm:$0xff]
        %v4611 = vld [vmem:[%s4609 + $0x8] sm:$0xff]
        %v4612 = vld [vmem:[%s4609 + $0x10] sm:$0xff]
        %v4613 = vld [vmem:[%s4609 + $0x18] sm:$0xff]
        %4614 = vset.pattern.permute.xlu0 98
        %4615 = vperm.xlu0 %4614, %v3960
        %v4616 = vpop.permute.xlu0 %4615
        %4618 = vset.pattern.permute.xlu0 98
        %4619 = vperm.xlu0 %4618, %v3962
        %v4620 = vpop.permute.xlu0 %4619
        %4622 = vset.pattern.permute.xlu0 98
        %4623 = vperm.xlu0 %4622, %v3964
        %v4624 = vpop.permute.xlu0 %4623
        %4626 = vset.pattern.permute.xlu0 98
        %4627 = vperm.xlu0 %4626, %v3966
        %v4628 = vpop.permute.xlu0 %4627
        %v4630 = vmul.f32 %v4616, %v4610
        %v4631 = vmul.f32 %v4620, %v4611
        %v4632 = vmul.f32 %v4624, %v4612
        %v4633 = vmul.f32 %v4628, %v4613
        %v4634 = vadd.f32 %v4605, %v4630
        %v4635 = vadd.f32 %v4606, %v4631
        %v4636 = vadd.f32 %v4607, %v4632
        %v4637 = vadd.f32 %v4608, %v4633
        %s4638 = scalar_lea.vmem [#allocation5], 736
        %v4639 = vld [vmem:[%s4638] sm:$0xff]
        %v4640 = vld [vmem:[%s4638 + $0x8] sm:$0xff]
        %v4641 = vld [vmem:[%s4638 + $0x10] sm:$0xff]
        %v4642 = vld [vmem:[%s4638 + $0x18] sm:$0xff]
        %4643 = vset.pattern.permute.xlu0 100
        %4644 = vperm.xlu0 %4643, %v3960
        %v4645 = vpop.permute.xlu0 %4644
        %4647 = vset.pattern.permute.xlu0 100
        %4648 = vperm.xlu0 %4647, %v3962
        %v4649 = vpop.permute.xlu0 %4648
        %4651 = vset.pattern.permute.xlu0 100
        %4652 = vperm.xlu0 %4651, %v3964
        %v4653 = vpop.permute.xlu0 %4652
        %4655 = vset.pattern.permute.xlu0 100
        %4656 = vperm.xlu0 %4655, %v3966
        %v4657 = vpop.permute.xlu0 %4656
        %v4659 = vmul.f32 %v4645, %v4639
        %v4660 = vmul.f32 %v4649, %v4640
        %v4661 = vmul.f32 %v4653, %v4641
        %v4662 = vmul.f32 %v4657, %v4642
        %v4663 = vadd.f32 %v4634, %v4659
        %v4664 = vadd.f32 %v4635, %v4660
        %v4665 = vadd.f32 %v4636, %v4661
        %v4666 = vadd.f32 %v4637, %v4662
        %s4667 = scalar_lea.vmem [#allocation5], 768
        %v4668 = vld [vmem:[%s4667] sm:$0xff]
        %v4669 = vld [vmem:[%s4667 + $0x8] sm:$0xff]
        %v4670 = vld [vmem:[%s4667 + $0x10] sm:$0xff]
        %v4671 = vld [vmem:[%s4667 + $0x18] sm:$0xff]
        %4672 = vset.pattern.permute.xlu0 102
        %4673 = vperm.xlu0 %4672, %v3960
        %v4674 = vpop.permute.xlu0 %4673
        %4676 = vset.pattern.permute.xlu0 102
        %4677 = vperm.xlu0 %4676, %v3962
        %v4678 = vpop.permute.xlu0 %4677
        %4680 = vset.pattern.permute.xlu0 102
        %4681 = vperm.xlu0 %4680, %v3964
        %v4682 = vpop.permute.xlu0 %4681
        %4684 = vset.pattern.permute.xlu0 102
        %4685 = vperm.xlu0 %4684, %v3966
        %v4686 = vpop.permute.xlu0 %4685
        %v4688 = vmul.f32 %v4674, %v4668
        %v4689 = vmul.f32 %v4678, %v4669
        %v4690 = vmul.f32 %v4682, %v4670
        %v4691 = vmul.f32 %v4686, %v4671
        %v4692 = vadd.f32 %v4663, %v4688
        %v4693 = vadd.f32 %v4664, %v4689
        %v4694 = vadd.f32 %v4665, %v4690
        %v4695 = vadd.f32 %v4666, %v4691
        %s4696 = scalar_lea.vmem [#allocation5], 800
        %v4697 = vld [vmem:[%s4696] sm:$0xff]
        %v4698 = vld [vmem:[%s4696 + $0x8] sm:$0xff]
        %v4699 = vld [vmem:[%s4696 + $0x10] sm:$0xff]
        %v4700 = vld [vmem:[%s4696 + $0x18] sm:$0xff]
        %4701 = vset.pattern.permute.xlu0 104
        %4702 = vperm.xlu0 %4701, %v3960
        %v4703 = vpop.permute.xlu0 %4702
        %4705 = vset.pattern.permute.xlu0 104
        %4706 = vperm.xlu0 %4705, %v3962
        %v4707 = vpop.permute.xlu0 %4706
        %4709 = vset.pattern.permute.xlu0 104
        %4710 = vperm.xlu0 %4709, %v3964
        %v4711 = vpop.permute.xlu0 %4710
        %4713 = vset.pattern.permute.xlu0 104
        %4714 = vperm.xlu0 %4713, %v3966
        %v4715 = vpop.permute.xlu0 %4714
        %v4717 = vmul.f32 %v4703, %v4697
        %v4718 = vmul.f32 %v4707, %v4698
        %v4719 = vmul.f32 %v4711, %v4699
        %v4720 = vmul.f32 %v4715, %v4700
        %v4721 = vadd.f32 %v4692, %v4717
        %v4722 = vadd.f32 %v4693, %v4718
        %v4723 = vadd.f32 %v4694, %v4719
        %v4724 = vadd.f32 %v4695, %v4720
        %s4725 = scalar_lea.vmem [#allocation5], 832
        %v4726 = vld [vmem:[%s4725] sm:$0xff]
        %v4727 = vld [vmem:[%s4725 + $0x8] sm:$0xff]
        %v4728 = vld [vmem:[%s4725 + $0x10] sm:$0xff]
        %v4729 = vld [vmem:[%s4725 + $0x18] sm:$0xff]
        %4730 = vset.pattern.permute.xlu0 106
        %4731 = vperm.xlu0 %4730, %v3960
        %v4732 = vpop.permute.xlu0 %4731
        %4734 = vset.pattern.permute.xlu0 106
        %4735 = vperm.xlu0 %4734, %v3962
        %v4736 = vpop.permute.xlu0 %4735
        %4738 = vset.pattern.permute.xlu0 106
        %4739 = vperm.xlu0 %4738, %v3964
        %v4740 = vpop.permute.xlu0 %4739
        %4742 = vset.pattern.permute.xlu0 106
        %4743 = vperm.xlu0 %4742, %v3966
        %v4744 = vpop.permute.xlu0 %4743
        %v4746 = vmul.f32 %v4732, %v4726
        %v4747 = vmul.f32 %v4736, %v4727
        %v4748 = vmul.f32 %v4740, %v4728
        %v4749 = vmul.f32 %v4744, %v4729
        %v4750 = vadd.f32 %v4721, %v4746
        %v4751 = vadd.f32 %v4722, %v4747
        %v4752 = vadd.f32 %v4723, %v4748
        %v4753 = vadd.f32 %v4724, %v4749
        %s4754 = scalar_lea.vmem [#allocation5], 864
        %v4755 = vld [vmem:[%s4754] sm:$0xff]
        %v4756 = vld [vmem:[%s4754 + $0x8] sm:$0xff]
        %v4757 = vld [vmem:[%s4754 + $0x10] sm:$0xff]
        %v4758 = vld [vmem:[%s4754 + $0x18] sm:$0xff]
        %4759 = vset.pattern.permute.xlu0 108
        %4760 = vperm.xlu0 %4759, %v3960
        %v4761 = vpop.permute.xlu0 %4760
        %4763 = vset.pattern.permute.xlu0 108
        %4764 = vperm.xlu0 %4763, %v3962
        %v4765 = vpop.permute.xlu0 %4764
        %4767 = vset.pattern.permute.xlu0 108
        %4768 = vperm.xlu0 %4767, %v3964
        %v4769 = vpop.permute.xlu0 %4768
        %4771 = vset.pattern.permute.xlu0 108
        %4772 = vperm.xlu0 %4771, %v3966
        %v4773 = vpop.permute.xlu0 %4772
        %v4775 = vmul.f32 %v4761, %v4755
        %v4776 = vmul.f32 %v4765, %v4756
        %v4777 = vmul.f32 %v4769, %v4757
        %v4778 = vmul.f32 %v4773, %v4758
        %v4779 = vadd.f32 %v4750, %v4775
        %v4780 = vadd.f32 %v4751, %v4776
        %v4781 = vadd.f32 %v4752, %v4777
        %v4782 = vadd.f32 %v4753, %v4778
        %s4783 = scalar_lea.vmem [#allocation5], 896
        %v4784 = vld [vmem:[%s4783] sm:$0xff]
        %v4785 = vld [vmem:[%s4783 + $0x8] sm:$0xff]
        %v4786 = vld [vmem:[%s4783 + $0x10] sm:$0xff]
        %v4787 = vld [vmem:[%s4783 + $0x18] sm:$0xff]
        %4789 = vset.pattern.permute.xlu0 0
        %4790 = vperm.xlu0 %4789, %v3961
        %v4791 = vpop.permute.xlu0 %4790
        %4794 = vset.pattern.permute.xlu0 0
        %4795 = vperm.xlu0 %4794, %v3963
        %v4796 = vpop.permute.xlu0 %4795
        %4799 = vset.pattern.permute.xlu0 0
        %4800 = vperm.xlu0 %4799, %v3965
        %v4801 = vpop.permute.xlu0 %4800
        %4804 = vset.pattern.permute.xlu0 0
        %4805 = vperm.xlu0 %4804, %v3967
        %v4806 = vpop.permute.xlu0 %4805
        %v4808 = vmul.f32 %v4791, %v4784
        %v4809 = vmul.f32 %v4796, %v4785
        %v4810 = vmul.f32 %v4801, %v4786
        %v4811 = vmul.f32 %v4806, %v4787
        %v4812 = vadd.f32 %v4779, %v4808
        %v4813 = vadd.f32 %v4780, %v4809
        %v4814 = vadd.f32 %v4781, %v4810
        %v4815 = vadd.f32 %v4782, %v4811
        %s4816 = scalar_lea.vmem [#allocation5], 928
        %v4817 = vld [vmem:[%s4816] sm:$0xff]
        %v4818 = vld [vmem:[%s4816 + $0x8] sm:$0xff]
        %v4819 = vld [vmem:[%s4816 + $0x10] sm:$0xff]
        %v4820 = vld [vmem:[%s4816 + $0x18] sm:$0xff]
        %4821 = vset.pattern.permute.xlu0 2
        %4822 = vperm.xlu0 %4821, %v3961
        %v4823 = vpop.permute.xlu0 %4822
        %4825 = vset.pattern.permute.xlu0 2
        %4826 = vperm.xlu0 %4825, %v3963
        %v4827 = vpop.permute.xlu0 %4826
        %4829 = vset.pattern.permute.xlu0 2
        %4830 = vperm.xlu0 %4829, %v3965
        %v4831 = vpop.permute.xlu0 %4830
        %4833 = vset.pattern.permute.xlu0 2
        %4834 = vperm.xlu0 %4833, %v3967
        %v4835 = vpop.permute.xlu0 %4834
        %v4837 = vmul.f32 %v4823, %v4817
        %v4838 = vmul.f32 %v4827, %v4818
        %v4839 = vmul.f32 %v4831, %v4819
        %v4840 = vmul.f32 %v4835, %v4820
        %v4841 = vadd.f32 %v4812, %v4837
        %v4842 = vadd.f32 %v4813, %v4838
        %v4843 = vadd.f32 %v4814, %v4839
        %v4844 = vadd.f32 %v4815, %v4840
        %s4845 = scalar_lea.vmem [#allocation5], 960
        %v4846 = vld [vmem:[%s4845] sm:$0xff]
        %v4847 = vld [vmem:[%s4845 + $0x8] sm:$0xff]
        %v4848 = vld [vmem:[%s4845 + $0x10] sm:$0xff]
        %v4849 = vld [vmem:[%s4845 + $0x18] sm:$0xff]
        %4850 = vset.pattern.permute.xlu0 4
        %4851 = vperm.xlu0 %4850, %v3961
        %v4852 = vpop.permute.xlu0 %4851
        %4854 = vset.pattern.permute.xlu0 4
        %4855 = vperm.xlu0 %4854, %v3963
        %v4856 = vpop.permute.xlu0 %4855
        %4858 = vset.pattern.permute.xlu0 4
        %4859 = vperm.xlu0 %4858, %v3965
        %v4860 = vpop.permute.xlu0 %4859
        %4862 = vset.pattern.permute.xlu0 4
        %4863 = vperm.xlu0 %4862, %v3967
        %v4864 = vpop.permute.xlu0 %4863
        %v4866 = vmul.f32 %v4852, %v4846
        %v4867 = vmul.f32 %v4856, %v4847
        %v4868 = vmul.f32 %v4860, %v4848
        %v4869 = vmul.f32 %v4864, %v4849
        %v4870 = vadd.f32 %v4841, %v4866
        %v4871 = vadd.f32 %v4842, %v4867
        %v4872 = vadd.f32 %v4843, %v4868
        %v4873 = vadd.f32 %v4844, %v4869
        %s4874 = scalar_lea.vmem [#allocation5], 992
        %v4875 = vld [vmem:[%s4874] sm:$0xff]
        %v4876 = vld [vmem:[%s4874 + $0x8] sm:$0xff]
        %v4877 = vld [vmem:[%s4874 + $0x10] sm:$0xff]
        %v4878 = vld [vmem:[%s4874 + $0x18] sm:$0xff]
        %4879 = vset.pattern.permute.xlu0 6
        %4880 = vperm.xlu0 %4879, %v3961
        %v4881 = vpop.permute.xlu0 %4880
        %4883 = vset.pattern.permute.xlu0 6
        %4884 = vperm.xlu0 %4883, %v3963
        %v4885 = vpop.permute.xlu0 %4884
        %4887 = vset.pattern.permute.xlu0 6
        %4888 = vperm.xlu0 %4887, %v3965
        %v4889 = vpop.permute.xlu0 %4888
        %4891 = vset.pattern.permute.xlu0 6
        %4892 = vperm.xlu0 %4891, %v3967
        %v4893 = vpop.permute.xlu0 %4892
        %v4895 = vmul.f32 %v4881, %v4875
        %v4896 = vmul.f32 %v4885, %v4876
        %v4897 = vmul.f32 %v4889, %v4877
        %v4898 = vmul.f32 %v4893, %v4878
        %v4899 = vadd.f32 %v4870, %v4895
        %v4900 = vadd.f32 %v4871, %v4896
        %v4901 = vadd.f32 %v4872, %v4897
        %v4902 = vadd.f32 %v4873, %v4898
        %s4903 = scalar_lea.vmem [#allocation5], 1024
        %v4904 = vld [vmem:[%s4903] sm:$0xff]
        %v4905 = vld [vmem:[%s4903 + $0x8] sm:$0xff]
        %v4906 = vld [vmem:[%s4903 + $0x10] sm:$0xff]
        %v4907 = vld [vmem:[%s4903 + $0x18] sm:$0xff]
        %4908 = vset.pattern.permute.xlu0 8
        %4909 = vperm.xlu0 %4908, %v3961
        %v4910 = vpop.permute.xlu0 %4909
        %4912 = vset.pattern.permute.xlu0 8
        %4913 = vperm.xlu0 %4912, %v3963
        %v4914 = vpop.permute.xlu0 %4913
        %4916 = vset.pattern.permute.xlu0 8
        %4917 = vperm.xlu0 %4916, %v3965
        %v4918 = vpop.permute.xlu0 %4917
        %4920 = vset.pattern.permute.xlu0 8
        %4921 = vperm.xlu0 %4920, %v3967
        %v4922 = vpop.permute.xlu0 %4921
        %v4924 = vmul.f32 %v4910, %v4904
        %v4925 = vmul.f32 %v4914, %v4905
        %v4926 = vmul.f32 %v4918, %v4906
        %v4927 = vmul.f32 %v4922, %v4907
        %v4928 = vadd.f32 %v4899, %v4924
        %v4929 = vadd.f32 %v4900, %v4925
        %v4930 = vadd.f32 %v4901, %v4926
        %v4931 = vadd.f32 %v4902, %v4927
        %s4932 = scalar_lea.vmem [#allocation5], 1056
        %v4933 = vld [vmem:[%s4932] sm:$0xff]
        %v4934 = vld [vmem:[%s4932 + $0x8] sm:$0xff]
        %v4935 = vld [vmem:[%s4932 + $0x10] sm:$0xff]
        %v4936 = vld [vmem:[%s4932 + $0x18] sm:$0xff]
        %4937 = vset.pattern.permute.xlu0 10
        %4938 = vperm.xlu0 %4937, %v3961
        %v4939 = vpop.permute.xlu0 %4938
        %4941 = vset.pattern.permute.xlu0 10
        %4942 = vperm.xlu0 %4941, %v3963
        %v4943 = vpop.permute.xlu0 %4942
        %4945 = vset.pattern.permute.xlu0 10
        %4946 = vperm.xlu0 %4945, %v3965
        %v4947 = vpop.permute.xlu0 %4946
        %4949 = vset.pattern.permute.xlu0 10
        %4950 = vperm.xlu0 %4949, %v3967
        %v4951 = vpop.permute.xlu0 %4950
        %v4953 = vmul.f32 %v4939, %v4933
        %v4954 = vmul.f32 %v4943, %v4934
        %v4955 = vmul.f32 %v4947, %v4935
        %v4956 = vmul.f32 %v4951, %v4936
        %v4957 = vadd.f32 %v4928, %v4953
        %v4958 = vadd.f32 %v4929, %v4954
        %v4959 = vadd.f32 %v4930, %v4955
        %v4960 = vadd.f32 %v4931, %v4956
        %s4961 = scalar_lea.vmem [#allocation5], 1088
        %v4962 = vld [vmem:[%s4961] sm:$0xff]
        %v4963 = vld [vmem:[%s4961 + $0x8] sm:$0xff]
        %v4964 = vld [vmem:[%s4961 + $0x10] sm:$0xff]
        %v4965 = vld [vmem:[%s4961 + $0x18] sm:$0xff]
        %4966 = vset.pattern.permute.xlu0 12
        %4967 = vperm.xlu0 %4966, %v3961
        %v4968 = vpop.permute.xlu0 %4967
        %4970 = vset.pattern.permute.xlu0 12
        %4971 = vperm.xlu0 %4970, %v3963
        %v4972 = vpop.permute.xlu0 %4971
        %4974 = vset.pattern.permute.xlu0 12
        %4975 = vperm.xlu0 %4974, %v3965
        %v4976 = vpop.permute.xlu0 %4975
        %4978 = vset.pattern.permute.xlu0 12
        %4979 = vperm.xlu0 %4978, %v3967
        %v4980 = vpop.permute.xlu0 %4979
        %v4982 = vmul.f32 %v4968, %v4962
        %v4983 = vmul.f32 %v4972, %v4963
        %v4984 = vmul.f32 %v4976, %v4964
        %v4985 = vmul.f32 %v4980, %v4965
        %v4986 = vadd.f32 %v4957, %v4982
        %v4987 = vadd.f32 %v4958, %v4983
        %v4988 = vadd.f32 %v4959, %v4984
        %v4989 = vadd.f32 %v4960, %v4985
        %s4990 = scalar_lea.vmem [#allocation5], 1120
        %v4991 = vld [vmem:[%s4990] sm:$0xff]
        %v4992 = vld [vmem:[%s4990 + $0x8] sm:$0xff]
        %v4993 = vld [vmem:[%s4990 + $0x10] sm:$0xff]
        %v4994 = vld [vmem:[%s4990 + $0x18] sm:$0xff]
        %4995 = vset.pattern.permute.xlu0 32
        %4996 = vperm.xlu0 %4995, %v3961
        %v4997 = vpop.permute.xlu0 %4996
        %4999 = vset.pattern.permute.xlu0 32
        %5000 = vperm.xlu0 %4999, %v3963
        %v5001 = vpop.permute.xlu0 %5000
        %5003 = vset.pattern.permute.xlu0 32
        %5004 = vperm.xlu0 %5003, %v3965
        %v5005 = vpop.permute.xlu0 %5004
        %5007 = vset.pattern.permute.xlu0 32
        %5008 = vperm.xlu0 %5007, %v3967
        %v5009 = vpop.permute.xlu0 %5008
        %v5011 = vmul.f32 %v4997, %v4991
        %v5012 = vmul.f32 %v5001, %v4992
        %v5013 = vmul.f32 %v5005, %v4993
        %v5014 = vmul.f32 %v5009, %v4994
        %v5015 = vadd.f32 %v4986, %v5011
        %v5016 = vadd.f32 %v4987, %v5012
        %v5017 = vadd.f32 %v4988, %v5013
        %v5018 = vadd.f32 %v4989, %v5014
        %s5019 = scalar_lea.vmem [#allocation5], 1152
        %v5020 = vld [vmem:[%s5019] sm:$0xff]
        %v5021 = vld [vmem:[%s5019 + $0x8] sm:$0xff]
        %v5022 = vld [vmem:[%s5019 + $0x10] sm:$0xff]
        %v5023 = vld [vmem:[%s5019 + $0x18] sm:$0xff]
        %5024 = vset.pattern.permute.xlu0 34
        %5025 = vperm.xlu0 %5024, %v3961
        %v5026 = vpop.permute.xlu0 %5025
        %5028 = vset.pattern.permute.xlu0 34
        %5029 = vperm.xlu0 %5028, %v3963
        %v5030 = vpop.permute.xlu0 %5029
        %5032 = vset.pattern.permute.xlu0 34
        %5033 = vperm.xlu0 %5032, %v3965
        %v5034 = vpop.permute.xlu0 %5033
        %5036 = vset.pattern.permute.xlu0 34
        %5037 = vperm.xlu0 %5036, %v3967
        %v5038 = vpop.permute.xlu0 %5037
        %v5040 = vmul.f32 %v5026, %v5020
        %v5041 = vmul.f32 %v5030, %v5021
        %v5042 = vmul.f32 %v5034, %v5022
        %v5043 = vmul.f32 %v5038, %v5023
        %v5044 = vadd.f32 %v5015, %v5040
        %v5045 = vadd.f32 %v5016, %v5041
        %v5046 = vadd.f32 %v5017, %v5042
        %v5047 = vadd.f32 %v5018, %v5043
        %s5048 = scalar_lea.vmem [#allocation5], 1184
        %v5049 = vld [vmem:[%s5048] sm:$0xff]
        %v5050 = vld [vmem:[%s5048 + $0x8] sm:$0xff]
        %v5051 = vld [vmem:[%s5048 + $0x10] sm:$0xff]
        %v5052 = vld [vmem:[%s5048 + $0x18] sm:$0xff]
        %5053 = vset.pattern.permute.xlu0 36
        %5054 = vperm.xlu0 %5053, %v3961
        %v5055 = vpop.permute.xlu0 %5054
        %5057 = vset.pattern.permute.xlu0 36
        %5058 = vperm.xlu0 %5057, %v3963
        %v5059 = vpop.permute.xlu0 %5058
        %5061 = vset.pattern.permute.xlu0 36
        %5062 = vperm.xlu0 %5061, %v3965
        %v5063 = vpop.permute.xlu0 %5062
        %5065 = vset.pattern.permute.xlu0 36
        %5066 = vperm.xlu0 %5065, %v3967
        %v5067 = vpop.permute.xlu0 %5066
        %v5069 = vmul.f32 %v5055, %v5049
        %v5070 = vmul.f32 %v5059, %v5050
        %v5071 = vmul.f32 %v5063, %v5051
        %v5072 = vmul.f32 %v5067, %v5052
        %v5073 = vadd.f32 %v5044, %v5069
        %v5074 = vadd.f32 %v5045, %v5070
        %v5075 = vadd.f32 %v5046, %v5071
        %v5076 = vadd.f32 %v5047, %v5072
        %s5077 = scalar_lea.vmem [#allocation5], 1216
        %v5078 = vld [vmem:[%s5077] sm:$0xff]
        %v5079 = vld [vmem:[%s5077 + $0x8] sm:$0xff]
        %v5080 = vld [vmem:[%s5077 + $0x10] sm:$0xff]
        %v5081 = vld [vmem:[%s5077 + $0x18] sm:$0xff]
        %5082 = vset.pattern.permute.xlu0 38
        %5083 = vperm.xlu0 %5082, %v3961
        %v5084 = vpop.permute.xlu0 %5083
        %5086 = vset.pattern.permute.xlu0 38
        %5087 = vperm.xlu0 %5086, %v3963
        %v5088 = vpop.permute.xlu0 %5087
        %5090 = vset.pattern.permute.xlu0 38
        %5091 = vperm.xlu0 %5090, %v3965
        %v5092 = vpop.permute.xlu0 %5091
        %5094 = vset.pattern.permute.xlu0 38
        %5095 = vperm.xlu0 %5094, %v3967
        %v5096 = vpop.permute.xlu0 %5095
        %v5098 = vmul.f32 %v5084, %v5078
        %v5099 = vmul.f32 %v5088, %v5079
        %v5100 = vmul.f32 %v5092, %v5080
        %v5101 = vmul.f32 %v5096, %v5081
        %v5102 = vadd.f32 %v5073, %v5098
        %v5103 = vadd.f32 %v5074, %v5099
        %v5104 = vadd.f32 %v5075, %v5100
        %v5105 = vadd.f32 %v5076, %v5101
        %s5106 = scalar_lea.vmem [#allocation5], 1248
        %v5107 = vld [vmem:[%s5106] sm:$0xff]
        %v5108 = vld [vmem:[%s5106 + $0x8] sm:$0xff]
        %v5109 = vld [vmem:[%s5106 + $0x10] sm:$0xff]
        %v5110 = vld [vmem:[%s5106 + $0x18] sm:$0xff]
        %5111 = vset.pattern.permute.xlu0 40
        %5112 = vperm.xlu0 %5111, %v3961
        %v5113 = vpop.permute.xlu0 %5112
        %5115 = vset.pattern.permute.xlu0 40
        %5116 = vperm.xlu0 %5115, %v3963
        %v5117 = vpop.permute.xlu0 %5116
        %5119 = vset.pattern.permute.xlu0 40
        %5120 = vperm.xlu0 %5119, %v3965
        %v5121 = vpop.permute.xlu0 %5120
        %5123 = vset.pattern.permute.xlu0 40
        %5124 = vperm.xlu0 %5123, %v3967
        %v5125 = vpop.permute.xlu0 %5124
        %v5127 = vmul.f32 %v5113, %v5107
        %v5128 = vmul.f32 %v5117, %v5108
        %v5129 = vmul.f32 %v5121, %v5109
        %v5130 = vmul.f32 %v5125, %v5110
        %v5131 = vadd.f32 %v5102, %v5127
        %v5132 = vadd.f32 %v5103, %v5128
        %v5133 = vadd.f32 %v5104, %v5129
        %v5134 = vadd.f32 %v5105, %v5130
        %s5135 = scalar_lea.vmem [#allocation5], 1280
        %v5136 = vld [vmem:[%s5135] sm:$0xff]
        %v5137 = vld [vmem:[%s5135 + $0x8] sm:$0xff]
        %v5138 = vld [vmem:[%s5135 + $0x10] sm:$0xff]
        %v5139 = vld [vmem:[%s5135 + $0x18] sm:$0xff]
        %5140 = vset.pattern.permute.xlu0 42
        %5141 = vperm.xlu0 %5140, %v3961
        %v5142 = vpop.permute.xlu0 %5141
        %5144 = vset.pattern.permute.xlu0 42
        %5145 = vperm.xlu0 %5144, %v3963
        %v5146 = vpop.permute.xlu0 %5145
        %5148 = vset.pattern.permute.xlu0 42
        %5149 = vperm.xlu0 %5148, %v3965
        %v5150 = vpop.permute.xlu0 %5149
        %5152 = vset.pattern.permute.xlu0 42
        %5153 = vperm.xlu0 %5152, %v3967
        %v5154 = vpop.permute.xlu0 %5153
        %v5156 = vmul.f32 %v5142, %v5136
        %v5157 = vmul.f32 %v5146, %v5137
        %v5158 = vmul.f32 %v5150, %v5138
        %v5159 = vmul.f32 %v5154, %v5139
        %v5160 = vadd.f32 %v5131, %v5156
        %v5161 = vadd.f32 %v5132, %v5157
        %v5162 = vadd.f32 %v5133, %v5158
        %v5163 = vadd.f32 %v5134, %v5159
        %s5164 = scalar_lea.vmem [#allocation5], 1312
        %v5165 = vld [vmem:[%s5164] sm:$0xff]
        %v5166 = vld [vmem:[%s5164 + $0x8] sm:$0xff]
        %v5167 = vld [vmem:[%s5164 + $0x10] sm:$0xff]
        %v5168 = vld [vmem:[%s5164 + $0x18] sm:$0xff]
        %5169 = vset.pattern.permute.xlu0 44
        %5170 = vperm.xlu0 %5169, %v3961
        %v5171 = vpop.permute.xlu0 %5170
        %5173 = vset.pattern.permute.xlu0 44
        %5174 = vperm.xlu0 %5173, %v3963
        %v5175 = vpop.permute.xlu0 %5174
        %5177 = vset.pattern.permute.xlu0 44
        %5178 = vperm.xlu0 %5177, %v3965
        %v5179 = vpop.permute.xlu0 %5178
        %5181 = vset.pattern.permute.xlu0 44
        %5182 = vperm.xlu0 %5181, %v3967
        %v5183 = vpop.permute.xlu0 %5182
        %v5185 = vmul.f32 %v5171, %v5165
        %v5186 = vmul.f32 %v5175, %v5166
        %v5187 = vmul.f32 %v5179, %v5167
        %v5188 = vmul.f32 %v5183, %v5168
        %v5189 = vadd.f32 %v5160, %v5185
        %v5190 = vadd.f32 %v5161, %v5186
        %v5191 = vadd.f32 %v5162, %v5187
        %v5192 = vadd.f32 %v5163, %v5188
        %s5193 = scalar_lea.vmem [#allocation5], 1344
        %v5194 = vld [vmem:[%s5193] sm:$0xff]
        %v5195 = vld [vmem:[%s5193 + $0x8] sm:$0xff]
        %v5196 = vld [vmem:[%s5193 + $0x10] sm:$0xff]
        %v5197 = vld [vmem:[%s5193 + $0x18] sm:$0xff]
        %5198 = vset.pattern.permute.xlu0 64
        %5199 = vperm.xlu0 %5198, %v3961
        %v5200 = vpop.permute.xlu0 %5199
        %5202 = vset.pattern.permute.xlu0 64
        %5203 = vperm.xlu0 %5202, %v3963
        %v5204 = vpop.permute.xlu0 %5203
        %5206 = vset.pattern.permute.xlu0 64
        %5207 = vperm.xlu0 %5206, %v3965
        %v5208 = vpop.permute.xlu0 %5207
        %5210 = vset.pattern.permute.xlu0 64
        %5211 = vperm.xlu0 %5210, %v3967
        %v5212 = vpop.permute.xlu0 %5211
        %v5214 = vmul.f32 %v5200, %v5194
        %v5215 = vmul.f32 %v5204, %v5195
        %v5216 = vmul.f32 %v5208, %v5196
        %v5217 = vmul.f32 %v5212, %v5197
        %v5218 = vadd.f32 %v5189, %v5214
        %v5219 = vadd.f32 %v5190, %v5215
        %v5220 = vadd.f32 %v5191, %v5216
        %v5221 = vadd.f32 %v5192, %v5217
        %s5222 = scalar_lea.vmem [#allocation5], 1376
        %v5223 = vld [vmem:[%s5222] sm:$0xff]
        %v5224 = vld [vmem:[%s5222 + $0x8] sm:$0xff]
        %v5225 = vld [vmem:[%s5222 + $0x10] sm:$0xff]
        %v5226 = vld [vmem:[%s5222 + $0x18] sm:$0xff]
        %5227 = vset.pattern.permute.xlu0 66
        %5228 = vperm.xlu0 %5227, %v3961
        %v5229 = vpop.permute.xlu0 %5228
        %5231 = vset.pattern.permute.xlu0 66
        %5232 = vperm.xlu0 %5231, %v3963
        %v5233 = vpop.permute.xlu0 %5232
        %5235 = vset.pattern.permute.xlu0 66
        %5236 = vperm.xlu0 %5235, %v3965
        %v5237 = vpop.permute.xlu0 %5236
        %5239 = vset.pattern.permute.xlu0 66
        %5240 = vperm.xlu0 %5239, %v3967
        %v5241 = vpop.permute.xlu0 %5240
        %v5243 = vmul.f32 %v5229, %v5223
        %v5244 = vmul.f32 %v5233, %v5224
        %v5245 = vmul.f32 %v5237, %v5225
        %v5246 = vmul.f32 %v5241, %v5226
        %v5247 = vadd.f32 %v5218, %v5243
        %v5248 = vadd.f32 %v5219, %v5244
        %v5249 = vadd.f32 %v5220, %v5245
        %v5250 = vadd.f32 %v5221, %v5246
        %s5251 = scalar_lea.vmem [#allocation5], 1408
        %v5252 = vld [vmem:[%s5251] sm:$0xff]
        %v5253 = vld [vmem:[%s5251 + $0x8] sm:$0xff]
        %v5254 = vld [vmem:[%s5251 + $0x10] sm:$0xff]
        %v5255 = vld [vmem:[%s5251 + $0x18] sm:$0xff]
        %5256 = vset.pattern.permute.xlu0 68
        %5257 = vperm.xlu0 %5256, %v3961
        %v5258 = vpop.permute.xlu0 %5257
        %5260 = vset.pattern.permute.xlu0 68
        %5261 = vperm.xlu0 %5260, %v3963
        %v5262 = vpop.permute.xlu0 %5261
        %5264 = vset.pattern.permute.xlu0 68
        %5265 = vperm.xlu0 %5264, %v3965
        %v5266 = vpop.permute.xlu0 %5265
        %5268 = vset.pattern.permute.xlu0 68
        %5269 = vperm.xlu0 %5268, %v3967
        %v5270 = vpop.permute.xlu0 %5269
        %v5272 = vmul.f32 %v5258, %v5252
        %v5273 = vmul.f32 %v5262, %v5253
        %v5274 = vmul.f32 %v5266, %v5254
        %v5275 = vmul.f32 %v5270, %v5255
        %v5276 = vadd.f32 %v5247, %v5272
        %v5277 = vadd.f32 %v5248, %v5273
        %v5278 = vadd.f32 %v5249, %v5274
        %v5279 = vadd.f32 %v5250, %v5275
        %s5280 = scalar_lea.vmem [#allocation5], 1440
        %v5281 = vld [vmem:[%s5280] sm:$0xff]
        %v5282 = vld [vmem:[%s5280 + $0x8] sm:$0xff]
        %v5283 = vld [vmem:[%s5280 + $0x10] sm:$0xff]
        %v5284 = vld [vmem:[%s5280 + $0x18] sm:$0xff]
        %5285 = vset.pattern.permute.xlu0 70
        %5286 = vperm.xlu0 %5285, %v3961
        %v5287 = vpop.permute.xlu0 %5286
        %5289 = vset.pattern.permute.xlu0 70
        %5290 = vperm.xlu0 %5289, %v3963
        %v5291 = vpop.permute.xlu0 %5290
        %5293 = vset.pattern.permute.xlu0 70
        %5294 = vperm.xlu0 %5293, %v3965
        %v5295 = vpop.permute.xlu0 %5294
        %5297 = vset.pattern.permute.xlu0 70
        %5298 = vperm.xlu0 %5297, %v3967
        %v5299 = vpop.permute.xlu0 %5298
        %v5301 = vmul.f32 %v5287, %v5281
        %v5302 = vmul.f32 %v5291, %v5282
        %v5303 = vmul.f32 %v5295, %v5283
        %v5304 = vmul.f32 %v5299, %v5284
        %v5305 = vadd.f32 %v5276, %v5301
        %v5306 = vadd.f32 %v5277, %v5302
        %v5307 = vadd.f32 %v5278, %v5303
        %v5308 = vadd.f32 %v5279, %v5304
        %s5309 = scalar_lea.vmem [#allocation5], 1472
        %v5310 = vld [vmem:[%s5309] sm:$0xff]
        %v5311 = vld [vmem:[%s5309 + $0x8] sm:$0xff]
        %v5312 = vld [vmem:[%s5309 + $0x10] sm:$0xff]
        %v5313 = vld [vmem:[%s5309 + $0x18] sm:$0xff]
        %5314 = vset.pattern.permute.xlu0 72
        %5315 = vperm.xlu0 %5314, %v3961
        %v5316 = vpop.permute.xlu0 %5315
        %5318 = vset.pattern.permute.xlu0 72
        %5319 = vperm.xlu0 %5318, %v3963
        %v5320 = vpop.permute.xlu0 %5319
        %5322 = vset.pattern.permute.xlu0 72
        %5323 = vperm.xlu0 %5322, %v3965
        %v5324 = vpop.permute.xlu0 %5323
        %5326 = vset.pattern.permute.xlu0 72
        %5327 = vperm.xlu0 %5326, %v3967
        %v5328 = vpop.permute.xlu0 %5327
        %v5330 = vmul.f32 %v5316, %v5310
        %v5331 = vmul.f32 %v5320, %v5311
        %v5332 = vmul.f32 %v5324, %v5312
        %v5333 = vmul.f32 %v5328, %v5313
        %v5334 = vadd.f32 %v5305, %v5330
        %v5335 = vadd.f32 %v5306, %v5331
        %v5336 = vadd.f32 %v5307, %v5332
        %v5337 = vadd.f32 %v5308, %v5333
        %s5338 = scalar_lea.vmem [#allocation5], 1504
        %v5339 = vld [vmem:[%s5338] sm:$0xff]
        %v5340 = vld [vmem:[%s5338 + $0x8] sm:$0xff]
        %v5341 = vld [vmem:[%s5338 + $0x10] sm:$0xff]
        %v5342 = vld [vmem:[%s5338 + $0x18] sm:$0xff]
        %5343 = vset.pattern.permute.xlu0 74
        %5344 = vperm.xlu0 %5343, %v3961
        %v5345 = vpop.permute.xlu0 %5344
        %5347 = vset.pattern.permute.xlu0 74
        %5348 = vperm.xlu0 %5347, %v3963
        %v5349 = vpop.permute.xlu0 %5348
        %5351 = vset.pattern.permute.xlu0 74
        %5352 = vperm.xlu0 %5351, %v3965
        %v5353 = vpop.permute.xlu0 %5352
        %5355 = vset.pattern.permute.xlu0 74
        %5356 = vperm.xlu0 %5355, %v3967
        %v5357 = vpop.permute.xlu0 %5356
        %v5359 = vmul.f32 %v5345, %v5339
        %v5360 = vmul.f32 %v5349, %v5340
        %v5361 = vmul.f32 %v5353, %v5341
        %v5362 = vmul.f32 %v5357, %v5342
        %v5363 = vadd.f32 %v5334, %v5359
        %v5364 = vadd.f32 %v5335, %v5360
        %v5365 = vadd.f32 %v5336, %v5361
        %v5366 = vadd.f32 %v5337, %v5362
        %s5367 = scalar_lea.vmem [#allocation5], 1536
        %v5368 = vld [vmem:[%s5367] sm:$0xff]
        %v5369 = vld [vmem:[%s5367 + $0x8] sm:$0xff]
        %v5370 = vld [vmem:[%s5367 + $0x10] sm:$0xff]
        %v5371 = vld [vmem:[%s5367 + $0x18] sm:$0xff]
        %5372 = vset.pattern.permute.xlu0 76
        %5373 = vperm.xlu0 %5372, %v3961
        %v5374 = vpop.permute.xlu0 %5373
        %5376 = vset.pattern.permute.xlu0 76
        %5377 = vperm.xlu0 %5376, %v3963
        %v5378 = vpop.permute.xlu0 %5377
        %5380 = vset.pattern.permute.xlu0 76
        %5381 = vperm.xlu0 %5380, %v3965
        %v5382 = vpop.permute.xlu0 %5381
        %5384 = vset.pattern.permute.xlu0 76
        %5385 = vperm.xlu0 %5384, %v3967
        %v5386 = vpop.permute.xlu0 %5385
        %v5388 = vmul.f32 %v5374, %v5368
        %v5389 = vmul.f32 %v5378, %v5369
        %v5390 = vmul.f32 %v5382, %v5370
        %v5391 = vmul.f32 %v5386, %v5371
        %v5392 = vadd.f32 %v5363, %v5388
        %v5393 = vadd.f32 %v5364, %v5389
        %v5394 = vadd.f32 %v5365, %v5390
        %v5395 = vadd.f32 %v5366, %v5391
        %vm5396 = vcmask 523264
        %v5397 = vsel %vm5396, %v5392, 0.0
        %v5398 = vsel %vm5396, %v5393, 0.0
        %v5399 = vadd.f32 %v5397, %v5398
        %v5400 = vsel %vm5396, %v5394, 0.0
        %v5401 = vadd.f32 %v5399, %v5400
        %v5402 = vsel %vm5396, %v5395, 0.0
        %v5403 = vadd.f32 %v5401, %v5402
        %v5404 = vrot.slane %v5403, 4
        %v5405 = vadd.f32 %v5403, %v5404
        %v5406 = vrot.slane %v5405, 2
        %v5407 = vadd.f32 %v5405, %v5406
        %v5408 = vrot.slane %v5407, 1
        %v5409 = vadd.f32 %v5407, %v5408
        %v5410 = vld [vmem:[%s7] sm:$0x1]
        %v5411 = vadd.f32 %v5409, %v5410
        %vm5412 = vcmask 516096
        %5413 = vst.msk [vmem:[%s413] sm:$0x1] %vm5412, %v5411
        %v5414 = vld [vmem:[%s8] sm:$0xff]
        %v5415 = vld [vmem:[%s8 + $0x8] sm:$0xff]
        %v5416 = vld [vmem:[%s8 + $0x10] sm:$0xff]
        %v5417 = vld [vmem:[%s8 + $0x18] sm:$0xff]
        %v5418 = vld [vmem:[%s8 + $0x20] sm:$0xff]
        %v5419 = vld [vmem:[%s8 + $0x28] sm:$0xff]
        %v5420 = vld [vmem:[%s8 + $0x30] sm:$0xff]
        %v5421 = vld [vmem:[%s8 + $0x38] sm:$0xff]
        %v5422 = vld [vmem:[%s8 + $0x40] sm:$0xff]
        %v5423 = vld [vmem:[%s8 + $0x48] sm:$0xff]
        %v5424 = vld [vmem:[%s8 + $0x50] sm:$0xff]
        %v5425 = vld [vmem:[%s8 + $0x58] sm:$0xff]
        %v5426 = vld [vmem:[%s8 + $0x60] sm:$0xff]
        %v5427 = vld [vmem:[%s8 + $0x68] sm:$0xff]
        %v5428 = vld [vmem:[%s8 + $0x70] sm:$0xff]
        %v5429 = vld [vmem:[%s8 + $0x78] sm:$0xff]
        %v5430 = vld [vmem:[%s8 + $0x80] sm:$0xff]
        %v5431 = vld [vmem:[%s8 + $0x88] sm:$0xff]
        %v5432 = vld [vmem:[%s8 + $0x90] sm:$0xff]
        %v5433 = vld [vmem:[%s8 + $0x98] sm:$0xff]
        %v5434 = vld [vmem:[%s8 + $0xa0] sm:$0xff]
        %v5435 = vld [vmem:[%s8 + $0xa8] sm:$0xff]
        %v5436 = vld [vmem:[%s8 + $0xb0] sm:$0xff]
        %v5437 = vld [vmem:[%s8 + $0xb8] sm:$0xff]
        %v5438 = vld [vmem:[%s8 + $0xc0] sm:$0xff]
        %v5439 = vld [vmem:[%s8 + $0xc8] sm:$0xff]
        %v5440 = vld [vmem:[%s8 + $0xd0] sm:$0xff]
        %v5441 = vld [vmem:[%s8 + $0xd8] sm:$0xff]
        %v5442 = vld [vmem:[%s8 + $0xe0] sm:$0xff]
        %v5443 = vld [vmem:[%s8 + $0xe8] sm:$0xff]
        %v5444 = vld [vmem:[%s8 + $0xf0] sm:$0xff]
        %v5445 = vld [vmem:[%s8 + $0xf8] sm:$0xff]
        %v5446 = vld [vmem:[%s8 + $0x100] sm:$0xff]
        %v5447 = vld [vmem:[%s8 + $0x108] sm:$0xff]
        %v5448 = vld [vmem:[%s8 + $0x110] sm:$0xff]
        %v5449 = vld [vmem:[%s8 + $0x118] sm:$0xff]
        %v5450 = vld [vmem:[%s8 + $0x120] sm:$0xff]
        %v5451 = vld [vmem:[%s8 + $0x128] sm:$0xff]
        %v5452 = vld [vmem:[%s8 + $0x130] sm:$0xff]
        %v5453 = vld [vmem:[%s8 + $0x138] sm:$0xff]
        %v5454 = vld [vmem:[%s8 + $0x140] sm:$0xff]
        %v5455 = vld [vmem:[%s8 + $0x148] sm:$0xff]
        %v5456 = vld [vmem:[%s8 + $0x150] sm:$0xff]
        %v5457 = vld [vmem:[%s8 + $0x158] sm:$0xff]
        %v5458 = vld [vmem:[%s8 + $0x160] sm:$0xff]
        %v5459 = vld [vmem:[%s8 + $0x168] sm:$0xff]
        %v5460 = vld [vmem:[%s8 + $0x170] sm:$0xff]
        %v5461 = vld [vmem:[%s8 + $0x178] sm:$0xff]
        %v5462 = vld [vmem:[%s8 + $0x180] sm:$0xff]
        %v5463 = vld [vmem:[%s8 + $0x188] sm:$0xff]
        %v5464 = vld [vmem:[%s8 + $0x190] sm:$0xff]
        %v5465 = vld [vmem:[%s8 + $0x198] sm:$0xff]
        %v5466 = vld [vmem:[%s8 + $0x1a0] sm:$0xff]
        %v5467 = vld [vmem:[%s8 + $0x1a8] sm:$0xff]
        %v5468 = vld [vmem:[%s8 + $0x1b0] sm:$0xff]
        %v5469 = vld [vmem:[%s8 + $0x1b8] sm:$0xff]
        %v5470 = vld [vmem:[%s8 + $0x1c0] sm:$0xff]
        %v5471 = vld [vmem:[%s8 + $0x1c8] sm:$0xff]
        %v5472 = vld [vmem:[%s8 + $0x1d0] sm:$0xff]
        %v5473 = vld [vmem:[%s8 + $0x1d8] sm:$0xff]
        %v5474 = vld [vmem:[%s8 + $0x1e0] sm:$0xff]
        %v5475 = vld [vmem:[%s8 + $0x1e8] sm:$0xff]
        %v5476 = vld [vmem:[%s8 + $0x1f0] sm:$0xff]
        %v5477 = vld [vmem:[%s8 + $0x1f8] sm:$0xff]
        %v5478 = vld [vmem:[%s8 + $0x200] sm:$0xff]
        %v5479 = vld [vmem:[%s8 + $0x208] sm:$0xff]
        %v5480 = vld [vmem:[%s8 + $0x210] sm:$0xff]
        %v5481 = vld [vmem:[%s8 + $0x218] sm:$0xff]
        %v5482 = vld [vmem:[%s8 + $0x220] sm:$0xff]
        %v5483 = vld [vmem:[%s8 + $0x228] sm:$0xff]
        %v5484 = vld [vmem:[%s8 + $0x230] sm:$0xff]
        %v5485 = vld [vmem:[%s8 + $0x238] sm:$0xff]
        %v5486 = vld [vmem:[%s8 + $0x240] sm:$0xff]
        %v5487 = vld [vmem:[%s8 + $0x248] sm:$0xff]
        %v5488 = vld [vmem:[%s8 + $0x250] sm:$0xff]
        %v5489 = vld [vmem:[%s8 + $0x258] sm:$0xff]
        %v5490 = vld [vmem:[%s8 + $0x260] sm:$0xff]
        %v5491 = vld [vmem:[%s8 + $0x268] sm:$0xff]
        %v5492 = vld [vmem:[%s8 + $0x270] sm:$0xff]
        %v5493 = vld [vmem:[%s8 + $0x278] sm:$0xff]
        %v5494 = vld [vmem:[%s8 + $0x280] sm:$0xff]
        %v5495 = vld [vmem:[%s8 + $0x288] sm:$0xff]
        %v5496 = vld [vmem:[%s8 + $0x290] sm:$0xff]
        %v5497 = vld [vmem:[%s8 + $0x298] sm:$0xff]
        %v5498 = vld [vmem:[%s8 + $0x2a0] sm:$0xff]
        %v5499 = vld [vmem:[%s8 + $0x2a8] sm:$0xff]
        %v5500 = vld [vmem:[%s8 + $0x2b0] sm:$0xff]
        %v5501 = vld [vmem:[%s8 + $0x2b8] sm:$0xff]
        %v5502 = vld [vmem:[%s8 + $0x2c0] sm:$0xff]
        %v5503 = vld [vmem:[%s8 + $0x2c8] sm:$0xff]
        %v5504 = vld [vmem:[%s8 + $0x2d0] sm:$0xff]
        %v5505 = vld [vmem:[%s8 + $0x2d8] sm:$0xff]
        %v5506 = vld [vmem:[%s8 + $0x2e0] sm:$0xff]
        %v5507 = vld [vmem:[%s8 + $0x2e8] sm:$0xff]
        %v5508 = vld [vmem:[%s8 + $0x2f0] sm:$0xff]
        %v5509 = vld [vmem:[%s8 + $0x2f8] sm:$0xff]
        %v5510 = vld [vmem:[%s8 + $0x300] sm:$0xff]
        %v5511 = vld [vmem:[%s8 + $0x308] sm:$0xff]
        %v5512 = vld [vmem:[%s8 + $0x310] sm:$0xff]
        %v5513 = vld [vmem:[%s8 + $0x318] sm:$0xff]
        %v5514 = vld [vmem:[%s8 + $0x320] sm:$0xff]
        %v5515 = vld [vmem:[%s8 + $0x328] sm:$0xff]
        %v5516 = vld [vmem:[%s8 + $0x330] sm:$0xff]
        %v5517 = vld [vmem:[%s8 + $0x338] sm:$0xff]
        %v5518 = vld [vmem:[%s9] sm:$0xff]
        %v5519 = vld [vmem:[%s9 + $0x8] sm:$0x1f]
        %v5522 = vperm.slane %v5518, 0
        %v5523 = vperm.slane %v5518, 1
        %v5524 = vperm.slane %v5518, 2
        %v5525 = vperm.slane %v5518, 3
        %v5526 = vperm.slane %v5518, 4
        %v5527 = vperm.slane %v5518, 5
        %v5528 = vperm.slane %v5518, 6
        %v5529 = vperm.slane %v5518, 7
        %v5530 = vperm.slane %v5519, 0
        %v5531 = vperm.slane %v5519, 1
        %v5532 = vperm.slane %v5519, 2
        %v5533 = vperm.slane %v5519, 3
        %v5534 = vperm.slane %v5519, 4
        %v5549 = vsel %vm5396, %v5411, 0
        %5551 = vmatpush.msra.mxu0 0.0
        %5552 = vmatpush.msra.mxu0 0.0
        %5553 = vmatpush.msra.mxu0 0.0
        %5554 = vmatpush.msra.mxu0 0.0
        %5555 = vmatpush.msra.mxu0 0.0
        %5556 = vmatpush.msra.mxu0 0.0
        %5557 = vmatpush.msra.mxu0 0.0
        %5558 = vmatpush.msra.mxu0 0.0
        %5559 = vmatpush.msra.mxu0 %v5505
        %5560 = vmatpush.msra.mxu0 %v5492
        %5561 = vmatpush.msra.mxu0 %v5479
        %5562 = vmatpush.msra.mxu0 %v5466
        %5563 = vmatpush.msra.mxu0 %v5453
        %5564 = vmatpush.msra.mxu0 %v5440
        %5565 = vmatpush.msra.mxu0 %v5427
        %5566 = vmatpush.msra.mxu0 %v5414
        %5567 = vmatmul.f32.gmra.mxu0 %v5549
        %v5568 = vpop.f32.mrf.mxu0
        %v5569 = vadd.f32 %v5522, %v5568
        %5570 = vdwg.mxu0
        %5571 = vmatpush.msra.mxu0 0.0
        %5572 = vmatpush.msra.mxu0 0.0
        %5573 = vmatpush.msra.mxu0 0.0
        %5574 = vmatpush.msra.mxu0 0.0
        %5575 = vmatpush.msra.mxu0 0.0
        %5576 = vmatpush.msra.mxu0 0.0
        %5577 = vmatpush.msra.mxu0 0.0
        %5578 = vmatpush.msra.mxu0 0.0
        %5579 = vmatpush.msra.mxu0 %v5506
        %5580 = vmatpush.msra.mxu0 %v5493
        %5581 = vmatpush.msra.mxu0 %v5480
        %5582 = vmatpush.msra.mxu0 %v5467
        %5583 = vmatpush.msra.mxu0 %v5454
        %5584 = vmatpush.msra.mxu0 %v5441
        %5585 = vmatpush.msra.mxu0 %v5428
        %5586 = vmatpush.msra.mxu0 %v5415
        %5587 = vmatmul.f32.gmra.mxu0 %v5549
        %v5588 = vpop.f32.mrf.mxu0
        %v5589 = vadd.f32 %v5523, %v5588
        %5590 = vdwg.mxu0
        %5591 = vmatpush.msra.mxu0 0.0
        %5592 = vmatpush.msra.mxu0 0.0
        %5593 = vmatpush.msra.mxu0 0.0
        %5594 = vmatpush.msra.mxu0 0.0
        %5595 = vmatpush.msra.mxu0 0.0
        %5596 = vmatpush.msra.mxu0 0.0
        %5597 = vmatpush.msra.mxu0 0.0
        %5598 = vmatpush.msra.mxu0 0.0
        %5599 = vmatpush.msra.mxu0 %v5507
        %5600 = vmatpush.msra.mxu0 %v5494
        %5601 = vmatpush.msra.mxu0 %v5481
        %5602 = vmatpush.msra.mxu0 %v5468
        %5603 = vmatpush.msra.mxu0 %v5455
        %5604 = vmatpush.msra.mxu0 %v5442
        %5605 = vmatpush.msra.mxu0 %v5429
        %5606 = vmatpush.msra.mxu0 %v5416
        %5607 = vmatmul.f32.gmra.mxu0 %v5549
        %v5608 = vpop.f32.mrf.mxu0
        %v5609 = vadd.f32 %v5524, %v5608
        %5610 = vdwg.mxu0
        %5611 = vmatpush.msra.mxu0 0.0
        %5612 = vmatpush.msra.mxu0 0.0
        %5613 = vmatpush.msra.mxu0 0.0
        %5614 = vmatpush.msra.mxu0 0.0
        %5615 = vmatpush.msra.mxu0 0.0
        %5616 = vmatpush.msra.mxu0 0.0
        %5617 = vmatpush.msra.mxu0 0.0
        %5618 = vmatpush.msra.mxu0 0.0
        %5619 = vmatpush.msra.mxu0 %v5508
        %5620 = vmatpush.msra.mxu0 %v5495
        %5621 = vmatpush.msra.mxu0 %v5482
        %5622 = vmatpush.msra.mxu0 %v5469
        %5623 = vmatpush.msra.mxu0 %v5456
        %5624 = vmatpush.msra.mxu0 %v5443
        %5625 = vmatpush.msra.mxu0 %v5430
        %5626 = vmatpush.msra.mxu0 %v5417
        %5627 = vmatmul.f32.gmra.mxu0 %v5549
        %v5628 = vpop.f32.mrf.mxu0
        %v5629 = vadd.f32 %v5525, %v5628
        %5630 = vdwg.mxu0
        %5631 = vmatpush.msra.mxu0 0.0
        %5632 = vmatpush.msra.mxu0 0.0
        %5633 = vmatpush.msra.mxu0 0.0
        %5634 = vmatpush.msra.mxu0 0.0
        %5635 = vmatpush.msra.mxu0 0.0
        %5636 = vmatpush.msra.mxu0 0.0
        %5637 = vmatpush.msra.mxu0 0.0
        %5638 = vmatpush.msra.mxu0 0.0
        %5639 = vmatpush.msra.mxu0 %v5509
        %5640 = vmatpush.msra.mxu0 %v5496
        %5641 = vmatpush.msra.mxu0 %v5483
        %5642 = vmatpush.msra.mxu0 %v5470
        %5643 = vmatpush.msra.mxu0 %v5457
        %5644 = vmatpush.msra.mxu0 %v5444
        %5645 = vmatpush.msra.mxu0 %v5431
        %5646 = vmatpush.msra.mxu0 %v5418
        %5647 = vmatmul.f32.gmra.mxu0 %v5549
        %v5648 = vpop.f32.mrf.mxu0
        %v5649 = vadd.f32 %v5526, %v5648
        %5650 = vdwg.mxu0
        %5651 = vmatpush.msra.mxu0 0.0
        %5652 = vmatpush.msra.mxu0 0.0
        %5653 = vmatpush.msra.mxu0 0.0
        %5654 = vmatpush.msra.mxu0 0.0
        %5655 = vmatpush.msra.mxu0 0.0
        %5656 = vmatpush.msra.mxu0 0.0
        %5657 = vmatpush.msra.mxu0 0.0
        %5658 = vmatpush.msra.mxu0 0.0
        %5659 = vmatpush.msra.mxu0 %v5510
        %5660 = vmatpush.msra.mxu0 %v5497
        %5661 = vmatpush.msra.mxu0 %v5484
        %5662 = vmatpush.msra.mxu0 %v5471
        %5663 = vmatpush.msra.mxu0 %v5458
        %5664 = vmatpush.msra.mxu0 %v5445
        %5665 = vmatpush.msra.mxu0 %v5432
        %5666 = vmatpush.msra.mxu0 %v5419
        %5667 = vmatmul.f32.gmra.mxu0 %v5549
        %v5668 = vpop.f32.mrf.mxu0
        %v5669 = vadd.f32 %v5527, %v5668
        %5670 = vdwg.mxu0
        %5671 = vmatpush.msra.mxu0 0.0
        %5672 = vmatpush.msra.mxu0 0.0
        %5673 = vmatpush.msra.mxu0 0.0
        %5674 = vmatpush.msra.mxu0 0.0
        %5675 = vmatpush.msra.mxu0 0.0
        %5676 = vmatpush.msra.mxu0 0.0
        %5677 = vmatpush.msra.mxu0 0.0
        %5678 = vmatpush.msra.mxu0 0.0
        %5679 = vmatpush.msra.mxu0 %v5511
        %5680 = vmatpush.msra.mxu0 %v5498
        %5681 = vmatpush.msra.mxu0 %v5485
        %5682 = vmatpush.msra.mxu0 %v5472
        %5683 = vmatpush.msra.mxu0 %v5459
        %5684 = vmatpush.msra.mxu0 %v5446
        %5685 = vmatpush.msra.mxu0 %v5433
        %5686 = vmatpush.msra.mxu0 %v5420
        %5687 = vmatmul.f32.gmra.mxu0 %v5549
        %v5688 = vpop.f32.mrf.mxu0
        %v5689 = vadd.f32 %v5528, %v5688
        %5690 = vdwg.mxu0
        %5691 = vmatpush.msra.mxu0 0.0
        %5692 = vmatpush.msra.mxu0 0.0
        %5693 = vmatpush.msra.mxu0 0.0
        %5694 = vmatpush.msra.mxu0 0.0
        %5695 = vmatpush.msra.mxu0 0.0
        %5696 = vmatpush.msra.mxu0 0.0
        %5697 = vmatpush.msra.mxu0 0.0
        %5698 = vmatpush.msra.mxu0 0.0
        %5699 = vmatpush.msra.mxu0 %v5512
        %5700 = vmatpush.msra.mxu0 %v5499
        %5701 = vmatpush.msra.mxu0 %v5486
        %5702 = vmatpush.msra.mxu0 %v5473
        %5703 = vmatpush.msra.mxu0 %v5460
        %5704 = vmatpush.msra.mxu0 %v5447
        %5705 = vmatpush.msra.mxu0 %v5434
        %5706 = vmatpush.msra.mxu0 %v5421
        %5707 = vmatmul.f32.gmra.mxu0 %v5549
        %v5708 = vpop.f32.mrf.mxu0
        %v5709 = vadd.f32 %v5529, %v5708
        %5710 = vdwg.mxu0
        %5711 = vmatpush.msra.mxu0 0.0
        %5712 = vmatpush.msra.mxu0 0.0
        %5713 = vmatpush.msra.mxu0 0.0
        %5714 = vmatpush.msra.mxu0 0.0
        %5715 = vmatpush.msra.mxu0 0.0
        %5716 = vmatpush.msra.mxu0 0.0
        %5717 = vmatpush.msra.mxu0 0.0
        %5718 = vmatpush.msra.mxu0 0.0
        %5719 = vmatpush.msra.mxu0 %v5513
        %5720 = vmatpush.msra.mxu0 %v5500
        %5721 = vmatpush.msra.mxu0 %v5487
        %5722 = vmatpush.msra.mxu0 %v5474
        %5723 = vmatpush.msra.mxu0 %v5461
        %5724 = vmatpush.msra.mxu0 %v5448
        %5725 = vmatpush.msra.mxu0 %v5435
        %5726 = vmatpush.msra.mxu0 %v5422
        %5727 = vmatmul.f32.gmra.mxu0 %v5549
        %v5728 = vpop.f32.mrf.mxu0
        %v5729 = vadd.f32 %v5530, %v5728
        %5730 = vdwg.mxu0
        %5731 = vmatpush.msra.mxu0 0.0
        %5732 = vmatpush.msra.mxu0 0.0
        %5733 = vmatpush.msra.mxu0 0.0
        %5734 = vmatpush.msra.mxu0 0.0
        %5735 = vmatpush.msra.mxu0 0.0
        %5736 = vmatpush.msra.mxu0 0.0
        %5737 = vmatpush.msra.mxu0 0.0
        %5738 = vmatpush.msra.mxu0 0.0
        %5739 = vmatpush.msra.mxu0 %v5514
        %5740 = vmatpush.msra.mxu0 %v5501
        %5741 = vmatpush.msra.mxu0 %v5488
        %5742 = vmatpush.msra.mxu0 %v5475
        %5743 = vmatpush.msra.mxu0 %v5462
        %5744 = vmatpush.msra.mxu0 %v5449
        %5745 = vmatpush.msra.mxu0 %v5436
        %5746 = vmatpush.msra.mxu0 %v5423
        %5747 = vmatmul.f32.gmra.mxu0 %v5549
        %v5748 = vpop.f32.mrf.mxu0
        %v5749 = vadd.f32 %v5531, %v5748
        %5750 = vdwg.mxu0
        %5751 = vmatpush.msra.mxu0 0.0
        %5752 = vmatpush.msra.mxu0 0.0
        %5753 = vmatpush.msra.mxu0 0.0
        %5754 = vmatpush.msra.mxu0 0.0
        %5755 = vmatpush.msra.mxu0 0.0
        %5756 = vmatpush.msra.mxu0 0.0
        %5757 = vmatpush.msra.mxu0 0.0
        %5758 = vmatpush.msra.mxu0 0.0
        %5759 = vmatpush.msra.mxu0 %v5515
        %5760 = vmatpush.msra.mxu0 %v5502
        %5761 = vmatpush.msra.mxu0 %v5489
        %5762 = vmatpush.msra.mxu0 %v5476
        %5763 = vmatpush.msra.mxu0 %v5463
        %5764 = vmatpush.msra.mxu0 %v5450
        %5765 = vmatpush.msra.mxu0 %v5437
        %5766 = vmatpush.msra.mxu0 %v5424
        %5767 = vmatmul.f32.gmra.mxu0 %v5549
        %v5768 = vpop.f32.mrf.mxu0
        %v5769 = vadd.f32 %v5532, %v5768
        %5770 = vdwg.mxu0
        %5771 = vmatpush.msra.mxu0 0.0
        %5772 = vmatpush.msra.mxu0 0.0
        %5773 = vmatpush.msra.mxu0 0.0
        %5774 = vmatpush.msra.mxu0 0.0
        %5775 = vmatpush.msra.mxu0 0.0
        %5776 = vmatpush.msra.mxu0 0.0
        %5777 = vmatpush.msra.mxu0 0.0
        %5778 = vmatpush.msra.mxu0 0.0
        %5779 = vmatpush.msra.mxu0 %v5516
        %5780 = vmatpush.msra.mxu0 %v5503
        %5781 = vmatpush.msra.mxu0 %v5490
        %5782 = vmatpush.msra.mxu0 %v5477
        %5783 = vmatpush.msra.mxu0 %v5464
        %5784 = vmatpush.msra.mxu0 %v5451
        %5785 = vmatpush.msra.mxu0 %v5438
        %5786 = vmatpush.msra.mxu0 %v5425
        %5787 = vmatmul.f32.gmra.mxu0 %v5549
        %v5788 = vpop.f32.mrf.mxu0
        %v5789 = vadd.f32 %v5533, %v5788
        %5790 = vdwg.mxu0
        %5791 = vmatpush.msra.mxu0 0.0
        %5792 = vmatpush.msra.mxu0 0.0
        %5793 = vmatpush.msra.mxu0 0.0
        %5794 = vmatpush.msra.mxu0 0.0
        %5795 = vmatpush.msra.mxu0 0.0
        %5796 = vmatpush.msra.mxu0 0.0
        %5797 = vmatpush.msra.mxu0 0.0
        %5798 = vmatpush.msra.mxu0 0.0
        %5799 = vmatpush.msra.mxu0 %v5517
        %5800 = vmatpush.msra.mxu0 %v5504
        %5801 = vmatpush.msra.mxu0 %v5491
        %5802 = vmatpush.msra.mxu0 %v5478
        %5803 = vmatpush.msra.mxu0 %v5465
        %5804 = vmatpush.msra.mxu0 %v5452
        %5805 = vmatpush.msra.mxu0 %v5439
        %5806 = vmatpush.msra.mxu0 %v5426
        %5807 = vmatmul.f32.gmra.mxu0 %v5549
        %v5808 = vpop.f32.mrf.mxu0
        %v5809 = vadd.f32 %v5534, %v5808
        %5810 = vdwg.mxu0
        %v5811 = vmax.f32 %v5569, 0.0
        %v5812 = vmax.f32 %v5589, 0.0
        %v5813 = vmax.f32 %v5609, 0.0
        %v5814 = vmax.f32 %v5629, 0.0
        %v5815 = vmax.f32 %v5649, 0.0
        %v5816 = vmax.f32 %v5669, 0.0
        %v5817 = vmax.f32 %v5689, 0.0
        %v5818 = vmax.f32 %v5709, 0.0
        %v5819 = vmax.f32 %v5729, 0.0
        %v5820 = vmax.f32 %v5749, 0.0
        %v5821 = vmax.f32 %v5769, 0.0
        %v5822 = vmax.f32 %v5789, 0.0
        %v5823 = vmax.f32 %v5809, 0.0
        %v5837 = vrot.slane %v5812, 7
        %v5838 = vrot.slane %v5813, 6
        %v5839 = vrot.slane %v5814, 5
        %v5840 = vrot.slane %v5815, 4
        %v5841 = vrot.slane %v5816, 3
        %v5842 = vrot.slane %v5817, 2
        %v5843 = vrot.slane %v5818, 1
        %v5844 = vrot.slane %v5820, 7
        %v5845 = vrot.slane %v5821, 6
        %v5846 = vrot.slane %v5822, 5
        %v5847 = vrot.slane %v5823, 4
        %vm5848 = vcmask 1040384
        %v5849 = vsel %vm5848, %v5811, %v5837
        %vm5850 = vcmask 1042434
        %v5851 = vsel %vm5850, %v5838, %v5839
        %vm5852 = vcmask 1041408
        %v5853 = vsel %vm5852, %v5849, %v5851
        %vm5854 = vcmask 1044484
        %v5855 = vsel %vm5854, %v5840, %v5841
        %vm5856 = vcmask 1046534
        %v5857 = vsel %vm5856, %v5842, %v5843
        %vm5858 = vcmask 1045508
        %v5859 = vsel %vm5858, %v5855, %v5857
        %vm5860 = vcmask 1043456
        %v5861 = vsel %vm5860, %v5853, %v5859
        %v5862 = vsel %vm5848, %v5819, %v5844
        %v5863 = vsel %vm5852, %v5862, %v5845
        %vm5864 = vcmask 1043459
        %v5865 = vsel %vm5864, %v5846, %v5847
        %v5866 = vsel %vm485, %v5863, %v5865
        %5869 = vst [vmem:[%s428] sm:$0xff] %v5861
        %v5870 = vlaneseq
        %vm5871 = vcmp.ge.s32.totalorder %v5870, 0
        %vm5872 = vcmp.lt.s32.totalorder %v5870, 544
        %vm5873 = vmand %vm5871, %vm5872
        %5874 = vst.msk [vmem:[%s428 + $0x8] sm:$0x1f] %vm5873, %v5866
        %s5875 = sand.u32 %s251, 1
        %s5876 = scalar_lea.sflag [#allocation4], %s5875
        %s5877 = sand.u32 %s251, 1
        %s5878 = scalar_lea.vmem [#allocation7], %s5877
        %p5879 = scmp.lt.s32.totalorder %s28, 1
        %s5880 = scalar_select %p5879, %s28, 1
        %s5881 = smul.addr %s5880, 13
        %s5882 = scalar_lea.vmem %s11, %s5881
        // Predicated region
        $region69: #{autoencoder_vgg1_forward.2} parent=59 // pred_check
          %p5883 = pneg %p261
        $region70: #{autoencoder_vgg1_forward.2} parent=59 // pred_check_branch
          %5885 = sbr.rel (%p5883) target = $region72
        $region71: #{autoencoder_vgg1_forward.2} parent=59 // pred_region
          %5887 = vsyncadd %s5876, 0
          %s5888 = scalar_lea.hbm %s10, %s28
          %s5890 = sshll.u32 %s5878, 4
          %s5891 = int_to_ptr.vmem [resolvable:$true] %s5890
          %s5892 = sshll.u32 %s5888, 4
          %s5893 = int_to_ptr.hbm [resolvable:$true] %s5892
          %5895 = dma.vmem_to_hbm [thread:$0]  %s5891, 16, %s5893, %s5876
        $region72: #{autoencoder_vgg1_forward.2} parent=59 // pred_fallthru
          _
        // Predicated region
        $region73: #{autoencoder_vgg1_forward.2} parent=59 // pred_check
          %p5896 = pneg %p287
        $region74: #{autoencoder_vgg1_forward.2} parent=59 // pred_check_branch
          %5898 = sbr.rel (%p5896) target = $region76
        $region75: #{autoencoder_vgg1_forward.2} parent=59 // pred_region
          _
        $region76: #{autoencoder_vgg1_forward.2} parent=59 // pred_fallthru
          _
      $region60: #{autoencoder_vgg1_forward.2} parent=5 // pred_fallthru
        _
      %p5899 = scmp.le.s32.totalorder 2, %s23
      // Predicated region
      $region77: #{autoencoder_vgg1_forward.2} parent=5 // pred_check
        %p5900 = pneg %p5899
      $region78: #{autoencoder_vgg1_forward.2} parent=5 // pred_check_branch
        %5902 = sbr.rel (%p5900) target = $region80
      $region79: #{autoencoder_vgg1_forward.2} parent=5 // pred_region
        %s5903 = ssub.s32 %s23, 2
        // Predicated region
        $region81: #{autoencoder_vgg1_forward.2} parent=79 // pred_check
          %p5904 = pneg %p267
        $region82: #{autoencoder_vgg1_forward.2} parent=79 // pred_check_branch
          %5906 = sbr.rel (%p5904) target = $region84
        $region83: #{autoencoder_vgg1_forward.2} parent=79 // pred_region
          %s5907 = sand.u32 %s252, 1
          %s5908 = scalar_lea.sflag [#allocation4], %s5907
          %s5909 = sand.u32 %s252, 1
          %s5910 = scalar_lea.vmem [#allocation7], %s5909
          %5912 = dma.done %s5908, 16
        $region84: #{autoencoder_vgg1_forward.2} parent=79 // pred_fallthru
          _
        // Predicated region
        $region85: #{autoencoder_vgg1_forward.2} parent=79 // pred_check
          %p5913 = pneg %p293
        $region86: #{autoencoder_vgg1_forward.2} parent=79 // pred_check_branch
          %5915 = sbr.rel (%p5913) target = $region88
        $region87: #{autoencoder_vgg1_forward.2} parent=79 // pred_region
          %p5916 = scmp.lt.s32.totalorder %s29, 1
          %s5917 = scalar_select %p5916, %s29, 1
          %s5918 = smul.addr %s5917, 13
          %s5919 = scalar_lea.vmem %s11, %s5918
        $region88: #{autoencoder_vgg1_forward.2} parent=79 // pred_fallthru
          _
      $region80: #{autoencoder_vgg1_forward.2} parent=5 // pred_fallthru
        _
    $region6: #{autoencoder_vgg1_forward.2} parent=1 // loop_footer
      %s27 = sadd.s32 1, %s23
    $region7: #{autoencoder_vgg1_forward.2} parent=1 // loop_footer_branch
      %22 = sbr.rel target = $region3
    $region8: #{autoencoder_vgg1_forward.2} parent=1 // loop_exit
      _
    %5920 = vsyncpa [#allocation3], 1
    %s5921 = scalar_lea.sflag [#allocation3], 1
    %5922 = vsyncpa %s5921, 1
    %5923 = vsyncpa [#allocation6], 1
    %5924 = vsyncpa [#allocation4], 1
    %s5925 = scalar_lea.sflag [#allocation4], 1
    %5926 = vsyncpa %s5925, 1

</llo_original>
